<compile_context>
chip_gen: v5e
topology: v5e:2x2
jax: 0.10.0
libtpu: 0.0.40
codegen_flags: <defaults>
</compile_context>

<pallas_src>
import math
from functools import partial

import jax
import jax.numpy as jnp
from jax import lax
from jax.experimental import pallas as pl
from jax.experimental.pallas import tpu as pltpu

_INV_SQRT2 = 1.0 / math.sqrt(2.0)
_LN_EPS = 1e-5
# Safe on every generation (>= v5e's 16 MiB scoped default, <= v7x's 64 MiB physical VMEM).
# TODO(synk): at realistic d_model (512+) raise this on v6e (128 MiB physical) and tile d_ff /
#             use pl.Buffered(1) on the constant-index blocks for v7x's 64 MiB budget.
_VMEM_LIMIT_BYTES = 32 * 1024 * 1024


# --------------------- in-kernel helpers (all values live in VMEM / vregs) ---------------------

def _layernorm(x, g, b):
    mu = jnp.mean(x, axis=-1, keepdims=True)
    var = jnp.mean(jnp.square(x - mu), axis=-1, keepdims=True)
    return (x - mu) * lax.rsqrt(var + _LN_EPS) * g + b


def _gelu(x):
    # exact erf-based GELU, matching torch.nn.GELU() default
    return 0.5 * x * (1.0 + lax.erf(x * _INV_SQRT2))


def _attention(q, k, v, w_o, b_o, n_heads, scale):
    """Multi-head attention core for one batch element.

    q: (Sq, D), k/v: (Skv, D) already projected.  Heads are split from the activations with
    static lane slices; the output projection accumulates per head against row-slices of the
    full (D, D) W_o (== concat(ctx_heads) @ W_o, but every matmul result stays D lanes wide).
    """
    Sq, D = q.shape
    dh = D // n_heads
    out = jnp.zeros((Sq, D), jnp.float32)
    for h in range(n_heads):                                    # static unroll over heads
        lo, hi = h * dh, (h + 1) * dh
        qh, kh, vh = q[:, lo:hi], k[:, lo:hi], v[:, lo:hi]
        s = lax.dot_general(qh, kh, (((1,), (1,)), ((), ())),
                            preferred_element_type=jnp.float32) * scale
        s = s - jnp.max(s, axis=-1, keepdims=True)
        p = jnp.exp(s)
        p = p / jnp.sum(p, axis=-1, keepdims=True)              # exact divide (parity)
        ctx = jnp.dot(p, vh, preferred_element_type=jnp.float32)            # (Sq, dh)
        out = out + jnp.dot(ctx, w_o[lo:hi, :], preferred_element_type=jnp.float32)
    return out + b_o


def _ffn(x, w1_ref, b1_ref, w2_ref, b2_ref):
    h = jnp.dot(x, w1_ref[0], preferred_element_type=jnp.float32) + b1_ref[0]
    h = _gelu(h)
    return jnp.dot(h, w2_ref[0], preferred_element_type=jnp.float32) + b2_ref[0]


# ----------------------------- fused stack kernels (one call per stack) -----------------------------

def _encoder_stack_kernel(x_ref,
                          ln1g_ref, ln1b_ref, wqkv_ref, bqkv_ref, wo_ref, bo_ref,
                          ln2g_ref, ln2b_ref, w1_ref, b1_ref, w2_ref, b2_ref,
                          o_ref, act_sc, *, n_heads, scale):
    l = pl.program_id(1)

    @pl.when(l == 0)
    def _():                                    # load the embedded input once per batch element
        act_sc[...] = x_ref[0]

    x = act_sc[...]                             # (S, D), resident across the layer axis
    D = x.shape[1]

    # pre-norm self-attention with fused QKV projection (lane-dense (S, 3D) result)
    xn = _layernorm(x, ln1g_ref[0], ln1b_ref[0])
    qkv = jnp.dot(xn, wqkv_ref[0], preferred_element_type=jnp.float32) + bqkv_ref[0]
    q, k, v = qkv[:, :D], qkv[:, D:2 * D], qkv[:, 2 * D:]
    x1 = _attention(q, k, v, wo_ref[0], bo_ref[0], n_heads, scale) + x

    # pre-norm FFN
    xn2 = _layernorm(x1, ln2g_ref[0], ln2b_ref[0])
    y = _ffn(xn2, w1_ref, b1_ref, w2_ref, b2_ref) + x1

    act_sc[...] = y

    @pl.when(l == pl.num_programs(1) - 1)
    def _():
        o_ref[0] = y


def _decoder_stack_kernel(tgt_ref, mem_ref,
                          ln1g_ref, ln1b_ref, wq_ref, bq_ref, wkv_ref, bkv_ref, wo_ref, bo_ref,
                          ln2g_ref, ln2b_ref, wih_ref, whh_ref, bl_ref,
                          w1_ref, b1_ref, w2_ref, b2_ref,
                          o_ref, act_sc, gx_sc, hseq_sc, *, n_heads, scale):
    l = pl.program_id(1)

    @pl.when(l == 0)
    def _():
        act_sc[...] = tgt_ref[0]

    tgt = act_sc[...]                           # (S, D), resident across the layer axis
    mem = mem_ref[0]                            # (Skv, D), resident too (constant block index)
    S, D = tgt.shape

    # cross-attention: q from norm1(tgt), fused K/V projection of the raw encoder memory
    xn = _layernorm(tgt, ln1g_ref[0], ln1b_ref[0])
    q = jnp.dot(xn, wq_ref[0], preferred_element_type=jnp.float32) + bq_ref[0]
    kv = jnp.dot(mem, wkv_ref[0], preferred_element_type=jnp.float32) + bkv_ref[0]
    k, v = kv[:, :D], kv[:, D:]
    tgt_in = _attention(q, k, v, wo_ref[0], bo_ref[0], n_heads, scale) + tgt

    # LSTM (hidden size == D) on norm2(tgt_in), zero initial state.
    # Input projection is hoisted out of the recurrence as ONE (S, D) @ (D, 4D) matmul and
    # staged into a VMEM scratch; the serial loop does a single h @ W_hh_all per step.
    xn2 = _layernorm(tgt_in, ln2g_ref[0], ln2b_ref[0])
    gx_sc[...] = jnp.dot(xn2, wih_ref[0], preferred_element_type=jnp.float32) + bl_ref[0]
    whh = whh_ref[0]                            # (D, 4D), gate order [i | f | g | o]
    h = jnp.zeros((1, D), jnp.float32)
    c = jnp.zeros((1, D), jnp.float32)
    for t in range(S):                          # fully unrolled, serial recurrence
        gates = gx_sc[t:t + 1, :] + jnp.dot(h, whh, preferred_element_type=jnp.float32)
        i_g = jax.nn.sigmoid(gates[:, 0 * D:1 * D])
        f_g = jax.nn.sigmoid(gates[:, 1 * D:2 * D])
        g_g = jnp.tanh(gates[:, 2 * D:3 * D])
        o_g = jax.nn.sigmoid(gates[:, 3 * D:4 * D])
        c = f_g * c + i_g * g_g
        h = o_g * jnp.tanh(c)
        hseq_sc[t:t + 1, :] = h
    tgt_out = hseq_sc[...] + tgt_in

    # FFN applied to the un-normed residual stream (norm3 in the PyTorch module is unused)
    y = _ffn(tgt_out, w1_ref, b1_ref, w2_ref, b2_ref) + tgt_out

    act_sc[...] = y

    @pl.when(l == pl.num_programs(1) - 1)
    def _():
        o_ref[0] = y


def _vocab_kernel(x_ref, w_ref, b_ref, o_ref):
    o_ref[...] = (jnp.dot(x_ref[...], w_ref[...], preferred_element_type=jnp.float32)
                  + b_ref[...])


# ----------------------------- stack wrappers (one pallas_call per stack) -----------------------------

def _weight_spec(a):
    nd = a.ndim
    return pl.BlockSpec((1,) + a.shape[1:],
                        lambda b, l, _nd=nd: (l,) + (0,) * (_nd - 1))


def encoder_stack_forward(x, ep, n_heads):
    B, S, D = x.shape
    L = ep["w_qkv"].shape[0]
    scale = 1.0 / math.sqrt(D // n_heads)

    w_args = (ep["ln1_g"], ep["ln1_b"], ep["w_qkv"], ep["b_qkv"], ep["w_o"], ep["b_o"],
              ep["ln2_g"], ep["ln2_b"], ep["w1"], ep["b1"], ep["w2"], ep["b2"])

    return pl.pallas_call(
        partial(_encoder_stack_kernel, n_heads=n_heads, scale=scale),
        out_shape=jax.ShapeDtypeStruct((B, S, D), jnp.float32),
        grid=(B, L),
        in_specs=([pl.BlockSpec((1, S, D), lambda b, l: (b, 0, 0))]
                  + [_weight_spec(a) for a in w_args]),
        out_specs=pl.BlockSpec((1, S, D), lambda b, l: (b, 0, 0)),
        scratch_shapes=[pltpu.VMEM((S, D), jnp.float32)],        # resident activation
        compiler_params=pltpu.CompilerParams(
            dimension_semantics=("parallel", "arbitrary"),
            vmem_limit_bytes=_VMEM_LIMIT_BYTES),
    )(x, *w_args)


def decoder_stack_forward(tgt, memory, dp, n_heads):
    B, S, D = tgt.shape
    Skv = memory.shape[1]
    L = dp["w_q"].shape[0]
    scale = 1.0 / math.sqrt(D // n_heads)

    w_args = (dp["ln1_g"], dp["ln1_b"], dp["w_q"], dp["b_q"], dp["w_kv"], dp["b_kv"],
              dp["w_o"], dp["b_o"], dp["ln2_g"], dp["ln2_b"],
              dp["w_ih"], dp["w_hh"], dp["b_lstm"],
              dp["w1"], dp["b1"], dp["w2"], dp["b2"])

    return pl.pallas_call(
        partial(_decoder_stack_kernel, n_heads=n_heads, scale=scale),
        out_shape=jax.ShapeDtypeStruct((B, S, D), jnp.float32),
        grid=(B, L),
        in_specs=([pl.BlockSpec((1, S, D), lambda b, l: (b, 0, 0)),
                   pl.BlockSpec((1, Skv, D), lambda b, l: (b, 0, 0))]
                  + [_weight_spec(a) for a in w_args]),
        out_specs=pl.BlockSpec((1, S, D), lambda b, l: (b, 0, 0)),
        scratch_shapes=[pltpu.VMEM((S, D), jnp.float32),         # resident activation
                        pltpu.VMEM((S, 4 * D), jnp.float32),     # hoisted LSTM gate inputs
                        pltpu.VMEM((S, D), jnp.float32)],        # LSTM hidden-state rows
        compiler_params=pltpu.CompilerParams(
            dimension_semantics=("parallel", "arbitrary"),
            vmem_limit_bytes=_VMEM_LIMIT_BYTES),
    )(tgt, memory, *w_args)


def vocab_projection(x2d, w, b):
    """Column-tiled output projection; x stays resident, lane-dense wide column tiles."""
    M, D = x2d.shape
    V = w.shape[1]
    Vp = ((V + 127) // 128) * 128
    if Vp != V:
        # TODO(synk): for a big non-128-multiple vocab, fold this pad into prepare_params.
        w = jnp.pad(w, ((0, 0), (0, Vp - V)))
        b = jnp.pad(b, ((0, 0), (0, Vp - V)))
    tn = next(t for t in (1024, 512, 256, 128) if Vp % t == 0)   # widest lane-dense tile
    out = pl.pallas_call(
        _vocab_kernel,
        out_shape=jax.ShapeDtypeStruct((M, Vp), jnp.float32),
        grid=(Vp // tn,),
        in_specs=[
            pl.BlockSpec((M, D), lambda j: (0, 0)),              # x resident across columns
            pl.BlockSpec((D, tn), lambda j: (0, j)),
            pl.BlockSpec((1, tn), lambda j: (0, j)),
        ],
        out_specs=pl.BlockSpec((M, tn), lambda j: (0, j)),
        compiler_params=pltpu.CompilerParams(
            dimension_semantics=("parallel",),
            vmem_limit_bytes=_VMEM_LIMIT_BYTES),
    )(x2d, w, b)
    return out[:, :V] if Vp != V else out


# ----------------------------- full model forward -----------------------------

@partial(jax.jit, static_argnums=(3,))
def seq2seq_forward(prep, src_ids, tgt_ids, n_heads):
    # TODO(synk): nn.Embedding gather stays in plain JAX (tiny table; not a hot path).
    src = jnp.take(prep["embedding"], src_ids, axis=0)
    tgt = jnp.take(prep["embedding"], tgt_ids, axis=0)

    mem = encoder_stack_forward(src, prep["encoder"], n_heads)
    out = decoder_stack_forward(tgt, mem, prep["decoder"], n_heads)

    B, S, D = out.shape
    logits = vocab_projection(out.reshape(B * S, D),
                              prep["hid2vocab"]["w"], prep["hid2vocab"]["b"])
    return logits.reshape(B, S, -1)


# ----------------------------- parameter init + one-time kernel-layout prep -----------------------------

def init_params(key, *, d_model, d_ff, vocab, n_enc, n_dec):
    """Torch-like parameter layout (separate q/k/v/o, separate LSTM biases)."""
    keys = iter(jax.random.split(key, 1024))

    def w(shape, scale=0.02):
        return scale * jax.random.normal(next(keys), shape, jnp.float32)

    def dense(k_in, k_out):
        return dict(w=w((k_in, k_out)), b=jnp.zeros((k_out,), jnp.float32))

    def mha_p():
        return dict(q=dense(d_model, d_model), k=dense(d_model, d_model),
                    v=dense(d_model, d_model), o=dense(d_model, d_model))

    def ln_p():
        return dict(g=jnp.ones((d_model,), jnp.float32),
                    b=jnp.zeros((d_model,), jnp.float32))

    def ffn_p():
        return dict(fc1=dense(d_model, d_ff), fc2=dense(d_ff, d_model))

    def enc_layer():
        return dict(ln1=ln_p(), ln2=ln_p(), mha=mha_p(), ffn=ffn_p())

    def dec_layer():
        # torch nn.LSTM layout port: w_ih = weight_ih_l0.T, w_hh = weight_hh_l0.T (gate order i,f,g,o)
        return dict(ln1=ln_p(), ln2=ln_p(), mha=mha_p(), ffn=ffn_p(),
                    lstm=dict(w_ih=w((d_model, 4 * d_model)),
                              w_hh=w((d_model, 4 * d_model)),
                              b_ih=jnp.zeros((4 * d_model,), jnp.float32),
                              b_hh=jnp.zeros((4 * d_model,), jnp.float32)))

    return dict(
        embedding=w((vocab, d_model)),
        hid2vocab=dense(d_model, vocab),
        encoder=[enc_layer() for _ in range(n_enc)],
        decoder=[dec_layer() for _ in range(n_dec)],
    )


def prepare_params(params):
    """One-time weight re-layout, run OUTSIDE the jitted forward (review: hoist re-layouts).

    Fuses Q/K/V -> W_qkv (encoder), K/V -> W_kv (decoder), fuses the four LSTM gates into
    (D, 4D) slabs with a single bias (b = b_ih + b_hh), reshapes biases to (1, N), and stacks
    per-layer weights along a leading layer axis so each stack is a single pallas_call.
    """
    D = params["embedding"].shape[1]

    def stk(fn, layers):
        return jnp.stack([fn(p) for p in layers], axis=0)

    def common(layers):
        return dict(
            ln1_g=stk(lambda p: p["ln1"]["g"].reshape(1, D), layers),
            ln1_b=stk(lambda p: p["ln1"]["b"].reshape(1, D), layers),
            ln2_g=stk(lambda p: p["ln2"]["g"].reshape(1, D), layers),
            ln2_b=stk(lambda p: p["ln2"]["b"].reshape(1, D), layers),
            w_o=stk(lambda p: p["mha"]["o"]["w"], layers),
            b_o=stk(lambda p: p["mha"]["o"]["b"].reshape(1, D), layers),
            w1=stk(lambda p: p["ffn"]["fc1"]["w"], layers),
            b1=stk(lambda p: p["ffn"]["fc1"]["b"].reshape(1, -1), layers),
            w2=stk(lambda p: p["ffn"]["fc2"]["w"], layers),
            b2=stk(lambda p: p["ffn"]["fc2"]["b"].reshape(1, D), layers),
        )

    enc_layers = params["encoder"]
    dec_layers = params["decoder"]

    enc = common(enc_layers)
    enc.update(
        w_qkv=stk(lambda p: jnp.concatenate(
            [p["mha"]["q"]["w"], p["mha"]["k"]["w"], p["mha"]["v"]["w"]], axis=1), enc_layers),
        b_qkv=stk(lambda p: jnp.concatenate(
            [p["mha"]["q"]["b"], p["mha"]["k"]["b"], p["mha"]["v"]["b"]]).reshape(1, 3 * D),
            enc_layers),
    )

    dec = common(dec_layers)
    dec.update(
        w_q=stk(lambda p: p["mha"]["q"]["w"], dec_layers),
        b_q=stk(lambda p: p["mha"]["q"]["b"].reshape(1, D), dec_layers),
        w_kv=stk(lambda p: jnp.concatenate(
            [p["mha"]["k"]["w"], p["mha"]["v"]["w"]], axis=1), dec_layers),
        b_kv=stk(lambda p: jnp.concatenate(
            [p["mha"]["k"]["b"], p["mha"]["v"]["b"]]).reshape(1, 2 * D), dec_layers),
        w_ih=stk(lambda p: p["lstm"]["w_ih"], dec_layers),
        w_hh=stk(lambda p: p["lstm"]["w_hh"], dec_layers),
        b_lstm=stk(lambda p: (p["lstm"]["b_ih"] + p["lstm"]["b_hh"]).reshape(1, 4 * D),
                   dec_layers),
    )

    return dict(
        embedding=params["embedding"],
        hid2vocab=dict(w=params["hid2vocab"]["w"],
                       b=params["hid2vocab"]["b"].reshape(1, -1)),
        encoder=enc,
        decoder=dec,
    )


# ----------------------------- main -----------------------------

if __name__ == "__main__":
    # small config consistent with Seq2Seq(__init__); d_model=128 keeps every tile lane-dense
    D_MODEL, N_HEADS, D_FF, VOCAB = 128, 4, 256, 256
    N_ENC, N_DEC = 2, 2
    B, S_SRC, S_TGT = 2, 8, 8

    key = jax.random.PRNGKey(0)
    k_params, k_src, k_tgt = jax.random.split(key, 3)

    params = init_params(k_params, d_model=D_MODEL, d_ff=D_FF, vocab=VOCAB,
                         n_enc=N_ENC, n_dec=N_DEC)
    prep = prepare_params(params)            # one-time re-layout, outside the jitted forward

    src_ids = jax.random.randint(k_src, (B, S_SRC), 0, VOCAB, dtype=jnp.int32)
    tgt_ids = jax.random.randint(k_tgt, (B, S_TGT), 0, VOCAB, dtype=jnp.int32)

    logits = seq2seq_forward(prep, src_ids, tgt_ids, N_HEADS)
    logits = jax.block_until_ready(logits)

    assert logits.shape == (B, S_TGT, VOCAB), logits.shape
    assert bool(jnp.all(jnp.isfinite(logits)))
    print("KERNEL_OK")
</pallas_src>

<mosaic_0001>
module attributes {stable_mosaic.version = 11 : i64} {
  func.func @_encoder_stack_kernel(%arg0: i32, %arg1: i32, %arg2: memref<1x8x128xf32, #tpu.memory_space<vmem>>, %arg3: memref<1x1x128xf32, #tpu.memory_space<vmem>>, %arg4: memref<1x1x128xf32, #tpu.memory_space<vmem>>, %arg5: memref<1x128x384xf32, #tpu.memory_space<vmem>>, %arg6: memref<1x1x384xf32, #tpu.memory_space<vmem>>, %arg7: memref<1x128x128xf32, #tpu.memory_space<vmem>>, %arg8: memref<1x1x128xf32, #tpu.memory_space<vmem>>, %arg9: memref<1x1x128xf32, #tpu.memory_space<vmem>>, %arg10: memref<1x1x128xf32, #tpu.memory_space<vmem>>, %arg11: memref<1x128x256xf32, #tpu.memory_space<vmem>>, %arg12: memref<1x1x256xf32, #tpu.memory_space<vmem>>, %arg13: memref<1x256x128xf32, #tpu.memory_space<vmem>>, %arg14: memref<1x1x128xf32, #tpu.memory_space<vmem>>, %arg15: memref<1x8x128xf32, #tpu.memory_space<vmem>>, %arg16: memref<8x128xf32, #tpu.memory_space<vmem>>) attributes {dimension_semantics = [#tpu.dimension_semantics<parallel>, #tpu.dimension_semantics<arbitrary>], iteration_bounds = array<i64: 2, 2>, scalar_prefetch = 0 : i64, scratch_operands = 1 : i64, tpu.core_type = #tpu.core_type<tc>, window_params = [{transform_indices = @transform_0, window_bounds = array<i64: 1, 8, 128>}, {transform_indices = @transform_1, window_bounds = array<i64: 1, 1, 128>}, {transform_indices = @transform_2, window_bounds = array<i64: 1, 1, 128>}, {transform_indices = @transform_3, window_bounds = array<i64: 1, 128, 384>}, {transform_indices = @transform_4, window_bounds = array<i64: 1, 1, 384>}, {transform_indices = @transform_5, window_bounds = array<i64: 1, 128, 128>}, {transform_indices = @transform_6, window_bounds = array<i64: 1, 1, 128>}, {transform_indices = @transform_7, window_bounds = array<i64: 1, 1, 128>}, {transform_indices = @transform_8, window_bounds = array<i64: 1, 1, 128>}, {transform_indices = @transform_9, window_bounds = array<i64: 1, 128, 256>}, {transform_indices = @transform_10, window_bounds = array<i64: 1, 1, 256>}, {transform_indices = @transform_11, window_bounds = array<i64: 1, 256, 128>}, {transform_indices = @transform_12, window_bounds = array<i64: 1, 1, 128>}, {transform_indices = @transform_13, window_bounds = array<i64: 1, 8, 128>}]} {
    %c0_i32 = arith.constant 0 : i32
    %0 = arith.cmpi eq, %arg1, %c0_i32 : i32
    %1 = arith.extui %0 : i1 to i32
    %c0_i32_0 = arith.constant 0 : i32
    %2 = arith.cmpi ne, %1, %c0_i32_0 : i32
    scf.if %2 {
      %c0_81 = arith.constant 0 : index
      %c0_82 = arith.constant 0 : index
      %c0_83 = arith.constant 0 : index
      %177 = vector.load %arg2[%c0_81, %c0_82, %c0_83] : memref<1x8x128xf32, #tpu.memory_space<vmem>>, vector<1x8x128xf32>
      %178 = vector.shape_cast %177 : vector<1x8x128xf32> to vector<8x128xf32>
      %c0_84 = arith.constant 0 : index
      %c0_85 = arith.constant 0 : index
      %179 = vector.load %arg16[%c0_84, %c0_85] : memref<8x128xf32, #tpu.memory_space<vmem>>, vector<8x128xf32>
      tpu.vector_store %arg16[%c0_84, %c0_85], %178 {strides = array<i32>} : memref<8x128xf32, #tpu.memory_space<vmem>>, vector<8x128xf32>,
    } else {
    }
    %c0 = arith.constant 0 : index
    %c0_1 = arith.constant 0 : index
    %3 = vector.load %arg16[%c0, %c0_1] : memref<8x128xf32, #tpu.memory_space<vmem>>, vector<8x128xf32>
    %c0_2 = arith.constant 0 : index
    %c0_3 = arith.constant 0 : index
    %c0_4 = arith.constant 0 : index
    %4 = vector.load %arg3[%c0_2, %c0_3, %c0_4] : memref<1x1x128xf32, #tpu.memory_space<vmem>>, vector<1x1x128xf32>
    %5 = vector.shape_cast %4 : vector<1x1x128xf32> to vector<1x128xf32>
    %c0_5 = arith.constant 0 : index
    %c0_6 = arith.constant 0 : index
    %c0_7 = arith.constant 0 : index
    %6 = vector.load %arg4[%c0_5, %c0_6, %c0_7] : memref<1x1x128xf32, #tpu.memory_space<vmem>>, vector<1x1x128xf32>
    %7 = vector.shape_cast %6 : vector<1x1x128xf32> to vector<1x128xf32>
    %cst = arith.constant dense<0.000000e+00> : vector<8xf32>
    %8 = vector.multi_reduction <add>, %3, %cst [1] : vector<8x128xf32> to vector<8xf32>
    %9 = vector.shape_cast %8 : vector<8xf32> to vector<8x1xf32>
    %cst_8 = arith.constant 1.280000e+02 : f32
    %10 = vector.broadcast %cst_8 : f32 to vector<8x1xf32>
    %11 = arith.divf %9, %10 : vector<8x1xf32>
    %12 = vector.broadcast %11 : vector<8x1xf32> to vector<8x128xf32>
    %13 = arith.subf %3, %12 : vector<8x128xf32>
    %14 = arith.mulf %13, %13 : vector<8x128xf32>
    %cst_9 = arith.constant dense<0.000000e+00> : vector<8xf32>
    %15 = vector.multi_reduction <add>, %14, %cst_9 [1] : vector<8x128xf32> to vector<8xf32>
    %16 = vector.shape_cast %15 : vector<8xf32> to vector<8x1xf32>
    %cst_10 = arith.constant 1.280000e+02 : f32
    %17 = vector.broadcast %cst_10 : f32 to vector<8x1xf32>
    %18 = arith.divf %16, %17 : vector<8x1xf32>
    %19 = vector.broadcast %11 : vector<8x1xf32> to vector<8x128xf32>
    %20 = arith.subf %3, %19 : vector<8x128xf32>
    %cst_11 = arith.constant 9.99999974E-6 : f32
    %21 = vector.broadcast %cst_11 : f32 to vector<8x1xf32>
    %22 = arith.addf %18, %21 : vector<8x1xf32>
    %23 = math.rsqrt %22 : vector<8x1xf32>
    %24 = vector.broadcast %23 : vector<8x1xf32> to vector<8x128xf32>
    %25 = arith.mulf %20, %24 : vector<8x128xf32>
    %26 = vector.broadcast %5 : vector<1x128xf32> to vector<8x128xf32>
    %27 = arith.mulf %25, %26 : vector<8x128xf32>
    %28 = vector.broadcast %7 : vector<1x128xf32> to vector<8x128xf32>
    %29 = arith.addf %27, %28 : vector<8x128xf32>
    %c0_12 = arith.constant 0 : index
    %c0_13 = arith.constant 0 : index
    %c0_14 = arith.constant 0 : index
    %30 = vector.load %arg5[%c0_12, %c0_13, %c0_14] : memref<1x128x384xf32, #tpu.memory_space<vmem>>, vector<1x128x384xf32>
    %31 = vector.shape_cast %30 : vector<1x128x384xf32> to vector<128x384xf32>
    %cst_15 = arith.constant dense<0.000000e+00> : vector<8x384xf32>
    %32 = tpu.matmul %29, %31, %cst_15 {dimension_numbers = #tpu.dot_dimension_numbers<[1], [0], [0], [1], [0, 0, 1, 1], [], []>} : vector<8x128xf32>, vector<128x384xf32>, vector<8x384xf32> -> vector<8x384xf32>
    %c0_16 = arith.constant 0 : index
    %c0_17 = arith.constant 0 : index
    %c0_18 = arith.constant 0 : index
    %33 = vector.load %arg6[%c0_16, %c0_17, %c0_18] : memref<1x1x384xf32, #tpu.memory_space<vmem>>, vector<1x1x384xf32>
    %34 = vector.shape_cast %33 : vector<1x1x384xf32> to vector<1x384xf32>
    %35 = vector.broadcast %34 : vector<1x384xf32> to vector<8x384xf32>
    %36 = arith.addf %32, %35 : vector<8x384xf32>
    %37 = vector.extract_strided_slice %36 {offsets = [0, 0], sizes = [8, 128], strides = [1, 1]} : vector<8x384xf32> to vector<8x128xf32>
    %38 = vector.extract_strided_slice %36 {offsets = [0, 128], sizes = [8, 128], strides = [1, 1]} : vector<8x384xf32> to vector<8x128xf32>
    %39 = vector.extract_strided_slice %36 {offsets = [0, 256], sizes = [8, 128], strides = [1, 1]} : vector<8x384xf32> to vector<8x128xf32>
    %c0_19 = arith.constant 0 : index
    %c0_20 = arith.constant 0 : index
    %c0_21 = arith.constant 0 : index
    %40 = vector.load %arg7[%c0_19, %c0_20, %c0_21] : memref<1x128x128xf32, #tpu.memory_space<vmem>>, vector<1x128x128xf32>
    %41 = vector.shape_cast %40 : vector<1x128x128xf32> to vector<128x128xf32>
    %c0_22 = arith.constant 0 : index
    %c0_23 = arith.constant 0 : index
    %c0_24 = arith.constant 0 : index
    %42 = vector.load %arg8[%c0_22, %c0_23, %c0_24] : memref<1x1x128xf32, #tpu.memory_space<vmem>>, vector<1x1x128xf32>
    %43 = vector.shape_cast %42 : vector<1x1x128xf32> to vector<1x128xf32>
    %cst_25 = arith.constant 0.000000e+00 : f32
    %44 = vector.broadcast %cst_25 : f32 to vector<8x128xf32>
    %45 = vector.extract_strided_slice %37 {offsets = [0, 0], sizes = [8, 32], strides = [1, 1]} : vector<8x128xf32> to vector<8x32xf32>
    %46 = vector.extract_strided_slice %38 {offsets = [0, 0], sizes = [8, 32], strides = [1, 1]} : vector<8x128xf32> to vector<8x32xf32>
    %47 = vector.extract_strided_slice %39 {offsets = [0, 0], sizes = [8, 32], strides = [1, 1]} : vector<8x128xf32> to vector<8x32xf32>
    %cst_26 = arith.constant dense<0.000000e+00> : vector<8x8xf32>
    %48 = tpu.matmul %45, %46, %cst_26 {dimension_numbers = #tpu.dot_dimension_numbers<[1], [1], [0], [0], [0, 0, 1, 0], [], []>} : vector<8x32xf32>, vector<8x32xf32>, vector<8x8xf32> -> vector<8x8xf32>
    %cst_27 = arith.constant 0.176776692 : f32
    %49 = vector.broadcast %cst_27 : f32 to vector<8x8xf32>
    %50 = arith.mulf %48, %49 : vector<8x8xf32>
    %cst_28 = arith.constant dense<0xFF800000> : vector<8xf32>
    %51 = vector.multi_reduction <maximumf>, %50, %cst_28 [1] : vector<8x8xf32> to vector<8xf32>
    %52 = vector.shape_cast %51 : vector<8xf32> to vector<8x1xf32>
    %53 = vector.broadcast %52 : vector<8x1xf32> to vector<8x8xf32>
    %54 = arith.subf %50, %53 : vector<8x8xf32>
    %55 = math.exp %54 : vector<8x8xf32>
    %cst_29 = arith.constant dense<0.000000e+00> : vector<8xf32>
    %56 = vector.multi_reduction <add>, %55, %cst_29 [1] : vector<8x8xf32> to vector<8xf32>
    %57 = vector.shape_cast %56 : vector<8xf32> to vector<8x1xf32>
    %58 = vector.broadcast %57 : vector<8x1xf32> to vector<8x8xf32>
    %59 = arith.divf %55, %58 : vector<8x8xf32>
    %cst_30 = arith.constant dense<0.000000e+00> : vector<8x32xf32>
    %60 = tpu.matmul %59, %47, %cst_30 {dimension_numbers = #tpu.dot_dimension_numbers<[1], [0], [0], [1], [0, 0, 1, 1], [], []>} : vector<8x8xf32>, vector<8x32xf32>, vector<8x32xf32> -> vector<8x32xf32>
    %61 = vector.extract_strided_slice %41 {offsets = [0, 0], sizes = [32, 128], strides = [1, 1]} : vector<128x128xf32> to vector<32x128xf32>
    %cst_31 = arith.constant dense<0.000000e+00> : vector<8x128xf32>
    %62 = tpu.matmul %60, %61, %cst_31 {dimension_numbers = #tpu.dot_dimension_numbers<[1], [0], [0], [1], [0, 0, 1, 1], [], []>} : vector<8x32xf32>, vector<32x128xf32>, vector<8x128xf32> -> vector<8x128xf32>
    %63 = arith.addf %44, %62 : vector<8x128xf32>
    %64 = vector.extract_strided_slice %37 {offsets = [0, 32], sizes = [8, 32], strides = [1, 1]} : vector<8x128xf32> to vector<8x32xf32>
    %65 = vector.extract_strided_slice %38 {offsets = [0, 32], sizes = [8, 32], strides = [1, 1]} : vector<8x128xf32> to vector<8x32xf32>
    %66 = vector.extract_strided_slice %39 {offsets = [0, 32], sizes = [8, 32], strides = [1, 1]} : vector<8x128xf32> to vector<8x32xf32>
    %cst_32 = arith.constant dense<0.000000e+00> : vector<8x8xf32>
    %67 = tpu.matmul %64, %65, %cst_32 {dimension_numbers = #tpu.dot_dimension_numbers<[1], [1], [0], [0], [0, 0, 1, 0], [], []>} : vector<8x32xf32>, vector<8x32xf32>, vector<8x8xf32> -> vector<8x8xf32>
    %cst_33 = arith.constant 0.176776692 : f32
    %68 = vector.broadcast %cst_33 : f32 to vector<8x8xf32>
    %69 = arith.mulf %67, %68 : vector<8x8xf32>
    %cst_34 = arith.constant dense<0xFF800000> : vector<8xf32>
    %70 = vector.multi_reduction <maximumf>, %69, %cst_34 [1] : vector<8x8xf32> to vector<8xf32>
    %71 = vector.shape_cast %70 : vector<8xf32> to vector<8x1xf32>
    %72 = vector.broadcast %71 : vector<8x1xf32> to vector<8x8xf32>
    %73 = arith.subf %69, %72 : vector<8x8xf32>
    %74 = math.exp %73 : vector<8x8xf32>
    %cst_35 = arith.constant dense<0.000000e+00> : vector<8xf32>
    %75 = vector.multi_reduction <add>, %74, %cst_35 [1] : vector<8x8xf32> to vector<8xf32>
    %76 = vector.shape_cast %75 : vector<8xf32> to vector<8x1xf32>
    %77 = vector.broadcast %76 : vector<8x1xf32> to vector<8x8xf32>
    %78 = arith.divf %74, %77 : vector<8x8xf32>
    %cst_36 = arith.constant dense<0.000000e+00> : vector<8x32xf32>
    %79 = tpu.matmul %78, %66, %cst_36 {dimension_numbers = #tpu.dot_dimension_numbers<[1], [0], [0], [1], [0, 0, 1, 1], [], []>} : vector<8x8xf32>, vector<8x32xf32>, vector<8x32xf32> -> vector<8x32xf32>
    %80 = vector.extract_strided_slice %41 {offsets = [32, 0], sizes = [32, 128], strides = [1, 1]} : vector<128x128xf32> to vector<32x128xf32>
    %cst_37 = arith.constant dense<0.000000e+00> : vector<8x128xf32>
    %81 = tpu.matmul %79, %80, %cst_37 {dimension_numbers = #tpu.dot_dimension_numbers<[1], [0], [0], [1], [0, 0, 1, 1], [], []>} : vector<8x32xf32>, vector<32x128xf32>, vector<8x128xf32> -> vector<8x128xf32>
    %82 = arith.addf %63, %81 : vector<8x128xf32>
    %83 = vector.extract_strided_slice %37 {offsets = [0, 64], sizes = [8, 32], strides = [1, 1]} : vector<8x128xf32> to vector<8x32xf32>
    %84 = vector.extract_strided_slice %38 {offsets = [0, 64], sizes = [8, 32], strides = [1, 1]} : vector<8x128xf32> to vector<8x32xf32>
    %85 = vector.extract_strided_slice %39 {offsets = [0, 64], sizes = [8, 32], strides = [1, 1]} : vector<8x128xf32> to vector<8x32xf32>
    %cst_38 = arith.constant dense<0.000000e+00> : vector<8x8xf32>
    %86 = tpu.matmul %83, %84, %cst_38 {dimension_numbers = #tpu.dot_dimension_numbers<[1], [1], [0], [0], [0, 0, 1, 0], [], []>} : vector<8x32xf32>, vector<8x32xf32>, vector<8x8xf32> -> vector<8x8xf32>
    %cst_39 = arith.constant 0.176776692 : f32
    %87 = vector.broadcast %cst_39 : f32 to vector<8x8xf32>
    %88 = arith.mulf %86, %87 : vector<8x8xf32>
    %cst_40 = arith.constant dense<0xFF800000> : vector<8xf32>
    %89 = vector.multi_reduction <maximumf>, %88, %cst_40 [1] : vector<8x8xf32> to vector<8xf32>
    %90 = vector.shape_cast %89 : vector<8xf32> to vector<8x1xf32>
    %91 = vector.broadcast %90 : vector<8x1xf32> to vector<8x8xf32>
    %92 = arith.subf %88, %91 : vector<8x8xf32>
    %93 = math.exp %92 : vector<8x8xf32>
    %cst_41 = arith.constant dense<0.000000e+00> : vector<8xf32>
    %94 = vector.multi_reduction <add>, %93, %cst_41 [1] : vector<8x8xf32> to vector<8xf32>
    %95 = vector.shape_cast %94 : vector<8xf32> to vector<8x1xf32>
    %96 = vector.broadcast %95 : vector<8x1xf32> to vector<8x8xf32>
    %97 = arith.divf %93, %96 : vector<8x8xf32>
    %cst_42 = arith.constant dense<0.000000e+00> : vector<8x32xf32>
    %98 = tpu.matmul %97, %85, %cst_42 {dimension_numbers = #tpu.dot_dimension_numbers<[1], [0], [0], [1], [0, 0, 1, 1], [], []>} : vector<8x8xf32>, vector<8x32xf32>, vector<8x32xf32> -> vector<8x32xf32>
    %99 = vector.extract_strided_slice %41 {offsets = [64, 0], sizes = [32, 128], strides = [1, 1]} : vector<128x128xf32> to vector<32x128xf32>
    %cst_43 = arith.constant dense<0.000000e+00> : vector<8x128xf32>
    %100 = tpu.matmul %98, %99, %cst_43 {dimension_numbers = #tpu.dot_dimension_numbers<[1], [0], [0], [1], [0, 0, 1, 1], [], []>} : vector<8x32xf32>, vector<32x128xf32>, vector<8x128xf32> -> vector<8x128xf32>
    %101 = arith.addf %82, %100 : vector<8x128xf32>
    %102 = vector.extract_strided_slice %37 {offsets = [0, 96], sizes = [8, 32], strides = [1, 1]} : vector<8x128xf32> to vector<8x32xf32>
    %103 = vector.extract_strided_slice %38 {offsets = [0, 96], sizes = [8, 32], strides = [1, 1]} : vector<8x128xf32> to vector<8x32xf32>
    %104 = vector.extract_strided_slice %39 {offsets = [0, 96], sizes = [8, 32], strides = [1, 1]} : vector<8x128xf32> to vector<8x32xf32>
    %cst_44 = arith.constant dense<0.000000e+00> : vector<8x8xf32>
    %105 = tpu.matmul %102, %103, %cst_44 {dimension_numbers = #tpu.dot_dimension_numbers<[1], [1], [0], [0], [0, 0, 1, 0], [], []>} : vector<8x32xf32>, vector<8x32xf32>, vector<8x8xf32> -> vector<8x8xf32>
    %cst_45 = arith.constant 0.176776692 : f32
    %106 = vector.broadcast %cst_45 : f32 to vector<8x8xf32>
    %107 = arith.mulf %105, %106 : vector<8x8xf32>
    %cst_46 = arith.constant dense<0xFF800000> : vector<8xf32>
    %108 = vector.multi_reduction <maximumf>, %107, %cst_46 [1] : vector<8x8xf32> to vector<8xf32>
    %109 = vector.shape_cast %108 : vector<8xf32> to vector<8x1xf32>
    %110 = vector.broadcast %109 : vector<8x1xf32> to vector<8x8xf32>
    %111 = arith.subf %107, %110 : vector<8x8xf32>
    %112 = math.exp %111 : vector<8x8xf32>
    %cst_47 = arith.constant dense<0.000000e+00> : vector<8xf32>
    %113 = vector.multi_reduction <add>, %112, %cst_47 [1] : vector<8x8xf32> to vector<8xf32>
    %114 = vector.shape_cast %113 : vector<8xf32> to vector<8x1xf32>
    %115 = vector.broadcast %114 : vector<8x1xf32> to vector<8x8xf32>
    %116 = arith.divf %112, %115 : vector<8x8xf32>
    %cst_48 = arith.constant dense<0.000000e+00> : vector<8x32xf32>
    %117 = tpu.matmul %116, %104, %cst_48 {dimension_numbers = #tpu.dot_dimension_numbers<[1], [0], [0], [1], [0, 0, 1, 1], [], []>} : vector<8x8xf32>, vector<8x32xf32>, vector<8x32xf32> -> vector<8x32xf32>
    %118 = vector.extract_strided_slice %41 {offsets = [96, 0], sizes = [32, 128], strides = [1, 1]} : vector<128x128xf32> to vector<32x128xf32>
    %cst_49 = arith.constant dense<0.000000e+00> : vector<8x128xf32>
    %119 = tpu.matmul %117, %118, %cst_49 {dimension_numbers = #tpu.dot_dimension_numbers<[1], [0], [0], [1], [0, 0, 1, 1], [], []>} : vector<8x32xf32>, vector<32x128xf32>, vector<8x128xf32> -> vector<8x128xf32>
    %120 = arith.addf %101, %119 : vector<8x128xf32>
    %121 = vector.broadcast %43 : vector<1x128xf32> to vector<8x128xf32>
    %122 = arith.addf %120, %121 : vector<8x128xf32>
    %123 = arith.addf %122, %3 : vector<8x128xf32>
    %c0_50 = arith.constant 0 : index
    %c0_51 = arith.constant 0 : index
    %c0_52 = arith.constant 0 : index
    %124 = vector.load %arg9[%c0_50, %c0_51, %c0_52] : memref<1x1x128xf32, #tpu.memory_space<vmem>>, vector<1x1x128xf32>
    %125 = vector.shape_cast %124 : vector<1x1x128xf32> to vector<1x128xf32>
    %c0_53 = arith.constant 0 : index
    %c0_54 = arith.constant 0 : index
    %c0_55 = arith.constant 0 : index
    %126 = vector.load %arg10[%c0_53, %c0_54, %c0_55] : memref<1x1x128xf32, #tpu.memory_space<vmem>>, vector<1x1x128xf32>
    %127 = vector.shape_cast %126 : vector<1x1x128xf32> to vector<1x128xf32>
    %cst_56 = arith.constant dense<0.000000e+00> : vector<8xf32>
    %128 = vector.multi_reduction <add>, %123, %cst_56 [1] : vector<8x128xf32> to vector<8xf32>
    %129 = vector.shape_cast %128 : vector<8xf32> to vector<8x1xf32>
    %cst_57 = arith.constant 1.280000e+02 : f32
    %130 = vector.broadcast %cst_57 : f32 to vector<8x1xf32>
    %131 = arith.divf %129, %130 : vector<8x1xf32>
    %132 = vector.broadcast %131 : vector<8x1xf32> to vector<8x128xf32>
    %133 = arith.subf %123, %132 : vector<8x128xf32>
    %134 = arith.mulf %133, %133 : vector<8x128xf32>
    %cst_58 = arith.constant dense<0.000000e+00> : vector<8xf32>
    %135 = vector.multi_reduction <add>, %134, %cst_58 [1] : vector<8x128xf32> to vector<8xf32>
    %136 = vector.shape_cast %135 : vector<8xf32> to vector<8x1xf32>
    %cst_59 = arith.constant 1.280000e+02 : f32
    %137 = vector.broadcast %cst_59 : f32 to vector<8x1xf32>
    %138 = arith.divf %136, %137 : vector<8x1xf32>
    %139 = vector.broadcast %131 : vector<8x1xf32> to vector<8x128xf32>
    %140 = arith.subf %123, %139 : vector<8x128xf32>
    %cst_60 = arith.constant 9.99999974E-6 : f32
    %141 = vector.broadcast %cst_60 : f32 to vector<8x1xf32>
    %142 = arith.addf %138, %141 : vector<8x1xf32>
    %143 = math.rsqrt %142 : vector<8x1xf32>
    %144 = vector.broadcast %143 : vector<8x1xf32> to vector<8x128xf32>
    %145 = arith.mulf %140, %144 : vector<8x128xf32>
    %146 = vector.broadcast %125 : vector<1x128xf32> to vector<8x128xf32>
    %147 = arith.mulf %145, %146 : vector<8x128xf32>
    %148 = vector.broadcast %127 : vector<1x128xf32> to vector<8x128xf32>
    %149 = arith.addf %147, %148 : vector<8x128xf32>
    %c0_61 = arith.constant 0 : index
    %c0_62 = arith.constant 0 : index
    %c0_63 = arith.constant 0 : index
    %150 = vector.load %arg11[%c0_61, %c0_62, %c0_63] : memref<1x128x256xf32, #tpu.memory_space<vmem>>, vector<1x128x256xf32>
    %151 = vector.shape_cast %150 : vector<1x128x256xf32> to vector<128x256xf32>
    %cst_64 = arith.constant dense<0.000000e+00> : vector<8x256xf32>
    %152 = tpu.matmul %149, %151, %cst_64 {dimension_numbers = #tpu.dot_dimension_numbers<[1], [0], [0], [1], [0, 0, 1, 1], [], []>} : vector<8x128xf32>, vector<128x256xf32>, vector<8x256xf32> -> vector<8x256xf32>
    %c0_65 = arith.constant 0 : index
    %c0_66 = arith.constant 0 : index
    %c0_67 = arith.constant 0 : index
    %153 = vector.load %arg12[%c0_65, %c0_66, %c0_67] : memref<1x1x256xf32, #tpu.memory_space<vmem>>, vector<1x1x256xf32>
    %154 = vector.shape_cast %153 : vector<1x1x256xf32> to vector<1x256xf32>
    %155 = vector.broadcast %154 : vector<1x256xf32> to vector<8x256xf32>
    %156 = arith.addf %152, %155 : vector<8x256xf32>
    %cst_68 = arith.constant 5.000000e-01 : f32
    %157 = vector.broadcast %cst_68 : f32 to vector<8x256xf32>
    %158 = arith.mulf %157, %156 : vector<8x256xf32>
    %cst_69 = arith.constant 0.707106769 : f32
    %159 = vector.broadcast %cst_69 : f32 to vector<8x256xf32>
    %160 = arith.mulf %156, %159 : vector<8x256xf32>
    %161 = math.erf %160 : vector<8x256xf32>
    %cst_70 = arith.constant 1.000000e+00 : f32
    %162 = vector.broadcast %cst_70 : f32 to vector<8x256xf32>
    %163 = arith.addf %162, %161 : vector<8x256xf32>
    %164 = arith.mulf %158, %163 : vector<8x256xf32>
    %c0_71 = arith.constant 0 : index
    %c0_72 = arith.constant 0 : index
    %c0_73 = arith.constant 0 : index
    %165 = vector.load %arg13[%c0_71, %c0_72, %c0_73] : memref<1x256x128xf32, #tpu.memory_space<vmem>>, vector<1x256x128xf32>
    %166 = vector.shape_cast %165 : vector<1x256x128xf32> to vector<256x128xf32>
    %cst_74 = arith.constant dense<0.000000e+00> : vector<8x128xf32>
    %167 = tpu.matmul %164, %166, %cst_74 {dimension_numbers = #tpu.dot_dimension_numbers<[1], [0], [0], [1], [0, 0, 1, 1], [], []>} : vector<8x256xf32>, vector<256x128xf32>, vector<8x128xf32> -> vector<8x128xf32>
    %c0_75 = arith.constant 0 : index
    %c0_76 = arith.constant 0 : index
    %c0_77 = arith.constant 0 : index
    %168 = vector.load %arg14[%c0_75, %c0_76, %c0_77] : memref<1x1x128xf32, #tpu.memory_space<vmem>>, vector<1x1x128xf32>
    %169 = vector.shape_cast %168 : vector<1x1x128xf32> to vector<1x128xf32>
    %170 = vector.broadcast %169 : vector<1x128xf32> to vector<8x128xf32>
    %171 = arith.addf %167, %170 : vector<8x128xf32>
    %172 = arith.addf %171, %123 : vector<8x128xf32>
    %c0_78 = arith.constant 0 : index
    %c0_79 = arith.constant 0 : index
    %173 = vector.load %arg16[%c0_78, %c0_79] : memref<8x128xf32, #tpu.memory_space<vmem>>, vector<8x128xf32>
    tpu.vector_store %arg16[%c0_78, %c0_79], %172 {strides = array<i32>} : memref<8x128xf32, #tpu.memory_space<vmem>>, vector<8x128xf32>,
    %c1_i32 = arith.constant 1 : i32
    %174 = arith.cmpi eq, %arg1, %c1_i32 : i32
    %175 = arith.extui %174 : i1 to i32
    %c0_i32_80 = arith.constant 0 : i32
    %176 = arith.cmpi ne, %175, %c0_i32_80 : i32
    scf.if %176 {
      %c0_81 = arith.constant 0 : index
      %c0_82 = arith.constant 0 : index
      %c0_83 = arith.constant 0 : index
      %177 = vector.load %arg15[%c0_81, %c0_82, %c0_83] : memref<1x8x128xf32, #tpu.memory_space<vmem>>, vector<1x8x128xf32>
      %178 = vector.shape_cast %177 : vector<1x8x128xf32> to vector<8x128xf32>
      %179 = vector.shape_cast %172 : vector<8x128xf32> to vector<1x8x128xf32>
      tpu.vector_store %arg15[%c0_81, %c0_82, %c0_83], %179 {strides = array<i32>} : memref<1x8x128xf32, #tpu.memory_space<vmem>>, vector<1x8x128xf32>,
    } else {
    }
    return
  }
  func.func @transform_0(%arg0: i32, %arg1: i32) -> (i32, i32, i32) {
    %c0_i32 = arith.constant 0 : i32
    %c0_i32_0 = arith.constant 0 : i32
    %c0_i32_1 = arith.constant 0 : i32
    return %arg0, %c0_i32, %c0_i32_0 : i32, i32, i32
  }
  func.func @transform_1(%arg0: i32, %arg1: i32) -> (i32, i32, i32) {
    %c0_i32 = arith.constant 0 : i32
    %c0_i32_0 = arith.constant 0 : i32
    %c0_i32_1 = arith.constant 0 : i32
    return %arg1, %c0_i32, %c0_i32_0 : i32, i32, i32
  }
  func.func @transform_2(%arg0: i32, %arg1: i32) -> (i32, i32, i32) {
    %c0_i32 = arith.constant 0 : i32
    %c0_i32_0 = arith.constant 0 : i32
    %c0_i32_1 = arith.constant 0 : i32
    return %arg1, %c0_i32, %c0_i32_0 : i32, i32, i32
  }
  func.func @transform_3(%arg0: i32, %arg1: i32) -> (i32, i32, i32) {
    %c0_i32 = arith.constant 0 : i32
    %c0_i32_0 = arith.constant 0 : i32
    %c0_i32_1 = arith.constant 0 : i32
    return %arg1, %c0_i32, %c0_i32_0 : i32, i32, i32
  }
  func.func @transform_4(%arg0: i32, %arg1: i32) -> (i32, i32, i32) {
    %c0_i32 = arith.constant 0 : i32
    %c0_i32_0 = arith.constant 0 : i32
    %c0_i32_1 = arith.constant 0 : i32
    return %arg1, %c0_i32, %c0_i32_0 : i32, i32, i32
  }
  func.func @transform_5(%arg0: i32, %arg1: i32) -> (i32, i32, i32) {
    %c0_i32 = arith.constant 0 : i32
    %c0_i32_0 = arith.constant 0 : i32
    %c0_i32_1 = arith.constant 0 : i32
    return %arg1, %c0_i32, %c0_i32_0 : i32, i32, i32
  }
  func.func @transform_6(%arg0: i32, %arg1: i32) -> (i32, i32, i32) {
    %c0_i32 = arith.constant 0 : i32
    %c0_i32_0 = arith.constant 0 : i32
    %c0_i32_1 = arith.constant 0 : i32
    return %arg1, %c0_i32, %c0_i32_0 : i32, i32, i32
  }
  func.func @transform_7(%arg0: i32, %arg1: i32) -> (i32, i32, i32) {
    %c0_i32 = arith.constant 0 : i32
    %c0_i32_0 = arith.constant 0 : i32
    %c0_i32_1 = arith.constant 0 : i32
    return %arg1, %c0_i32, %c0_i32_0 : i32, i32, i32
  }
  func.func @transform_8(%arg0: i32, %arg1: i32) -> (i32, i32, i32) {
    %c0_i32 = arith.constant 0 : i32
    %c0_i32_0 = arith.constant 0 : i32
    %c0_i32_1 = arith.constant 0 : i32
    return %arg1, %c0_i32, %c0_i32_0 : i32, i32, i32
  }
  func.func @transform_9(%arg0: i32, %arg1: i32) -> (i32, i32, i32) {
    %c0_i32 = arith.constant 0 : i32
    %c0_i32_0 = arith.constant 0 : i32
    %c0_i32_1 = arith.constant 0 : i32
    return %arg1, %c0_i32, %c0_i32_0 : i32, i32, i32
  }
  func.func @transform_10(%arg0: i32, %arg1: i32) -> (i32, i32, i32) {
    %c0_i32 = arith.constant 0 : i32
    %c0_i32_0 = arith.constant 0 : i32
    %c0_i32_1 = arith.constant 0 : i32
    return %arg1, %c0_i32, %c0_i32_0 : i32, i32, i32
  }
  func.func @transform_11(%arg0: i32, %arg1: i32) -> (i32, i32, i32) {
    %c0_i32 = arith.constant 0 : i32
    %c0_i32_0 = arith.constant 0 : i32
    %c0_i32_1 = arith.constant 0 : i32
    return %arg1, %c0_i32, %c0_i32_0 : i32, i32, i32
  }
  func.func @transform_12(%arg0: i32, %arg1: i32) -> (i32, i32, i32) {
    %c0_i32 = arith.constant 0 : i32
    %c0_i32_0 = arith.constant 0 : i32
    %c0_i32_1 = arith.constant 0 : i32
    return %arg1, %c0_i32, %c0_i32_0 : i32, i32, i32
  }
  func.func @transform_13(%arg0: i32, %arg1: i32) -> (i32, i32, i32) {
    %c0_i32 = arith.constant 0 : i32
    %c0_i32_0 = arith.constant 0 : i32
    %c0_i32_1 = arith.constant 0 : i32
    return %arg0, %c0_i32, %c0_i32_0 : i32, i32, i32
  }
}

module attributes {stable_mosaic.version = 11 : i64} {
  func.func @_decoder_stack_kernel(%arg0: i32, %arg1: i32, %arg2: memref<1x8x128xf32, #tpu.memory_space<vmem>>, %arg3: memref<1x8x128xf32, #tpu.memory_space<vmem>>, %arg4: memref<1x1x128xf32, #tpu.memory_space<vmem>>, %arg5: memref<1x1x128xf32, #tpu.memory_space<vmem>>, %arg6: memref<1x128x128xf32, #tpu.memory_space<vmem>>, %arg7: memref<1x1x128xf32, #tpu.memory_space<vmem>>, %arg8: memref<1x128x256xf32, #tpu.memory_space<vmem>>, %arg9: memref<1x1x256xf32, #tpu.memory_space<vmem>>, %arg10: memref<1x128x128xf32, #tpu.memory_space<vmem>>, %arg11: memref<1x1x128xf32, #tpu.memory_space<vmem>>, %arg12: memref<1x1x128xf32, #tpu.memory_space<vmem>>, %arg13: memref<1x1x128xf32, #tpu.memory_space<vmem>>, %arg14: memref<1x128x512xf32, #tpu.memory_space<vmem>>, %arg15: memref<1x128x512xf32, #tpu.memory_space<vmem>>, %arg16: memref<1x1x512xf32, #tpu.memory_space<vmem>>, %arg17: memref<1x128x256xf32, #tpu.memory_space<vmem>>, %arg18: memref<1x1x256xf32, #tpu.memory_space<vmem>>, %arg19: memref<1x256x128xf32, #tpu.memory_space<vmem>>, %arg20: memref<1x1x128xf32, #tpu.memory_space<vmem>>, %arg21: memref<1x8x128xf32, #tpu.memory_space<vmem>>, %arg22: memref<8x128xf32, #tpu.memory_space<vmem>>, %arg23: memref<8x512xf32, #tpu.memory_space<vmem>>, %arg24: memref<8x128xf32, #tpu.memory_space<vmem>>) attributes {dimension_semantics = [#tpu.dimension_semantics<parallel>, #tpu.dimension_semantics<arbitrary>], iteration_bounds = array<i64: 2, 2>, scalar_prefetch = 0 : i64, scratch_operands = 3 : i64, tpu.core_type = #tpu.core_type<tc>, window_params = [{transform_indices = @transform_0, window_bounds = array<i64: 1, 8, 128>}, {transform_indices = @transform_1, window_bounds = array<i64: 1, 8, 128>}, {transform_indices = @transform_2, window_bounds = array<i64: 1, 1, 128>}, {transform_indices = @transform_3, window_bounds = array<i64: 1, 1, 128>}, {transform_indices = @transform_4, window_bounds = array<i64: 1, 128, 128>}, {transform_indices = @transform_5, window_bounds = array<i64: 1, 1, 128>}, {transform_indices = @transform_6, window_bounds = array<i64: 1, 128, 256>}, {transform_indices = @transform_7, window_bounds = array<i64: 1, 1, 256>}, {transform_indices = @transform_8, window_bounds = array<i64: 1, 128, 128>}, {transform_indices = @transform_9, window_bounds = array<i64: 1, 1, 128>}, {transform_indices = @transform_10, window_bounds = array<i64: 1, 1, 128>}, {transform_indices = @transform_11, window_bounds = array<i64: 1, 1, 128>}, {transform_indices = @transform_12, window_bounds = array<i64: 1, 128, 512>}, {transform_indices = @transform_13, window_bounds = array<i64: 1, 128, 512>}, {transform_indices = @transform_14, window_bounds = array<i64: 1, 1, 512>}, {transform_indices = @transform_15, window_bounds = array<i64: 1, 128, 256>}, {transform_indices = @transform_16, window_bounds = array<i64: 1, 1, 256>}, {transform_indices = @transform_17, window_bounds = array<i64: 1, 256, 128>}, {transform_indices = @transform_18, window_bounds = array<i64: 1, 1, 128>}, {transform_indices = @transform_19, window_bounds = array<i64: 1, 8, 128>}]} {
    %c0_i32 = arith.constant 0 : i32
    %0 = arith.cmpi eq, %arg1, %c0_i32 : i32
    %1 = arith.extui %0 : i1 to i32
    %c0_i32_0 = arith.constant 0 : i32
    %2 = arith.cmpi ne, %1, %c0_i32_0 : i32
    scf.if %2 {
      %c0_164 = arith.constant 0 : index
      %c0_165 = arith.constant 0 : index
      %c0_166 = arith.constant 0 : index
      %431 = vector.load %arg2[%c0_164, %c0_165, %c0_166] : memref<1x8x128xf32, #tpu.memory_space<vmem>>, vector<1x8x128xf32>
      %432 = vector.shape_cast %431 : vector<1x8x128xf32> to vector<8x128xf32>
      %c0_167 = arith.constant 0 : index
      %c0_168 = arith.constant 0 : index
      %433 = vector.load %arg22[%c0_167, %c0_168] : memref<8x128xf32, #tpu.memory_space<vmem>>, vector<8x128xf32>
      tpu.vector_store %arg22[%c0_167, %c0_168], %432 {strides = array<i32>} : memref<8x128xf32, #tpu.memory_space<vmem>>, vector<8x128xf32>,
    } else {
    }
    %c0 = arith.constant 0 : index
    %c0_1 = arith.constant 0 : index
    %3 = vector.load %arg22[%c0, %c0_1] : memref<8x128xf32, #tpu.memory_space<vmem>>, vector<8x128xf32>
    %c0_2 = arith.constant 0 : index
    %c0_3 = arith.constant 0 : index
    %c0_4 = arith.constant 0 : index
    %4 = vector.load %arg3[%c0_2, %c0_3, %c0_4] : memref<1x8x128xf32, #tpu.memory_space<vmem>>, vector<1x8x128xf32>
    %5 = vector.shape_cast %4 : vector<1x8x128xf32> to vector<8x128xf32>
    %c0_5 = arith.constant 0 : index
    %c0_6 = arith.constant 0 : index
    %c0_7 = arith.constant 0 : index
    %6 = vector.load %arg4[%c0_5, %c0_6, %c0_7] : memref<1x1x128xf32, #tpu.memory_space<vmem>>, vector<1x1x128xf32>
    %7 = vector.shape_cast %6 : vector<1x1x128xf32> to vector<1x128xf32>
    %c0_8 = arith.constant 0 : index
    %c0_9 = arith.constant 0 : index
    %c0_10 = arith.constant 0 : index
    %8 = vector.load %arg5[%c0_8, %c0_9, %c0_10] : memref<1x1x128xf32, #tpu.memory_space<vmem>>, vector<1x1x128xf32>
    %9 = vector.shape_cast %8 : vector<1x1x128xf32> to vector<1x128xf32>
    %cst = arith.constant dense<0.000000e+00> : vector<8xf32>
    %10 = vector.multi_reduction <add>, %3, %cst [1] : vector<8x128xf32> to vector<8xf32>
    %11 = vector.shape_cast %10 : vector<8xf32> to vector<8x1xf32>
    %cst_11 = arith.constant 1.280000e+02 : f32
    %12 = vector.broadcast %cst_11 : f32 to vector<8x1xf32>
    %13 = arith.divf %11, %12 : vector<8x1xf32>
    %14 = vector.broadcast %13 : vector<8x1xf32> to vector<8x128xf32>
    %15 = arith.subf %3, %14 : vector<8x128xf32>
    %16 = arith.mulf %15, %15 : vector<8x128xf32>
    %cst_12 = arith.constant dense<0.000000e+00> : vector<8xf32>
    %17 = vector.multi_reduction <add>, %16, %cst_12 [1] : vector<8x128xf32> to vector<8xf32>
    %18 = vector.shape_cast %17 : vector<8xf32> to vector<8x1xf32>
    %cst_13 = arith.constant 1.280000e+02 : f32
    %19 = vector.broadcast %cst_13 : f32 to vector<8x1xf32>
    %20 = arith.divf %18, %19 : vector<8x1xf32>
    %21 = vector.broadcast %13 : vector<8x1xf32> to vector<8x128xf32>
    %22 = arith.subf %3, %21 : vector<8x128xf32>
    %cst_14 = arith.constant 9.99999974E-6 : f32
    %23 = vector.broadcast %cst_14 : f32 to vector<8x1xf32>
    %24 = arith.addf %20, %23 : vector<8x1xf32>
    %25 = math.rsqrt %24 : vector<8x1xf32>
    %26 = vector.broadcast %25 : vector<8x1xf32> to vector<8x128xf32>
    %27 = arith.mulf %22, %26 : vector<8x128xf32>
    %28 = vector.broadcast %7 : vector<1x128xf32> to vector<8x128xf32>
    %29 = arith.mulf %27, %28 : vector<8x128xf32>
    %30 = vector.broadcast %9 : vector<1x128xf32> to vector<8x128xf32>
    %31 = arith.addf %29, %30 : vector<8x128xf32>
    %c0_15 = arith.constant 0 : index
    %c0_16 = arith.constant 0 : index
    %c0_17 = arith.constant 0 : index
    %32 = vector.load %arg6[%c0_15, %c0_16, %c0_17] : memref<1x128x128xf32, #tpu.memory_space<vmem>>, vector<1x128x128xf32>
    %33 = vector.shape_cast %32 : vector<1x128x128xf32> to vector<128x128xf32>
    %cst_18 = arith.constant dense<0.000000e+00> : vector<8x128xf32>
    %34 = tpu.matmul %31, %33, %cst_18 {dimension_numbers = #tpu.dot_dimension_numbers<[1], [0], [0], [1], [0, 0, 1, 1], [], []>} : vector<8x128xf32>, vector<128x128xf32>, vector<8x128xf32> -> vector<8x128xf32>
    %c0_19 = arith.constant 0 : index
    %c0_20 = arith.constant 0 : index
    %c0_21 = arith.constant 0 : index
    %35 = vector.load %arg7[%c0_19, %c0_20, %c0_21] : memref<1x1x128xf32, #tpu.memory_space<vmem>>, vector<1x1x128xf32>
    %36 = vector.shape_cast %35 : vector<1x1x128xf32> to vector<1x128xf32>
    %37 = vector.broadcast %36 : vector<1x128xf32> to vector<8x128xf32>
    %38 = arith.addf %34, %37 : vector<8x128xf32>
    %c0_22 = arith.constant 0 : index
    %c0_23 = arith.constant 0 : index
    %c0_24 = arith.constant 0 : index
    %39 = vector.load %arg8[%c0_22, %c0_23, %c0_24] : memref<1x128x256xf32, #tpu.memory_space<vmem>>, vector<1x128x256xf32>
    %40 = vector.shape_cast %39 : vector<1x128x256xf32> to vector<128x256xf32>
    %cst_25 = arith.constant dense<0.000000e+00> : vector<8x256xf32>
    %41 = tpu.matmul %5, %40, %cst_25 {dimension_numbers = #tpu.dot_dimension_numbers<[1], [0], [0], [1], [0, 0, 1, 1], [], []>} : vector<8x128xf32>, vector<128x256xf32>, vector<8x256xf32> -> vector<8x256xf32>
    %c0_26 = arith.constant 0 : index
    %c0_27 = arith.constant 0 : index
    %c0_28 = arith.constant 0 : index
    %42 = vector.load %arg9[%c0_26, %c0_27, %c0_28] : memref<1x1x256xf32, #tpu.memory_space<vmem>>, vector<1x1x256xf32>
    %43 = vector.shape_cast %42 : vector<1x1x256xf32> to vector<1x256xf32>
    %44 = vector.broadcast %43 : vector<1x256xf32> to vector<8x256xf32>
    %45 = arith.addf %41, %44 : vector<8x256xf32>
    %46 = vector.extract_strided_slice %45 {offsets = [0, 0], sizes = [8, 128], strides = [1, 1]} : vector<8x256xf32> to vector<8x128xf32>
    %47 = vector.extract_strided_slice %45 {offsets = [0, 128], sizes = [8, 128], strides = [1, 1]} : vector<8x256xf32> to vector<8x128xf32>
    %c0_29 = arith.constant 0 : index
    %c0_30 = arith.constant 0 : index
    %c0_31 = arith.constant 0 : index
    %48 = vector.load %arg10[%c0_29, %c0_30, %c0_31] : memref<1x128x128xf32, #tpu.memory_space<vmem>>, vector<1x128x128xf32>
    %49 = vector.shape_cast %48 : vector<1x128x128xf32> to vector<128x128xf32>
    %c0_32 = arith.constant 0 : index
    %c0_33 = arith.constant 0 : index
    %c0_34 = arith.constant 0 : index
    %50 = vector.load %arg11[%c0_32, %c0_33, %c0_34] : memref<1x1x128xf32, #tpu.memory_space<vmem>>, vector<1x1x128xf32>
    %51 = vector.shape_cast %50 : vector<1x1x128xf32> to vector<1x128xf32>
    %cst_35 = arith.constant 0.000000e+00 : f32
    %52 = vector.broadcast %cst_35 : f32 to vector<8x128xf32>
    %53 = vector.extract_strided_slice %38 {offsets = [0, 0], sizes = [8, 32], strides = [1, 1]} : vector<8x128xf32> to vector<8x32xf32>
    %54 = vector.extract_strided_slice %46 {offsets = [0, 0], sizes = [8, 32], strides = [1, 1]} : vector<8x128xf32> to vector<8x32xf32>
    %55 = vector.extract_strided_slice %47 {offsets = [0, 0], sizes = [8, 32], strides = [1, 1]} : vector<8x128xf32> to vector<8x32xf32>
    %cst_36 = arith.constant dense<0.000000e+00> : vector<8x8xf32>
    %56 = tpu.matmul %53, %54, %cst_36 {dimension_numbers = #tpu.dot_dimension_numbers<[1], [1], [0], [0], [0, 0, 1, 0], [], []>} : vector<8x32xf32>, vector<8x32xf32>, vector<8x8xf32> -> vector<8x8xf32>
    %cst_37 = arith.constant 0.176776692 : f32
    %57 = vector.broadcast %cst_37 : f32 to vector<8x8xf32>
    %58 = arith.mulf %56, %57 : vector<8x8xf32>
    %cst_38 = arith.constant dense<0xFF800000> : vector<8xf32>
    %59 = vector.multi_reduction <maximumf>, %58, %cst_38 [1] : vector<8x8xf32> to vector<8xf32>
    %60 = vector.shape_cast %59 : vector<8xf32> to vector<8x1xf32>
    %61 = vector.broadcast %60 : vector<8x1xf32> to vector<8x8xf32>
    %62 = arith.subf %58, %61 : vector<8x8xf32>
    %63 = math.exp %62 : vector<8x8xf32>
    %cst_39 = arith.constant dense<0.000000e+00> : vector<8xf32>
    %64 = vector.multi_reduction <add>, %63, %cst_39 [1] : vector<8x8xf32> to vector<8xf32>
    %65 = vector.shape_cast %64 : vector<8xf32> to vector<8x1xf32>
    %66 = vector.broadcast %65 : vector<8x1xf32> to vector<8x8xf32>
    %67 = arith.divf %63, %66 : vector<8x8xf32>
    %cst_40 = arith.constant dense<0.000000e+00> : vector<8x32xf32>
    %68 = tpu.matmul %67, %55, %cst_40 {dimension_numbers = #tpu.dot_dimension_numbers<[1], [0], [0], [1], [0, 0, 1, 1], [], []>} : vector<8x8xf32>, vector<8x32xf32>, vector<8x32xf32> -> vector<8x32xf32>
    %69 = vector.extract_strided_slice %49 {offsets = [0, 0], sizes = [32, 128], strides = [1, 1]} : vector<128x128xf32> to vector<32x128xf32>
    %cst_41 = arith.constant dense<0.000000e+00> : vector<8x128xf32>
    %70 = tpu.matmul %68, %69, %cst_41 {dimension_numbers = #tpu.dot_dimension_numbers<[1], [0], [0], [1], [0, 0, 1, 1], [], []>} : vector<8x32xf32>, vector<32x128xf32>, vector<8x128xf32> -> vector<8x128xf32>
    %71 = arith.addf %52, %70 : vector<8x128xf32>
    %72 = vector.extract_strided_slice %38 {offsets = [0, 32], sizes = [8, 32], strides = [1, 1]} : vector<8x128xf32> to vector<8x32xf32>
    %73 = vector.extract_strided_slice %46 {offsets = [0, 32], sizes = [8, 32], strides = [1, 1]} : vector<8x128xf32> to vector<8x32xf32>
    %74 = vector.extract_strided_slice %47 {offsets = [0, 32], sizes = [8, 32], strides = [1, 1]} : vector<8x128xf32> to vector<8x32xf32>
    %cst_42 = arith.constant dense<0.000000e+00> : vector<8x8xf32>
    %75 = tpu.matmul %72, %73, %cst_42 {dimension_numbers = #tpu.dot_dimension_numbers<[1], [1], [0], [0], [0, 0, 1, 0], [], []>} : vector<8x32xf32>, vector<8x32xf32>, vector<8x8xf32> -> vector<8x8xf32>
    %cst_43 = arith.constant 0.176776692 : f32
    %76 = vector.broadcast %cst_43 : f32 to vector<8x8xf32>
    %77 = arith.mulf %75, %76 : vector<8x8xf32>
    %cst_44 = arith.constant dense<0xFF800000> : vector<8xf32>
    %78 = vector.multi_reduction <maximumf>, %77, %cst_44 [1] : vector<8x8xf32> to vector<8xf32>
    %79 = vector.shape_cast %78 : vector<8xf32> to vector<8x1xf32>
    %80 = vector.broadcast %79 : vector<8x1xf32> to vector<8x8xf32>
    %81 = arith.subf %77, %80 : vector<8x8xf32>
    %82 = math.exp %81 : vector<8x8xf32>
    %cst_45 = arith.constant dense<0.000000e+00> : vector<8xf32>
    %83 = vector.multi_reduction <add>, %82, %cst_45 [1] : vector<8x8xf32> to vector<8xf32>
    %84 = vector.shape_cast %83 : vector<8xf32> to vector<8x1xf32>
    %85 = vector.broadcast %84 : vector<8x1xf32> to vector<8x8xf32>
    %86 = arith.divf %82, %85 : vector<8x8xf32>
    %cst_46 = arith.constant dense<0.000000e+00> : vector<8x32xf32>
    %87 = tpu.matmul %86, %74, %cst_46 {dimension_numbers = #tpu.dot_dimension_numbers<[1], [0], [0], [1], [0, 0, 1, 1], [], []>} : vector<8x8xf32>, vector<8x32xf32>, vector<8x32xf32> -> vector<8x32xf32>
    %88 = vector.extract_strided_slice %49 {offsets = [32, 0], sizes = [32, 128], strides = [1, 1]} : vector<128x128xf32> to vector<32x128xf32>
    %cst_47 = arith.constant dense<0.000000e+00> : vector<8x128xf32>
    %89 = tpu.matmul %87, %88, %cst_47 {dimension_numbers = #tpu.dot_dimension_numbers<[1], [0], [0], [1], [0, 0, 1, 1], [], []>} : vector<8x32xf32>, vector<32x128xf32>, vector<8x128xf32> -> vector<8x128xf32>
    %90 = arith.addf %71, %89 : vector<8x128xf32>
    %91 = vector.extract_strided_slice %38 {offsets = [0, 64], sizes = [8, 32], strides = [1, 1]} : vector<8x128xf32> to vector<8x32xf32>
    %92 = vector.extract_strided_slice %46 {offsets = [0, 64], sizes = [8, 32], strides = [1, 1]} : vector<8x128xf32> to vector<8x32xf32>
    %93 = vector.extract_strided_slice %47 {offsets = [0, 64], sizes = [8, 32], strides = [1, 1]} : vector<8x128xf32> to vector<8x32xf32>
    %cst_48 = arith.constant dense<0.000000e+00> : vector<8x8xf32>
    %94 = tpu.matmul %91, %92, %cst_48 {dimension_numbers = #tpu.dot_dimension_numbers<[1], [1], [0], [0], [0, 0, 1, 0], [], []>} : vector<8x32xf32>, vector<8x32xf32>, vector<8x8xf32> -> vector<8x8xf32>
    %cst_49 = arith.constant 0.176776692 : f32
    %95 = vector.broadcast %cst_49 : f32 to vector<8x8xf32>
    %96 = arith.mulf %94, %95 : vector<8x8xf32>
    %cst_50 = arith.constant dense<0xFF800000> : vector<8xf32>
    %97 = vector.multi_reduction <maximumf>, %96, %cst_50 [1] : vector<8x8xf32> to vector<8xf32>
    %98 = vector.shape_cast %97 : vector<8xf32> to vector<8x1xf32>
    %99 = vector.broadcast %98 : vector<8x1xf32> to vector<8x8xf32>
    %100 = arith.subf %96, %99 : vector<8x8xf32>
    %101 = math.exp %100 : vector<8x8xf32>
    %cst_51 = arith.constant dense<0.000000e+00> : vector<8xf32>
    %102 = vector.multi_reduction <add>, %101, %cst_51 [1] : vector<8x8xf32> to vector<8xf32>
    %103 = vector.shape_cast %102 : vector<8xf32> to vector<8x1xf32>
    %104 = vector.broadcast %103 : vector<8x1xf32> to vector<8x8xf32>
    %105 = arith.divf %101, %104 : vector<8x8xf32>
    %cst_52 = arith.constant dense<0.000000e+00> : vector<8x32xf32>
    %106 = tpu.matmul %105, %93, %cst_52 {dimension_numbers = #tpu.dot_dimension_numbers<[1], [0], [0], [1], [0, 0, 1, 1], [], []>} : vector<8x8xf32>, vector<8x32xf32>, vector<8x32xf32> -> vector<8x32xf32>
    %107 = vector.extract_strided_slice %49 {offsets = [64, 0], sizes = [32, 128], strides = [1, 1]} : vector<128x128xf32> to vector<32x128xf32>
    %cst_53 = arith.constant dense<0.000000e+00> : vector<8x128xf32>
    %108 = tpu.matmul %106, %107, %cst_53 {dimension_numbers = #tpu.dot_dimension_numbers<[1], [0], [0], [1], [0, 0, 1, 1], [], []>} : vector<8x32xf32>, vector<32x128xf32>, vector<8x128xf32> -> vector<8x128xf32>
    %109 = arith.addf %90, %108 : vector<8x128xf32>
    %110 = vector.extract_strided_slice %38 {offsets = [0, 96], sizes = [8, 32], strides = [1, 1]} : vector<8x128xf32> to vector<8x32xf32>
    %111 = vector.extract_strided_slice %46 {offsets = [0, 96], sizes = [8, 32], strides = [1, 1]} : vector<8x128xf32> to vector<8x32xf32>
    %112 = vector.extract_strided_slice %47 {offsets = [0, 96], sizes = [8, 32], strides = [1, 1]} : vector<8x128xf32> to vector<8x32xf32>
    %cst_54 = arith.constant dense<0.000000e+00> : vector<8x8xf32>
    %113 = tpu.matmul %110, %111, %cst_54 {dimension_numbers = #tpu.dot_dimension_numbers<[1], [1], [0], [0], [0, 0, 1, 0], [], []>} : vector<8x32xf32>, vector<8x32xf32>, vector<8x8xf32> -> vector<8x8xf32>
    %cst_55 = arith.constant 0.176776692 : f32
    %114 = vector.broadcast %cst_55 : f32 to vector<8x8xf32>
    %115 = arith.mulf %113, %114 : vector<8x8xf32>
    %cst_56 = arith.constant dense<0xFF800000> : vector<8xf32>
    %116 = vector.multi_reduction <maximumf>, %115, %cst_56 [1] : vector<8x8xf32> to vector<8xf32>
    %117 = vector.shape_cast %116 : vector<8xf32> to vector<8x1xf32>
    %118 = vector.broadcast %117 : vector<8x1xf32> to vector<8x8xf32>
    %119 = arith.subf %115, %118 : vector<8x8xf32>
    %120 = math.exp %119 : vector<8x8xf32>
    %cst_57 = arith.constant dense<0.000000e+00> : vector<8xf32>
    %121 = vector.multi_reduction <add>, %120, %cst_57 [1] : vector<8x8xf32> to vector<8xf32>
    %122 = vector.shape_cast %121 : vector<8xf32> to vector<8x1xf32>
    %123 = vector.broadcast %122 : vector<8x1xf32> to vector<8x8xf32>
    %124 = arith.divf %120, %123 : vector<8x8xf32>
    %cst_58 = arith.constant dense<0.000000e+00> : vector<8x32xf32>
    %125 = tpu.matmul %124, %112, %cst_58 {dimension_numbers = #tpu.dot_dimension_numbers<[1], [0], [0], [1], [0, 0, 1, 1], [], []>} : vector<8x8xf32>, vector<8x32xf32>, vector<8x32xf32> -> vector<8x32xf32>
    %126 = vector.extract_strided_slice %49 {offsets = [96, 0], sizes = [32, 128], strides = [1, 1]} : vector<128x128xf32> to vector<32x128xf32>
    %cst_59 = arith.constant dense<0.000000e+00> : vector<8x128xf32>
    %127 = tpu.matmul %125, %126, %cst_59 {dimension_numbers = #tpu.dot_dimension_numbers<[1], [0], [0], [1], [0, 0, 1, 1], [], []>} : vector<8x32xf32>, vector<32x128xf32>, vector<8x128xf32> -> vector<8x128xf32>
    %128 = arith.addf %109, %127 : vector<8x128xf32>
    %129 = vector.broadcast %51 : vector<1x128xf32> to vector<8x128xf32>
    %130 = arith.addf %128, %129 : vector<8x128xf32>
    %131 = arith.addf %130, %3 : vector<8x128xf32>
    %c0_60 = arith.constant 0 : index
    %c0_61 = arith.constant 0 : index
    %c0_62 = arith.constant 0 : index
    %132 = vector.load %arg12[%c0_60, %c0_61, %c0_62] : memref<1x1x128xf32, #tpu.memory_space<vmem>>, vector<1x1x128xf32>
    %133 = vector.shape_cast %132 : vector<1x1x128xf32> to vector<1x128xf32>
    %c0_63 = arith.constant 0 : index
    %c0_64 = arith.constant 0 : index
    %c0_65 = arith.constant 0 : index
    %134 = vector.load %arg13[%c0_63, %c0_64, %c0_65] : memref<1x1x128xf32, #tpu.memory_space<vmem>>, vector<1x1x128xf32>
    %135 = vector.shape_cast %134 : vector<1x1x128xf32> to vector<1x128xf32>
    %cst_66 = arith.constant dense<0.000000e+00> : vector<8xf32>
    %136 = vector.multi_reduction <add>, %131, %cst_66 [1] : vector<8x128xf32> to vector<8xf32>
    %137 = vector.shape_cast %136 : vector<8xf32> to vector<8x1xf32>
    %cst_67 = arith.constant 1.280000e+02 : f32
    %138 = vector.broadcast %cst_67 : f32 to vector<8x1xf32>
    %139 = arith.divf %137, %138 : vector<8x1xf32>
    %140 = vector.broadcast %139 : vector<8x1xf32> to vector<8x128xf32>
    %141 = arith.subf %131, %140 : vector<8x128xf32>
    %142 = arith.mulf %141, %141 : vector<8x128xf32>
    %cst_68 = arith.constant dense<0.000000e+00> : vector<8xf32>
    %143 = vector.multi_reduction <add>, %142, %cst_68 [1] : vector<8x128xf32> to vector<8xf32>
    %144 = vector.shape_cast %143 : vector<8xf32> to vector<8x1xf32>
    %cst_69 = arith.constant 1.280000e+02 : f32
    %145 = vector.broadcast %cst_69 : f32 to vector<8x1xf32>
    %146 = arith.divf %144, %145 : vector<8x1xf32>
    %147 = vector.broadcast %139 : vector<8x1xf32> to vector<8x128xf32>
    %148 = arith.subf %131, %147 : vector<8x128xf32>
    %cst_70 = arith.constant 9.99999974E-6 : f32
    %149 = vector.broadcast %cst_70 : f32 to vector<8x1xf32>
    %150 = arith.addf %146, %149 : vector<8x1xf32>
    %151 = math.rsqrt %150 : vector<8x1xf32>
    %152 = vector.broadcast %151 : vector<8x1xf32> to vector<8x128xf32>
    %153 = arith.mulf %148, %152 : vector<8x128xf32>
    %154 = vector.broadcast %133 : vector<1x128xf32> to vector<8x128xf32>
    %155 = arith.mulf %153, %154 : vector<8x128xf32>
    %156 = vector.broadcast %135 : vector<1x128xf32> to vector<8x128xf32>
    %157 = arith.addf %155, %156 : vector<8x128xf32>
    %c0_71 = arith.constant 0 : index
    %c0_72 = arith.constant 0 : index
    %c0_73 = arith.constant 0 : index
    %158 = vector.load %arg14[%c0_71, %c0_72, %c0_73] : memref<1x128x512xf32, #tpu.memory_space<vmem>>, vector<1x128x512xf32>
    %159 = vector.shape_cast %158 : vector<1x128x512xf32> to vector<128x512xf32>
    %cst_74 = arith.constant dense<0.000000e+00> : vector<8x512xf32>
    %160 = tpu.matmul %157, %159, %cst_74 {dimension_numbers = #tpu.dot_dimension_numbers<[1], [0], [0], [1], [0, 0, 1, 1], [], []>} : vector<8x128xf32>, vector<128x512xf32>, vector<8x512xf32> -> vector<8x512xf32>
    %c0_75 = arith.constant 0 : index
    %c0_76 = arith.constant 0 : index
    %c0_77 = arith.constant 0 : index
    %161 = vector.load %arg16[%c0_75, %c0_76, %c0_77] : memref<1x1x512xf32, #tpu.memory_space<vmem>>, vector<1x1x512xf32>
    %162 = vector.shape_cast %161 : vector<1x1x512xf32> to vector<1x512xf32>
    %163 = vector.broadcast %162 : vector<1x512xf32> to vector<8x512xf32>
    %164 = arith.addf %160, %163 : vector<8x512xf32>
    %c0_78 = arith.constant 0 : index
    %c0_79 = arith.constant 0 : index
    %165 = vector.load %arg23[%c0_78, %c0_79] : memref<8x512xf32, #tpu.memory_space<vmem>>, vector<8x512xf32>
    tpu.vector_store %arg23[%c0_78, %c0_79], %164 {strides = array<i32>} : memref<8x512xf32, #tpu.memory_space<vmem>>, vector<8x512xf32>,
    %c0_80 = arith.constant 0 : index
    %c0_81 = arith.constant 0 : index
    %c0_82 = arith.constant 0 : index
    %166 = vector.load %arg15[%c0_80, %c0_81, %c0_82] : memref<1x128x512xf32, #tpu.memory_space<vmem>>, vector<1x128x512xf32>
    %167 = vector.shape_cast %166 : vector<1x128x512xf32> to vector<128x512xf32>
    %cst_83 = arith.constant 0.000000e+00 : f32
    %168 = vector.broadcast %cst_83 : f32 to vector<1x128xf32>
    %cst_84 = arith.constant 0.000000e+00 : f32
    %169 = vector.broadcast %cst_84 : f32 to vector<1x128xf32>
    %c0_85 = arith.constant 0 : index
    %c0_86 = arith.constant 0 : index
    %170 = vector.load %arg23[%c0_85, %c0_86] : memref<8x512xf32, #tpu.memory_space<vmem>>, vector<1x512xf32>
    %cst_87 = arith.constant dense<0.000000e+00> : vector<1x512xf32>
    %171 = tpu.matmul %168, %167, %cst_87 {dimension_numbers = #tpu.dot_dimension_numbers<[1], [0], [0], [1], [0, 0, 1, 1], [], []>} : vector<1x128xf32>, vector<128x512xf32>, vector<1x512xf32> -> vector<1x512xf32>
    %172 = arith.addf %170, %171 : vector<1x512xf32>
    %173 = vector.extract_strided_slice %172 {offsets = [0, 0], sizes = [1, 128], strides = [1, 1]} : vector<1x512xf32> to vector<1x128xf32>
    %174 = arith.negf %173 : vector<1x128xf32>
    %175 = math.exp %174 : vector<1x128xf32>
    %cst_88 = arith.constant 1.000000e+00 : f32
    %176 = vector.broadcast %cst_88 : f32 to vector<1x128xf32>
    %177 = arith.addf %176, %175 : vector<1x128xf32>
    %178 = arith.divf %176, %177 : vector<1x128xf32>
    %179 = vector.extract_strided_slice %172 {offsets = [0, 128], sizes = [1, 128], strides = [1, 1]} : vector<1x512xf32> to vector<1x128xf32>
    %180 = arith.negf %179 : vector<1x128xf32>
    %181 = math.exp %180 : vector<1x128xf32>
    %cst_89 = arith.constant 1.000000e+00 : f32
    %182 = vector.broadcast %cst_89 : f32 to vector<1x128xf32>
    %183 = arith.addf %182, %181 : vector<1x128xf32>
    %184 = arith.divf %182, %183 : vector<1x128xf32>
    %185 = vector.extract_strided_slice %172 {offsets = [0, 256], sizes = [1, 128], strides = [1, 1]} : vector<1x512xf32> to vector<1x128xf32>
    %186 = math.tanh %185 : vector<1x128xf32>
    %187 = vector.extract_strided_slice %172 {offsets = [0, 384], sizes = [1, 128], strides = [1, 1]} : vector<1x512xf32> to vector<1x128xf32>
    %188 = arith.negf %187 : vector<1x128xf32>
    %189 = math.exp %188 : vector<1x128xf32>
    %cst_90 = arith.constant 1.000000e+00 : f32
    %190 = vector.broadcast %cst_90 : f32 to vector<1x128xf32>
    %191 = arith.addf %190, %189 : vector<1x128xf32>
    %192 = arith.divf %190, %191 : vector<1x128xf32>
    %193 = arith.mulf %184, %169 : vector<1x128xf32>
    %194 = arith.mulf %178, %186 : vector<1x128xf32>
    %195 = arith.addf %193, %194 : vector<1x128xf32>
    %196 = math.tanh %195 : vector<1x128xf32>
    %197 = arith.mulf %192, %196 : vector<1x128xf32>
    %c0_91 = arith.constant 0 : index
    %c0_92 = arith.constant 0 : index
    %198 = vector.load %arg24[%c0_91, %c0_92] : memref<8x128xf32, #tpu.memory_space<vmem>>, vector<1x128xf32>
    tpu.vector_store %arg24[%c0_91, %c0_92], %197 {strides = array<i32>} : memref<8x128xf32, #tpu.memory_space<vmem>>, vector<1x128xf32>,
    %c1 = arith.constant 1 : index
    %c0_93 = arith.constant 0 : index
    %199 = vector.load %arg23[%c1, %c0_93] : memref<8x512xf32, #tpu.memory_space<vmem>>, vector<1x512xf32>
    %cst_94 = arith.constant dense<0.000000e+00> : vector<1x512xf32>
    %200 = tpu.matmul %197, %167, %cst_94 {dimension_numbers = #tpu.dot_dimension_numbers<[1], [0], [0], [1], [0, 0, 1, 1], [], []>} : vector<1x128xf32>, vector<128x512xf32>, vector<1x512xf32> -> vector<1x512xf32>
    %201 = arith.addf %199, %200 : vector<1x512xf32>
    %202 = vector.extract_strided_slice %201 {offsets = [0, 0], sizes = [1, 128], strides = [1, 1]} : vector<1x512xf32> to vector<1x128xf32>
    %203 = arith.negf %202 : vector<1x128xf32>
    %204 = math.exp %203 : vector<1x128xf32>
    %cst_95 = arith.constant 1.000000e+00 : f32
    %205 = vector.broadcast %cst_95 : f32 to vector<1x128xf32>
    %206 = arith.addf %205, %204 : vector<1x128xf32>
    %207 = arith.divf %205, %206 : vector<1x128xf32>
    %208 = vector.extract_strided_slice %201 {offsets = [0, 128], sizes = [1, 128], strides = [1, 1]} : vector<1x512xf32> to vector<1x128xf32>
    %209 = arith.negf %208 : vector<1x128xf32>
    %210 = math.exp %209 : vector<1x128xf32>
    %cst_96 = arith.constant 1.000000e+00 : f32
    %211 = vector.broadcast %cst_96 : f32 to vector<1x128xf32>
    %212 = arith.addf %211, %210 : vector<1x128xf32>
    %213 = arith.divf %211, %212 : vector<1x128xf32>
    %214 = vector.extract_strided_slice %201 {offsets = [0, 256], sizes = [1, 128], strides = [1, 1]} : vector<1x512xf32> to vector<1x128xf32>
    %215 = math.tanh %214 : vector<1x128xf32>
    %216 = vector.extract_strided_slice %201 {offsets = [0, 384], sizes = [1, 128], strides = [1, 1]} : vector<1x512xf32> to vector<1x128xf32>
    %217 = arith.negf %216 : vector<1x128xf32>
    %218 = math.exp %217 : vector<1x128xf32>
    %cst_97 = arith.constant 1.000000e+00 : f32
    %219 = vector.broadcast %cst_97 : f32 to vector<1x128xf32>
    %220 = arith.addf %219, %218 : vector<1x128xf32>
    %221 = arith.divf %219, %220 : vector<1x128xf32>
    %222 = arith.mulf %213, %195 : vector<1x128xf32>
    %223 = arith.mulf %207, %215 : vector<1x128xf32>
    %224 = arith.addf %222, %223 : vector<1x128xf32>
    %225 = math.tanh %224 : vector<1x128xf32>
    %226 = arith.mulf %221, %225 : vector<1x128xf32>
    %c1_98 = arith.constant 1 : index
    %c0_99 = arith.constant 0 : index
    %227 = vector.load %arg24[%c1_98, %c0_99] : memref<8x128xf32, #tpu.memory_space<vmem>>, vector<1x128xf32>
    tpu.vector_store %arg24[%c1_98, %c0_99], %226 {strides = array<i32>} : memref<8x128xf32, #tpu.memory_space<vmem>>, vector<1x128xf32>,
    %c2 = arith.constant 2 : index
    %c0_100 = arith.constant 0 : index
    %228 = vector.load %arg23[%c2, %c0_100] : memref<8x512xf32, #tpu.memory_space<vmem>>, vector<1x512xf32>
    %cst_101 = arith.constant dense<0.000000e+00> : vector<1x512xf32>
    %229 = tpu.matmul %226, %167, %cst_101 {dimension_numbers = #tpu.dot_dimension_numbers<[1], [0], [0], [1], [0, 0, 1, 1], [], []>} : vector<1x128xf32>, vector<128x512xf32>, vector<1x512xf32> -> vector<1x512xf32>
    %230 = arith.addf %228, %229 : vector<1x512xf32>
    %231 = vector.extract_strided_slice %230 {offsets = [0, 0], sizes = [1, 128], strides = [1, 1]} : vector<1x512xf32> to vector<1x128xf32>
    %232 = arith.negf %231 : vector<1x128xf32>
    %233 = math.exp %232 : vector<1x128xf32>
    %cst_102 = arith.constant 1.000000e+00 : f32
    %234 = vector.broadcast %cst_102 : f32 to vector<1x128xf32>
    %235 = arith.addf %234, %233 : vector<1x128xf32>
    %236 = arith.divf %234, %235 : vector<1x128xf32>
    %237 = vector.extract_strided_slice %230 {offsets = [0, 128], sizes = [1, 128], strides = [1, 1]} : vector<1x512xf32> to vector<1x128xf32>
    %238 = arith.negf %237 : vector<1x128xf32>
    %239 = math.exp %238 : vector<1x128xf32>
    %cst_103 = arith.constant 1.000000e+00 : f32
    %240 = vector.broadcast %cst_103 : f32 to vector<1x128xf32>
    %241 = arith.addf %240, %239 : vector<1x128xf32>
    %242 = arith.divf %240, %241 : vector<1x128xf32>
    %243 = vector.extract_strided_slice %230 {offsets = [0, 256], sizes = [1, 128], strides = [1, 1]} : vector<1x512xf32> to vector<1x128xf32>
    %244 = math.tanh %243 : vector<1x128xf32>
    %245 = vector.extract_strided_slice %230 {offsets = [0, 384], sizes = [1, 128], strides = [1, 1]} : vector<1x512xf32> to vector<1x128xf32>
    %246 = arith.negf %245 : vector<1x128xf32>
    %247 = math.exp %246 : vector<1x128xf32>
    %cst_104 = arith.constant 1.000000e+00 : f32
    %248 = vector.broadcast %cst_104 : f32 to vector<1x128xf32>
    %249 = arith.addf %248, %247 : vector<1x128xf32>
    %250 = arith.divf %248, %249 : vector<1x128xf32>
    %251 = arith.mulf %242, %224 : vector<1x128xf32>
    %252 = arith.mulf %236, %244 : vector<1x128xf32>
    %253 = arith.addf %251, %252 : vector<1x128xf32>
    %254 = math.tanh %253 : vector<1x128xf32>
    %255 = arith.mulf %250, %254 : vector<1x128xf32>
    %c2_105 = arith.constant 2 : index
    %c0_106 = arith.constant 0 : index
    %256 = vector.load %arg24[%c2_105, %c0_106] : memref<8x128xf32, #tpu.memory_space<vmem>>, vector<1x128xf32>
    tpu.vector_store %arg24[%c2_105, %c0_106], %255 {strides = array<i32>} : memref<8x128xf32, #tpu.memory_space<vmem>>, vector<1x128xf32>,
    %c3 = arith.constant 3 : index
    %c0_107 = arith.constant 0 : index
    %257 = vector.load %arg23[%c3, %c0_107] : memref<8x512xf32, #tpu.memory_space<vmem>>, vector<1x512xf32>
    %cst_108 = arith.constant dense<0.000000e+00> : vector<1x512xf32>
    %258 = tpu.matmul %255, %167, %cst_108 {dimension_numbers = #tpu.dot_dimension_numbers<[1], [0], [0], [1], [0, 0, 1, 1], [], []>} : vector<1x128xf32>, vector<128x512xf32>, vector<1x512xf32> -> vector<1x512xf32>
    %259 = arith.addf %257, %258 : vector<1x512xf32>
    %260 = vector.extract_strided_slice %259 {offsets = [0, 0], sizes = [1, 128], strides = [1, 1]} : vector<1x512xf32> to vector<1x128xf32>
    %261 = arith.negf %260 : vector<1x128xf32>
    %262 = math.exp %261 : vector<1x128xf32>
    %cst_109 = arith.constant 1.000000e+00 : f32
    %263 = vector.broadcast %cst_109 : f32 to vector<1x128xf32>
    %264 = arith.addf %263, %262 : vector<1x128xf32>
    %265 = arith.divf %263, %264 : vector<1x128xf32>
    %266 = vector.extract_strided_slice %259 {offsets = [0, 128], sizes = [1, 128], strides = [1, 1]} : vector<1x512xf32> to vector<1x128xf32>
    %267 = arith.negf %266 : vector<1x128xf32>
    %268 = math.exp %267 : vector<1x128xf32>
    %cst_110 = arith.constant 1.000000e+00 : f32
    %269 = vector.broadcast %cst_110 : f32 to vector<1x128xf32>
    %270 = arith.addf %269, %268 : vector<1x128xf32>
    %271 = arith.divf %269, %270 : vector<1x128xf32>
    %272 = vector.extract_strided_slice %259 {offsets = [0, 256], sizes = [1, 128], strides = [1, 1]} : vector<1x512xf32> to vector<1x128xf32>
    %273 = math.tanh %272 : vector<1x128xf32>
    %274 = vector.extract_strided_slice %259 {offsets = [0, 384], sizes = [1, 128], strides = [1, 1]} : vector<1x512xf32> to vector<1x128xf32>
    %275 = arith.negf %274 : vector<1x128xf32>
    %276 = math.exp %275 : vector<1x128xf32>
    %cst_111 = arith.constant 1.000000e+00 : f32
    %277 = vector.broadcast %cst_111 : f32 to vector<1x128xf32>
    %278 = arith.addf %277, %276 : vector<1x128xf32>
    %279 = arith.divf %277, %278 : vector<1x128xf32>
    %280 = arith.mulf %271, %253 : vector<1x128xf32>
    %281 = arith.mulf %265, %273 : vector<1x128xf32>
    %282 = arith.addf %280, %281 : vector<1x128xf32>
    %283 = math.tanh %282 : vector<1x128xf32>
    %284 = arith.mulf %279, %283 : vector<1x128xf32>
    %c3_112 = arith.constant 3 : index
    %c0_113 = arith.constant 0 : index
    %285 = vector.load %arg24[%c3_112, %c0_113] : memref<8x128xf32, #tpu.memory_space<vmem>>, vector<1x128xf32>
    tpu.vector_store %arg24[%c3_112, %c0_113], %284 {strides = array<i32>} : memref<8x128xf32, #tpu.memory_space<vmem>>, vector<1x128xf32>,
    %c4 = arith.constant 4 : index
    %c0_114 = arith.constant 0 : index
    %286 = vector.load %arg23[%c4, %c0_114] : memref<8x512xf32, #tpu.memory_space<vmem>>, vector<1x512xf32>
    %cst_115 = arith.constant dense<0.000000e+00> : vector<1x512xf32>
    %287 = tpu.matmul %284, %167, %cst_115 {dimension_numbers = #tpu.dot_dimension_numbers<[1], [0], [0], [1], [0, 0, 1, 1], [], []>} : vector<1x128xf32>, vector<128x512xf32>, vector<1x512xf32> -> vector<1x512xf32>
    %288 = arith.addf %286, %287 : vector<1x512xf32>
    %289 = vector.extract_strided_slice %288 {offsets = [0, 0], sizes = [1, 128], strides = [1, 1]} : vector<1x512xf32> to vector<1x128xf32>
    %290 = arith.negf %289 : vector<1x128xf32>
    %291 = math.exp %290 : vector<1x128xf32>
    %cst_116 = arith.constant 1.000000e+00 : f32
    %292 = vector.broadcast %cst_116 : f32 to vector<1x128xf32>
    %293 = arith.addf %292, %291 : vector<1x128xf32>
    %294 = arith.divf %292, %293 : vector<1x128xf32>
    %295 = vector.extract_strided_slice %288 {offsets = [0, 128], sizes = [1, 128], strides = [1, 1]} : vector<1x512xf32> to vector<1x128xf32>
    %296 = arith.negf %295 : vector<1x128xf32>
    %297 = math.exp %296 : vector<1x128xf32>
    %cst_117 = arith.constant 1.000000e+00 : f32
    %298 = vector.broadcast %cst_117 : f32 to vector<1x128xf32>
    %299 = arith.addf %298, %297 : vector<1x128xf32>
    %300 = arith.divf %298, %299 : vector<1x128xf32>
    %301 = vector.extract_strided_slice %288 {offsets = [0, 256], sizes = [1, 128], strides = [1, 1]} : vector<1x512xf32> to vector<1x128xf32>
    %302 = math.tanh %301 : vector<1x128xf32>
    %303 = vector.extract_strided_slice %288 {offsets = [0, 384], sizes = [1, 128], strides = [1, 1]} : vector<1x512xf32> to vector<1x128xf32>
    %304 = arith.negf %303 : vector<1x128xf32>
    %305 = math.exp %304 : vector<1x128xf32>
    %cst_118 = arith.constant 1.000000e+00 : f32
    %306 = vector.broadcast %cst_118 : f32 to vector<1x128xf32>
    %307 = arith.addf %306, %305 : vector<1x128xf32>
    %308 = arith.divf %306, %307 : vector<1x128xf32>
    %309 = arith.mulf %300, %282 : vector<1x128xf32>
    %310 = arith.mulf %294, %302 : vector<1x128xf32>
    %311 = arith.addf %309, %310 : vector<1x128xf32>
    %312 = math.tanh %311 : vector<1x128xf32>
    %313 = arith.mulf %308, %312 : vector<1x128xf32>
    %c4_119 = arith.constant 4 : index
    %c0_120 = arith.constant 0 : index
    %314 = vector.load %arg24[%c4_119, %c0_120] : memref<8x128xf32, #tpu.memory_space<vmem>>, vector<1x128xf32>
    tpu.vector_store %arg24[%c4_119, %c0_120], %313 {strides = array<i32>} : memref<8x128xf32, #tpu.memory_space<vmem>>, vector<1x128xf32>,
    %c5 = arith.constant 5 : index
    %c0_121 = arith.constant 0 : index
    %315 = vector.load %arg23[%c5, %c0_121] : memref<8x512xf32, #tpu.memory_space<vmem>>, vector<1x512xf32>
    %cst_122 = arith.constant dense<0.000000e+00> : vector<1x512xf32>
    %316 = tpu.matmul %313, %167, %cst_122 {dimension_numbers = #tpu.dot_dimension_numbers<[1], [0], [0], [1], [0, 0, 1, 1], [], []>} : vector<1x128xf32>, vector<128x512xf32>, vector<1x512xf32> -> vector<1x512xf32>
    %317 = arith.addf %315, %316 : vector<1x512xf32>
    %318 = vector.extract_strided_slice %317 {offsets = [0, 0], sizes = [1, 128], strides = [1, 1]} : vector<1x512xf32> to vector<1x128xf32>
    %319 = arith.negf %318 : vector<1x128xf32>
    %320 = math.exp %319 : vector<1x128xf32>
    %cst_123 = arith.constant 1.000000e+00 : f32
    %321 = vector.broadcast %cst_123 : f32 to vector<1x128xf32>
    %322 = arith.addf %321, %320 : vector<1x128xf32>
    %323 = arith.divf %321, %322 : vector<1x128xf32>
    %324 = vector.extract_strided_slice %317 {offsets = [0, 128], sizes = [1, 128], strides = [1, 1]} : vector<1x512xf32> to vector<1x128xf32>
    %325 = arith.negf %324 : vector<1x128xf32>
    %326 = math.exp %325 : vector<1x128xf32>
    %cst_124 = arith.constant 1.000000e+00 : f32
    %327 = vector.broadcast %cst_124 : f32 to vector<1x128xf32>
    %328 = arith.addf %327, %326 : vector<1x128xf32>
    %329 = arith.divf %327, %328 : vector<1x128xf32>
    %330 = vector.extract_strided_slice %317 {offsets = [0, 256], sizes = [1, 128], strides = [1, 1]} : vector<1x512xf32> to vector<1x128xf32>
    %331 = math.tanh %330 : vector<1x128xf32>
    %332 = vector.extract_strided_slice %317 {offsets = [0, 384], sizes = [1, 128], strides = [1, 1]} : vector<1x512xf32> to vector<1x128xf32>
    %333 = arith.negf %332 : vector<1x128xf32>
    %334 = math.exp %333 : vector<1x128xf32>
    %cst_125 = arith.constant 1.000000e+00 : f32
    %335 = vector.broadcast %cst_125 : f32 to vector<1x128xf32>
    %336 = arith.addf %335, %334 : vector<1x128xf32>
    %337 = arith.divf %335, %336 : vector<1x128xf32>
    %338 = arith.mulf %329, %311 : vector<1x128xf32>
    %339 = arith.mulf %323, %331 : vector<1x128xf32>
    %340 = arith.addf %338, %339 : vector<1x128xf32>
    %341 = math.tanh %340 : vector<1x128xf32>
    %342 = arith.mulf %337, %341 : vector<1x128xf32>
    %c5_126 = arith.constant 5 : index
    %c0_127 = arith.constant 0 : index
    %343 = vector.load %arg24[%c5_126, %c0_127] : memref<8x128xf32, #tpu.memory_space<vmem>>, vector<1x128xf32>
    tpu.vector_store %arg24[%c5_126, %c0_127], %342 {strides = array<i32>} : memref<8x128xf32, #tpu.memory_space<vmem>>, vector<1x128xf32>,
    %c6 = arith.constant 6 : index
    %c0_128 = arith.constant 0 : index
    %344 = vector.load %arg23[%c6, %c0_128] : memref<8x512xf32, #tpu.memory_space<vmem>>, vector<1x512xf32>
    %cst_129 = arith.constant dense<0.000000e+00> : vector<1x512xf32>
    %345 = tpu.matmul %342, %167, %cst_129 {dimension_numbers = #tpu.dot_dimension_numbers<[1], [0], [0], [1], [0, 0, 1, 1], [], []>} : vector<1x128xf32>, vector<128x512xf32>, vector<1x512xf32> -> vector<1x512xf32>
    %346 = arith.addf %344, %345 : vector<1x512xf32>
    %347 = vector.extract_strided_slice %346 {offsets = [0, 0], sizes = [1, 128], strides = [1, 1]} : vector<1x512xf32> to vector<1x128xf32>
    %348 = arith.negf %347 : vector<1x128xf32>
    %349 = math.exp %348 : vector<1x128xf32>
    %cst_130 = arith.constant 1.000000e+00 : f32
    %350 = vector.broadcast %cst_130 : f32 to vector<1x128xf32>
    %351 = arith.addf %350, %349 : vector<1x128xf32>
    %352 = arith.divf %350, %351 : vector<1x128xf32>
    %353 = vector.extract_strided_slice %346 {offsets = [0, 128], sizes = [1, 128], strides = [1, 1]} : vector<1x512xf32> to vector<1x128xf32>
    %354 = arith.negf %353 : vector<1x128xf32>
    %355 = math.exp %354 : vector<1x128xf32>
    %cst_131 = arith.constant 1.000000e+00 : f32
    %356 = vector.broadcast %cst_131 : f32 to vector<1x128xf32>
    %357 = arith.addf %356, %355 : vector<1x128xf32>
    %358 = arith.divf %356, %357 : vector<1x128xf32>
    %359 = vector.extract_strided_slice %346 {offsets = [0, 256], sizes = [1, 128], strides = [1, 1]} : vector<1x512xf32> to vector<1x128xf32>
    %360 = math.tanh %359 : vector<1x128xf32>
    %361 = vector.extract_strided_slice %346 {offsets = [0, 384], sizes = [1, 128], strides = [1, 1]} : vector<1x512xf32> to vector<1x128xf32>
    %362 = arith.negf %361 : vector<1x128xf32>
    %363 = math.exp %362 : vector<1x128xf32>
    %cst_132 = arith.constant 1.000000e+00 : f32
    %364 = vector.broadcast %cst_132 : f32 to vector<1x128xf32>
    %365 = arith.addf %364, %363 : vector<1x128xf32>
    %366 = arith.divf %364, %365 : vector<1x128xf32>
    %367 = arith.mulf %358, %340 : vector<1x128xf32>
    %368 = arith.mulf %352, %360 : vector<1x128xf32>
    %369 = arith.addf %367, %368 : vector<1x128xf32>
    %370 = math.tanh %369 : vector<1x128xf32>
    %371 = arith.mulf %366, %370 : vector<1x128xf32>
    %c6_133 = arith.constant 6 : index
    %c0_134 = arith.constant 0 : index
    %372 = vector.load %arg24[%c6_133, %c0_134] : memref<8x128xf32, #tpu.memory_space<vmem>>, vector<1x128xf32>
    tpu.vector_store %arg24[%c6_133, %c0_134], %371 {strides = array<i32>} : memref<8x128xf32, #tpu.memory_space<vmem>>, vector<1x128xf32>,
    %c7 = arith.constant 7 : index
    %c0_135 = arith.constant 0 : index
    %373 = vector.load %arg23[%c7, %c0_135] : memref<8x512xf32, #tpu.memory_space<vmem>>, vector<1x512xf32>
    %cst_136 = arith.constant dense<0.000000e+00> : vector<1x512xf32>
    %374 = tpu.matmul %371, %167, %cst_136 {dimension_numbers = #tpu.dot_dimension_numbers<[1], [0], [0], [1], [0, 0, 1, 1], [], []>} : vector<1x128xf32>, vector<128x512xf32>, vector<1x512xf32> -> vector<1x512xf32>
    %375 = arith.addf %373, %374 : vector<1x512xf32>
    %376 = vector.extract_strided_slice %375 {offsets = [0, 0], sizes = [1, 128], strides = [1, 1]} : vector<1x512xf32> to vector<1x128xf32>
    %377 = arith.negf %376 : vector<1x128xf32>
    %378 = math.exp %377 : vector<1x128xf32>
    %cst_137 = arith.constant 1.000000e+00 : f32
    %379 = vector.broadcast %cst_137 : f32 to vector<1x128xf32>
    %380 = arith.addf %379, %378 : vector<1x128xf32>
    %381 = arith.divf %379, %380 : vector<1x128xf32>
    %382 = vector.extract_strided_slice %375 {offsets = [0, 128], sizes = [1, 128], strides = [1, 1]} : vector<1x512xf32> to vector<1x128xf32>
    %383 = arith.negf %382 : vector<1x128xf32>
    %384 = math.exp %383 : vector<1x128xf32>
    %cst_138 = arith.constant 1.000000e+00 : f32
    %385 = vector.broadcast %cst_138 : f32 to vector<1x128xf32>
    %386 = arith.addf %385, %384 : vector<1x128xf32>
    %387 = arith.divf %385, %386 : vector<1x128xf32>
    %388 = vector.extract_strided_slice %375 {offsets = [0, 256], sizes = [1, 128], strides = [1, 1]} : vector<1x512xf32> to vector<1x128xf32>
    %389 = math.tanh %388 : vector<1x128xf32>
    %390 = vector.extract_strided_slice %375 {offsets = [0, 384], sizes = [1, 128], strides = [1, 1]} : vector<1x512xf32> to vector<1x128xf32>
    %391 = arith.negf %390 : vector<1x128xf32>
    %392 = math.exp %391 : vector<1x128xf32>
    %cst_139 = arith.constant 1.000000e+00 : f32
    %393 = vector.broadcast %cst_139 : f32 to vector<1x128xf32>
    %394 = arith.addf %393, %392 : vector<1x128xf32>
    %395 = arith.divf %393, %394 : vector<1x128xf32>
    %396 = arith.mulf %387, %369 : vector<1x128xf32>
    %397 = arith.mulf %381, %389 : vector<1x128xf32>
    %398 = arith.addf %396, %397 : vector<1x128xf32>
    %399 = math.tanh %398 : vector<1x128xf32>
    %400 = arith.mulf %395, %399 : vector<1x128xf32>
    %c7_140 = arith.constant 7 : index
    %c0_141 = arith.constant 0 : index
    %401 = vector.load %arg24[%c7_140, %c0_141] : memref<8x128xf32, #tpu.memory_space<vmem>>, vector<1x128xf32>
    tpu.vector_store %arg24[%c7_140, %c0_141], %400 {strides = array<i32>} : memref<8x128xf32, #tpu.memory_space<vmem>>, vector<1x128xf32>,
    %c0_142 = arith.constant 0 : index
    %c0_143 = arith.constant 0 : index
    %402 = vector.load %arg24[%c0_142, %c0_143] : memref<8x128xf32, #tpu.memory_space<vmem>>, vector<8x128xf32>
    %403 = arith.addf %402, %131 : vector<8x128xf32>
    %c0_144 = arith.constant 0 : index
    %c0_145 = arith.constant 0 : index
    %c0_146 = arith.constant 0 : index
    %404 = vector.load %arg17[%c0_144, %c0_145, %c0_146] : memref<1x128x256xf32, #tpu.memory_space<vmem>>, vector<1x128x256xf32>
    %405 = vector.shape_cast %404 : vector<1x128x256xf32> to vector<128x256xf32>
    %cst_147 = arith.constant dense<0.000000e+00> : vector<8x256xf32>
    %406 = tpu.matmul %403, %405, %cst_147 {dimension_numbers = #tpu.dot_dimension_numbers<[1], [0], [0], [1], [0, 0, 1, 1], [], []>} : vector<8x128xf32>, vector<128x256xf32>, vector<8x256xf32> -> vector<8x256xf32>
    %c0_148 = arith.constant 0 : index
    %c0_149 = arith.constant 0 : index
    %c0_150 = arith.constant 0 : index
    %407 = vector.load %arg18[%c0_148, %c0_149, %c0_150] : memref<1x1x256xf32, #tpu.memory_space<vmem>>, vector<1x1x256xf32>
    %408 = vector.shape_cast %407 : vector<1x1x256xf32> to vector<1x256xf32>
    %409 = vector.broadcast %408 : vector<1x256xf32> to vector<8x256xf32>
    %410 = arith.addf %406, %409 : vector<8x256xf32>
    %cst_151 = arith.constant 5.000000e-01 : f32
    %411 = vector.broadcast %cst_151 : f32 to vector<8x256xf32>
    %412 = arith.mulf %411, %410 : vector<8x256xf32>
    %cst_152 = arith.constant 0.707106769 : f32
    %413 = vector.broadcast %cst_152 : f32 to vector<8x256xf32>
    %414 = arith.mulf %410, %413 : vector<8x256xf32>
    %415 = math.erf %414 : vector<8x256xf32>
    %cst_153 = arith.constant 1.000000e+00 : f32
    %416 = vector.broadcast %cst_153 : f32 to vector<8x256xf32>
    %417 = arith.addf %416, %415 : vector<8x256xf32>
    %418 = arith.mulf %412, %417 : vector<8x256xf32>
    %c0_154 = arith.constant 0 : index
    %c0_155 = arith.constant 0 : index
    %c0_156 = arith.constant 0 : index
    %419 = vector.load %arg19[%c0_154, %c0_155, %c0_156] : memref<1x256x128xf32, #tpu.memory_space<vmem>>, vector<1x256x128xf32>
    %420 = vector.shape_cast %419 : vector<1x256x128xf32> to vector<256x128xf32>
    %cst_157 = arith.constant dense<0.000000e+00> : vector<8x128xf32>
    %421 = tpu.matmul %418, %420, %cst_157 {dimension_numbers = #tpu.dot_dimension_numbers<[1], [0], [0], [1], [0, 0, 1, 1], [], []>} : vector<8x256xf32>, vector<256x128xf32>, vector<8x128xf32> -> vector<8x128xf32>
    %c0_158 = arith.constant 0 : index
    %c0_159 = arith.constant 0 : index
    %c0_160 = arith.constant 0 : index
    %422 = vector.load %arg20[%c0_158, %c0_159, %c0_160] : memref<1x1x128xf32, #tpu.memory_space<vmem>>, vector<1x1x128xf32>
    %423 = vector.shape_cast %422 : vector<1x1x128xf32> to vector<1x128xf32>
    %424 = vector.broadcast %423 : vector<1x128xf32> to vector<8x128xf32>
    %425 = arith.addf %421, %424 : vector<8x128xf32>
    %426 = arith.addf %425, %403 : vector<8x128xf32>
    %c0_161 = arith.constant 0 : index
    %c0_162 = arith.constant 0 : index
    %427 = vector.load %arg22[%c0_161, %c0_162] : memref<8x128xf32, #tpu.memory_space<vmem>>, vector<8x128xf32>
    tpu.vector_store %arg22[%c0_161, %c0_162], %426 {strides = array<i32>} : memref<8x128xf32, #tpu.memory_space<vmem>>, vector<8x128xf32>,
    %c1_i32 = arith.constant 1 : i32
    %428 = arith.cmpi eq, %arg1, %c1_i32 : i32
    %429 = arith.extui %428 : i1 to i32
    %c0_i32_163 = arith.constant 0 : i32
    %430 = arith.cmpi ne, %429, %c0_i32_163 : i32
    scf.if %430 {
      %c0_164 = arith.constant 0 : index
      %c0_165 = arith.constant 0 : index
      %c0_166 = arith.constant 0 : index
      %431 = vector.load %arg21[%c0_164, %c0_165, %c0_166] : memref<1x8x128xf32, #tpu.memory_space<vmem>>, vector<1x8x128xf32>
      %432 = vector.shape_cast %431 : vector<1x8x128xf32> to vector<8x128xf32>
      %433 = vector.shape_cast %426 : vector<8x128xf32> to vector<1x8x128xf32>
      tpu.vector_store %arg21[%c0_164, %c0_165, %c0_166], %433 {strides = array<i32>} : memref<1x8x128xf32, #tpu.memory_space<vmem>>, vector<1x8x128xf32>,
    } else {
    }
    return
  }
  func.func @transform_0(%arg0: i32, %arg1: i32) -> (i32, i32, i32) {
    %c0_i32 = arith.constant 0 : i32
    %c0_i32_0 = arith.constant 0 : i32
    %c0_i32_1 = arith.constant 0 : i32
    return %arg0, %c0_i32, %c0_i32_0 : i32, i32, i32
  }
  func.func @transform_1(%arg0: i32, %arg1: i32) -> (i32, i32, i32) {
    %c0_i32 = arith.constant 0 : i32
    %c0_i32_0 = arith.constant 0 : i32
    %c0_i32_1 = arith.constant 0 : i32
    return %arg0, %c0_i32, %c0_i32_0 : i32, i32, i32
  }
  func.func @transform_2(%arg0: i32, %arg1: i32) -> (i32, i32, i32) {
    %c0_i32 = arith.constant 0 : i32
    %c0_i32_0 = arith.constant 0 : i32
    %c0_i32_1 = arith.constant 0 : i32
    return %arg1, %c0_i32, %c0_i32_0 : i32, i32, i32
  }
  func.func @transform_3(%arg0: i32, %arg1: i32) -> (i32, i32, i32) {
    %c0_i32 = arith.constant 0 : i32
    %c0_i32_0 = arith.constant 0 : i32
    %c0_i32_1 = arith.constant 0 : i32
    return %arg1, %c0_i32, %c0_i32_0 : i32, i32, i32
  }
  func.func @transform_4(%arg0: i32, %arg1: i32) -> (i32, i32, i32) {
    %c0_i32 = arith.constant 0 : i32
    %c0_i32_0 = arith.constant 0 : i32
    %c0_i32_1 = arith.constant 0 : i32
    return %arg1, %c0_i32, %c0_i32_0 : i32, i32, i32
  }
  func.func @transform_5(%arg0: i32, %arg1: i32) -> (i32, i32, i32) {
    %c0_i32 = arith.constant 0 : i32
    %c0_i32_0 = arith.constant 0 : i32
    %c0_i32_1 = arith.constant 0 : i32
    return %arg1, %c0_i32, %c0_i32_0 : i32, i32, i32
  }
  func.func @transform_6(%arg0: i32, %arg1: i32) -> (i32, i32, i32) {
    %c0_i32 = arith.constant 0 : i32
    %c0_i32_0 = arith.constant 0 : i32
    %c0_i32_1 = arith.constant 0 : i32
    return %arg1, %c0_i32, %c0_i32_0 : i32, i32, i32
  }
  func.func @transform_7(%arg0: i32, %arg1: i32) -> (i32, i32, i32) {
    %c0_i32 = arith.constant 0 : i32
    %c0_i32_0 = arith.constant 0 : i32
    %c0_i32_1 = arith.constant 0 : i32
    return %arg1, %c0_i32, %c0_i32_0 : i32, i32, i32
  }
  func.func @transform_8(%arg0: i32, %arg1: i32) -> (i32, i32, i32) {
    %c0_i32 = arith.constant 0 : i32
    %c0_i32_0 = arith.constant 0 : i32
    %c0_i32_1 = arith.constant 0 : i32
    return %arg1, %c0_i32, %c0_i32_0 : i32, i32, i32
  }
  func.func @transform_9(%arg0: i32, %arg1: i32) -> (i32, i32, i32) {
    %c0_i32 = arith.constant 0 : i32
    %c0_i32_0 = arith.constant 0 : i32
    %c0_i32_1 = arith.constant 0 : i32
    return %arg1, %c0_i32, %c0_i32_0 : i32, i32, i32
  }
  func.func @transform_10(%arg0: i32, %arg1: i32) -> (i32, i32, i32) {
    %c0_i32 = arith.constant 0 : i32
    %c0_i32_0 = arith.constant 0 : i32
    %c0_i32_1 = arith.constant 0 : i32
    return %arg1, %c0_i32, %c0_i32_0 : i32, i32, i32
  }
  func.func @transform_11(%arg0: i32, %arg1: i32) -> (i32, i32, i32) {
    %c0_i32 = arith.constant 0 : i32
    %c0_i32_0 = arith.constant 0 : i32
    %c0_i32_1 = arith.constant 0 : i32
    return %arg1, %c0_i32, %c0_i32_0 : i32, i32, i32
  }
  func.func @transform_12(%arg0: i32, %arg1: i32) -> (i32, i32, i32) {
    %c0_i32 = arith.constant 0 : i32
    %c0_i32_0 = arith.constant 0 : i32
    %c0_i32_1 = arith.constant 0 : i32
    return %arg1, %c0_i32, %c0_i32_0 : i32, i32, i32
  }
  func.func @transform_13(%arg0: i32, %arg1: i32) -> (i32, i32, i32) {
    %c0_i32 = arith.constant 0 : i32
    %c0_i32_0 = arith.constant 0 : i32
    %c0_i32_1 = arith.constant 0 : i32
    return %arg1, %c0_i32, %c0_i32_0 : i32, i32, i32
  }
  func.func @transform_14(%arg0: i32, %arg1: i32) -> (i32, i32, i32) {
    %c0_i32 = arith.constant 0 : i32
    %c0_i32_0 = arith.constant 0 : i32
    %c0_i32_1 = arith.constant 0 : i32
    return %arg1, %c0_i32, %c0_i32_0 : i32, i32, i32
  }
  func.func @transform_15(%arg0: i32, %arg1: i32) -> (i32, i32, i32) {
    %c0_i32 = arith.constant 0 : i32
    %c0_i32_0 = arith.constant 0 : i32
    %c0_i32_1 = arith.constant 0 : i32
    return %arg1, %c0_i32, %c0_i32_0 : i32, i32, i32
  }
  func.func @transform_16(%arg0: i32, %arg1: i32) -> (i32, i32, i32) {
    %c0_i32 = arith.constant 0 : i32
    %c0_i32_0 = arith.constant 0 : i32
    %c0_i32_1 = arith.constant 0 : i32
    return %arg1, %c0_i32, %c0_i32_0 : i32, i32, i32
  }
  func.func @transform_17(%arg0: i32, %arg1: i32) -> (i32, i32, i32) {
    %c0_i32 = arith.constant 0 : i32
    %c0_i32_0 = arith.constant 0 : i32
    %c0_i32_1 = arith.constant 0 : i32
    return %arg1, %c0_i32, %c0_i32_0 : i32, i32, i32
  }
  func.func @transform_18(%arg0: i32, %arg1: i32) -> (i32, i32, i32) {
    %c0_i32 = arith.constant 0 : i32
    %c0_i32_0 = arith.constant 0 : i32
    %c0_i32_1 = arith.constant 0 : i32
    return %arg1, %c0_i32, %c0_i32_0 : i32, i32, i32
  }
  func.func @transform_19(%arg0: i32, %arg1: i32) -> (i32, i32, i32) {
    %c0_i32 = arith.constant 0 : i32
    %c0_i32_0 = arith.constant 0 : i32
    %c0_i32_1 = arith.constant 0 : i32
    return %arg0, %c0_i32, %c0_i32_0 : i32, i32, i32
  }
}

module attributes {stable_mosaic.version = 11 : i64} {
  func.func @_vocab_kernel(%arg0: i32, %arg1: memref<16x128xf32, #tpu.memory_space<vmem>>, %arg2: memref<128x256xf32, #tpu.memory_space<vmem>>, %arg3: memref<1x256xf32, #tpu.memory_space<vmem>>, %arg4: memref<16x256xf32, #tpu.memory_space<vmem>>) attributes {dimension_semantics = [#tpu.dimension_semantics<parallel>], iteration_bounds = array<i64: 1>, scalar_prefetch = 0 : i64, scratch_operands = 0 : i64, tpu.core_type = #tpu.core_type<tc>, window_params = [{pipeline_mode = #tpu.pipeline_mode<synchronous>, transform_indices = @transform_0, window_bounds = array<i64: 16, 128>}, {transform_indices = @transform_1, window_bounds = array<i64: 128, 256>}, {transform_indices = @transform_2, window_bounds = array<i64: 1, 256>}, {transform_indices = @transform_3, window_bounds = array<i64: 16, 256>}]} {
    %c0 = arith.constant 0 : index
    %c0_0 = arith.constant 0 : index
    %0 = vector.load %arg1[%c0, %c0_0] : memref<16x128xf32, #tpu.memory_space<vmem>>, vector<16x128xf32>
    %c0_1 = arith.constant 0 : index
    %c0_2 = arith.constant 0 : index
    %1 = vector.load %arg2[%c0_1, %c0_2] : memref<128x256xf32, #tpu.memory_space<vmem>>, vector<128x256xf32>
    %cst = arith.constant dense<0.000000e+00> : vector<16x256xf32>
    %2 = tpu.matmul %0, %1, %cst {dimension_numbers = #tpu.dot_dimension_numbers<[1], [0], [0], [1], [0, 0, 1, 1], [], []>} : vector<16x128xf32>, vector<128x256xf32>, vector<16x256xf32> -> vector<16x256xf32>
    %c0_3 = arith.constant 0 : index
    %c0_4 = arith.constant 0 : index
    %3 = vector.load %arg3[%c0_3, %c0_4] : memref<1x256xf32, #tpu.memory_space<vmem>>, vector<1x256xf32>
    %4 = vector.broadcast %3 : vector<1x256xf32> to vector<16x256xf32>
    %5 = arith.addf %2, %4 : vector<16x256xf32>
    %c0_5 = arith.constant 0 : index
    %c0_6 = arith.constant 0 : index
    %6 = vector.load %arg4[%c0_5, %c0_6] : memref<16x256xf32, #tpu.memory_space<vmem>>, vector<16x256xf32>
    tpu.vector_store %arg4[%c0_5, %c0_6], %5 {strides = array<i32>} : memref<16x256xf32, #tpu.memory_space<vmem>>, vector<16x256xf32>,
    return
  }
  func.func @transform_0(%arg0: i32) -> (i32, i32) {
    %c0_i32 = arith.constant 0 : i32
    %c0_i32_0 = arith.constant 0 : i32
    %c0_i32_1 = arith.constant 0 : i32
    return %c0_i32, %c0_i32_0 : i32, i32
  }
  func.func @transform_1(%arg0: i32) -> (i32, i32) {
    %c0_i32 = arith.constant 0 : i32
    %c0_i32_0 = arith.constant 0 : i32
    return %c0_i32, %arg0 : i32, i32
  }
  func.func @transform_2(%arg0: i32) -> (i32, i32) {
    %c0_i32 = arith.constant 0 : i32
    %c0_i32_0 = arith.constant 0 : i32
    return %c0_i32, %arg0 : i32, i32
  }
  func.func @transform_3(%arg0: i32) -> (i32, i32) {
    %c0_i32 = arith.constant 0 : i32
    %c0_i32_0 = arith.constant 0 : i32
    return %c0_i32, %arg0 : i32, i32
  }
}

</mosaic_0001>

<llo_original>
// kernel: seq2seq_forward.5
$region0: #{seq2seq_forward.5}
  #allocation0 [shape = 'u32[]', space=smem, size = 0x4, offset = 0x4, fixed_abs, tag = 'smem constant byte address 0x4 - core index']
  #allocation1 [shape = 'u32[72,128]{1,0:T(1,128)}', space=vmem, size = 0x9000, scoped, tag = 'internal scratch']
  %s0 = inlined_call_operand.vmem [shape: f32[16,128], index: 0, kind: input, shape index: {}]
  %s1 = inlined_call_operand.hbm [shape: f32[128,256], index: 1, kind: input, shape index: {}]
  %s2 = inlined_call_operand.vmem [shape: f32[1,256], index: 2, kind: input, shape index: {}]
  %s3 = inlined_call_operand.hbm [shape: f32[16,256], index: 3, kind: output, shape index: {}]
  %s4 = sld [smem:[#allocation0]]
  $region26: #{seq2seq_forward.5} parent=0
    _
  %s6 = ssub.s32 1, %s4
  %s7 = scalar_select 0, %s6, %s4
  $region1: #{seq2seq_forward.5} parent=0
    #allocation2 [shape = 'u8[131072]{0}', space=vmem, size = 0x20000, scoped, tag = 'input window, operand 1, single buffered']
    #allocation3 [shape = 's32[1]{0}', space=sflag, size = 0x4, scoped, tag = 'scoped memory for seq2seq_forward.5']
    #allocation4 [shape = 's32[1]{0}', space=sflag, size = 0x4, scoped, tag = 'scoped memory for seq2seq_forward.5']
    #allocation5 [shape = 'u8[16384]{0}', space=vmem, size = 0x4000, scoped, tag = 'output window, operand 0, single buffered']
    %8 = vsyncpa [#allocation3], 0
    %9 = vsyncpa [#allocation4], 0
    // Predicated region
    $region2: #{seq2seq_forward.5} parent=1 // pred_check
      _
    $region3: #{seq2seq_forward.5} parent=1 // pred_check_branch
      %11 = sbr.rel (0) target = $region5
    $region4: #{seq2seq_forward.5} parent=1 // pred_region
      _
    $region5: #{seq2seq_forward.5} parent=1 // pred_fallthru
      _
    // Predicated region
    $region6: #{seq2seq_forward.5} parent=1 // pred_check
      _
    $region7: #{seq2seq_forward.5} parent=1 // pred_check_branch
      %13 = sbr.rel (0) target = $region9
    $region8: #{seq2seq_forward.5} parent=1 // pred_region
      %15 = vsyncadd [#allocation3], 0
      %s16 = sshll.u32 %s1, 4
      %s17 = int_to_ptr.hbm [resolvable:$true] %s16
      %s18 = sshll.u32 [#allocation2], 4
      %s19 = int_to_ptr.vmem [resolvable:$true] %s18
      %24 = dma.hbm_to_vmem [thread:$0]  %s17, 4096, %s19, [#allocation3], 256, 256, 16
    $region9: #{seq2seq_forward.5} parent=1 // pred_fallthru
      _
    // Predicated region
    $region10: #{seq2seq_forward.5} parent=1 // pred_check
      _
    $region11: #{seq2seq_forward.5} parent=1 // pred_check_branch
      %26 = sbr.rel (0) target = $region13
    $region12: #{seq2seq_forward.5} parent=1 // pred_region
      _
    $region13: #{seq2seq_forward.5} parent=1 // pred_fallthru
      _
    // Predicated region
    $region14: #{seq2seq_forward.5} parent=1 // pred_check
      _
    $region15: #{seq2seq_forward.5} parent=1 // pred_check_branch
      %28 = sbr.rel (0) target = $region17
    $region16: #{seq2seq_forward.5} parent=1 // pred_region
      %30 = dma.done [#allocation3], 4096
    $region17: #{seq2seq_forward.5} parent=1 // pred_fallthru
      _
    %v31 = vld [vmem:[%s0] sm:$0xff]
    %v32 = vld [vmem:[%s0 + $0x8] sm:$0xff]
    %v33 = vld [vmem:[#allocation2] sm:$0xff]
    %v34 = vld [vmem:[#allocation2 + $0x8] sm:$0xff]
    %v35 = vld [vmem:[#allocation2 + $0x10] sm:$0xff]
    %v36 = vld [vmem:[#allocation2 + $0x18] sm:$0xff]
    %v37 = vld [vmem:[#allocation2 + $0x20] sm:$0xff]
    %v38 = vld [vmem:[#allocation2 + $0x28] sm:$0xff]
    %v39 = vld [vmem:[#allocation2 + $0x30] sm:$0xff]
    %v40 = vld [vmem:[#allocation2 + $0x38] sm:$0xff]
    %v41 = vld [vmem:[#allocation2 + $0x40] sm:$0xff]
    %v42 = vld [vmem:[#allocation2 + $0x48] sm:$0xff]
    %v43 = vld [vmem:[#allocation2 + $0x50] sm:$0xff]
    %v44 = vld [vmem:[#allocation2 + $0x58] sm:$0xff]
    %v45 = vld [vmem:[#allocation2 + $0x60] sm:$0xff]
    %v46 = vld [vmem:[#allocation2 + $0x68] sm:$0xff]
    %v47 = vld [vmem:[#allocation2 + $0x70] sm:$0xff]
    %v48 = vld [vmem:[#allocation2 + $0x78] sm:$0xff]
    %v49 = vld [vmem:[#allocation2 + $0x80] sm:$0xff]
    %v50 = vld [vmem:[#allocation2 + $0x88] sm:$0xff]
    %v51 = vld [vmem:[#allocation2 + $0x90] sm:$0xff]
    %v52 = vld [vmem:[#allocation2 + $0x98] sm:$0xff]
    %v53 = vld [vmem:[#allocation2 + $0xa0] sm:$0xff]
    %v54 = vld [vmem:[#allocation2 + $0xa8] sm:$0xff]
    %v55 = vld [vmem:[#allocation2 + $0xb0] sm:$0xff]
    %v56 = vld [vmem:[#allocation2 + $0xb8] sm:$0xff]
    %v57 = vld [vmem:[#allocation2 + $0xc0] sm:$0xff]
    %v58 = vld [vmem:[#allocation2 + $0xc8] sm:$0xff]
    %v59 = vld [vmem:[#allocation2 + $0xd0] sm:$0xff]
    %v60 = vld [vmem:[#allocation2 + $0xd8] sm:$0xff]
    %v61 = vld [vmem:[#allocation2 + $0xe0] sm:$0xff]
    %v62 = vld [vmem:[#allocation2 + $0xe8] sm:$0xff]
    %v63 = vld [vmem:[#allocation2 + $0xf0] sm:$0xff]
    %v64 = vld [vmem:[#allocation2 + $0xf8] sm:$0xff]
    %v65 = vld [vmem:[%s2] sm:$0x3]
    %v67 = vperm.slane %v65, 0
    %v68 = vperm.slane %v65, 1
    %71 = vmatpush.msra.mxu0 %v63
    %72 = vmatpush.msra.mxu0 %v61
    %73 = vmatpush.msra.mxu0 %v59
    %74 = vmatpush.msra.mxu0 %v57
    %75 = vmatpush.msra.mxu0 %v55
    %76 = vmatpush.msra.mxu0 %v53
    %77 = vmatpush.msra.mxu0 %v51
    %78 = vmatpush.msra.mxu0 %v49
    %79 = vmatpush.msra.mxu0 %v47
    %80 = vmatpush.msra.mxu0 %v45
    %81 = vmatpush.msra.mxu0 %v43
    %82 = vmatpush.msra.mxu0 %v41
    %83 = vmatpush.msra.mxu0 %v39
    %84 = vmatpush.msra.mxu0 %v37
    %85 = vmatpush.msra.mxu0 %v35
    %86 = vmatpush.msra.mxu0 %v33
    %87 = vmatmul.f32.gmra.mxu0 %v31
    %v88 = vpop.f32.mrf.mxu0
    %v89 = vadd.f32 %v67, %v88
    %90 = vmatmul.f32.gmra.mxu0 %v32
    %v91 = vpop.f32.mrf.mxu0
    %v92 = vadd.f32 %v67, %v91
    %93 = vdwg.mxu0
    %94 = vmatpush.msra.mxu0 %v64
    %95 = vmatpush.msra.mxu0 %v62
    %96 = vmatpush.msra.mxu0 %v60
    %97 = vmatpush.msra.mxu0 %v58
    %98 = vmatpush.msra.mxu0 %v56
    %99 = vmatpush.msra.mxu0 %v54
    %100 = vmatpush.msra.mxu0 %v52
    %101 = vmatpush.msra.mxu0 %v50
    %102 = vmatpush.msra.mxu0 %v48
    %103 = vmatpush.msra.mxu0 %v46
    %104 = vmatpush.msra.mxu0 %v44
    %105 = vmatpush.msra.mxu0 %v42
    %106 = vmatpush.msra.mxu0 %v40
    %107 = vmatpush.msra.mxu0 %v38
    %108 = vmatpush.msra.mxu0 %v36
    %109 = vmatpush.msra.mxu0 %v34
    %110 = vmatmul.f32.gmra.mxu0 %v31
    %v111 = vpop.f32.mrf.mxu0
    %v112 = vadd.f32 %v68, %v111
    %113 = vmatmul.f32.gmra.mxu0 %v32
    %v114 = vpop.f32.mrf.mxu0
    %v115 = vadd.f32 %v68, %v114
    %116 = vdwg.mxu0
    %117 = vst [vmem:[#allocation5] sm:$0xff] %v89
    %118 = vst [vmem:[#allocation5 + $0x8] sm:$0xff] %v112
    %119 = vst [vmem:[#allocation5 + $0x10] sm:$0xff] %v92
    %120 = vst [vmem:[#allocation5 + $0x18] sm:$0xff] %v115
    // Predicated region
    $region18: #{seq2seq_forward.5} parent=1 // pred_check
      _
    $region19: #{seq2seq_forward.5} parent=1 // pred_check_branch
      %122 = sbr.rel (0) target = $region21
    $region20: #{seq2seq_forward.5} parent=1 // pred_region
      %124 = vsyncadd [#allocation4], 0
      %s125 = sshll.u32 [#allocation5], 4
      %s126 = int_to_ptr.vmem [resolvable:$true] %s125
      %s127 = sshll.u32 %s3, 4
      %s128 = int_to_ptr.hbm [resolvable:$true] %s127
      %133 = dma.vmem_to_hbm [thread:$0]  %s126, 512, %s128, [#allocation4], 256, 256, 16
    $region21: #{seq2seq_forward.5} parent=1 // pred_fallthru
      _
    // Predicated region
    $region22: #{seq2seq_forward.5} parent=1 // pred_check
      _
    $region23: #{seq2seq_forward.5} parent=1 // pred_check_branch
      %135 = sbr.rel (0) target = $region25
    $region24: #{seq2seq_forward.5} parent=1 // pred_region
      %137 = dma.done [#allocation4], 512
    $region25: #{seq2seq_forward.5} parent=1 // pred_fallthru
      _
    %138 = vsyncpa [#allocation3], 1
    %139 = vsyncpa [#allocation4], 1

// kernel: seq2seq_forward.3
$region0: #{seq2seq_forward.3}
  #allocation0 [shape = 'u32[]', space=smem, size = 0x4, offset = 0x4, fixed_abs, tag = 'smem constant byte address 0x4 - core index']
  #allocation1 [shape = 'u32[72,128]{1,0:T(1,128)}', space=vmem, size = 0x9000, scoped, tag = 'internal scratch']
  #allocation2 [shape = 'f32[8,128]{1,0:T(8,128)}', space=vmem, size = 0x1000, scoped, tag = 'scratch operand']
  %s0 = inlined_call_operand.vmem [shape: f32[2,8,128], index: 0, kind: input, shape index: {}]
  %s1 = inlined_call_operand.vmem [shape: f32[2,1,128], index: 1, kind: input, shape index: {}]
  %s2 = inlined_call_operand.vmem [shape: f32[2,1,128], index: 2, kind: input, shape index: {}]
  %s3 = inlined_call_operand.hbm [shape: f32[2,128,384], index: 3, kind: input, shape index: {}]
  %s4 = inlined_call_operand.vmem [shape: f32[2,1,384], index: 4, kind: input, shape index: {}]
  %s5 = inlined_call_operand.hbm [shape: f32[2,128,128], index: 5, kind: input, shape index: {}]
  %s6 = inlined_call_operand.hbm [shape: f32[2,1,128], index: 6, kind: input, shape index: {}]
  %s7 = inlined_call_operand.vmem [shape: f32[2,1,128], index: 7, kind: input, shape index: {}]
  %s8 = inlined_call_operand.vmem [shape: f32[2,1,128], index: 8, kind: input, shape index: {}]
  %s9 = inlined_call_operand.hbm [shape: f32[2,128,256], index: 9, kind: input, shape index: {}]
  %s10 = inlined_call_operand.vmem [shape: f32[2,1,256], index: 10, kind: input, shape index: {}]
  %s11 = inlined_call_operand.hbm [shape: f32[2,256,128], index: 11, kind: input, shape index: {}]
  %s12 = inlined_call_operand.hbm [shape: f32[2,1,128], index: 12, kind: input, shape index: {}]
  %s13 = inlined_call_operand.vmem [shape: f32[2,8,128], index: 13, kind: output, shape index: {}]
  %s14 = sld [smem:[#allocation0]]
  $region117: #{seq2seq_forward.3} parent=0
    _
  %s16 = ssub.s32 1, %s14
  %s17 = scalar_select 0, %s16, %s14
  $region1: #{seq2seq_forward.3} parent=0
    #allocation3 [shape = 'u8[393216]{0}', space=vmem, size = 0x60000, scoped, tag = 'input window, operand 3']
    #allocation4 [shape = 's32[2]{0}', space=sflag, size = 0x8, scoped, tag = 'scoped memory for seq2seq_forward.3']
    #allocation5 [shape = 'u8[131072]{0}', space=vmem, size = 0x20000, scoped, tag = 'input window, operand 5']
    #allocation6 [shape = 's32[2]{0}', space=sflag, size = 0x8, scoped, tag = 'scoped memory for seq2seq_forward.3']
    #allocation7 [shape = 'u8[1024]{0}', space=vmem, size = 0x400, scoped, tag = 'input window, operand 6']
    #allocation8 [shape = 'u8[262144]{0}', space=vmem, size = 0x40000, scoped, tag = 'input window, operand 9']
    #allocation9 [shape = 's32[2]{0}', space=sflag, size = 0x8, scoped, tag = 'scoped memory for seq2seq_forward.3']
    #allocation10 [shape = 'u8[262144]{0}', space=vmem, size = 0x40000, scoped, tag = 'input window, operand 11']
    #allocation11 [shape = 'u8[1024]{0}', space=vmem, size = 0x400, scoped, tag = 'input window, operand 12']
    #allocation12 [shape = 's32[2]{0}', space=sflag, size = 0x8, scoped, tag = 'scoped memory for seq2seq_forward.3']
    %18 = vsyncpa [#allocation4], 0
    %s19 = scalar_lea.sflag [#allocation4], 1
    %20 = vsyncpa %s19, 0
    %21 = vsyncpa [#allocation6], 0
    %s22 = scalar_lea.sflag [#allocation6], 1
    %23 = vsyncpa %s22, 0
    %24 = vsyncpa [#allocation9], 0
    %s25 = scalar_lea.sflag [#allocation9], 1
    %26 = vsyncpa %s25, 0
    %27 = vsyncpa [#allocation12], 0
    %s28 = scalar_lea.sflag [#allocation12], 1
    %29 = vsyncpa %s28, 0
    loop: start=0, step=1, limit=6
    $region2: #{seq2seq_forward.3} parent=1 // loop_pre_header
      _
    $region3: #{seq2seq_forward.3} parent=1 // loop_header
      %s31 = sphi 0, %s35
      %p32 = scmp.ge.s32.totalorder %s31, 6
      %s38 = sphi 0, %s50
      %s39 = sphi 0, %s46
      %s40 = sphi 0, %s38
      %s41 = sphi 0, %s39
      %s42 = sphi 0, %s40
      %s43 = sphi 0, %s41
      %s53 = sphi 0, %s55
      %s56 = sphi 0, %s53
      %s57 = sphi 0, %s56
      %s73 = sphi 0, %s57
      %s79 = sphi 0, %s81
      %s82 = sphi 0, %s79
      %s83 = sphi 0, %s82
      %s99 = sphi 0, %s83
      %s105 = sphi 0, %s107
      %s108 = sphi 0, %s105
      %s109 = sphi 0, %s108
      %s125 = sphi 0, %s109
      %s131 = sphi 0, %s133
      %s134 = sphi 0, %s131
      %s135 = sphi 0, %s134
      %s151 = sphi 0, %s135
      %s157 = sphi 0, %s159
      %s160 = sphi 0, %s157
      %s161 = sphi 0, %s160
      %s177 = sphi 0, %s161
      %s183 = sphi 0, %s185
      %s186 = sphi 0, %s183
      %s187 = sphi 0, %s186
      %s203 = sphi 0, %s187
      %s209 = sphi 0, %s211
      %s212 = sphi 0, %s209
      %s213 = sphi 0, %s212
      %s229 = sphi 0, %s213
      %s235 = sphi 0, %s237
      %s238 = sphi 0, %s235
      %s239 = sphi 0, %s238
      %s255 = sphi 0, %s239
      %s261 = sphi 0, %s263
      %s264 = sphi 0, %s261
      %s265 = sphi 0, %s264
      %s281 = sphi 0, %s265
      %s287 = sphi 0, %s289
      %s290 = sphi 0, %s287
      %s291 = sphi 0, %s290
      %s307 = sphi 0, %s291
      %s313 = sphi 0, %s315
      %s316 = sphi 0, %s313
      %s317 = sphi 0, %s316
      %s333 = sphi 0, %s317
      %s339 = sphi 0, %s341
      %s342 = sphi 0, %s339
      %s343 = sphi 0, %s342
      %s359 = sphi 0, %s343
      %s365 = sphi 0, %s367
      %s368 = sphi 0, %s365
      %s369 = sphi 0, %s368
      %s385 = sphi 0, %s369
      %s391 = sphi 0, %s393
      %s394 = sphi 0, %s391
      %s395 = sphi 0, %s394
      %s411 = sphi 0, %s395
    $region4: #{seq2seq_forward.3} parent=1 // loop_header_branch
      %34 = sbr.rel (%p32) target = $region8
    $region5: #{seq2seq_forward.3} parent=1 // loop_body
      %s36 = ssub.s32 %s31, 1
      %s37 = ssub.s32 %s31, 2
      %s44 = sadd.s32 1, %s39
      %p45 = scmp.ge.s32.totalorder %s44, 2
      %s46 = scalar_select %p45, 0, %s44
      %s47 = sadd.s32 1, %s38
      %s48 = scalar_select %p45, %s47, %s38
      %p49 = scmp.ge.s32.totalorder %s48, 2
      %s50 = scalar_select %p49, 0, %s48
      %s51 = ssub.s32 %s38, %s50
      %p52 = scmp.eq.s32.totalorder %s51, 0
      %s54 = sadd.s32 %s53, 1
      %s55 = scalar_select %p52, %s53, %s54
      %p58 = pneg %p52
      %p59 = scmp.eq.s32.totalorder %s31, 3
      %p60 = por %p58, %p59
      %p61 = scmp.ne.s32.totalorder %s53, %s56
      %p62 = scmp.eq.s32.totalorder %s31, 0
      %p63 = por %p61, %p62
      %p64 = scmp.ne.s32.totalorder %s53, %s56
      %p65 = scmp.eq.s32.totalorder %s36, 3
      %p66 = por %p64, %p65
      %p67 = scmp.ne.s32.totalorder %s56, %s57
      %p68 = scmp.eq.s32.totalorder %s36, 0
      %p69 = por %p67, %p68
      %p70 = scmp.ne.s32.totalorder %s56, %s57
      %p71 = scmp.eq.s32.totalorder %s37, 3
      %p72 = por %p70, %p71
      %p74 = scmp.ne.s32.totalorder %s57, %s73
      %p75 = scmp.eq.s32.totalorder %s37, 0
      %p76 = por %p74, %p75
      %s77 = ssub.s32 %s39, %s46
      %p78 = scmp.eq.s32.totalorder %s77, 0
      %s80 = sadd.s32 %s79, 1
      %s81 = scalar_select %p78, %s79, %s80
      %p84 = pneg %p78
      %p85 = scmp.eq.s32.totalorder %s31, 3
      %p86 = por %p84, %p85
      %p87 = scmp.ne.s32.totalorder %s79, %s82
      %p88 = scmp.eq.s32.totalorder %s31, 0
      %p89 = por %p87, %p88
      %p90 = scmp.ne.s32.totalorder %s79, %s82
      %p91 = scmp.eq.s32.totalorder %s36, 3
      %p92 = por %p90, %p91
      %p93 = scmp.ne.s32.totalorder %s82, %s83
      %p94 = scmp.eq.s32.totalorder %s36, 0
      %p95 = por %p93, %p94
      %p96 = scmp.ne.s32.totalorder %s82, %s83
      %p97 = scmp.eq.s32.totalorder %s37, 3
      %p98 = por %p96, %p97
      %p100 = scmp.ne.s32.totalorder %s83, %s99
      %p101 = scmp.eq.s32.totalorder %s37, 0
      %p102 = por %p100, %p101
      %s103 = ssub.s32 %s39, %s46
      %p104 = scmp.eq.s32.totalorder %s103, 0
      %s106 = sadd.s32 %s105, 1
      %s107 = scalar_select %p104, %s105, %s106
      %p110 = pneg %p104
      %p111 = scmp.eq.s32.totalorder %s31, 3
      %p112 = por %p110, %p111
      %p113 = scmp.ne.s32.totalorder %s105, %s108
      %p114 = scmp.eq.s32.totalorder %s31, 0
      %p115 = por %p113, %p114
      %p116 = scmp.ne.s32.totalorder %s105, %s108
      %p117 = scmp.eq.s32.totalorder %s36, 3
      %p118 = por %p116, %p117
      %p119 = scmp.ne.s32.totalorder %s108, %s109
      %p120 = scmp.eq.s32.totalorder %s36, 0
      %p121 = por %p119, %p120
      %p122 = scmp.ne.s32.totalorder %s108, %s109
      %p123 = scmp.eq.s32.totalorder %s37, 3
      %p124 = por %p122, %p123
      %p126 = scmp.ne.s32.totalorder %s109, %s125
      %p127 = scmp.eq.s32.totalorder %s37, 0
      %p128 = por %p126, %p127
      %s129 = ssub.s32 %s39, %s46
      %p130 = scmp.eq.s32.totalorder %s129, 0
      %s132 = sadd.s32 %s131, 1
      %s133 = scalar_select %p130, %s131, %s132
      %p136 = pneg %p130
      %p137 = scmp.eq.s32.totalorder %s31, 3
      %p138 = por %p136, %p137
      %p139 = scmp.ne.s32.totalorder %s131, %s134
      %p140 = scmp.eq.s32.totalorder %s31, 0
      %p141 = por %p139, %p140
      %p142 = scmp.ne.s32.totalorder %s131, %s134
      %p143 = scmp.eq.s32.totalorder %s36, 3
      %p144 = por %p142, %p143
      %p145 = scmp.ne.s32.totalorder %s134, %s135
      %p146 = scmp.eq.s32.totalorder %s36, 0
      %p147 = por %p145, %p146
      %p148 = scmp.ne.s32.totalorder %s134, %s135
      %p149 = scmp.eq.s32.totalorder %s37, 3
      %p150 = por %p148, %p149
      %p152 = scmp.ne.s32.totalorder %s135, %s151
      %p153 = scmp.eq.s32.totalorder %s37, 0
      %p154 = por %p152, %p153
      %s155 = ssub.s32 %s39, %s46
      %p156 = scmp.eq.s32.totalorder %s155, 0
      %s158 = sadd.s32 %s157, 1
      %s159 = scalar_select %p156, %s157, %s158
      %p162 = pneg %p156
      %p163 = scmp.eq.s32.totalorder %s31, 3
      %p164 = por %p162, %p163
      %p165 = scmp.ne.s32.totalorder %s157, %s160
      %p166 = scmp.eq.s32.totalorder %s31, 0
      %p167 = por %p165, %p166
      %p168 = scmp.ne.s32.totalorder %s157, %s160
      %p169 = scmp.eq.s32.totalorder %s36, 3
      %p170 = por %p168, %p169
      %p171 = scmp.ne.s32.totalorder %s160, %s161
      %p172 = scmp.eq.s32.totalorder %s36, 0
      %p173 = por %p171, %p172
      %p174 = scmp.ne.s32.totalorder %s160, %s161
      %p175 = scmp.eq.s32.totalorder %s37, 3
      %p176 = por %p174, %p175
      %p178 = scmp.ne.s32.totalorder %s161, %s177
      %p179 = scmp.eq.s32.totalorder %s37, 0
      %p180 = por %p178, %p179
      %s181 = ssub.s32 %s39, %s46
      %p182 = scmp.eq.s32.totalorder %s181, 0
      %s184 = sadd.s32 %s183, 1
      %s185 = scalar_select %p182, %s183, %s184
      %p188 = pneg %p182
      %p189 = scmp.eq.s32.totalorder %s31, 3
      %p190 = por %p188, %p189
      %p191 = scmp.ne.s32.totalorder %s183, %s186
      %p192 = scmp.eq.s32.totalorder %s31, 0
      %p193 = por %p191, %p192
      %p194 = scmp.ne.s32.totalorder %s183, %s186
      %p195 = scmp.eq.s32.totalorder %s36, 3
      %p196 = por %p194, %p195
      %p197 = scmp.ne.s32.totalorder %s186, %s187
      %p198 = scmp.eq.s32.totalorder %s36, 0
      %p199 = por %p197, %p198
      %p200 = scmp.ne.s32.totalorder %s186, %s187
      %p201 = scmp.eq.s32.totalorder %s37, 3
      %p202 = por %p200, %p201
      %p204 = scmp.ne.s32.totalorder %s187, %s203
      %p205 = scmp.eq.s32.totalorder %s37, 0
      %p206 = por %p204, %p205
      %s207 = ssub.s32 %s39, %s46
      %p208 = scmp.eq.s32.totalorder %s207, 0
      %s210 = sadd.s32 %s209, 1
      %s211 = scalar_select %p208, %s209, %s210
      %p214 = pneg %p208
      %p215 = scmp.eq.s32.totalorder %s31, 3
      %p216 = por %p214, %p215
      %p217 = scmp.ne.s32.totalorder %s209, %s212
      %p218 = scmp.eq.s32.totalorder %s31, 0
      %p219 = por %p217, %p218
      %p220 = scmp.ne.s32.totalorder %s209, %s212
      %p221 = scmp.eq.s32.totalorder %s36, 3
      %p222 = por %p220, %p221
      %p223 = scmp.ne.s32.totalorder %s212, %s213
      %p224 = scmp.eq.s32.totalorder %s36, 0
      %p225 = por %p223, %p224
      %p226 = scmp.ne.s32.totalorder %s212, %s213
      %p227 = scmp.eq.s32.totalorder %s37, 3
      %p228 = por %p226, %p227
      %p230 = scmp.ne.s32.totalorder %s213, %s229
      %p231 = scmp.eq.s32.totalorder %s37, 0
      %p232 = por %p230, %p231
      %s233 = ssub.s32 %s39, %s46
      %p234 = scmp.eq.s32.totalorder %s233, 0
      %s236 = sadd.s32 %s235, 1
      %s237 = scalar_select %p234, %s235, %s236
      %p240 = pneg %p234
      %p241 = scmp.eq.s32.totalorder %s31, 3
      %p242 = por %p240, %p241
      %p243 = scmp.ne.s32.totalorder %s235, %s238
      %p244 = scmp.eq.s32.totalorder %s31, 0
      %p245 = por %p243, %p244
      %p246 = scmp.ne.s32.totalorder %s235, %s238
      %p247 = scmp.eq.s32.totalorder %s36, 3
      %p248 = por %p246, %p247
      %p249 = scmp.ne.s32.totalorder %s238, %s239
      %p250 = scmp.eq.s32.totalorder %s36, 0
      %p251 = por %p249, %p250
      %p252 = scmp.ne.s32.totalorder %s238, %s239
      %p253 = scmp.eq.s32.totalorder %s37, 3
      %p254 = por %p252, %p253
      %p256 = scmp.ne.s32.totalorder %s239, %s255
      %p257 = scmp.eq.s32.totalorder %s37, 0
      %p258 = por %p256, %p257
      %s259 = ssub.s32 %s39, %s46
      %p260 = scmp.eq.s32.totalorder %s259, 0
      %s262 = sadd.s32 %s261, 1
      %s263 = scalar_select %p260, %s261, %s262
      %p266 = pneg %p260
      %p267 = scmp.eq.s32.totalorder %s31, 3
      %p268 = por %p266, %p267
      %p269 = scmp.ne.s32.totalorder %s261, %s264
      %p270 = scmp.eq.s32.totalorder %s31, 0
      %p271 = por %p269, %p270
      %p272 = scmp.ne.s32.totalorder %s261, %s264
      %p273 = scmp.eq.s32.totalorder %s36, 3
      %p274 = por %p272, %p273
      %p275 = scmp.ne.s32.totalorder %s264, %s265
      %p276 = scmp.eq.s32.totalorder %s36, 0
      %p277 = por %p275, %p276
      %p278 = scmp.ne.s32.totalorder %s264, %s265
      %p279 = scmp.eq.s32.totalorder %s37, 3
      %p280 = por %p278, %p279
      %p282 = scmp.ne.s32.totalorder %s265, %s281
      %p283 = scmp.eq.s32.totalorder %s37, 0
      %p284 = por %p282, %p283
      %s285 = ssub.s32 %s39, %s46
      %p286 = scmp.eq.s32.totalorder %s285, 0
      %s288 = sadd.s32 %s287, 1
      %s289 = scalar_select %p286, %s287, %s288
      %p292 = pneg %p286
      %p293 = scmp.eq.s32.totalorder %s31, 3
      %p294 = por %p292, %p293
      %p295 = scmp.ne.s32.totalorder %s287, %s290
      %p296 = scmp.eq.s32.totalorder %s31, 0
      %p297 = por %p295, %p296
      %p298 = scmp.ne.s32.totalorder %s287, %s290
      %p299 = scmp.eq.s32.totalorder %s36, 3
      %p300 = por %p298, %p299
      %p301 = scmp.ne.s32.totalorder %s290, %s291
      %p302 = scmp.eq.s32.totalorder %s36, 0
      %p303 = por %p301, %p302
      %p304 = scmp.ne.s32.totalorder %s290, %s291
      %p305 = scmp.eq.s32.totalorder %s37, 3
      %p306 = por %p304, %p305
      %p308 = scmp.ne.s32.totalorder %s291, %s307
      %p309 = scmp.eq.s32.totalorder %s37, 0
      %p310 = por %p308, %p309
      %s311 = ssub.s32 %s39, %s46
      %p312 = scmp.eq.s32.totalorder %s311, 0
      %s314 = sadd.s32 %s313, 1
      %s315 = scalar_select %p312, %s313, %s314
      %p318 = pneg %p312
      %p319 = scmp.eq.s32.totalorder %s31, 3
      %p320 = por %p318, %p319
      %p321 = scmp.ne.s32.totalorder %s313, %s316
      %p322 = scmp.eq.s32.totalorder %s31, 0
      %p323 = por %p321, %p322
      %p324 = scmp.ne.s32.totalorder %s313, %s316
      %p325 = scmp.eq.s32.totalorder %s36, 3
      %p326 = por %p324, %p325
      %p327 = scmp.ne.s32.totalorder %s316, %s317
      %p328 = scmp.eq.s32.totalorder %s36, 0
      %p329 = por %p327, %p328
      %p330 = scmp.ne.s32.totalorder %s316, %s317
      %p331 = scmp.eq.s32.totalorder %s37, 3
      %p332 = por %p330, %p331
      %p334 = scmp.ne.s32.totalorder %s317, %s333
      %p335 = scmp.eq.s32.totalorder %s37, 0
      %p336 = por %p334, %p335
      %s337 = ssub.s32 %s39, %s46
      %p338 = scmp.eq.s32.totalorder %s337, 0
      %s340 = sadd.s32 %s339, 1
      %s341 = scalar_select %p338, %s339, %s340
      %p344 = pneg %p338
      %p345 = scmp.eq.s32.totalorder %s31, 3
      %p346 = por %p344, %p345
      %p347 = scmp.ne.s32.totalorder %s339, %s342
      %p348 = scmp.eq.s32.totalorder %s31, 0
      %p349 = por %p347, %p348
      %p350 = scmp.ne.s32.totalorder %s339, %s342
      %p351 = scmp.eq.s32.totalorder %s36, 3
      %p352 = por %p350, %p351
      %p353 = scmp.ne.s32.totalorder %s342, %s343
      %p354 = scmp.eq.s32.totalorder %s36, 0
      %p355 = por %p353, %p354
      %p356 = scmp.ne.s32.totalorder %s342, %s343
      %p357 = scmp.eq.s32.totalorder %s37, 3
      %p358 = por %p356, %p357
      %p360 = scmp.ne.s32.totalorder %s343, %s359
      %p361 = scmp.eq.s32.totalorder %s37, 0
      %p362 = por %p360, %p361
      %s363 = ssub.s32 %s39, %s46
      %p364 = scmp.eq.s32.totalorder %s363, 0
      %s366 = sadd.s32 %s365, 1
      %s367 = scalar_select %p364, %s365, %s366
      %p370 = pneg %p364
      %p371 = scmp.eq.s32.totalorder %s31, 3
      %p372 = por %p370, %p371
      %p373 = scmp.ne.s32.totalorder %s365, %s368
      %p374 = scmp.eq.s32.totalorder %s31, 0
      %p375 = por %p373, %p374
      %p376 = scmp.ne.s32.totalorder %s365, %s368
      %p377 = scmp.eq.s32.totalorder %s36, 3
      %p378 = por %p376, %p377
      %p379 = scmp.ne.s32.totalorder %s368, %s369
      %p380 = scmp.eq.s32.totalorder %s36, 0
      %p381 = por %p379, %p380
      %p382 = scmp.ne.s32.totalorder %s368, %s369
      %p383 = scmp.eq.s32.totalorder %s37, 3
      %p384 = por %p382, %p383
      %p386 = scmp.ne.s32.totalorder %s369, %s385
      %p387 = scmp.eq.s32.totalorder %s37, 0
      %p388 = por %p386, %p387
      %s389 = ssub.s32 %s38, %s50
      %p390 = scmp.eq.s32.totalorder %s389, 0
      %s392 = sadd.s32 %s391, 1
      %s393 = scalar_select %p390, %s391, %s392
      %p396 = pneg %p390
      %p397 = scmp.eq.s32.totalorder %s31, 3
      %p398 = por %p396, %p397
      %p399 = scmp.ne.s32.totalorder %s391, %s394
      %p400 = scmp.eq.s32.totalorder %s31, 0
      %p401 = por %p399, %p400
      %p402 = scmp.ne.s32.totalorder %s391, %s394
      %p403 = scmp.eq.s32.totalorder %s36, 3
      %p404 = por %p402, %p403
      %p405 = scmp.ne.s32.totalorder %s394, %s395
      %p406 = scmp.eq.s32.totalorder %s36, 0
      %p407 = por %p405, %p406
      %p408 = scmp.ne.s32.totalorder %s394, %s395
      %p409 = scmp.eq.s32.totalorder %s37, 3
      %p410 = por %p408, %p409
      %p412 = scmp.ne.s32.totalorder %s395, %s411
      %p413 = scmp.eq.s32.totalorder %s37, 0
      %p414 = por %p412, %p413
      %p415 = scmp.le.s32.totalorder 1, %s31
      %p416 = scmp.lt.s32.totalorder %s31, 5
      %p417 = pnand %p415, %p416
      %p418 = pneg %p417
      // Predicated region
      $region9: #{seq2seq_forward.3} parent=5 // pred_check
        _
      $region10: #{seq2seq_forward.3} parent=5 // pred_check_branch
        %420 = sbr.rel (%p417) target = $region12
      $region11: #{seq2seq_forward.3} parent=5 // pred_region
        %s421 = ssub.s32 %s31, 1
      $region12: #{seq2seq_forward.3} parent=5 // pred_fallthru
        _
      %p422 = scmp.lt.s32.totalorder %s31, 4
      // Predicated region
      $region13: #{seq2seq_forward.3} parent=5 // pred_check
        %p423 = pneg %p422
      $region14: #{seq2seq_forward.3} parent=5 // pred_check_branch
        %425 = sbr.rel (%p423) target = $region16
      $region15: #{seq2seq_forward.3} parent=5 // pred_region
        // Predicated region
        $region17: #{seq2seq_forward.3} parent=15 // pred_check
          %p426 = pneg %p63
        $region18: #{seq2seq_forward.3} parent=15 // pred_check_branch
          %428 = sbr.rel (%p426) target = $region20
        $region19: #{seq2seq_forward.3} parent=15 // pred_region
          %p429 = scmp.lt.s32.totalorder %s38, 1
          %s430 = scalar_select %p429, %s38, 1
          %s431 = smul.addr %s430, 8
          %s432 = scalar_lea.vmem %s0, %s431
        $region20: #{seq2seq_forward.3} parent=15 // pred_fallthru
          _
        // Predicated region
        $region21: #{seq2seq_forward.3} parent=15 // pred_check
          %p433 = pneg %p89
        $region22: #{seq2seq_forward.3} parent=15 // pred_check_branch
          %435 = sbr.rel (%p433) target = $region24
        $region23: #{seq2seq_forward.3} parent=15 // pred_region
          %p436 = scmp.lt.s32.totalorder %s39, 1
          %s437 = scalar_select %p436, %s39, 1
          %s438 = scalar_lea.vmem %s1, %s437
        $region24: #{seq2seq_forward.3} parent=15 // pred_fallthru
          _
        // Predicated region
        $region25: #{seq2seq_forward.3} parent=15 // pred_check
          %p439 = pneg %p115
        $region26: #{seq2seq_forward.3} parent=15 // pred_check_branch
          %441 = sbr.rel (%p439) target = $region28
        $region27: #{seq2seq_forward.3} parent=15 // pred_region
          %p442 = scmp.lt.s32.totalorder %s39, 1
          %s443 = scalar_select %p442, %s39, 1
          %s444 = scalar_lea.vmem %s2, %s443
        $region28: #{seq2seq_forward.3} parent=15 // pred_fallthru
          _
        // Predicated region
        $region29: #{seq2seq_forward.3} parent=15 // pred_check
          %p445 = pneg %p141
        $region30: #{seq2seq_forward.3} parent=15 // pred_check_branch
          %447 = sbr.rel (%p445) target = $region32
        $region31: #{seq2seq_forward.3} parent=15 // pred_region
          %s448 = sand.u32 %s131, 1
          %s449 = scalar_lea.sflag [#allocation4], %s448
          %s450 = sand.u32 %s131, 1
          %s451 = smul.addr %s450, 384
          %s452 = scalar_lea.vmem [#allocation3], %s451
          %454 = vsyncadd %s449, 0
          %s455 = smul.addr %s39, 48
          %s456 = smul.addr %s455, 8
          %s457 = scalar_lea.hbm %s3, %s456
          %s458 = sshll.u32 %s457, 4
          %s459 = int_to_ptr.hbm [resolvable:$true] %s458
          %s460 = sshll.u32 %s452, 4
          %s461 = int_to_ptr.vmem [resolvable:$true] %s460
          %466 = dma.hbm_to_vmem [thread:$0]  %s459, 6144, %s461, %s449, 384, 384, 24
        $region32: #{seq2seq_forward.3} parent=15 // pred_fallthru
          _
        // Predicated region
        $region33: #{seq2seq_forward.3} parent=15 // pred_check
          %p467 = pneg %p167
        $region34: #{seq2seq_forward.3} parent=15 // pred_check_branch
          %469 = sbr.rel (%p467) target = $region36
        $region35: #{seq2seq_forward.3} parent=15 // pred_region
          %p470 = scmp.lt.s32.totalorder %s39, 1
          %s471 = scalar_select %p470, %s39, 1
          %s472 = smul.addr %s471, 3
          %s473 = scalar_lea.vmem %s4, %s472
        $region36: #{seq2seq_forward.3} parent=15 // pred_fallthru
          _
        // Predicated region
        $region37: #{seq2seq_forward.3} parent=15 // pred_check
          %p474 = pneg %p193
        $region38: #{seq2seq_forward.3} parent=15 // pred_check_branch
          %476 = sbr.rel (%p474) target = $region40
        $region39: #{seq2seq_forward.3} parent=15 // pred_region
          %s477 = sand.u32 %s31, 1
          %s478 = scalar_lea.sflag [#allocation6], %s477
          %s479 = sand.u32 %s183, 1
          %s480 = smul.addr %s479, 128
          %s481 = scalar_lea.vmem [#allocation5], %s480
          %483 = vsyncadd %s478, 0
          %s484 = smul.addr %s39, 16
          %s485 = smul.addr %s484, 8
          %s486 = scalar_lea.hbm %s5, %s485
          %s487 = sshll.u32 %s486, 4
          %s488 = int_to_ptr.hbm [resolvable:$true] %s487
          %s489 = sshll.u32 %s481, 4
          %s490 = int_to_ptr.vmem [resolvable:$true] %s489
          %495 = dma.hbm_to_vmem [thread:$0]  %s488, 2048, %s490, %s478, 128, 128, 8
        $region40: #{seq2seq_forward.3} parent=15 // pred_fallthru
          _
        // Predicated region
        $region41: #{seq2seq_forward.3} parent=15 // pred_check
          %p496 = pneg %p219
        $region42: #{seq2seq_forward.3} parent=15 // pred_check_branch
          %498 = sbr.rel (%p496) target = $region44
        $region43: #{seq2seq_forward.3} parent=15 // pred_region
          %s499 = sand.u32 %s31, 1
          %s500 = scalar_lea.sflag [#allocation6], %s499
          %s501 = sand.u32 %s209, 1
          %s502 = scalar_lea.vmem [#allocation7], %s501
          %504 = vsyncadd %s500, 0
          %s505 = scalar_lea.hbm %s6, %s39
          %s507 = sshll.u32 %s505, 4
          %s508 = int_to_ptr.hbm [resolvable:$true] %s507
          %s509 = sshll.u32 %s502, 4
          %s510 = int_to_ptr.vmem [resolvable:$true] %s509
          %512 = dma.hbm_to_vmem [thread:$0]  %s508, 16, %s510, %s500
        $region44: #{seq2seq_forward.3} parent=15 // pred_fallthru
          _
        // Predicated region
        $region45: #{seq2seq_forward.3} parent=15 // pred_check
          %p513 = pneg %p245
        $region46: #{seq2seq_forward.3} parent=15 // pred_check_branch
          %515 = sbr.rel (%p513) target = $region48
        $region47: #{seq2seq_forward.3} parent=15 // pred_region
          %p516 = scmp.lt.s32.totalorder %s39, 1
          %s517 = scalar_select %p516, %s39, 1
          %s518 = scalar_lea.vmem %s7, %s517
        $region48: #{seq2seq_forward.3} parent=15 // pred_fallthru
          _
        // Predicated region
        $region49: #{seq2seq_forward.3} parent=15 // pred_check
          %p519 = pneg %p271
        $region50: #{seq2seq_forward.3} parent=15 // pred_check_branch
          %521 = sbr.rel (%p519) target = $region52
        $region51: #{seq2seq_forward.3} parent=15 // pred_region
          %p522 = scmp.lt.s32.totalorder %s39, 1
          %s523 = scalar_select %p522, %s39, 1
          %s524 = scalar_lea.vmem %s8, %s523
        $region52: #{seq2seq_forward.3} parent=15 // pred_fallthru
          _
        // Predicated region
        $region53: #{seq2seq_forward.3} parent=15 // pred_check
          %p525 = pneg %p297
        $region54: #{seq2seq_forward.3} parent=15 // pred_check_branch
          %527 = sbr.rel (%p525) target = $region56
        $region55: #{seq2seq_forward.3} parent=15 // pred_region
          %s528 = sand.u32 %s31, 1
          %s529 = scalar_lea.sflag [#allocation9], %s528
          %s530 = sand.u32 %s287, 1
          %s531 = smul.addr %s530, 256
          %s532 = scalar_lea.vmem [#allocation8], %s531
          %534 = vsyncadd %s529, 0
          %s535 = smul.addr %s39, 32
          %s536 = smul.addr %s535, 8
          %s537 = scalar_lea.hbm %s9, %s536
          %s538 = sshll.u32 %s537, 4
          %s539 = int_to_ptr.hbm [resolvable:$true] %s538
          %s540 = sshll.u32 %s532, 4
          %s541 = int_to_ptr.vmem [resolvable:$true] %s540
          %546 = dma.hbm_to_vmem [thread:$0]  %s539, 4096, %s541, %s529, 256, 256, 16
        $region56: #{seq2seq_forward.3} parent=15 // pred_fallthru
          _
        // Predicated region
        $region57: #{seq2seq_forward.3} parent=15 // pred_check
          %p547 = pneg %p323
        $region58: #{seq2seq_forward.3} parent=15 // pred_check_branch
          %549 = sbr.rel (%p547) target = $region60
        $region59: #{seq2seq_forward.3} parent=15 // pred_region
          %p550 = scmp.lt.s32.totalorder %s39, 1
          %s551 = scalar_select %p550, %s39, 1
          %s552 = smul.addr %s551, 2
          %s553 = scalar_lea.vmem %s10, %s552
        $region60: #{seq2seq_forward.3} parent=15 // pred_fallthru
          _
        // Predicated region
        $region61: #{seq2seq_forward.3} parent=15 // pred_check
          %p554 = pneg %p349
        $region62: #{seq2seq_forward.3} parent=15 // pred_check_branch
          %556 = sbr.rel (%p554) target = $region64
        $region63: #{seq2seq_forward.3} parent=15 // pred_region
          %s557 = sand.u32 %s31, 1
          %s558 = scalar_lea.sflag [#allocation9], %s557
          %s559 = sand.u32 %s339, 1
          %s560 = smul.addr %s559, 256
          %s561 = scalar_lea.vmem [#allocation10], %s560
          %563 = vsyncadd %s558, 0
          %s564 = smul.addr %s39, 32
          %s565 = smul.addr %s564, 8
          %s566 = scalar_lea.hbm %s11, %s565
          %s567 = sshll.u32 %s566, 4
          %s568 = int_to_ptr.hbm [resolvable:$true] %s567
          %s569 = sshll.u32 %s561, 4
          %s570 = int_to_ptr.vmem [resolvable:$true] %s569
          %575 = dma.hbm_to_vmem [thread:$0]  %s568, 4096, %s570, %s558, 128, 128, 8
        $region64: #{seq2seq_forward.3} parent=15 // pred_fallthru
          _
        // Predicated region
        $region65: #{seq2seq_forward.3} parent=15 // pred_check
          %p576 = pneg %p375
        $region66: #{seq2seq_forward.3} parent=15 // pred_check_branch
          %578 = sbr.rel (%p576) target = $region68
        $region67: #{seq2seq_forward.3} parent=15 // pred_region
          %s579 = sand.u32 %s365, 1
          %s580 = scalar_lea.sflag [#allocation12], %s579
          %s581 = sand.u32 %s365, 1
          %s582 = scalar_lea.vmem [#allocation11], %s581
          %584 = vsyncadd %s580, 0
          %s585 = scalar_lea.hbm %s12, %s39
          %s587 = sshll.u32 %s585, 4
          %s588 = int_to_ptr.hbm [resolvable:$true] %s587
          %s589 = sshll.u32 %s582, 4
          %s590 = int_to_ptr.vmem [resolvable:$true] %s589
          %592 = dma.hbm_to_vmem [thread:$0]  %s588, 16, %s590, %s580
        $region68: #{seq2seq_forward.3} parent=15 // pred_fallthru
          _
      $region16: #{seq2seq_forward.3} parent=5 // pred_fallthru
        _
      %p593 = scmp.le.s32.totalorder 1, %s31
      %p594 = scmp.lt.s32.totalorder %s31, 5
      %p595 = pnand %p593, %p594
      %p596 = pneg %p595
      // Predicated region
      $region69: #{seq2seq_forward.3} parent=5 // pred_check
        _
      $region70: #{seq2seq_forward.3} parent=5 // pred_check_branch
        %598 = sbr.rel (%p595) target = $region72
      $region71: #{seq2seq_forward.3} parent=5 // pred_region
        %s599 = ssub.s32 %s31, 1
        %s600 = sand.u32 %s134, 1
        %s601 = scalar_lea.sflag [#allocation4], %s600
        %s602 = sand.u32 %s134, 1
        %s603 = smul.addr %s602, 384
        %s604 = scalar_lea.vmem [#allocation3], %s603
        // Predicated region
        $region73: #{seq2seq_forward.3} parent=71 // pred_check
          %p605 = pneg %p147
        $region74: #{seq2seq_forward.3} parent=71 // pred_check_branch
          %607 = sbr.rel (%p605) target = $region76
        $region75: #{seq2seq_forward.3} parent=71 // pred_region
          %609 = dma.done %s601, 6144
        $region76: #{seq2seq_forward.3} parent=71 // pred_fallthru
          _
        %s610 = sand.u32 %s36, 1
        %s611 = scalar_lea.sflag [#allocation6], %s610
        %s612 = sand.u32 %s186, 1
        %s613 = smul.addr %s612, 128
        %s614 = scalar_lea.vmem [#allocation5], %s613
        // Predicated region
        $region77: #{seq2seq_forward.3} parent=71 // pred_check
          %p615 = pneg %p199
        $region78: #{seq2seq_forward.3} parent=71 // pred_check_branch
          %617 = sbr.rel (%p615) target = $region80
        $region79: #{seq2seq_forward.3} parent=71 // pred_region
          %619 = dma.done %s611, 2048
        $region80: #{seq2seq_forward.3} parent=71 // pred_fallthru
          _
        %s620 = sand.u32 %s36, 1
        %s621 = scalar_lea.sflag [#allocation6], %s620
        %s622 = sand.u32 %s212, 1
        %s623 = scalar_lea.vmem [#allocation7], %s622
        // Predicated region
        $region81: #{seq2seq_forward.3} parent=71 // pred_check
          %p624 = pneg %p225
        $region82: #{seq2seq_forward.3} parent=71 // pred_check_branch
          %626 = sbr.rel (%p624) target = $region84
        $region83: #{seq2seq_forward.3} parent=71 // pred_region
          %628 = dma.done %s621, 16
        $region84: #{seq2seq_forward.3} parent=71 // pred_fallthru
          _
        %s629 = sand.u32 %s36, 1
        %s630 = scalar_lea.sflag [#allocation9], %s629
        %s631 = sand.u32 %s290, 1
        %s632 = smul.addr %s631, 256
        %s633 = scalar_lea.vmem [#allocation8], %s632
        // Predicated region
        $region85: #{seq2seq_forward.3} parent=71 // pred_check
          %p634 = pneg %p303
        $region86: #{seq2seq_forward.3} parent=71 // pred_check_branch
          %636 = sbr.rel (%p634) target = $region88
        $region87: #{seq2seq_forward.3} parent=71 // pred_region
          %638 = dma.done %s630, 4096
        $region88: #{seq2seq_forward.3} parent=71 // pred_fallthru
          _
        %s639 = sand.u32 %s36, 1
        %s640 = scalar_lea.sflag [#allocation9], %s639
        %s641 = sand.u32 %s342, 1
        %s642 = smul.addr %s641, 256
        %s643 = scalar_lea.vmem [#allocation10], %s642
        // Predicated region
        $region89: #{seq2seq_forward.3} parent=71 // pred_check
          %p644 = pneg %p355
        $region90: #{seq2seq_forward.3} parent=71 // pred_check_branch
          %646 = sbr.rel (%p644) target = $region92
        $region91: #{seq2seq_forward.3} parent=71 // pred_region
          %648 = dma.done %s640, 4096
        $region92: #{seq2seq_forward.3} parent=71 // pred_fallthru
          _
        %s649 = sand.u32 %s368, 1
        %s650 = scalar_lea.sflag [#allocation12], %s649
        %s651 = sand.u32 %s368, 1
        %s652 = scalar_lea.vmem [#allocation11], %s651
        // Predicated region
        $region93: #{seq2seq_forward.3} parent=71 // pred_check
          %p653 = pneg %p381
        $region94: #{seq2seq_forward.3} parent=71 // pred_check_branch
          %655 = sbr.rel (%p653) target = $region96
        $region95: #{seq2seq_forward.3} parent=71 // pred_region
          %657 = dma.done %s650, 16
        $region96: #{seq2seq_forward.3} parent=71 // pred_fallthru
          _
        %p658 = scmp.lt.s32.totalorder %s40, 1
        %s659 = scalar_select %p658, %s40, 1
        %s660 = smul.addr %s659, 8
        %s661 = scalar_lea.vmem %s0, %s660
        %p662 = pneg %p69
        %p663 = pneg %p66
        %p664 = scmp.lt.s32.totalorder %s41, 1
        %s665 = scalar_select %p664, %s41, 1
        %s666 = scalar_lea.vmem %s1, %s665
        %p667 = pneg %p95
        %p668 = pneg %p92
        %p669 = scmp.lt.s32.totalorder %s41, 1
        %s670 = scalar_select %p669, %s41, 1
        %s671 = scalar_lea.vmem %s2, %s670
        %p672 = pneg %p121
        %p673 = pneg %p118
        %s674 = sand.u32 %s134, 1
        %s675 = scalar_lea.sflag [#allocation4], %s674
        %s676 = sand.u32 %s134, 1
        %s677 = smul.addr %s676, 384
        %s678 = scalar_lea.vmem [#allocation3], %s677
        %p679 = pneg %p147
        %p680 = pneg %p144
        %p681 = scmp.lt.s32.totalorder %s41, 1
        %s682 = scalar_select %p681, %s41, 1
        %s683 = smul.addr %s682, 3
        %s684 = scalar_lea.vmem %s4, %s683
        %p685 = pneg %p173
        %p686 = pneg %p170
        %s687 = sand.u32 %s36, 1
        %s688 = scalar_lea.sflag [#allocation6], %s687
        %s689 = sand.u32 %s186, 1
        %s690 = smul.addr %s689, 128
        %s691 = scalar_lea.vmem [#allocation5], %s690
        %p692 = pneg %p199
        %p693 = pneg %p196
        %s694 = sand.u32 %s36, 1
        %s695 = scalar_lea.sflag [#allocation6], %s694
        %s696 = sand.u32 %s212, 1
        %s697 = scalar_lea.vmem [#allocation7], %s696
        %p698 = pneg %p225
        %p699 = pneg %p222
        %p700 = scmp.lt.s32.totalorder %s41, 1
        %s701 = scalar_select %p700, %s41, 1
        %s702 = scalar_lea.vmem %s7, %s701
        %p703 = pneg %p251
        %p704 = pneg %p248
        %p705 = scmp.lt.s32.totalorder %s41, 1
        %s706 = scalar_select %p705, %s41, 1
        %s707 = scalar_lea.vmem %s8, %s706
        %p708 = pneg %p277
        %p709 = pneg %p274
        %s710 = sand.u32 %s36, 1
        %s711 = scalar_lea.sflag [#allocation9], %s710
        %s712 = sand.u32 %s290, 1
        %s713 = smul.addr %s712, 256
        %s714 = scalar_lea.vmem [#allocation8], %s713
        %p715 = pneg %p303
        %p716 = pneg %p300
        %p717 = scmp.lt.s32.totalorder %s41, 1
        %s718 = scalar_select %p717, %s41, 1
        %s719 = smul.addr %s718, 2
        %s720 = scalar_lea.vmem %s10, %s719
        %p721 = pneg %p329
        %p722 = pneg %p326
        %s723 = sand.u32 %s36, 1
        %s724 = scalar_lea.sflag [#allocation9], %s723
        %s725 = sand.u32 %s342, 1
        %s726 = smul.addr %s725, 256
        %s727 = scalar_lea.vmem [#allocation10], %s726
        %p728 = pneg %p355
        %p729 = pneg %p352
        %s730 = sand.u32 %s368, 1
        %s731 = scalar_lea.sflag [#allocation12], %s730
        %s732 = sand.u32 %s368, 1
        %s733 = scalar_lea.vmem [#allocation11], %s732
        %p734 = pneg %p381
        %p735 = pneg %p378
        %p736 = pneg %p407
        %p737 = pneg %p404
        %p738 = scmp.lt.s32.totalorder %s40, 1
        %s739 = scalar_select %p738, %s40, 1
        %s740 = smul.addr %s739, 8
        %s741 = scalar_lea.vmem %s13, %s740
        %p742 = scmp.lt.s32.totalorder %s40, 1
        %s743 = scalar_select %p742, %s40, 1
        %s744 = smul.addr %s743, 8
        %s745 = scalar_lea.vmem %s0, %s744
        %p746 = scmp.lt.s32.totalorder %s41, 1
        %s747 = scalar_select %p746, %s41, 1
        %s748 = scalar_lea.vmem %s1, %s747
        %p749 = scmp.lt.s32.totalorder %s41, 1
        %s750 = scalar_select %p749, %s41, 1
        %s751 = scalar_lea.vmem %s2, %s750
        %p752 = scmp.lt.s32.totalorder %s41, 1
        %s753 = scalar_select %p752, %s41, 1
        %s754 = smul.addr %s753, 3
        %s755 = scalar_lea.vmem %s4, %s754
        %p756 = scmp.lt.s32.totalorder %s41, 1
        %s757 = scalar_select %p756, %s41, 1
        %s758 = scalar_lea.vmem %s7, %s757
        %p759 = scmp.lt.s32.totalorder %s41, 1
        %s760 = scalar_select %p759, %s41, 1
        %s761 = scalar_lea.vmem %s8, %s760
        %p762 = scmp.lt.s32.totalorder %s41, 1
        %s763 = scalar_select %p762, %s41, 1
        %s764 = smul.addr %s763, 2
        %s765 = scalar_lea.vmem %s10, %s764
        %p766 = scmp.lt.s32.totalorder %s40, 1
        %s767 = scalar_select %p766, %s40, 1
        %s768 = smul.addr %s767, 8
        %s769 = scalar_lea.vmem %s13, %s768
        %p770 = scmp.eq.s32.totalorder %s41, 0
        // Predicated region
        $region97: #{seq2seq_forward.3} parent=71 // pred_check
          %p771 = pneg %p770
        $region98: #{seq2seq_forward.3} parent=71 // pred_check_branch
          %773 = sbr.rel (%p771) target = $region100
        $region99: #{seq2seq_forward.3} parent=71 // pred_region
          %v774 = vld [vmem:[%s745] sm:$0xff]
          %775 = vst [vmem:[#allocation2] sm:$0xff] %v774
        $region100: #{seq2seq_forward.3} parent=71 // pred_fallthru
          _
        %v776 = vld [vmem:[#allocation2] sm:$0xff]
        %v777 = vld [vmem:[%s748] sm:$0x1]
        %v778 = vld [vmem:[%s751] sm:$0x1]
        %779 = vadd.xlane.f32.xlu0 %v776
        %v780 = vpop.xlane.xlu0 %779
        %v781 = vrcp.pop 128.0
        %v782 = vmul.f32 128.0, %v781
        %v783 = vsub.f32 1.0, %v782
        %v784 = vmul.f32 %v781, %v783
        %v785 = vadd.f32 %v781, %v784
        %vm786 = vweird.f32 %v781
        %v787 = vsel %vm786, %v781, %v785
        %v788 = vmul.f32 %v780, %v787
        %v789 = vsub.f32 %v776, %v788
        %v790 = vmul.f32 %v789, %v789
        %791 = vadd.xlane.f32.xlu0 %v790
        %v792 = vpop.xlane.xlu0 %791
        %v793 = vmul.f32 %v792, %v787
        %v794 = vadd.f32 %v793, 1e-05
        %v795 = vrsqrt.pop %v794
        %v796 = vmul.f32 %v795, %v794
        %v797 = vmul.f32 %v796, %v795
        %v798 = vmul.f32 0.5, %v797
        %v799 = vsub.f32 1.5, %v798
        %v800 = vmul.f32 %v795, %v799
        %vm801 = vweird.f32 %v794
        %vm802 = vweird.f32 %v795
        %vm803 = vmor %vm801, %vm802
        %v804 = vsel %vm803, %v795, %v800
        %v805 = vmul.f32 %v789, %v804
        %v807 = vperm.slane %v777, 0
        %v809 = vmul.f32 %v805, %v807
        %v811 = vperm.slane %v778, 0
        %v813 = vadd.f32 %v809, %v811
        %v814 = vld [vmem:[%s604] sm:$0xff]
        %v815 = vld [vmem:[%s604 + $0x8] sm:$0xff]
        %v816 = vld [vmem:[%s604 + $0x10] sm:$0xff]
        %v817 = vld [vmem:[%s604 + $0x18] sm:$0xff]
        %v818 = vld [vmem:[%s604 + $0x20] sm:$0xff]
        %v819 = vld [vmem:[%s604 + $0x28] sm:$0xff]
        %v820 = vld [vmem:[%s604 + $0x30] sm:$0xff]
        %v821 = vld [vmem:[%s604 + $0x38] sm:$0xff]
        %v822 = vld [vmem:[%s604 + $0x40] sm:$0xff]
        %v823 = vld [vmem:[%s604 + $0x48] sm:$0xff]
        %v824 = vld [vmem:[%s604 + $0x50] sm:$0xff]
        %v825 = vld [vmem:[%s604 + $0x58] sm:$0xff]
        %v826 = vld [vmem:[%s604 + $0x60] sm:$0xff]
        %v827 = vld [vmem:[%s604 + $0x68] sm:$0xff]
        %v828 = vld [vmem:[%s604 + $0x70] sm:$0xff]
        %v829 = vld [vmem:[%s604 + $0x78] sm:$0xff]
        %v830 = vld [vmem:[%s604 + $0x80] sm:$0xff]
        %v831 = vld [vmem:[%s604 + $0x88] sm:$0xff]
        %v832 = vld [vmem:[%s604 + $0x90] sm:$0xff]
        %v833 = vld [vmem:[%s604 + $0x98] sm:$0xff]
        %v834 = vld [vmem:[%s604 + $0xa0] sm:$0xff]
        %v835 = vld [vmem:[%s604 + $0xa8] sm:$0xff]
        %v836 = vld [vmem:[%s604 + $0xb0] sm:$0xff]
        %v837 = vld [vmem:[%s604 + $0xb8] sm:$0xff]
        %v838 = vld [vmem:[%s604 + $0xc0] sm:$0xff]
        %v839 = vld [vmem:[%s604 + $0xc8] sm:$0xff]
        %v840 = vld [vmem:[%s604 + $0xd0] sm:$0xff]
        %v841 = vld [vmem:[%s604 + $0xd8] sm:$0xff]
        %v842 = vld [vmem:[%s604 + $0xe0] sm:$0xff]
        %v843 = vld [vmem:[%s604 + $0xe8] sm:$0xff]
        %v844 = vld [vmem:[%s604 + $0xf0] sm:$0xff]
        %v845 = vld [vmem:[%s604 + $0xf8] sm:$0xff]
        %v846 = vld [vmem:[%s604 + $0x100] sm:$0xff]
        %v847 = vld [vmem:[%s604 + $0x108] sm:$0xff]
        %v848 = vld [vmem:[%s604 + $0x110] sm:$0xff]
        %v849 = vld [vmem:[%s604 + $0x118] sm:$0xff]
        %v850 = vld [vmem:[%s604 + $0x120] sm:$0xff]
        %v851 = vld [vmem:[%s604 + $0x128] sm:$0xff]
        %v852 = vld [vmem:[%s604 + $0x130] sm:$0xff]
        %v853 = vld [vmem:[%s604 + $0x138] sm:$0xff]
        %v854 = vld [vmem:[%s604 + $0x140] sm:$0xff]
        %v855 = vld [vmem:[%s604 + $0x148] sm:$0xff]
        %v856 = vld [vmem:[%s604 + $0x150] sm:$0xff]
        %v857 = vld [vmem:[%s604 + $0x158] sm:$0xff]
        %v858 = vld [vmem:[%s604 + $0x160] sm:$0xff]
        %v859 = vld [vmem:[%s604 + $0x168] sm:$0xff]
        %v860 = vld [vmem:[%s604 + $0x170] sm:$0xff]
        %v861 = vld [vmem:[%s604 + $0x178] sm:$0xff]
        %v862 = vld [vmem:[%s755] sm:$0x7]
        %v864 = vperm.slane %v862, 0
        %v865 = vperm.slane %v862, 1
        %v866 = vperm.slane %v862, 2
        %870 = vmatpush.msra.mxu0 %v859
        %871 = vmatpush.msra.mxu0 %v856
        %872 = vmatpush.msra.mxu0 %v853
        %873 = vmatpush.msra.mxu0 %v850
        %874 = vmatpush.msra.mxu0 %v847
        %875 = vmatpush.msra.mxu0 %v844
        %876 = vmatpush.msra.mxu0 %v841
        %877 = vmatpush.msra.mxu0 %v838
        %878 = vmatpush.msra.mxu0 %v835
        %879 = vmatpush.msra.mxu0 %v832
        %880 = vmatpush.msra.mxu0 %v829
        %881 = vmatpush.msra.mxu0 %v826
        %882 = vmatpush.msra.mxu0 %v823
        %883 = vmatpush.msra.mxu0 %v820
        %884 = vmatpush.msra.mxu0 %v817
        %885 = vmatpush.msra.mxu0 %v814
        %886 = vmatmul.f32.gmra.mxu0 %v813
        %v887 = vpop.f32.mrf.mxu0
        %v888 = vadd.f32 %v864, %v887
        %889 = vdwg.mxu0
        %890 = vmatpush.msra.mxu0 %v860
        %891 = vmatpush.msra.mxu0 %v857
        %892 = vmatpush.msra.mxu0 %v854
        %893 = vmatpush.msra.mxu0 %v851
        %894 = vmatpush.msra.mxu0 %v848
        %895 = vmatpush.msra.mxu0 %v845
        %896 = vmatpush.msra.mxu0 %v842
        %897 = vmatpush.msra.mxu0 %v839
        %898 = vmatpush.msra.mxu0 %v836
        %899 = vmatpush.msra.mxu0 %v833
        %900 = vmatpush.msra.mxu0 %v830
        %901 = vmatpush.msra.mxu0 %v827
        %902 = vmatpush.msra.mxu0 %v824
        %903 = vmatpush.msra.mxu0 %v821
        %904 = vmatpush.msra.mxu0 %v818
        %905 = vmatpush.msra.mxu0 %v815
        %906 = vmatmul.f32.gmra.mxu0 %v813
        %v907 = vpop.f32.mrf.mxu0
        %v908 = vadd.f32 %v865, %v907
        %909 = vdwg.mxu0
        %910 = vmatpush.msra.mxu0 %v861
        %911 = vmatpush.msra.mxu0 %v858
        %912 = vmatpush.msra.mxu0 %v855
        %913 = vmatpush.msra.mxu0 %v852
        %914 = vmatpush.msra.mxu0 %v849
        %915 = vmatpush.msra.mxu0 %v846
        %916 = vmatpush.msra.mxu0 %v843
        %917 = vmatpush.msra.mxu0 %v840
        %918 = vmatpush.msra.mxu0 %v837
        %919 = vmatpush.msra.mxu0 %v834
        %920 = vmatpush.msra.mxu0 %v831
        %921 = vmatpush.msra.mxu0 %v828
        %922 = vmatpush.msra.mxu0 %v825
        %923 = vmatpush.msra.mxu0 %v822
        %924 = vmatpush.msra.mxu0 %v819
        %925 = vmatpush.msra.mxu0 %v816
        %926 = vmatmul.f32.gmra.mxu0 %v813
        %v927 = vpop.f32.mrf.mxu0
        %v928 = vadd.f32 %v866, %v927
        %929 = vdwg.mxu0
        %v930 = vld [vmem:[%s614] sm:$0xff]
        %v931 = vld [vmem:[%s614 + $0x8] sm:$0xff]
        %v932 = vld [vmem:[%s614 + $0x10] sm:$0xff]
        %v933 = vld [vmem:[%s614 + $0x18] sm:$0xff]
        %v934 = vld [vmem:[%s614 + $0x20] sm:$0xff]
        %v935 = vld [vmem:[%s614 + $0x28] sm:$0xff]
        %v936 = vld [vmem:[%s614 + $0x30] sm:$0xff]
        %v937 = vld [vmem:[%s614 + $0x38] sm:$0xff]
        %v938 = vld [vmem:[%s614 + $0x40] sm:$0xff]
        %v939 = vld [vmem:[%s614 + $0x48] sm:$0xff]
        %v940 = vld [vmem:[%s614 + $0x50] sm:$0xff]
        %v941 = vld [vmem:[%s614 + $0x58] sm:$0xff]
        %v942 = vld [vmem:[%s614 + $0x60] sm:$0xff]
        %v943 = vld [vmem:[%s614 + $0x68] sm:$0xff]
        %v944 = vld [vmem:[%s614 + $0x70] sm:$0xff]
        %v945 = vld [vmem:[%s614 + $0x78] sm:$0xff]
        %v946 = vld [vmem:[%s623] sm:$0x1]
        %vm947 = vcmask 261120
        %v949 = vsel %vm947, %v888, 0
        %v952 = vsel %vm947, %v908, 0
        %954 = vmatpush.xpose.msra.mxu0 0.0
        %955 = vmatpush.xpose.msra.mxu0 0.0
        %956 = vmatpush.xpose.msra.mxu0 0.0
        %957 = vmatpush.xpose.msra.mxu0 0.0
        %958 = vmatpush.xpose.msra.mxu0 0.0
        %959 = vmatpush.xpose.msra.mxu0 0.0
        %960 = vmatpush.xpose.msra.mxu0 0.0
        %961 = vmatpush.xpose.msra.mxu0 0.0
        %962 = vmatpush.xpose.msra.mxu0 0.0
        %963 = vmatpush.xpose.msra.mxu0 0.0
        %964 = vmatpush.xpose.msra.mxu0 0.0
        %965 = vmatpush.xpose.msra.mxu0 0.0
        %966 = vmatpush.xpose.msra.mxu0 0.0
        %967 = vmatpush.xpose.msra.mxu0 0.0
        %968 = vmatpush.xpose.msra.mxu0 0.0
        %969 = vmatpush.xpose.msra.mxu0 %v952
        %970 = vmatmul.f32.gmra.mxu0 %v949
        %v971 = vpop.f32.mrf.mxu0
        %v972 = vadd.f32 0.0, %v971
        %973 = vdwg.mxu0
        %v974 = vmul.f32 %v972, 0.17677669
        %vm975 = vcmask 64512
        %v976 = vsel %vm975, %v974, -inf
        %977 = vmax.xlane.f32.xlu0 %v976
        %v978 = vpop.xlane.xlu0 %977
        %v979 = vsub.f32 %v974, %v978
        %v980 = vmul.f32 %v979, 1.442695
        %v981 = vpow.pop %v980
        %v982 = vsel %vm975, %v981, 0.0
        %983 = vadd.xlane.f32.xlu0 %v982
        %v984 = vpop.xlane.xlu0 %983
        %v985 = vrcp.pop %v984
        %v986 = vmul.f32 %v984, %v985
        %v987 = vsub.f32 1.0, %v986
        %v988 = vmul.f32 %v985, %v987
        %v989 = vadd.f32 %v985, %v988
        %vm990 = vweird.f32 %v984
        %vm991 = vweird.f32 %v985
        %vm992 = vmor %vm990, %vm991
        %v993 = vsel %vm992, %v985, %v989
        %v994 = vand.u32 2147483647, %v984
        %vm995 = vcmp.eq.f32.partialorder %v994, 8.507059e+37
        %v996 = vand.u32 %v984, 2147483648
        %v997 = vor.u32 1.1754944e-38, %v996
        %v998 = vsel %vm995, %v997, %v993
        %v999 = vmul.f32 %v981, %v998
        %v1001 = vsel %vm975, %v999, 0
        %1003 = vmatpush.msra.mxu0 0.0
        %1004 = vmatpush.msra.mxu0 0.0
        %1005 = vmatpush.msra.mxu0 0.0
        %1006 = vmatpush.msra.mxu0 0.0
        %1007 = vmatpush.msra.mxu0 0.0
        %1008 = vmatpush.msra.mxu0 0.0
        %1009 = vmatpush.msra.mxu0 0.0
        %1010 = vmatpush.msra.mxu0 0.0
        %1011 = vmatpush.msra.mxu0 0.0
        %1012 = vmatpush.msra.mxu0 0.0
        %1013 = vmatpush.msra.mxu0 0.0
        %1014 = vmatpush.msra.mxu0 0.0
        %1015 = vmatpush.msra.mxu0 0.0
        %1016 = vmatpush.msra.mxu0 0.0
        %1017 = vmatpush.msra.mxu0 0.0
        %1018 = vmatpush.msra.mxu0 %v928
        %1019 = vmatmul.f32.gmra.mxu0 %v1001
        %v1020 = vpop.f32.mrf.mxu0
        %v1021 = vadd.f32 0.0, %v1020
        %1022 = vdwg.mxu0
        %1023 = vrot.lane.b32.xlu0 %v888, 96
        %v1024 = vpop.permute.xlu0 %1023
        %1025 = vrot.lane.b32.xlu0 %v908, 96
        %v1026 = vpop.permute.xlu0 %1025
        %v1027 = vsel %vm947, %v1024, 0
        %v1029 = vsel %vm947, %v1026, 0
        %1031 = vmatpush.xpose.msra.mxu0 0.0
        %1032 = vmatpush.xpose.msra.mxu0 0.0
        %1033 = vmatpush.xpose.msra.mxu0 0.0
        %1034 = vmatpush.xpose.msra.mxu0 0.0
        %1035 = vmatpush.xpose.msra.mxu0 0.0
        %1036 = vmatpush.xpose.msra.mxu0 0.0
        %1037 = vmatpush.xpose.msra.mxu0 0.0
        %1038 = vmatpush.xpose.msra.mxu0 0.0
        %1039 = vmatpush.xpose.msra.mxu0 0.0
        %1040 = vmatpush.xpose.msra.mxu0 0.0
        %1041 = vmatpush.xpose.msra.mxu0 0.0
        %1042 = vmatpush.xpose.msra.mxu0 0.0
        %1043 = vmatpush.xpose.msra.mxu0 0.0
        %1044 = vmatpush.xpose.msra.mxu0 0.0
        %1045 = vmatpush.xpose.msra.mxu0 0.0
        %1046 = vmatpush.xpose.msra.mxu0 %v1029
        %1047 = vmatmul.f32.gmra.mxu0 %v1027
        %v1048 = vpop.f32.mrf.mxu0
        %v1049 = vadd.f32 0.0, %v1048
        %1050 = vdwg.mxu0
        %v1051 = vmul.f32 %v1049, 0.17677669
        %v1052 = vsel %vm975, %v1051, -inf
        %1053 = vmax.xlane.f32.xlu0 %v1052
        %v1054 = vpop.xlane.xlu0 %1053
        %v1055 = vsub.f32 %v1051, %v1054
        %v1056 = vmul.f32 %v1055, 1.442695
        %v1057 = vpow.pop %v1056
        %v1058 = vsel %vm975, %v1057, 0.0
        %1059 = vadd.xlane.f32.xlu0 %v1058
        %v1060 = vpop.xlane.xlu0 %1059
        %v1061 = vrcp.pop %v1060
        %v1062 = vmul.f32 %v1060, %v1061
        %v1063 = vsub.f32 1.0, %v1062
        %v1064 = vmul.f32 %v1061, %v1063
        %v1065 = vadd.f32 %v1061, %v1064
        %vm1066 = vweird.f32 %v1060
        %vm1067 = vweird.f32 %v1061
        %vm1068 = vmor %vm1066, %vm1067
        %v1069 = vsel %vm1068, %v1061, %v1065
        %v1070 = vand.u32 2147483647, %v1060
        %vm1071 = vcmp.eq.f32.partialorder %v1070, 8.507059e+37
        %v1072 = vand.u32 %v1060, 2147483648
        %v1073 = vor.u32 1.1754944e-38, %v1072
        %v1074 = vsel %vm1071, %v1073, %v1069
        %v1075 = vmul.f32 %v1057, %v1074
        %1077 = vrot.lane.b32.xlu0 %v928, 96
        %v1078 = vpop.permute.xlu0 %1077
        %v1081 = vsel %vm975, %v1075, 0
        %1083 = vmatpush.msra.mxu0 0.0
        %1084 = vmatpush.msra.mxu0 0.0
        %1085 = vmatpush.msra.mxu0 0.0
        %1086 = vmatpush.msra.mxu0 0.0
        %1087 = vmatpush.msra.mxu0 0.0
        %1088 = vmatpush.msra.mxu0 0.0
        %1089 = vmatpush.msra.mxu0 0.0
        %1090 = vmatpush.msra.mxu0 0.0
        %1091 = vmatpush.msra.mxu0 0.0
        %1092 = vmatpush.msra.mxu0 0.0
        %1093 = vmatpush.msra.mxu0 0.0
        %1094 = vmatpush.msra.mxu0 0.0
        %1095 = vmatpush.msra.mxu0 0.0
        %1096 = vmatpush.msra.mxu0 0.0
        %1097 = vmatpush.msra.mxu0 0.0
        %1098 = vmatpush.msra.mxu0 %v1078
        %1099 = vmatmul.f32.gmra.mxu0 %v1081
        %v1100 = vpop.f32.mrf.mxu0
        %v1101 = vadd.f32 0.0, %v1100
        %1102 = vdwg.mxu0
        %v1104 = vsel %vm947, %v1101, 0
        %1106 = vmatpush.msra.mxu0 0.0
        %1107 = vmatpush.msra.mxu0 0.0
        %1108 = vmatpush.msra.mxu0 0.0
        %1109 = vmatpush.msra.mxu0 0.0
        %1110 = vmatpush.msra.mxu0 0.0
        %1111 = vmatpush.msra.mxu0 0.0
        %1112 = vmatpush.msra.mxu0 0.0
        %1113 = vmatpush.msra.mxu0 0.0
        %1114 = vmatpush.msra.mxu0 0.0
        %1115 = vmatpush.msra.mxu0 0.0
        %1116 = vmatpush.msra.mxu0 0.0
        %1117 = vmatpush.msra.mxu0 0.0
        %1118 = vmatpush.msra.mxu0 %v937
        %1119 = vmatpush.msra.mxu0 %v936
        %1120 = vmatpush.msra.mxu0 %v935
        %1121 = vmatpush.msra.mxu0 %v934
        %1122 = vmatmul.f32.gmra.mxu0 %v1104
        %v1123 = vpop.f32.mrf.mxu0
        %v1124 = vadd.f32 0.0, %v1123
        %1125 = vdwg.mxu0
        %v1127 = vsel %vm947, %v1021, 0
        %1129 = vmatpush.msra.mxu0 0.0
        %1130 = vmatpush.msra.mxu0 0.0
        %1131 = vmatpush.msra.mxu0 0.0
        %1132 = vmatpush.msra.mxu0 0.0
        %1133 = vmatpush.msra.mxu0 0.0
        %1134 = vmatpush.msra.mxu0 0.0
        %1135 = vmatpush.msra.mxu0 0.0
        %1136 = vmatpush.msra.mxu0 0.0
        %1137 = vmatpush.msra.mxu0 0.0
        %1138 = vmatpush.msra.mxu0 0.0
        %1139 = vmatpush.msra.mxu0 0.0
        %1140 = vmatpush.msra.mxu0 0.0
        %1141 = vmatpush.msra.mxu0 %v933
        %1142 = vmatpush.msra.mxu0 %v932
        %1143 = vmatpush.msra.mxu0 %v931
        %1144 = vmatpush.msra.mxu0 %v930
        %1145 = vmatmul.f32.gmra.mxu0 %v1127
        %v1146 = vpop.f32.mrf.mxu0
        %v1147 = vadd.f32 %v1124, %v1146
        %1148 = vdwg.mxu0
        %1149 = vrot.lane.b32.xlu0 %v888, 64
        %v1150 = vpop.permute.xlu0 %1149
        %1151 = vrot.lane.b32.xlu0 %v908, 64
        %v1152 = vpop.permute.xlu0 %1151
        %v1153 = vsel %vm947, %v1150, 0
        %v1155 = vsel %vm947, %v1152, 0
        %1157 = vmatpush.xpose.msra.mxu0 0.0
        %1158 = vmatpush.xpose.msra.mxu0 0.0
        %1159 = vmatpush.xpose.msra.mxu0 0.0
        %1160 = vmatpush.xpose.msra.mxu0 0.0
        %1161 = vmatpush.xpose.msra.mxu0 0.0
        %1162 = vmatpush.xpose.msra.mxu0 0.0
        %1163 = vmatpush.xpose.msra.mxu0 0.0
        %1164 = vmatpush.xpose.msra.mxu0 0.0
        %1165 = vmatpush.xpose.msra.mxu0 0.0
        %1166 = vmatpush.xpose.msra.mxu0 0.0
        %1167 = vmatpush.xpose.msra.mxu0 0.0
        %1168 = vmatpush.xpose.msra.mxu0 0.0
        %1169 = vmatpush.xpose.msra.mxu0 0.0
        %1170 = vmatpush.xpose.msra.mxu0 0.0
        %1171 = vmatpush.xpose.msra.mxu0 0.0
        %1172 = vmatpush.xpose.msra.mxu0 %v1155
        %1173 = vmatmul.f32.gmra.mxu0 %v1153
        %v1174 = vpop.f32.mrf.mxu0
        %v1175 = vadd.f32 0.0, %v1174
        %1176 = vdwg.mxu0
        %v1177 = vmul.f32 %v1175, 0.17677669
        %v1178 = vsel %vm975, %v1177, -inf
        %1179 = vmax.xlane.f32.xlu0 %v1178
        %v1180 = vpop.xlane.xlu0 %1179
        %v1181 = vsub.f32 %v1177, %v1180
        %v1182 = vmul.f32 %v1181, 1.442695
        %v1183 = vpow.pop %v1182
        %v1184 = vsel %vm975, %v1183, 0.0
        %1185 = vadd.xlane.f32.xlu0 %v1184
        %v1186 = vpop.xlane.xlu0 %1185
        %v1187 = vrcp.pop %v1186
        %v1188 = vmul.f32 %v1186, %v1187
        %v1189 = vsub.f32 1.0, %v1188
        %v1190 = vmul.f32 %v1187, %v1189
        %v1191 = vadd.f32 %v1187, %v1190
        %vm1192 = vweird.f32 %v1186
        %vm1193 = vweird.f32 %v1187
        %vm1194 = vmor %vm1192, %vm1193
        %v1195 = vsel %vm1194, %v1187, %v1191
        %v1196 = vand.u32 2147483647, %v1186
        %vm1197 = vcmp.eq.f32.partialorder %v1196, 8.507059e+37
        %v1198 = vand.u32 %v1186, 2147483648
        %v1199 = vor.u32 1.1754944e-38, %v1198
        %v1200 = vsel %vm1197, %v1199, %v1195
        %v1201 = vmul.f32 %v1183, %v1200
        %1202 = vrot.lane.b32.xlu0 %v928, 64
        %v1203 = vpop.permute.xlu0 %1202
        %v1206 = vsel %vm975, %v1201, 0
        %1208 = vmatpush.msra.mxu0 0.0
        %1209 = vmatpush.msra.mxu0 0.0
        %1210 = vmatpush.msra.mxu0 0.0
        %1211 = vmatpush.msra.mxu0 0.0
        %1212 = vmatpush.msra.mxu0 0.0
        %1213 = vmatpush.msra.mxu0 0.0
        %1214 = vmatpush.msra.mxu0 0.0
        %1215 = vmatpush.msra.mxu0 0.0
        %1216 = vmatpush.msra.mxu0 0.0
        %1217 = vmatpush.msra.mxu0 0.0
        %1218 = vmatpush.msra.mxu0 0.0
        %1219 = vmatpush.msra.mxu0 0.0
        %1220 = vmatpush.msra.mxu0 0.0
        %1221 = vmatpush.msra.mxu0 0.0
        %1222 = vmatpush.msra.mxu0 0.0
        %1223 = vmatpush.msra.mxu0 %v1203
        %1224 = vmatmul.f32.gmra.mxu0 %v1206
        %v1225 = vpop.f32.mrf.mxu0
        %v1226 = vadd.f32 0.0, %v1225
        %1227 = vdwg.mxu0
        %v1229 = vsel %vm947, %v1226, 0
        %1231 = vmatpush.msra.mxu0 0.0
        %1232 = vmatpush.msra.mxu0 0.0
        %1233 = vmatpush.msra.mxu0 0.0
        %1234 = vmatpush.msra.mxu0 0.0
        %1235 = vmatpush.msra.mxu0 0.0
        %1236 = vmatpush.msra.mxu0 0.0
        %1237 = vmatpush.msra.mxu0 0.0
        %1238 = vmatpush.msra.mxu0 0.0
        %1239 = vmatpush.msra.mxu0 0.0
        %1240 = vmatpush.msra.mxu0 0.0
        %1241 = vmatpush.msra.mxu0 0.0
        %1242 = vmatpush.msra.mxu0 0.0
        %1243 = vmatpush.msra.mxu0 %v941
        %1244 = vmatpush.msra.mxu0 %v940
        %1245 = vmatpush.msra.mxu0 %v939
        %1246 = vmatpush.msra.mxu0 %v938
        %1247 = vmatmul.f32.gmra.mxu0 %v1229
        %v1248 = vpop.f32.mrf.mxu0
        %v1249 = vadd.f32 0.0, %v1248
        %1250 = vdwg.mxu0
        %v1251 = vadd.f32 %v1147, %v1249
        %1252 = vrot.lane.b32.xlu0 %v888, 32
        %v1253 = vpop.permute.xlu0 %1252
        %1254 = vrot.lane.b32.xlu0 %v908, 32
        %v1255 = vpop.permute.xlu0 %1254
        %v1256 = vsel %vm947, %v1253, 0
        %v1258 = vsel %vm947, %v1255, 0
        %1260 = vmatpush.xpose.msra.mxu0 0.0
        %1261 = vmatpush.xpose.msra.mxu0 0.0
        %1262 = vmatpush.xpose.msra.mxu0 0.0
        %1263 = vmatpush.xpose.msra.mxu0 0.0
        %1264 = vmatpush.xpose.msra.mxu0 0.0
        %1265 = vmatpush.xpose.msra.mxu0 0.0
        %1266 = vmatpush.xpose.msra.mxu0 0.0
        %1267 = vmatpush.xpose.msra.mxu0 0.0
        %1268 = vmatpush.xpose.msra.mxu0 0.0
        %1269 = vmatpush.xpose.msra.mxu0 0.0
        %1270 = vmatpush.xpose.msra.mxu0 0.0
        %1271 = vmatpush.xpose.msra.mxu0 0.0
        %1272 = vmatpush.xpose.msra.mxu0 0.0
        %1273 = vmatpush.xpose.msra.mxu0 0.0
        %1274 = vmatpush.xpose.msra.mxu0 0.0
        %1275 = vmatpush.xpose.msra.mxu0 %v1258
        %1276 = vmatmul.f32.gmra.mxu0 %v1256
        %v1277 = vpop.f32.mrf.mxu0
        %v1278 = vadd.f32 0.0, %v1277
        %1279 = vdwg.mxu0
        %v1280 = vmul.f32 %v1278, 0.17677669
        %v1281 = vsel %vm975, %v1280, -inf
        %1282 = vmax.xlane.f32.xlu0 %v1281
        %v1283 = vpop.xlane.xlu0 %1282
        %v1284 = vsub.f32 %v1280, %v1283
        %v1285 = vmul.f32 %v1284, 1.442695
        %v1286 = vpow.pop %v1285
        %v1287 = vsel %vm975, %v1286, 0.0
        %1288 = vadd.xlane.f32.xlu0 %v1287
        %v1289 = vpop.xlane.xlu0 %1288
        %v1290 = vrcp.pop %v1289
        %v1291 = vmul.f32 %v1289, %v1290
        %v1292 = vsub.f32 1.0, %v1291
        %v1293 = vmul.f32 %v1290, %v1292
        %v1294 = vadd.f32 %v1290, %v1293
        %vm1295 = vweird.f32 %v1289
        %vm1296 = vweird.f32 %v1290
        %vm1297 = vmor %vm1295, %vm1296
        %v1298 = vsel %vm1297, %v1290, %v1294
        %v1299 = vand.u32 2147483647, %v1289
        %vm1300 = vcmp.eq.f32.partialorder %v1299, 8.507059e+37
        %v1301 = vand.u32 %v1289, 2147483648
        %v1302 = vor.u32 1.1754944e-38, %v1301
        %v1303 = vsel %vm1300, %v1302, %v1298
        %v1304 = vmul.f32 %v1286, %v1303
        %1305 = vrot.lane.b32.xlu0 %v928, 32
        %v1306 = vpop.permute.xlu0 %1305
        %v1309 = vsel %vm975, %v1304, 0
        %1311 = vmatpush.msra.mxu0 0.0
        %1312 = vmatpush.msra.mxu0 0.0
        %1313 = vmatpush.msra.mxu0 0.0
        %1314 = vmatpush.msra.mxu0 0.0
        %1315 = vmatpush.msra.mxu0 0.0
        %1316 = vmatpush.msra.mxu0 0.0
        %1317 = vmatpush.msra.mxu0 0.0
        %1318 = vmatpush.msra.mxu0 0.0
        %1319 = vmatpush.msra.mxu0 0.0
        %1320 = vmatpush.msra.mxu0 0.0
        %1321 = vmatpush.msra.mxu0 0.0
        %1322 = vmatpush.msra.mxu0 0.0
        %1323 = vmatpush.msra.mxu0 0.0
        %1324 = vmatpush.msra.mxu0 0.0
        %1325 = vmatpush.msra.mxu0 0.0
        %1326 = vmatpush.msra.mxu0 %v1306
        %1327 = vmatmul.f32.gmra.mxu0 %v1309
        %v1328 = vpop.f32.mrf.mxu0
        %v1329 = vadd.f32 0.0, %v1328
        %1330 = vdwg.mxu0
        %v1332 = vsel %vm947, %v1329, 0
        %1334 = vmatpush.msra.mxu0 0.0
        %1335 = vmatpush.msra.mxu0 0.0
        %1336 = vmatpush.msra.mxu0 0.0
        %1337 = vmatpush.msra.mxu0 0.0
        %1338 = vmatpush.msra.mxu0 0.0
        %1339 = vmatpush.msra.mxu0 0.0
        %1340 = vmatpush.msra.mxu0 0.0
        %1341 = vmatpush.msra.mxu0 0.0
        %1342 = vmatpush.msra.mxu0 0.0
        %1343 = vmatpush.msra.mxu0 0.0
        %1344 = vmatpush.msra.mxu0 0.0
        %1345 = vmatpush.msra.mxu0 0.0
        %1346 = vmatpush.msra.mxu0 %v945
        %1347 = vmatpush.msra.mxu0 %v944
        %1348 = vmatpush.msra.mxu0 %v943
        %1349 = vmatpush.msra.mxu0 %v942
        %1350 = vmatmul.f32.gmra.mxu0 %v1332
        %v1351 = vpop.f32.mrf.mxu0
        %v1352 = vadd.f32 0.0, %v1351
        %1353 = vdwg.mxu0
        %v1354 = vadd.f32 %v1251, %v1352
        %v1356 = vperm.slane %v946, 0
        %v1358 = vadd.f32 %v1354, %v1356
        %v1359 = vadd.f32 %v1358, %v776
        %v1360 = vld [vmem:[%s758] sm:$0x1]
        %v1361 = vld [vmem:[%s761] sm:$0x1]
        %1362 = vadd.xlane.f32.xlu0 %v1359
        %v1363 = vpop.xlane.xlu0 %1362
        %v1364 = vmul.f32 %v1363, %v787
        %v1365 = vsub.f32 %v1359, %v1364
        %v1366 = vmul.f32 %v1365, %v1365
        %1367 = vadd.xlane.f32.xlu0 %v1366
        %v1368 = vpop.xlane.xlu0 %1367
        %v1369 = vmul.f32 %v1368, %v787
        %v1370 = vadd.f32 %v1369, 1e-05
        %v1371 = vrsqrt.pop %v1370
        %v1372 = vmul.f32 %v1371, %v1370
        %v1373 = vmul.f32 %v1372, %v1371
        %v1374 = vmul.f32 0.5, %v1373
        %v1375 = vsub.f32 1.5, %v1374
        %v1376 = vmul.f32 %v1371, %v1375
        %vm1377 = vweird.f32 %v1370
        %vm1378 = vweird.f32 %v1371
        %vm1379 = vmor %vm1377, %vm1378
        %v1380 = vsel %vm1379, %v1371, %v1376
        %v1381 = vmul.f32 %v1365, %v1380
        %v1383 = vperm.slane %v1360, 0
        %v1385 = vmul.f32 %v1381, %v1383
        %v1387 = vperm.slane %v1361, 0
        %v1389 = vadd.f32 %v1385, %v1387
        %v1390 = vld [vmem:[%s633] sm:$0xff]
        %v1391 = vld [vmem:[%s633 + $0x8] sm:$0xff]
        %v1392 = vld [vmem:[%s633 + $0x10] sm:$0xff]
        %v1393 = vld [vmem:[%s633 + $0x18] sm:$0xff]
        %v1394 = vld [vmem:[%s633 + $0x20] sm:$0xff]
        %v1395 = vld [vmem:[%s633 + $0x28] sm:$0xff]
        %v1396 = vld [vmem:[%s633 + $0x30] sm:$0xff]
        %v1397 = vld [vmem:[%s633 + $0x38] sm:$0xff]
        %v1398 = vld [vmem:[%s633 + $0x40] sm:$0xff]
        %v1399 = vld [vmem:[%s633 + $0x48] sm:$0xff]
        %v1400 = vld [vmem:[%s633 + $0x50] sm:$0xff]
        %v1401 = vld [vmem:[%s633 + $0x58] sm:$0xff]
        %v1402 = vld [vmem:[%s633 + $0x60] sm:$0xff]
        %v1403 = vld [vmem:[%s633 + $0x68] sm:$0xff]
        %v1404 = vld [vmem:[%s633 + $0x70] sm:$0xff]
        %v1405 = vld [vmem:[%s633 + $0x78] sm:$0xff]
        %v1406 = vld [vmem:[%s633 + $0x80] sm:$0xff]
        %v1407 = vld [vmem:[%s633 + $0x88] sm:$0xff]
        %v1408 = vld [vmem:[%s633 + $0x90] sm:$0xff]
        %v1409 = vld [vmem:[%s633 + $0x98] sm:$0xff]
        %v1410 = vld [vmem:[%s633 + $0xa0] sm:$0xff]
        %v1411 = vld [vmem:[%s633 + $0xa8] sm:$0xff]
        %v1412 = vld [vmem:[%s633 + $0xb0] sm:$0xff]
        %v1413 = vld [vmem:[%s633 + $0xb8] sm:$0xff]
        %v1414 = vld [vmem:[%s633 + $0xc0] sm:$0xff]
        %v1415 = vld [vmem:[%s633 + $0xc8] sm:$0xff]
        %v1416 = vld [vmem:[%s633 + $0xd0] sm:$0xff]
        %v1417 = vld [vmem:[%s633 + $0xd8] sm:$0xff]
        %v1418 = vld [vmem:[%s633 + $0xe0] sm:$0xff]
        %v1419 = vld [vmem:[%s633 + $0xe8] sm:$0xff]
        %v1420 = vld [vmem:[%s633 + $0xf0] sm:$0xff]
        %v1421 = vld [vmem:[%s633 + $0xf8] sm:$0xff]
        %v1422 = vld [vmem:[%s765] sm:$0x3]
        %v1424 = vperm.slane %v1422, 0
        %v1425 = vperm.slane %v1422, 1
        %1428 = vmatpush.msra.mxu0 %v1420
        %1429 = vmatpush.msra.mxu0 %v1418
        %1430 = vmatpush.msra.mxu0 %v1416
        %1431 = vmatpush.msra.mxu0 %v1414
        %1432 = vmatpush.msra.mxu0 %v1412
        %1433 = vmatpush.msra.mxu0 %v1410
        %1434 = vmatpush.msra.mxu0 %v1408
        %1435 = vmatpush.msra.mxu0 %v1406
        %1436 = vmatpush.msra.mxu0 %v1404
        %1437 = vmatpush.msra.mxu0 %v1402
        %1438 = vmatpush.msra.mxu0 %v1400
        %1439 = vmatpush.msra.mxu0 %v1398
        %1440 = vmatpush.msra.mxu0 %v1396
        %1441 = vmatpush.msra.mxu0 %v1394
        %1442 = vmatpush.msra.mxu0 %v1392
        %1443 = vmatpush.msra.mxu0 %v1390
        %1444 = vmatmul.f32.gmra.mxu0 %v1389
        %v1445 = vpop.f32.mrf.mxu0
        %v1446 = vadd.f32 %v1424, %v1445
        %1447 = vdwg.mxu0
        %1448 = vmatpush.msra.mxu0 %v1421
        %1449 = vmatpush.msra.mxu0 %v1419
        %1450 = vmatpush.msra.mxu0 %v1417
        %1451 = vmatpush.msra.mxu0 %v1415
        %1452 = vmatpush.msra.mxu0 %v1413
        %1453 = vmatpush.msra.mxu0 %v1411
        %1454 = vmatpush.msra.mxu0 %v1409
        %1455 = vmatpush.msra.mxu0 %v1407
        %1456 = vmatpush.msra.mxu0 %v1405
        %1457 = vmatpush.msra.mxu0 %v1403
        %1458 = vmatpush.msra.mxu0 %v1401
        %1459 = vmatpush.msra.mxu0 %v1399
        %1460 = vmatpush.msra.mxu0 %v1397
        %1461 = vmatpush.msra.mxu0 %v1395
        %1462 = vmatpush.msra.mxu0 %v1393
        %1463 = vmatpush.msra.mxu0 %v1391
        %1464 = vmatmul.f32.gmra.mxu0 %v1389
        %v1465 = vpop.f32.mrf.mxu0
        %v1466 = vadd.f32 %v1425, %v1465
        %1467 = vdwg.mxu0
        %v1468 = vmul.f32 %v1446, 0.5
        %v1469 = vmul.f32 %v1466, 0.5
        %v1470 = vmul.f32 %v1446, 0.70710677
        %v1471 = vmul.f32 %v1466, 0.70710677
        %v1472 = vmul.f32 %v1470, %v1470
        %v1473 = vmin.f32 16.0, %v1472
        %v1474 = vmul.f32 %v1473, 2.1237322e-06
        %v1475 = vadd.f32 %v1474, 0.00028619796
        %v1476 = vmul.f32 %v1473, %v1475
        %v1477 = vadd.f32 %v1476, 0.0036580483
        %v1478 = vmul.f32 %v1473, %v1477
        %v1479 = vadd.f32 %v1478, 0.05243302
        %v1480 = vmul.f32 %v1473, %v1479
        %v1481 = vadd.f32 %v1480, 0.18741608
        %v1482 = vmul.f32 %v1473, %v1481
        %v1483 = vadd.f32 %v1482, 1.1283791
        %v1484 = vmul.f32 %v1470, %v1483
        %v1485 = vmul.f32 %v1473, 3.8918573e-05
        %v1486 = vadd.f32 %v1485, 0.001143296
        %v1487 = vmul.f32 %v1473, %v1486
        %v1488 = vadd.f32 %v1487, 0.014752088
        %v1489 = vmul.f32 %v1473, %v1488
        %v1490 = vadd.f32 %v1489, 0.112945676
        %v1491 = vmul.f32 %v1473, %v1490
        %v1492 = vadd.f32 %v1491, 0.4994258
        %v1493 = vmul.f32 %v1473, %v1492
        %v1494 = vadd.f32 %v1493, 1.0
        %v1495 = vrcp.pop %v1494
        %v1496 = vmul.f32 %v1494, %v1495
        %v1497 = vsub.f32 1.0, %v1496
        %v1498 = vmul.f32 %v1495, %v1497
        %v1499 = vadd.f32 %v1495, %v1498
        %vm1500 = vweird.f32 %v1494
        %vm1501 = vweird.f32 %v1495
        %vm1502 = vmor %vm1500, %vm1501
        %v1503 = vsel %vm1502, %v1495, %v1499
        %v1504 = vand.u32 2147483647, %v1494
        %vm1505 = vcmp.eq.f32.partialorder %v1504, 8.507059e+37
        %v1506 = vand.u32 %v1494, 2147483648
        %v1507 = vor.u32 1.1754944e-38, %v1506
        %v1508 = vsel %vm1505, %v1507, %v1503
        %v1509 = vmul.f32 %v1484, %v1508
        %v1510 = vmin.f32 %v1509, 1.0
        %v1511 = vmax.f32 %v1510, -1.0
        %v1512 = vmul.f32 %v1471, %v1471
        %v1513 = vmin.f32 16.0, %v1512
        %v1514 = vmul.f32 %v1513, 2.1237322e-06
        %v1515 = vadd.f32 %v1514, 0.00028619796
        %v1516 = vmul.f32 %v1513, %v1515
        %v1517 = vadd.f32 %v1516, 0.0036580483
        %v1518 = vmul.f32 %v1513, %v1517
        %v1519 = vadd.f32 %v1518, 0.05243302
        %v1520 = vmul.f32 %v1513, %v1519
        %v1521 = vadd.f32 %v1520, 0.18741608
        %v1522 = vmul.f32 %v1513, %v1521
        %v1523 = vadd.f32 %v1522, 1.1283791
        %v1524 = vmul.f32 %v1471, %v1523
        %v1525 = vmul.f32 %v1513, 3.8918573e-05
        %v1526 = vadd.f32 %v1525, 0.001143296
        %v1527 = vmul.f32 %v1513, %v1526
        %v1528 = vadd.f32 %v1527, 0.014752088
        %v1529 = vmul.f32 %v1513, %v1528
        %v1530 = vadd.f32 %v1529, 0.112945676
        %v1531 = vmul.f32 %v1513, %v1530
        %v1532 = vadd.f32 %v1531, 0.4994258
        %v1533 = vmul.f32 %v1513, %v1532
        %v1534 = vadd.f32 %v1533, 1.0
        %v1535 = vrcp.pop %v1534
        %v1536 = vmul.f32 %v1534, %v1535
        %v1537 = vsub.f32 1.0, %v1536
        %v1538 = vmul.f32 %v1535, %v1537
        %v1539 = vadd.f32 %v1535, %v1538
        %vm1540 = vweird.f32 %v1534
        %vm1541 = vweird.f32 %v1535
        %vm1542 = vmor %vm1540, %vm1541
        %v1543 = vsel %vm1542, %v1535, %v1539
        %v1544 = vand.u32 2147483647, %v1534
        %vm1545 = vcmp.eq.f32.partialorder %v1544, 8.507059e+37
        %v1546 = vand.u32 %v1534, 2147483648
        %v1547 = vor.u32 1.1754944e-38, %v1546
        %v1548 = vsel %vm1545, %v1547, %v1543
        %v1549 = vmul.f32 %v1524, %v1548
        %v1550 = vmin.f32 %v1549, 1.0
        %v1551 = vmax.f32 %v1550, -1.0
        %v1552 = vadd.f32 %v1511, 1.0
        %v1553 = vadd.f32 %v1551, 1.0
        %v1554 = vmul.f32 %v1468, %v1552
        %v1555 = vmul.f32 %v1469, %v1553
        %v1556 = vld [vmem:[%s643] sm:$0xff]
        %v1557 = vld [vmem:[%s643 + $0x8] sm:$0xff]
        %v1558 = vld [vmem:[%s643 + $0x10] sm:$0xff]
        %v1559 = vld [vmem:[%s643 + $0x18] sm:$0xff]
        %v1560 = vld [vmem:[%s643 + $0x20] sm:$0xff]
        %v1561 = vld [vmem:[%s643 + $0x28] sm:$0xff]
        %v1562 = vld [vmem:[%s643 + $0x30] sm:$0xff]
        %v1563 = vld [vmem:[%s643 + $0x38] sm:$0xff]
        %v1564 = vld [vmem:[%s643 + $0x40] sm:$0xff]
        %v1565 = vld [vmem:[%s643 + $0x48] sm:$0xff]
        %v1566 = vld [vmem:[%s643 + $0x50] sm:$0xff]
        %v1567 = vld [vmem:[%s643 + $0x58] sm:$0xff]
        %v1568 = vld [vmem:[%s643 + $0x60] sm:$0xff]
        %v1569 = vld [vmem:[%s643 + $0x68] sm:$0xff]
        %v1570 = vld [vmem:[%s643 + $0x70] sm:$0xff]
        %v1571 = vld [vmem:[%s643 + $0x78] sm:$0xff]
        %v1572 = vld [vmem:[%s643 + $0x80] sm:$0xff]
        %v1573 = vld [vmem:[%s643 + $0x88] sm:$0xff]
        %v1574 = vld [vmem:[%s643 + $0x90] sm:$0xff]
        %v1575 = vld [vmem:[%s643 + $0x98] sm:$0xff]
        %v1576 = vld [vmem:[%s643 + $0xa0] sm:$0xff]
        %v1577 = vld [vmem:[%s643 + $0xa8] sm:$0xff]
        %v1578 = vld [vmem:[%s643 + $0xb0] sm:$0xff]
        %v1579 = vld [vmem:[%s643 + $0xb8] sm:$0xff]
        %v1580 = vld [vmem:[%s643 + $0xc0] sm:$0xff]
        %v1581 = vld [vmem:[%s643 + $0xc8] sm:$0xff]
        %v1582 = vld [vmem:[%s643 + $0xd0] sm:$0xff]
        %v1583 = vld [vmem:[%s643 + $0xd8] sm:$0xff]
        %v1584 = vld [vmem:[%s643 + $0xe0] sm:$0xff]
        %v1585 = vld [vmem:[%s643 + $0xe8] sm:$0xff]
        %v1586 = vld [vmem:[%s643 + $0xf0] sm:$0xff]
        %v1587 = vld [vmem:[%s643 + $0xf8] sm:$0xff]
        %v1588 = vld [vmem:[%s652] sm:$0x1]
        %v1590 = vperm.slane %v1588, 0
        %1592 = vmatpush.msra.mxu0 %v1571
        %1593 = vmatpush.msra.mxu0 %v1570
        %1594 = vmatpush.msra.mxu0 %v1569
        %1595 = vmatpush.msra.mxu0 %v1568
        %1596 = vmatpush.msra.mxu0 %v1567
        %1597 = vmatpush.msra.mxu0 %v1566
        %1598 = vmatpush.msra.mxu0 %v1565
        %1599 = vmatpush.msra.mxu0 %v1564
        %1600 = vmatpush.msra.mxu0 %v1563
        %1601 = vmatpush.msra.mxu0 %v1562
        %1602 = vmatpush.msra.mxu0 %v1561
        %1603 = vmatpush.msra.mxu0 %v1560
        %1604 = vmatpush.msra.mxu0 %v1559
        %1605 = vmatpush.msra.mxu0 %v1558
        %1606 = vmatpush.msra.mxu0 %v1557
        %1607 = vmatpush.msra.mxu0 %v1556
        %1608 = vmatmul.f32.gmra.mxu0 %v1554
        %v1609 = vpop.f32.mrf.mxu0
        %v1610 = vadd.f32 %v1590, %v1609
        %1611 = vdwg.mxu0
        %1612 = vmatpush.msra.mxu0 %v1587
        %1613 = vmatpush.msra.mxu0 %v1586
        %1614 = vmatpush.msra.mxu0 %v1585
        %1615 = vmatpush.msra.mxu0 %v1584
        %1616 = vmatpush.msra.mxu0 %v1583
        %1617 = vmatpush.msra.mxu0 %v1582
        %1618 = vmatpush.msra.mxu0 %v1581
        %1619 = vmatpush.msra.mxu0 %v1580
        %1620 = vmatpush.msra.mxu0 %v1579
        %1621 = vmatpush.msra.mxu0 %v1578
        %1622 = vmatpush.msra.mxu0 %v1577
        %1623 = vmatpush.msra.mxu0 %v1576
        %1624 = vmatpush.msra.mxu0 %v1575
        %1625 = vmatpush.msra.mxu0 %v1574
        %1626 = vmatpush.msra.mxu0 %v1573
        %1627 = vmatpush.msra.mxu0 %v1572
        %1628 = vmatmul.f32.gmra.mxu0 %v1555
        %v1629 = vpop.f32.mrf.mxu0
        %v1630 = vadd.f32 %v1610, %v1629
        %1631 = vdwg.mxu0
        %v1632 = vadd.f32 %v1630, %v1359
        %1633 = vst [vmem:[#allocation2] sm:$0xff] %v1632
        %p1634 = scmp.eq.s32.totalorder %s41, 1
        // Predicated region
        $region101: #{seq2seq_forward.3} parent=71 // pred_check
          %p1635 = pneg %p1634
        $region102: #{seq2seq_forward.3} parent=71 // pred_check_branch
          %1637 = sbr.rel (%p1635) target = $region104
        $region103: #{seq2seq_forward.3} parent=71 // pred_region
          %1638 = vst [vmem:[%s769] sm:$0xff] %v1632
        $region104: #{seq2seq_forward.3} parent=71 // pred_fallthru
          _
        %p1639 = scmp.lt.s32.totalorder %s40, 1
        %s1640 = scalar_select %p1639, %s40, 1
        %s1641 = smul.addr %s1640, 8
        %s1642 = scalar_lea.vmem %s13, %s1641
        // Predicated region
        $region105: #{seq2seq_forward.3} parent=71 // pred_check
          %p1643 = pneg %p404
        $region106: #{seq2seq_forward.3} parent=71 // pred_check_branch
          %1645 = sbr.rel (%p1643) target = $region108
        $region107: #{seq2seq_forward.3} parent=71 // pred_region
          _
        $region108: #{seq2seq_forward.3} parent=71 // pred_fallthru
          _
      $region72: #{seq2seq_forward.3} parent=5 // pred_fallthru
        _
      %p1646 = scmp.le.s32.totalorder 2, %s31
      // Predicated region
      $region109: #{seq2seq_forward.3} parent=5 // pred_check
        %p1647 = pneg %p1646
      $region110: #{seq2seq_forward.3} parent=5 // pred_check_branch
        %1649 = sbr.rel (%p1647) target = $region112
      $region111: #{seq2seq_forward.3} parent=5 // pred_region
        %s1650 = ssub.s32 %s31, 2
        // Predicated region
        $region113: #{seq2seq_forward.3} parent=111 // pred_check
          %p1651 = pneg %p410
        $region114: #{seq2seq_forward.3} parent=111 // pred_check_branch
          %1653 = sbr.rel (%p1651) target = $region116
        $region115: #{seq2seq_forward.3} parent=111 // pred_region
          %p1654 = scmp.lt.s32.totalorder %s42, 1
          %s1655 = scalar_select %p1654, %s42, 1
          %s1656 = smul.addr %s1655, 8
          %s1657 = scalar_lea.vmem %s13, %s1656
        $region116: #{seq2seq_forward.3} parent=111 // pred_fallthru
          _
      $region112: #{seq2seq_forward.3} parent=5 // pred_fallthru
        _
    $region6: #{seq2seq_forward.3} parent=1 // loop_footer
      %s35 = sadd.s32 1, %s31
    $region7: #{seq2seq_forward.3} parent=1 // loop_footer_branch
      %30 = sbr.rel target = $region3
    $region8: #{seq2seq_forward.3} parent=1 // loop_exit
      _
    %1658 = vsyncpa [#allocation4], 1
    %s1659 = scalar_lea.sflag [#allocation4], 1
    %1660 = vsyncpa %s1659, 1
    %1661 = vsyncpa [#allocation6], 1
    %s1662 = scalar_lea.sflag [#allocation6], 1
    %1663 = vsyncpa %s1662, 1
    %1664 = vsyncpa [#allocation9], 1
    %s1665 = scalar_lea.sflag [#allocation9], 1
    %1666 = vsyncpa %s1665, 1
    %1667 = vsyncpa [#allocation12], 1
    %s1668 = scalar_lea.sflag [#allocation12], 1
    %1669 = vsyncpa %s1668, 1

// kernel: seq2seq_forward.4
$region0: #{seq2seq_forward.4}
  #allocation0 [shape = 'u32[]', space=smem, size = 0x4, offset = 0x4, fixed_abs, tag = 'smem constant byte address 0x4 - core index']
  #allocation1 [shape = 'u32[72,128]{1,0:T(1,128)}', space=vmem, size = 0x9000, scoped, tag = 'internal scratch']
  #allocation2 [shape = 'f32[8,128]{1,0:T(8,128)}', space=vmem, size = 0x1000, scoped, tag = 'scratch operand']
  #allocation3 [shape = 'f32[8,512]{1,0:T(8,128)}', space=vmem, size = 0x4000, scoped, tag = 'scratch operand']
  #allocation4 [shape = 'f32[8,128]{1,0:T(8,128)}', space=vmem, size = 0x1000, scoped, tag = 'scratch operand']
  %s0 = inlined_call_operand.vmem [shape: f32[2,8,128], index: 0, kind: input, shape index: {}]
  %s1 = inlined_call_operand.vmem [shape: f32[2,8,128], index: 1, kind: input, shape index: {}]
  %s2 = inlined_call_operand.vmem [shape: f32[2,1,128], index: 2, kind: input, shape index: {}]
  %s3 = inlined_call_operand.vmem [shape: f32[2,1,128], index: 3, kind: input, shape index: {}]
  %s4 = inlined_call_operand.vmem [shape: f32[2,128,128], index: 4, kind: input, shape index: {}]
  %s5 = inlined_call_operand.vmem [shape: f32[2,1,128], index: 5, kind: input, shape index: {}]
  %s6 = inlined_call_operand.hbm [shape: f32[2,128,256], index: 6, kind: input, shape index: {}]
  %s7 = inlined_call_operand.vmem [shape: f32[2,1,256], index: 7, kind: input, shape index: {}]
  %s8 = inlined_call_operand.hbm [shape: f32[2,128,128], index: 8, kind: input, shape index: {}]
  %s9 = inlined_call_operand.vmem [shape: f32[2,1,128], index: 9, kind: input, shape index: {}]
  %s10 = inlined_call_operand.vmem [shape: f32[2,1,128], index: 10, kind: input, shape index: {}]
  %s11 = inlined_call_operand.vmem [shape: f32[2,1,128], index: 11, kind: input, shape index: {}]
  %s12 = inlined_call_operand.hbm [shape: f32[2,128,512], index: 12, kind: input, shape index: {}]
  %s13 = inlined_call_operand.hbm [shape: f32[2,128,512], index: 13, kind: input, shape index: {}]
  %s14 = inlined_call_operand.vmem [shape: f32[2,1,512], index: 14, kind: input, shape index: {}]
  %s15 = inlined_call_operand.hbm [shape: f32[2,128,256], index: 15, kind: input, shape index: {}]
  %s16 = inlined_call_operand.vmem [shape: f32[2,1,256], index: 16, kind: input, shape index: {}]
  %s17 = inlined_call_operand.hbm [shape: f32[2,256,128], index: 17, kind: input, shape index: {}]
  %s18 = inlined_call_operand.vmem [shape: f32[2,1,128], index: 18, kind: input, shape index: {}]
  %s19 = inlined_call_operand.vmem [shape: f32[2,8,128], index: 19, kind: output, shape index: {}]
  %s20 = sld [smem:[#allocation0]]
  $region141: #{seq2seq_forward.4} parent=0
    _
  %s22 = ssub.s32 1, %s20
  %s23 = scalar_select 0, %s22, %s20
  $region1: #{seq2seq_forward.4} parent=0
    #allocation5 [shape = 'u8[262144]{0}', space=vmem, size = 0x40000, scoped, tag = 'input window, operand 6']
    #allocation6 [shape = 's32[2]{0}', space=sflag, size = 0x8, scoped, tag = 'scoped memory for seq2seq_forward.4']
    #allocation7 [shape = 'u8[131072]{0}', space=vmem, size = 0x20000, scoped, tag = 'input window, operand 8']
    #allocation8 [shape = 's32[2]{0}', space=sflag, size = 0x8, scoped, tag = 'scoped memory for seq2seq_forward.4']
    #allocation9 [shape = 'u8[524288]{0}', space=vmem, size = 0x80000, scoped, tag = 'input window, operand 12']
    #allocation10 [shape = 'u8[524288]{0}', space=vmem, size = 0x80000, scoped, tag = 'input window, operand 13']
    #allocation11 [shape = 's32[2]{0}', space=sflag, size = 0x8, scoped, tag = 'scoped memory for seq2seq_forward.4']
    #allocation12 [shape = 'u8[262144]{0}', space=vmem, size = 0x40000, scoped, tag = 'input window, operand 15']
    #allocation13 [shape = 'u8[262144]{0}', space=vmem, size = 0x40000, scoped, tag = 'input window, operand 17']
    #allocation14 [shape = 's32[2]{0}', space=sflag, size = 0x8, scoped, tag = 'scoped memory for seq2seq_forward.4']
    %24 = vsyncpa [#allocation6], 0
    %s25 = scalar_lea.sflag [#allocation6], 1
    %26 = vsyncpa %s25, 0
    %27 = vsyncpa [#allocation8], 0
    %s28 = scalar_lea.sflag [#allocation8], 1
    %29 = vsyncpa %s28, 0
    %30 = vsyncpa [#allocation11], 0
    %s31 = scalar_lea.sflag [#allocation11], 1
    %32 = vsyncpa %s31, 0
    %33 = vsyncpa [#allocation14], 0
    %s34 = scalar_lea.sflag [#allocation14], 1
    %35 = vsyncpa %s34, 0
    loop: start=0, step=1, limit=6
    $region2: #{seq2seq_forward.4} parent=1 // loop_pre_header
      _
    $region3: #{seq2seq_forward.4} parent=1 // loop_header
      %s37 = sphi 0, %s41
      %p38 = scmp.ge.s32.totalorder %s37, 6
      %s44 = sphi 0, %s56
      %s45 = sphi 0, %s52
      %s46 = sphi 0, %s44
      %s47 = sphi 0, %s45
      %s48 = sphi 0, %s46
      %s49 = sphi 0, %s47
      %s59 = sphi 0, %s61
      %s62 = sphi 0, %s59
      %s63 = sphi 0, %s62
      %s79 = sphi 0, %s63
      %s85 = sphi 0, %s87
      %s88 = sphi 0, %s85
      %s89 = sphi 0, %s88
      %s105 = sphi 0, %s89
      %s111 = sphi 0, %s113
      %s114 = sphi 0, %s111
      %s115 = sphi 0, %s114
      %s131 = sphi 0, %s115
      %s137 = sphi 0, %s139
      %s140 = sphi 0, %s137
      %s141 = sphi 0, %s140
      %s157 = sphi 0, %s141
      %s163 = sphi 0, %s165
      %s166 = sphi 0, %s163
      %s167 = sphi 0, %s166
      %s183 = sphi 0, %s167
      %s189 = sphi 0, %s191
      %s192 = sphi 0, %s189
      %s193 = sphi 0, %s192
      %s209 = sphi 0, %s193
      %s215 = sphi 0, %s217
      %s218 = sphi 0, %s215
      %s219 = sphi 0, %s218
      %s235 = sphi 0, %s219
      %s241 = sphi 0, %s243
      %s244 = sphi 0, %s241
      %s245 = sphi 0, %s244
      %s261 = sphi 0, %s245
      %s267 = sphi 0, %s269
      %s270 = sphi 0, %s267
      %s271 = sphi 0, %s270
      %s287 = sphi 0, %s271
      %s293 = sphi 0, %s295
      %s296 = sphi 0, %s293
      %s297 = sphi 0, %s296
      %s313 = sphi 0, %s297
      %s319 = sphi 0, %s321
      %s322 = sphi 0, %s319
      %s323 = sphi 0, %s322
      %s339 = sphi 0, %s323
      %s345 = sphi 0, %s347
      %s348 = sphi 0, %s345
      %s349 = sphi 0, %s348
      %s365 = sphi 0, %s349
      %s371 = sphi 0, %s373
      %s374 = sphi 0, %s371
      %s375 = sphi 0, %s374
      %s391 = sphi 0, %s375
      %s397 = sphi 0, %s399
      %s400 = sphi 0, %s397
      %s401 = sphi 0, %s400
      %s417 = sphi 0, %s401
      %s423 = sphi 0, %s425
      %s426 = sphi 0, %s423
      %s427 = sphi 0, %s426
      %s443 = sphi 0, %s427
      %s449 = sphi 0, %s451
      %s452 = sphi 0, %s449
      %s453 = sphi 0, %s452
      %s469 = sphi 0, %s453
      %s475 = sphi 0, %s477
      %s478 = sphi 0, %s475
      %s479 = sphi 0, %s478
      %s495 = sphi 0, %s479
      %s501 = sphi 0, %s503
      %s504 = sphi 0, %s501
      %s505 = sphi 0, %s504
      %s521 = sphi 0, %s505
      %s527 = sphi 0, %s529
      %s530 = sphi 0, %s527
      %s531 = sphi 0, %s530
      %s547 = sphi 0, %s531
      %s553 = sphi 0, %s555
      %s556 = sphi 0, %s553
      %s557 = sphi 0, %s556
      %s573 = sphi 0, %s557
    $region4: #{seq2seq_forward.4} parent=1 // loop_header_branch
      %40 = sbr.rel (%p38) target = $region8
    $region5: #{seq2seq_forward.4} parent=1 // loop_body
      %s42 = ssub.s32 %s37, 1
      %s43 = ssub.s32 %s37, 2
      %s50 = sadd.s32 1, %s45
      %p51 = scmp.ge.s32.totalorder %s50, 2
      %s52 = scalar_select %p51, 0, %s50
      %s53 = sadd.s32 1, %s44
      %s54 = scalar_select %p51, %s53, %s44
      %p55 = scmp.ge.s32.totalorder %s54, 2
      %s56 = scalar_select %p55, 0, %s54
      %s57 = ssub.s32 %s44, %s56
      %p58 = scmp.eq.s32.totalorder %s57, 0
      %s60 = sadd.s32 %s59, 1
      %s61 = scalar_select %p58, %s59, %s60
      %p64 = pneg %p58
      %p65 = scmp.eq.s32.totalorder %s37, 3
      %p66 = por %p64, %p65
      %p67 = scmp.ne.s32.totalorder %s59, %s62
      %p68 = scmp.eq.s32.totalorder %s37, 0
      %p69 = por %p67, %p68
      %p70 = scmp.ne.s32.totalorder %s59, %s62
      %p71 = scmp.eq.s32.totalorder %s42, 3
      %p72 = por %p70, %p71
      %p73 = scmp.ne.s32.totalorder %s62, %s63
      %p74 = scmp.eq.s32.totalorder %s42, 0
      %p75 = por %p73, %p74
      %p76 = scmp.ne.s32.totalorder %s62, %s63
      %p77 = scmp.eq.s32.totalorder %s43, 3
      %p78 = por %p76, %p77
      %p80 = scmp.ne.s32.totalorder %s63, %s79
      %p81 = scmp.eq.s32.totalorder %s43, 0
      %p82 = por %p80, %p81
      %s83 = ssub.s32 %s44, %s56
      %p84 = scmp.eq.s32.totalorder %s83, 0
      %s86 = sadd.s32 %s85, 1
      %s87 = scalar_select %p84, %s85, %s86
      %p90 = pneg %p84
      %p91 = scmp.eq.s32.totalorder %s37, 3
      %p92 = por %p90, %p91
      %p93 = scmp.ne.s32.totalorder %s85, %s88
      %p94 = scmp.eq.s32.totalorder %s37, 0
      %p95 = por %p93, %p94
      %p96 = scmp.ne.s32.totalorder %s85, %s88
      %p97 = scmp.eq.s32.totalorder %s42, 3
      %p98 = por %p96, %p97
      %p99 = scmp.ne.s32.totalorder %s88, %s89
      %p100 = scmp.eq.s32.totalorder %s42, 0
      %p101 = por %p99, %p100
      %p102 = scmp.ne.s32.totalorder %s88, %s89
      %p103 = scmp.eq.s32.totalorder %s43, 3
      %p104 = por %p102, %p103
      %p106 = scmp.ne.s32.totalorder %s89, %s105
      %p107 = scmp.eq.s32.totalorder %s43, 0
      %p108 = por %p106, %p107
      %s109 = ssub.s32 %s45, %s52
      %p110 = scmp.eq.s32.totalorder %s109, 0
      %s112 = sadd.s32 %s111, 1
      %s113 = scalar_select %p110, %s111, %s112
      %p116 = pneg %p110
      %p117 = scmp.eq.s32.totalorder %s37, 3
      %p118 = por %p116, %p117
      %p119 = scmp.ne.s32.totalorder %s111, %s114
      %p120 = scmp.eq.s32.totalorder %s37, 0
      %p121 = por %p119, %p120
      %p122 = scmp.ne.s32.totalorder %s111, %s114
      %p123 = scmp.eq.s32.totalorder %s42, 3
      %p124 = por %p122, %p123
      %p125 = scmp.ne.s32.totalorder %s114, %s115
      %p126 = scmp.eq.s32.totalorder %s42, 0
      %p127 = por %p125, %p126
      %p128 = scmp.ne.s32.totalorder %s114, %s115
      %p129 = scmp.eq.s32.totalorder %s43, 3
      %p130 = por %p128, %p129
      %p132 = scmp.ne.s32.totalorder %s115, %s131
      %p133 = scmp.eq.s32.totalorder %s43, 0
      %p134 = por %p132, %p133
      %s135 = ssub.s32 %s45, %s52
      %p136 = scmp.eq.s32.totalorder %s135, 0
      %s138 = sadd.s32 %s137, 1
      %s139 = scalar_select %p136, %s137, %s138
      %p142 = pneg %p136
      %p143 = scmp.eq.s32.totalorder %s37, 3
      %p144 = por %p142, %p143
      %p145 = scmp.ne.s32.totalorder %s137, %s140
      %p146 = scmp.eq.s32.totalorder %s37, 0
      %p147 = por %p145, %p146
      %p148 = scmp.ne.s32.totalorder %s137, %s140
      %p149 = scmp.eq.s32.totalorder %s42, 3
      %p150 = por %p148, %p149
      %p151 = scmp.ne.s32.totalorder %s140, %s141
      %p152 = scmp.eq.s32.totalorder %s42, 0
      %p153 = por %p151, %p152
      %p154 = scmp.ne.s32.totalorder %s140, %s141
      %p155 = scmp.eq.s32.totalorder %s43, 3
      %p156 = por %p154, %p155
      %p158 = scmp.ne.s32.totalorder %s141, %s157
      %p159 = scmp.eq.s32.totalorder %s43, 0
      %p160 = por %p158, %p159
      %s161 = ssub.s32 %s45, %s52
      %p162 = scmp.eq.s32.totalorder %s161, 0
      %s164 = sadd.s32 %s163, 1
      %s165 = scalar_select %p162, %s163, %s164
      %p168 = pneg %p162
      %p169 = scmp.eq.s32.totalorder %s37, 3
      %p170 = por %p168, %p169
      %p171 = scmp.ne.s32.totalorder %s163, %s166
      %p172 = scmp.eq.s32.totalorder %s37, 0
      %p173 = por %p171, %p172
      %p174 = scmp.ne.s32.totalorder %s163, %s166
      %p175 = scmp.eq.s32.totalorder %s42, 3
      %p176 = por %p174, %p175
      %p177 = scmp.ne.s32.totalorder %s166, %s167
      %p178 = scmp.eq.s32.totalorder %s42, 0
      %p179 = por %p177, %p178
      %p180 = scmp.ne.s32.totalorder %s166, %s167
      %p181 = scmp.eq.s32.totalorder %s43, 3
      %p182 = por %p180, %p181
      %p184 = scmp.ne.s32.totalorder %s167, %s183
      %p185 = scmp.eq.s32.totalorder %s43, 0
      %p186 = por %p184, %p185
      %s187 = ssub.s32 %s45, %s52
      %p188 = scmp.eq.s32.totalorder %s187, 0
      %s190 = sadd.s32 %s189, 1
      %s191 = scalar_select %p188, %s189, %s190
      %p194 = pneg %p188
      %p195 = scmp.eq.s32.totalorder %s37, 3
      %p196 = por %p194, %p195
      %p197 = scmp.ne.s32.totalorder %s189, %s192
      %p198 = scmp.eq.s32.totalorder %s37, 0
      %p199 = por %p197, %p198
      %p200 = scmp.ne.s32.totalorder %s189, %s192
      %p201 = scmp.eq.s32.totalorder %s42, 3
      %p202 = por %p200, %p201
      %p203 = scmp.ne.s32.totalorder %s192, %s193
      %p204 = scmp.eq.s32.totalorder %s42, 0
      %p205 = por %p203, %p204
      %p206 = scmp.ne.s32.totalorder %s192, %s193
      %p207 = scmp.eq.s32.totalorder %s43, 3
      %p208 = por %p206, %p207
      %p210 = scmp.ne.s32.totalorder %s193, %s209
      %p211 = scmp.eq.s32.totalorder %s43, 0
      %p212 = por %p210, %p211
      %s213 = ssub.s32 %s45, %s52
      %p214 = scmp.eq.s32.totalorder %s213, 0
      %s216 = sadd.s32 %s215, 1
      %s217 = scalar_select %p214, %s215, %s216
      %p220 = pneg %p214
      %p221 = scmp.eq.s32.totalorder %s37, 3
      %p222 = por %p220, %p221
      %p223 = scmp.ne.s32.totalorder %s215, %s218
      %p224 = scmp.eq.s32.totalorder %s37, 0
      %p225 = por %p223, %p224
      %p226 = scmp.ne.s32.totalorder %s215, %s218
      %p227 = scmp.eq.s32.totalorder %s42, 3
      %p228 = por %p226, %p227
      %p229 = scmp.ne.s32.totalorder %s218, %s219
      %p230 = scmp.eq.s32.totalorder %s42, 0
      %p231 = por %p229, %p230
      %p232 = scmp.ne.s32.totalorder %s218, %s219
      %p233 = scmp.eq.s32.totalorder %s43, 3
      %p234 = por %p232, %p233
      %p236 = scmp.ne.s32.totalorder %s219, %s235
      %p237 = scmp.eq.s32.totalorder %s43, 0
      %p238 = por %p236, %p237
      %s239 = ssub.s32 %s45, %s52
      %p240 = scmp.eq.s32.totalorder %s239, 0
      %s242 = sadd.s32 %s241, 1
      %s243 = scalar_select %p240, %s241, %s242
      %p246 = pneg %p240
      %p247 = scmp.eq.s32.totalorder %s37, 3
      %p248 = por %p246, %p247
      %p249 = scmp.ne.s32.totalorder %s241, %s244
      %p250 = scmp.eq.s32.totalorder %s37, 0
      %p251 = por %p249, %p250
      %p252 = scmp.ne.s32.totalorder %s241, %s244
      %p253 = scmp.eq.s32.totalorder %s42, 3
      %p254 = por %p252, %p253
      %p255 = scmp.ne.s32.totalorder %s244, %s245
      %p256 = scmp.eq.s32.totalorder %s42, 0
      %p257 = por %p255, %p256
      %p258 = scmp.ne.s32.totalorder %s244, %s245
      %p259 = scmp.eq.s32.totalorder %s43, 3
      %p260 = por %p258, %p259
      %p262 = scmp.ne.s32.totalorder %s245, %s261
      %p263 = scmp.eq.s32.totalorder %s43, 0
      %p264 = por %p262, %p263
      %s265 = ssub.s32 %s45, %s52
      %p266 = scmp.eq.s32.totalorder %s265, 0
      %s268 = sadd.s32 %s267, 1
      %s269 = scalar_select %p266, %s267, %s268
      %p272 = pneg %p266
      %p273 = scmp.eq.s32.totalorder %s37, 3
      %p274 = por %p272, %p273
      %p275 = scmp.ne.s32.totalorder %s267, %s270
      %p276 = scmp.eq.s32.totalorder %s37, 0
      %p277 = por %p275, %p276
      %p278 = scmp.ne.s32.totalorder %s267, %s270
      %p279 = scmp.eq.s32.totalorder %s42, 3
      %p280 = por %p278, %p279
      %p281 = scmp.ne.s32.totalorder %s270, %s271
      %p282 = scmp.eq.s32.totalorder %s42, 0
      %p283 = por %p281, %p282
      %p284 = scmp.ne.s32.totalorder %s270, %s271
      %p285 = scmp.eq.s32.totalorder %s43, 3
      %p286 = por %p284, %p285
      %p288 = scmp.ne.s32.totalorder %s271, %s287
      %p289 = scmp.eq.s32.totalorder %s43, 0
      %p290 = por %p288, %p289
      %s291 = ssub.s32 %s45, %s52
      %p292 = scmp.eq.s32.totalorder %s291, 0
      %s294 = sadd.s32 %s293, 1
      %s295 = scalar_select %p292, %s293, %s294
      %p298 = pneg %p292
      %p299 = scmp.eq.s32.totalorder %s37, 3
      %p300 = por %p298, %p299
      %p301 = scmp.ne.s32.totalorder %s293, %s296
      %p302 = scmp.eq.s32.totalorder %s37, 0
      %p303 = por %p301, %p302
      %p304 = scmp.ne.s32.totalorder %s293, %s296
      %p305 = scmp.eq.s32.totalorder %s42, 3
      %p306 = por %p304, %p305
      %p307 = scmp.ne.s32.totalorder %s296, %s297
      %p308 = scmp.eq.s32.totalorder %s42, 0
      %p309 = por %p307, %p308
      %p310 = scmp.ne.s32.totalorder %s296, %s297
      %p311 = scmp.eq.s32.totalorder %s43, 3
      %p312 = por %p310, %p311
      %p314 = scmp.ne.s32.totalorder %s297, %s313
      %p315 = scmp.eq.s32.totalorder %s43, 0
      %p316 = por %p314, %p315
      %s317 = ssub.s32 %s45, %s52
      %p318 = scmp.eq.s32.totalorder %s317, 0
      %s320 = sadd.s32 %s319, 1
      %s321 = scalar_select %p318, %s319, %s320
      %p324 = pneg %p318
      %p325 = scmp.eq.s32.totalorder %s37, 3
      %p326 = por %p324, %p325
      %p327 = scmp.ne.s32.totalorder %s319, %s322
      %p328 = scmp.eq.s32.totalorder %s37, 0
      %p329 = por %p327, %p328
      %p330 = scmp.ne.s32.totalorder %s319, %s322
      %p331 = scmp.eq.s32.totalorder %s42, 3
      %p332 = por %p330, %p331
      %p333 = scmp.ne.s32.totalorder %s322, %s323
      %p334 = scmp.eq.s32.totalorder %s42, 0
      %p335 = por %p333, %p334
      %p336 = scmp.ne.s32.totalorder %s322, %s323
      %p337 = scmp.eq.s32.totalorder %s43, 3
      %p338 = por %p336, %p337
      %p340 = scmp.ne.s32.totalorder %s323, %s339
      %p341 = scmp.eq.s32.totalorder %s43, 0
      %p342 = por %p340, %p341
      %s343 = ssub.s32 %s45, %s52
      %p344 = scmp.eq.s32.totalorder %s343, 0
      %s346 = sadd.s32 %s345, 1
      %s347 = scalar_select %p344, %s345, %s346
      %p350 = pneg %p344
      %p351 = scmp.eq.s32.totalorder %s37, 3
      %p352 = por %p350, %p351
      %p353 = scmp.ne.s32.totalorder %s345, %s348
      %p354 = scmp.eq.s32.totalorder %s37, 0
      %p355 = por %p353, %p354
      %p356 = scmp.ne.s32.totalorder %s345, %s348
      %p357 = scmp.eq.s32.totalorder %s42, 3
      %p358 = por %p356, %p357
      %p359 = scmp.ne.s32.totalorder %s348, %s349
      %p360 = scmp.eq.s32.totalorder %s42, 0
      %p361 = por %p359, %p360
      %p362 = scmp.ne.s32.totalorder %s348, %s349
      %p363 = scmp.eq.s32.totalorder %s43, 3
      %p364 = por %p362, %p363
      %p366 = scmp.ne.s32.totalorder %s349, %s365
      %p367 = scmp.eq.s32.totalorder %s43, 0
      %p368 = por %p366, %p367
      %s369 = ssub.s32 %s45, %s52
      %p370 = scmp.eq.s32.totalorder %s369, 0
      %s372 = sadd.s32 %s371, 1
      %s373 = scalar_select %p370, %s371, %s372
      %p376 = pneg %p370
      %p377 = scmp.eq.s32.totalorder %s37, 3
      %p378 = por %p376, %p377
      %p379 = scmp.ne.s32.totalorder %s371, %s374
      %p380 = scmp.eq.s32.totalorder %s37, 0
      %p381 = por %p379, %p380
      %p382 = scmp.ne.s32.totalorder %s371, %s374
      %p383 = scmp.eq.s32.totalorder %s42, 3
      %p384 = por %p382, %p383
      %p385 = scmp.ne.s32.totalorder %s374, %s375
      %p386 = scmp.eq.s32.totalorder %s42, 0
      %p387 = por %p385, %p386
      %p388 = scmp.ne.s32.totalorder %s374, %s375
      %p389 = scmp.eq.s32.totalorder %s43, 3
      %p390 = por %p388, %p389
      %p392 = scmp.ne.s32.totalorder %s375, %s391
      %p393 = scmp.eq.s32.totalorder %s43, 0
      %p394 = por %p392, %p393
      %s395 = ssub.s32 %s45, %s52
      %p396 = scmp.eq.s32.totalorder %s395, 0
      %s398 = sadd.s32 %s397, 1
      %s399 = scalar_select %p396, %s397, %s398
      %p402 = pneg %p396
      %p403 = scmp.eq.s32.totalorder %s37, 3
      %p404 = por %p402, %p403
      %p405 = scmp.ne.s32.totalorder %s397, %s400
      %p406 = scmp.eq.s32.totalorder %s37, 0
      %p407 = por %p405, %p406
      %p408 = scmp.ne.s32.totalorder %s397, %s400
      %p409 = scmp.eq.s32.totalorder %s42, 3
      %p410 = por %p408, %p409
      %p411 = scmp.ne.s32.totalorder %s400, %s401
      %p412 = scmp.eq.s32.totalorder %s42, 0
      %p413 = por %p411, %p412
      %p414 = scmp.ne.s32.totalorder %s400, %s401
      %p415 = scmp.eq.s32.totalorder %s43, 3
      %p416 = por %p414, %p415
      %p418 = scmp.ne.s32.totalorder %s401, %s417
      %p419 = scmp.eq.s32.totalorder %s43, 0
      %p420 = por %p418, %p419
      %s421 = ssub.s32 %s45, %s52
      %p422 = scmp.eq.s32.totalorder %s421, 0
      %s424 = sadd.s32 %s423, 1
      %s425 = scalar_select %p422, %s423, %s424
      %p428 = pneg %p422
      %p429 = scmp.eq.s32.totalorder %s37, 3
      %p430 = por %p428, %p429
      %p431 = scmp.ne.s32.totalorder %s423, %s426
      %p432 = scmp.eq.s32.totalorder %s37, 0
      %p433 = por %p431, %p432
      %p434 = scmp.ne.s32.totalorder %s423, %s426
      %p435 = scmp.eq.s32.totalorder %s42, 3
      %p436 = por %p434, %p435
      %p437 = scmp.ne.s32.totalorder %s426, %s427
      %p438 = scmp.eq.s32.totalorder %s42, 0
      %p439 = por %p437, %p438
      %p440 = scmp.ne.s32.totalorder %s426, %s427
      %p441 = scmp.eq.s32.totalorder %s43, 3
      %p442 = por %p440, %p441
      %p444 = scmp.ne.s32.totalorder %s427, %s443
      %p445 = scmp.eq.s32.totalorder %s43, 0
      %p446 = por %p444, %p445
      %s447 = ssub.s32 %s45, %s52
      %p448 = scmp.eq.s32.totalorder %s447, 0
      %s450 = sadd.s32 %s449, 1
      %s451 = scalar_select %p448, %s449, %s450
      %p454 = pneg %p448
      %p455 = scmp.eq.s32.totalorder %s37, 3
      %p456 = por %p454, %p455
      %p457 = scmp.ne.s32.totalorder %s449, %s452
      %p458 = scmp.eq.s32.totalorder %s37, 0
      %p459 = por %p457, %p458
      %p460 = scmp.ne.s32.totalorder %s449, %s452
      %p461 = scmp.eq.s32.totalorder %s42, 3
      %p462 = por %p460, %p461
      %p463 = scmp.ne.s32.totalorder %s452, %s453
      %p464 = scmp.eq.s32.totalorder %s42, 0
      %p465 = por %p463, %p464
      %p466 = scmp.ne.s32.totalorder %s452, %s453
      %p467 = scmp.eq.s32.totalorder %s43, 3
      %p468 = por %p466, %p467
      %p470 = scmp.ne.s32.totalorder %s453, %s469
      %p471 = scmp.eq.s32.totalorder %s43, 0
      %p472 = por %p470, %p471
      %s473 = ssub.s32 %s45, %s52
      %p474 = scmp.eq.s32.totalorder %s473, 0
      %s476 = sadd.s32 %s475, 1
      %s477 = scalar_select %p474, %s475, %s476
      %p480 = pneg %p474
      %p481 = scmp.eq.s32.totalorder %s37, 3
      %p482 = por %p480, %p481
      %p483 = scmp.ne.s32.totalorder %s475, %s478
      %p484 = scmp.eq.s32.totalorder %s37, 0
      %p485 = por %p483, %p484
      %p486 = scmp.ne.s32.totalorder %s475, %s478
      %p487 = scmp.eq.s32.totalorder %s42, 3
      %p488 = por %p486, %p487
      %p489 = scmp.ne.s32.totalorder %s478, %s479
      %p490 = scmp.eq.s32.totalorder %s42, 0
      %p491 = por %p489, %p490
      %p492 = scmp.ne.s32.totalorder %s478, %s479
      %p493 = scmp.eq.s32.totalorder %s43, 3
      %p494 = por %p492, %p493
      %p496 = scmp.ne.s32.totalorder %s479, %s495
      %p497 = scmp.eq.s32.totalorder %s43, 0
      %p498 = por %p496, %p497
      %s499 = ssub.s32 %s45, %s52
      %p500 = scmp.eq.s32.totalorder %s499, 0
      %s502 = sadd.s32 %s501, 1
      %s503 = scalar_select %p500, %s501, %s502
      %p506 = pneg %p500
      %p507 = scmp.eq.s32.totalorder %s37, 3
      %p508 = por %p506, %p507
      %p509 = scmp.ne.s32.totalorder %s501, %s504
      %p510 = scmp.eq.s32.totalorder %s37, 0
      %p511 = por %p509, %p510
      %p512 = scmp.ne.s32.totalorder %s501, %s504
      %p513 = scmp.eq.s32.totalorder %s42, 3
      %p514 = por %p512, %p513
      %p515 = scmp.ne.s32.totalorder %s504, %s505
      %p516 = scmp.eq.s32.totalorder %s42, 0
      %p517 = por %p515, %p516
      %p518 = scmp.ne.s32.totalorder %s504, %s505
      %p519 = scmp.eq.s32.totalorder %s43, 3
      %p520 = por %p518, %p519
      %p522 = scmp.ne.s32.totalorder %s505, %s521
      %p523 = scmp.eq.s32.totalorder %s43, 0
      %p524 = por %p522, %p523
      %s525 = ssub.s32 %s45, %s52
      %p526 = scmp.eq.s32.totalorder %s525, 0
      %s528 = sadd.s32 %s527, 1
      %s529 = scalar_select %p526, %s527, %s528
      %p532 = pneg %p526
      %p533 = scmp.eq.s32.totalorder %s37, 3
      %p534 = por %p532, %p533
      %p535 = scmp.ne.s32.totalorder %s527, %s530
      %p536 = scmp.eq.s32.totalorder %s37, 0
      %p537 = por %p535, %p536
      %p538 = scmp.ne.s32.totalorder %s527, %s530
      %p539 = scmp.eq.s32.totalorder %s42, 3
      %p540 = por %p538, %p539
      %p541 = scmp.ne.s32.totalorder %s530, %s531
      %p542 = scmp.eq.s32.totalorder %s42, 0
      %p543 = por %p541, %p542
      %p544 = scmp.ne.s32.totalorder %s530, %s531
      %p545 = scmp.eq.s32.totalorder %s43, 3
      %p546 = por %p544, %p545
      %p548 = scmp.ne.s32.totalorder %s531, %s547
      %p549 = scmp.eq.s32.totalorder %s43, 0
      %p550 = por %p548, %p549
      %s551 = ssub.s32 %s44, %s56
      %p552 = scmp.eq.s32.totalorder %s551, 0
      %s554 = sadd.s32 %s553, 1
      %s555 = scalar_select %p552, %s553, %s554
      %p558 = pneg %p552
      %p559 = scmp.eq.s32.totalorder %s37, 3
      %p560 = por %p558, %p559
      %p561 = scmp.ne.s32.totalorder %s553, %s556
      %p562 = scmp.eq.s32.totalorder %s37, 0
      %p563 = por %p561, %p562
      %p564 = scmp.ne.s32.totalorder %s553, %s556
      %p565 = scmp.eq.s32.totalorder %s42, 3
      %p566 = por %p564, %p565
      %p567 = scmp.ne.s32.totalorder %s556, %s557
      %p568 = scmp.eq.s32.totalorder %s42, 0
      %p569 = por %p567, %p568
      %p570 = scmp.ne.s32.totalorder %s556, %s557
      %p571 = scmp.eq.s32.totalorder %s43, 3
      %p572 = por %p570, %p571
      %p574 = scmp.ne.s32.totalorder %s557, %s573
      %p575 = scmp.eq.s32.totalorder %s43, 0
      %p576 = por %p574, %p575
      %p577 = scmp.le.s32.totalorder 1, %s37
      %p578 = scmp.lt.s32.totalorder %s37, 5
      %p579 = pnand %p577, %p578
      %p580 = pneg %p579
      // Predicated region
      $region9: #{seq2seq_forward.4} parent=5 // pred_check
        _
      $region10: #{seq2seq_forward.4} parent=5 // pred_check_branch
        %582 = sbr.rel (%p579) target = $region12
      $region11: #{seq2seq_forward.4} parent=5 // pred_region
        %s583 = ssub.s32 %s37, 1
      $region12: #{seq2seq_forward.4} parent=5 // pred_fallthru
        _
      %p584 = scmp.lt.s32.totalorder %s37, 4
      // Predicated region
      $region13: #{seq2seq_forward.4} parent=5 // pred_check
        %p585 = pneg %p584
      $region14: #{seq2seq_forward.4} parent=5 // pred_check_branch
        %587 = sbr.rel (%p585) target = $region16
      $region15: #{seq2seq_forward.4} parent=5 // pred_region
        // Predicated region
        $region17: #{seq2seq_forward.4} parent=15 // pred_check
          %p588 = pneg %p69
        $region18: #{seq2seq_forward.4} parent=15 // pred_check_branch
          %590 = sbr.rel (%p588) target = $region20
        $region19: #{seq2seq_forward.4} parent=15 // pred_region
          %p591 = scmp.lt.s32.totalorder %s44, 1
          %s592 = scalar_select %p591, %s44, 1
          %s593 = smul.addr %s592, 8
          %s594 = scalar_lea.vmem %s0, %s593
        $region20: #{seq2seq_forward.4} parent=15 // pred_fallthru
          _
        // Predicated region
        $region21: #{seq2seq_forward.4} parent=15 // pred_check
          %p595 = pneg %p95
        $region22: #{seq2seq_forward.4} parent=15 // pred_check_branch
          %597 = sbr.rel (%p595) target = $region24
        $region23: #{seq2seq_forward.4} parent=15 // pred_region
          %p598 = scmp.lt.s32.totalorder %s44, 1
          %s599 = scalar_select %p598, %s44, 1
          %s600 = smul.addr %s599, 8
          %s601 = scalar_lea.vmem %s1, %s600
        $region24: #{seq2seq_forward.4} parent=15 // pred_fallthru
          _
        // Predicated region
        $region25: #{seq2seq_forward.4} parent=15 // pred_check
          %p602 = pneg %p121
        $region26: #{seq2seq_forward.4} parent=15 // pred_check_branch
          %604 = sbr.rel (%p602) target = $region28
        $region27: #{seq2seq_forward.4} parent=15 // pred_region
          %p605 = scmp.lt.s32.totalorder %s45, 1
          %s606 = scalar_select %p605, %s45, 1
          %s607 = scalar_lea.vmem %s2, %s606
        $region28: #{seq2seq_forward.4} parent=15 // pred_fallthru
          _
        // Predicated region
        $region29: #{seq2seq_forward.4} parent=15 // pred_check
          %p608 = pneg %p147
        $region30: #{seq2seq_forward.4} parent=15 // pred_check_branch
          %610 = sbr.rel (%p608) target = $region32
        $region31: #{seq2seq_forward.4} parent=15 // pred_region
          %p611 = scmp.lt.s32.totalorder %s45, 1
          %s612 = scalar_select %p611, %s45, 1
          %s613 = scalar_lea.vmem %s3, %s612
        $region32: #{seq2seq_forward.4} parent=15 // pred_fallthru
          _
        // Predicated region
        $region33: #{seq2seq_forward.4} parent=15 // pred_check
          %p614 = pneg %p173
        $region34: #{seq2seq_forward.4} parent=15 // pred_check_branch
          %616 = sbr.rel (%p614) target = $region36
        $region35: #{seq2seq_forward.4} parent=15 // pred_region
          %p617 = scmp.lt.s32.totalorder %s45, 1
          %s618 = scalar_select %p617, %s45, 1
          %s619 = smul.addr %s618, 16
          %s620 = smul.addr %s619, 8
          %s621 = scalar_lea.vmem %s4, %s620
        $region36: #{seq2seq_forward.4} parent=15 // pred_fallthru
          _
        // Predicated region
        $region37: #{seq2seq_forward.4} parent=15 // pred_check
          %p622 = pneg %p199
        $region38: #{seq2seq_forward.4} parent=15 // pred_check_branch
          %624 = sbr.rel (%p622) target = $region40
        $region39: #{seq2seq_forward.4} parent=15 // pred_region
          %p625 = scmp.lt.s32.totalorder %s45, 1
          %s626 = scalar_select %p625, %s45, 1
          %s627 = scalar_lea.vmem %s5, %s626
        $region40: #{seq2seq_forward.4} parent=15 // pred_fallthru
          _
        // Predicated region
        $region41: #{seq2seq_forward.4} parent=15 // pred_check
          %p628 = pneg %p225
        $region42: #{seq2seq_forward.4} parent=15 // pred_check_branch
          %630 = sbr.rel (%p628) target = $region44
        $region43: #{seq2seq_forward.4} parent=15 // pred_region
          %s631 = sand.u32 %s215, 1
          %s632 = scalar_lea.sflag [#allocation6], %s631
          %s633 = sand.u32 %s215, 1
          %s634 = smul.addr %s633, 256
          %s635 = scalar_lea.vmem [#allocation5], %s634
          %637 = vsyncadd %s632, 0
          %s638 = smul.addr %s45, 32
          %s639 = smul.addr %s638, 8
          %s640 = scalar_lea.hbm %s6, %s639
          %s641 = sshll.u32 %s640, 4
          %s642 = int_to_ptr.hbm [resolvable:$true] %s641
          %s643 = sshll.u32 %s635, 4
          %s644 = int_to_ptr.vmem [resolvable:$true] %s643
          %649 = dma.hbm_to_vmem [thread:$0]  %s642, 4096, %s644, %s632, 256, 256, 16
        $region44: #{seq2seq_forward.4} parent=15 // pred_fallthru
          _
        // Predicated region
        $region45: #{seq2seq_forward.4} parent=15 // pred_check
          %p650 = pneg %p251
        $region46: #{seq2seq_forward.4} parent=15 // pred_check_branch
          %652 = sbr.rel (%p650) target = $region48
        $region47: #{seq2seq_forward.4} parent=15 // pred_region
          %p653 = scmp.lt.s32.totalorder %s45, 1
          %s654 = scalar_select %p653, %s45, 1
          %s655 = smul.addr %s654, 2
          %s656 = scalar_lea.vmem %s7, %s655
        $region48: #{seq2seq_forward.4} parent=15 // pred_fallthru
          _
        // Predicated region
        $region49: #{seq2seq_forward.4} parent=15 // pred_check
          %p657 = pneg %p277
        $region50: #{seq2seq_forward.4} parent=15 // pred_check_branch
          %659 = sbr.rel (%p657) target = $region52
        $region51: #{seq2seq_forward.4} parent=15 // pred_region
          %s660 = sand.u32 %s37, 1
          %s661 = scalar_lea.sflag [#allocation8], %s660
          %s662 = sand.u32 %s267, 1
          %s663 = smul.addr %s662, 128
          %s664 = scalar_lea.vmem [#allocation7], %s663
          %666 = vsyncadd %s661, 0
          %s667 = smul.addr %s45, 16
          %s668 = smul.addr %s667, 8
          %s669 = scalar_lea.hbm %s8, %s668
          %s670 = sshll.u32 %s669, 4
          %s671 = int_to_ptr.hbm [resolvable:$true] %s670
          %s672 = sshll.u32 %s664, 4
          %s673 = int_to_ptr.vmem [resolvable:$true] %s672
          %678 = dma.hbm_to_vmem [thread:$0]  %s671, 2048, %s673, %s661, 128, 128, 8
        $region52: #{seq2seq_forward.4} parent=15 // pred_fallthru
          _
        // Predicated region
        $region53: #{seq2seq_forward.4} parent=15 // pred_check
          %p679 = pneg %p303
        $region54: #{seq2seq_forward.4} parent=15 // pred_check_branch
          %681 = sbr.rel (%p679) target = $region56
        $region55: #{seq2seq_forward.4} parent=15 // pred_region
          %p682 = scmp.lt.s32.totalorder %s45, 1
          %s683 = scalar_select %p682, %s45, 1
          %s684 = scalar_lea.vmem %s9, %s683
        $region56: #{seq2seq_forward.4} parent=15 // pred_fallthru
          _
        // Predicated region
        $region57: #{seq2seq_forward.4} parent=15 // pred_check
          %p685 = pneg %p329
        $region58: #{seq2seq_forward.4} parent=15 // pred_check_branch
          %687 = sbr.rel (%p685) target = $region60
        $region59: #{seq2seq_forward.4} parent=15 // pred_region
          %p688 = scmp.lt.s32.totalorder %s45, 1
          %s689 = scalar_select %p688, %s45, 1
          %s690 = scalar_lea.vmem %s10, %s689
        $region60: #{seq2seq_forward.4} parent=15 // pred_fallthru
          _
        // Predicated region
        $region61: #{seq2seq_forward.4} parent=15 // pred_check
          %p691 = pneg %p355
        $region62: #{seq2seq_forward.4} parent=15 // pred_check_branch
          %693 = sbr.rel (%p691) target = $region64
        $region63: #{seq2seq_forward.4} parent=15 // pred_region
          %p694 = scmp.lt.s32.totalorder %s45, 1
          %s695 = scalar_select %p694, %s45, 1
          %s696 = scalar_lea.vmem %s11, %s695
        $region64: #{seq2seq_forward.4} parent=15 // pred_fallthru
          _
        // Predicated region
        $region65: #{seq2seq_forward.4} parent=15 // pred_check
          %p697 = pneg %p381
        $region66: #{seq2seq_forward.4} parent=15 // pred_check_branch
          %699 = sbr.rel (%p697) target = $region68
        $region67: #{seq2seq_forward.4} parent=15 // pred_region
          %s700 = sand.u32 %s37, 1
          %s701 = scalar_lea.sflag [#allocation8], %s700
          %s702 = sand.u32 %s371, 1
          %s703 = smul.addr %s702, 512
          %s704 = scalar_lea.vmem [#allocation9], %s703
          %706 = vsyncadd %s701, 0
          %s707 = smul.addr %s45, 64
          %s708 = smul.addr %s707, 8
          %s709 = scalar_lea.hbm %s12, %s708
          %s710 = sshll.u32 %s709, 4
          %s711 = int_to_ptr.hbm [resolvable:$true] %s710
          %s712 = sshll.u32 %s704, 4
          %s713 = int_to_ptr.vmem [resolvable:$true] %s712
          %718 = dma.hbm_to_vmem [thread:$0]  %s711, 8192, %s713, %s701, 512, 512, 32
        $region68: #{seq2seq_forward.4} parent=15 // pred_fallthru
          _
        // Predicated region
        $region69: #{seq2seq_forward.4} parent=15 // pred_check
          %p719 = pneg %p407
        $region70: #{seq2seq_forward.4} parent=15 // pred_check_branch
          %721 = sbr.rel (%p719) target = $region72
        $region71: #{seq2seq_forward.4} parent=15 // pred_region
          %s722 = sand.u32 %s37, 1
          %s723 = scalar_lea.sflag [#allocation11], %s722
          %s724 = sand.u32 %s397, 1
          %s725 = smul.addr %s724, 512
          %s726 = scalar_lea.vmem [#allocation10], %s725
          %728 = vsyncadd %s723, 0
          %s729 = smul.addr %s45, 64
          %s730 = smul.addr %s729, 8
          %s731 = scalar_lea.hbm %s13, %s730
          %s732 = sshll.u32 %s731, 4
          %s733 = int_to_ptr.hbm [resolvable:$true] %s732
          %s734 = sshll.u32 %s726, 4
          %s735 = int_to_ptr.vmem [resolvable:$true] %s734
          %740 = dma.hbm_to_vmem [thread:$0]  %s733, 8192, %s735, %s723, 512, 512, 32
        $region72: #{seq2seq_forward.4} parent=15 // pred_fallthru
          _
        // Predicated region
        $region73: #{seq2seq_forward.4} parent=15 // pred_check
          %p741 = pneg %p433
        $region74: #{seq2seq_forward.4} parent=15 // pred_check_branch
          %743 = sbr.rel (%p741) target = $region76
        $region75: #{seq2seq_forward.4} parent=15 // pred_region
          %p744 = scmp.lt.s32.totalorder %s45, 1
          %s745 = scalar_select %p744, %s45, 1
          %s746 = smul.addr %s745, 4
          %s747 = scalar_lea.vmem %s14, %s746
        $region76: #{seq2seq_forward.4} parent=15 // pred_fallthru
          _
        // Predicated region
        $region77: #{seq2seq_forward.4} parent=15 // pred_check
          %p748 = pneg %p459
        $region78: #{seq2seq_forward.4} parent=15 // pred_check_branch
          %750 = sbr.rel (%p748) target = $region80
        $region79: #{seq2seq_forward.4} parent=15 // pred_region
          %s751 = sand.u32 %s37, 1
          %s752 = scalar_lea.sflag [#allocation11], %s751
          %s753 = sand.u32 %s449, 1
          %s754 = smul.addr %s753, 256
          %s755 = scalar_lea.vmem [#allocation12], %s754
          %757 = vsyncadd %s752, 0
          %s758 = smul.addr %s45, 32
          %s759 = smul.addr %s758, 8
          %s760 = scalar_lea.hbm %s15, %s759
          %s761 = sshll.u32 %s760, 4
          %s762 = int_to_ptr.hbm [resolvable:$true] %s761
          %s763 = sshll.u32 %s755, 4
          %s764 = int_to_ptr.vmem [resolvable:$true] %s763
          %769 = dma.hbm_to_vmem [thread:$0]  %s762, 4096, %s764, %s752, 256, 256, 16
        $region80: #{seq2seq_forward.4} parent=15 // pred_fallthru
          _
        // Predicated region
        $region81: #{seq2seq_forward.4} parent=15 // pred_check
          %p770 = pneg %p485
        $region82: #{seq2seq_forward.4} parent=15 // pred_check_branch
          %772 = sbr.rel (%p770) target = $region84
        $region83: #{seq2seq_forward.4} parent=15 // pred_region
          %p773 = scmp.lt.s32.totalorder %s45, 1
          %s774 = scalar_select %p773, %s45, 1
          %s775 = smul.addr %s774, 2
          %s776 = scalar_lea.vmem %s16, %s775
        $region84: #{seq2seq_forward.4} parent=15 // pred_fallthru
          _
        // Predicated region
        $region85: #{seq2seq_forward.4} parent=15 // pred_check
          %p777 = pneg %p511
        $region86: #{seq2seq_forward.4} parent=15 // pred_check_branch
          %779 = sbr.rel (%p777) target = $region88
        $region87: #{seq2seq_forward.4} parent=15 // pred_region
          %s780 = sand.u32 %s501, 1
          %s781 = scalar_lea.sflag [#allocation14], %s780
          %s782 = sand.u32 %s501, 1
          %s783 = smul.addr %s782, 256
          %s784 = scalar_lea.vmem [#allocation13], %s783
          %786 = vsyncadd %s781, 0
          %s787 = smul.addr %s45, 32
          %s788 = smul.addr %s787, 8
          %s789 = scalar_lea.hbm %s17, %s788
          %s790 = sshll.u32 %s789, 4
          %s791 = int_to_ptr.hbm [resolvable:$true] %s790
          %s792 = sshll.u32 %s784, 4
          %s793 = int_to_ptr.vmem [resolvable:$true] %s792
          %798 = dma.hbm_to_vmem [thread:$0]  %s791, 4096, %s793, %s781, 128, 128, 8
        $region88: #{seq2seq_forward.4} parent=15 // pred_fallthru
          _
        // Predicated region
        $region89: #{seq2seq_forward.4} parent=15 // pred_check
          %p799 = pneg %p537
        $region90: #{seq2seq_forward.4} parent=15 // pred_check_branch
          %801 = sbr.rel (%p799) target = $region92
        $region91: #{seq2seq_forward.4} parent=15 // pred_region
          %p802 = scmp.lt.s32.totalorder %s45, 1
          %s803 = scalar_select %p802, %s45, 1
          %s804 = scalar_lea.vmem %s18, %s803
        $region92: #{seq2seq_forward.4} parent=15 // pred_fallthru
          _
      $region16: #{seq2seq_forward.4} parent=5 // pred_fallthru
        _
      %p805 = scmp.le.s32.totalorder 1, %s37
      %p806 = scmp.lt.s32.totalorder %s37, 5
      %p807 = pnand %p805, %p806
      %p808 = pneg %p807
      // Predicated region
      $region93: #{seq2seq_forward.4} parent=5 // pred_check
        _
      $region94: #{seq2seq_forward.4} parent=5 // pred_check_branch
        %810 = sbr.rel (%p807) target = $region96
      $region95: #{seq2seq_forward.4} parent=5 // pred_region
        %s811 = ssub.s32 %s37, 1
        %s812 = sand.u32 %s218, 1
        %s813 = scalar_lea.sflag [#allocation6], %s812
        %s814 = sand.u32 %s218, 1
        %s815 = smul.addr %s814, 256
        %s816 = scalar_lea.vmem [#allocation5], %s815
        // Predicated region
        $region97: #{seq2seq_forward.4} parent=95 // pred_check
          %p817 = pneg %p231
        $region98: #{seq2seq_forward.4} parent=95 // pred_check_branch
          %819 = sbr.rel (%p817) target = $region100
        $region99: #{seq2seq_forward.4} parent=95 // pred_region
          %821 = dma.done %s813, 4096
        $region100: #{seq2seq_forward.4} parent=95 // pred_fallthru
          _
        %s822 = sand.u32 %s42, 1
        %s823 = scalar_lea.sflag [#allocation8], %s822
        %s824 = sand.u32 %s270, 1
        %s825 = smul.addr %s824, 128
        %s826 = scalar_lea.vmem [#allocation7], %s825
        // Predicated region
        $region101: #{seq2seq_forward.4} parent=95 // pred_check
          %p827 = pneg %p283
        $region102: #{seq2seq_forward.4} parent=95 // pred_check_branch
          %829 = sbr.rel (%p827) target = $region104
        $region103: #{seq2seq_forward.4} parent=95 // pred_region
          %831 = dma.done %s823, 2048
        $region104: #{seq2seq_forward.4} parent=95 // pred_fallthru
          _
        %s832 = sand.u32 %s42, 1
        %s833 = scalar_lea.sflag [#allocation8], %s832
        %s834 = sand.u32 %s374, 1
        %s835 = smul.addr %s834, 512
        %s836 = scalar_lea.vmem [#allocation9], %s835
        // Predicated region
        $region105: #{seq2seq_forward.4} parent=95 // pred_check
          %p837 = pneg %p387
        $region106: #{seq2seq_forward.4} parent=95 // pred_check_branch
          %839 = sbr.rel (%p837) target = $region108
        $region107: #{seq2seq_forward.4} parent=95 // pred_region
          %841 = dma.done %s833, 8192
        $region108: #{seq2seq_forward.4} parent=95 // pred_fallthru
          _
        %s842 = sand.u32 %s42, 1
        %s843 = scalar_lea.sflag [#allocation11], %s842
        %s844 = sand.u32 %s400, 1
        %s845 = smul.addr %s844, 512
        %s846 = scalar_lea.vmem [#allocation10], %s845
        // Predicated region
        $region109: #{seq2seq_forward.4} parent=95 // pred_check
          %p847 = pneg %p413
        $region110: #{seq2seq_forward.4} parent=95 // pred_check_branch
          %849 = sbr.rel (%p847) target = $region112
        $region111: #{seq2seq_forward.4} parent=95 // pred_region
          %851 = dma.done %s843, 8192
        $region112: #{seq2seq_forward.4} parent=95 // pred_fallthru
          _
        %s852 = sand.u32 %s42, 1
        %s853 = scalar_lea.sflag [#allocation11], %s852
        %s854 = sand.u32 %s452, 1
        %s855 = smul.addr %s854, 256
        %s856 = scalar_lea.vmem [#allocation12], %s855
        // Predicated region
        $region113: #{seq2seq_forward.4} parent=95 // pred_check
          %p857 = pneg %p465
        $region114: #{seq2seq_forward.4} parent=95 // pred_check_branch
          %859 = sbr.rel (%p857) target = $region116
        $region115: #{seq2seq_forward.4} parent=95 // pred_region
          %861 = dma.done %s853, 4096
        $region116: #{seq2seq_forward.4} parent=95 // pred_fallthru
          _
        %s862 = sand.u32 %s504, 1
        %s863 = scalar_lea.sflag [#allocation14], %s862
        %s864 = sand.u32 %s504, 1
        %s865 = smul.addr %s864, 256
        %s866 = scalar_lea.vmem [#allocation13], %s865
        // Predicated region
        $region117: #{seq2seq_forward.4} parent=95 // pred_check
          %p867 = pneg %p517
        $region118: #{seq2seq_forward.4} parent=95 // pred_check_branch
          %869 = sbr.rel (%p867) target = $region120
        $region119: #{seq2seq_forward.4} parent=95 // pred_region
          %871 = dma.done %s863, 4096
        $region120: #{seq2seq_forward.4} parent=95 // pred_fallthru
          _
        %p872 = scmp.lt.s32.totalorder %s46, 1
        %s873 = scalar_select %p872, %s46, 1
        %s874 = smul.addr %s873, 8
        %s875 = scalar_lea.vmem %s0, %s874
        %p876 = pneg %p75
        %p877 = pneg %p72
        %p878 = scmp.lt.s32.totalorder %s46, 1
        %s879 = scalar_select %p878, %s46, 1
        %s880 = smul.addr %s879, 8
        %s881 = scalar_lea.vmem %s1, %s880
        %p882 = pneg %p101
        %p883 = pneg %p98
        %p884 = scmp.lt.s32.totalorder %s47, 1
        %s885 = scalar_select %p884, %s47, 1
        %s886 = scalar_lea.vmem %s2, %s885
        %p887 = pneg %p127
        %p888 = pneg %p124
        %p889 = scmp.lt.s32.totalorder %s47, 1
        %s890 = scalar_select %p889, %s47, 1
        %s891 = scalar_lea.vmem %s3, %s890
        %p892 = pneg %p153
        %p893 = pneg %p150
        %p894 = scmp.lt.s32.totalorder %s47, 1
        %s895 = scalar_select %p894, %s47, 1
        %s896 = smul.addr %s895, 16
        %s897 = smul.addr %s896, 8
        %s898 = scalar_lea.vmem %s4, %s897
        %p899 = pneg %p179
        %p900 = pneg %p176
        %p901 = scmp.lt.s32.totalorder %s47, 1
        %s902 = scalar_select %p901, %s47, 1
        %s903 = scalar_lea.vmem %s5, %s902
        %p904 = pneg %p205
        %p905 = pneg %p202
        %s906 = sand.u32 %s218, 1
        %s907 = scalar_lea.sflag [#allocation6], %s906
        %s908 = sand.u32 %s218, 1
        %s909 = smul.addr %s908, 256
        %s910 = scalar_lea.vmem [#allocation5], %s909
        %p911 = pneg %p231
        %p912 = pneg %p228
        %p913 = scmp.lt.s32.totalorder %s47, 1
        %s914 = scalar_select %p913, %s47, 1
        %s915 = smul.addr %s914, 2
        %s916 = scalar_lea.vmem %s7, %s915
        %p917 = pneg %p257
        %p918 = pneg %p254
        %s919 = sand.u32 %s42, 1
        %s920 = scalar_lea.sflag [#allocation8], %s919
        %s921 = sand.u32 %s270, 1
        %s922 = smul.addr %s921, 128
        %s923 = scalar_lea.vmem [#allocation7], %s922
        %p924 = pneg %p283
        %p925 = pneg %p280
        %p926 = scmp.lt.s32.totalorder %s47, 1
        %s927 = scalar_select %p926, %s47, 1
        %s928 = scalar_lea.vmem %s9, %s927
        %p929 = pneg %p309
        %p930 = pneg %p306
        %p931 = scmp.lt.s32.totalorder %s47, 1
        %s932 = scalar_select %p931, %s47, 1
        %s933 = scalar_lea.vmem %s10, %s932
        %p934 = pneg %p335
        %p935 = pneg %p332
        %p936 = scmp.lt.s32.totalorder %s47, 1
        %s937 = scalar_select %p936, %s47, 1
        %s938 = scalar_lea.vmem %s11, %s937
        %p939 = pneg %p361
        %p940 = pneg %p358
        %s941 = sand.u32 %s42, 1
        %s942 = scalar_lea.sflag [#allocation8], %s941
        %s943 = sand.u32 %s374, 1
        %s944 = smul.addr %s943, 512
        %s945 = scalar_lea.vmem [#allocation9], %s944
        %p946 = pneg %p387
        %p947 = pneg %p384
        %s948 = sand.u32 %s42, 1
        %s949 = scalar_lea.sflag [#allocation11], %s948
        %s950 = sand.u32 %s400, 1
        %s951 = smul.addr %s950, 512
        %s952 = scalar_lea.vmem [#allocation10], %s951
        %p953 = pneg %p413
        %p954 = pneg %p410
        %p955 = scmp.lt.s32.totalorder %s47, 1
        %s956 = scalar_select %p955, %s47, 1
        %s957 = smul.addr %s956, 4
        %s958 = scalar_lea.vmem %s14, %s957
        %p959 = pneg %p439
        %p960 = pneg %p436
        %s961 = sand.u32 %s42, 1
        %s962 = scalar_lea.sflag [#allocation11], %s961
        %s963 = sand.u32 %s452, 1
        %s964 = smul.addr %s963, 256
        %s965 = scalar_lea.vmem [#allocation12], %s964
        %p966 = pneg %p465
        %p967 = pneg %p462
        %p968 = scmp.lt.s32.totalorder %s47, 1
        %s969 = scalar_select %p968, %s47, 1
        %s970 = smul.addr %s969, 2
        %s971 = scalar_lea.vmem %s16, %s970
        %p972 = pneg %p491
        %p973 = pneg %p488
        %s974 = sand.u32 %s504, 1
        %s975 = scalar_lea.sflag [#allocation14], %s974
        %s976 = sand.u32 %s504, 1
        %s977 = smul.addr %s976, 256
        %s978 = scalar_lea.vmem [#allocation13], %s977
        %p979 = pneg %p517
        %p980 = pneg %p514
        %p981 = scmp.lt.s32.totalorder %s47, 1
        %s982 = scalar_select %p981, %s47, 1
        %s983 = scalar_lea.vmem %s18, %s982
        %p984 = pneg %p543
        %p985 = pneg %p540
        %p986 = pneg %p569
        %p987 = pneg %p566
        %p988 = scmp.lt.s32.totalorder %s46, 1
        %s989 = scalar_select %p988, %s46, 1
        %s990 = smul.addr %s989, 8
        %s991 = scalar_lea.vmem %s19, %s990
        %p992 = scmp.lt.s32.totalorder %s46, 1
        %s993 = scalar_select %p992, %s46, 1
        %s994 = smul.addr %s993, 8
        %s995 = scalar_lea.vmem %s0, %s994
        %p996 = scmp.lt.s32.totalorder %s46, 1
        %s997 = scalar_select %p996, %s46, 1
        %s998 = smul.addr %s997, 8
        %s999 = scalar_lea.vmem %s1, %s998
        %p1000 = scmp.lt.s32.totalorder %s47, 1
        %s1001 = scalar_select %p1000, %s47, 1
        %s1002 = scalar_lea.vmem %s2, %s1001
        %p1003 = scmp.lt.s32.totalorder %s47, 1
        %s1004 = scalar_select %p1003, %s47, 1
        %s1005 = scalar_lea.vmem %s3, %s1004
        %p1006 = scmp.lt.s32.totalorder %s47, 1
        %s1007 = scalar_select %p1006, %s47, 1
        %s1008 = smul.addr %s1007, 16
        %s1009 = smul.addr %s1008, 8
        %s1010 = scalar_lea.vmem %s4, %s1009
        %p1011 = scmp.lt.s32.totalorder %s47, 1
        %s1012 = scalar_select %p1011, %s47, 1
        %s1013 = scalar_lea.vmem %s5, %s1012
        %p1014 = scmp.lt.s32.totalorder %s47, 1
        %s1015 = scalar_select %p1014, %s47, 1
        %s1016 = smul.addr %s1015, 2
        %s1017 = scalar_lea.vmem %s7, %s1016
        %p1018 = scmp.lt.s32.totalorder %s47, 1
        %s1019 = scalar_select %p1018, %s47, 1
        %s1020 = scalar_lea.vmem %s9, %s1019
        %p1021 = scmp.lt.s32.totalorder %s47, 1
        %s1022 = scalar_select %p1021, %s47, 1
        %s1023 = scalar_lea.vmem %s10, %s1022
        %p1024 = scmp.lt.s32.totalorder %s47, 1
        %s1025 = scalar_select %p1024, %s47, 1
        %s1026 = scalar_lea.vmem %s11, %s1025
        %p1027 = scmp.lt.s32.totalorder %s47, 1
        %s1028 = scalar_select %p1027, %s47, 1
        %s1029 = smul.addr %s1028, 4
        %s1030 = scalar_lea.vmem %s14, %s1029
        %p1031 = scmp.lt.s32.totalorder %s47, 1
        %s1032 = scalar_select %p1031, %s47, 1
        %s1033 = smul.addr %s1032, 2
        %s1034 = scalar_lea.vmem %s16, %s1033
        %p1035 = scmp.lt.s32.totalorder %s47, 1
        %s1036 = scalar_select %p1035, %s47, 1
        %s1037 = scalar_lea.vmem %s18, %s1036
        %p1038 = scmp.lt.s32.totalorder %s46, 1
        %s1039 = scalar_select %p1038, %s46, 1
        %s1040 = smul.addr %s1039, 8
        %s1041 = scalar_lea.vmem %s19, %s1040
        %p1042 = scmp.eq.s32.totalorder %s47, 0
        // Predicated region
        $region121: #{seq2seq_forward.4} parent=95 // pred_check
          %p1043 = pneg %p1042
        $region122: #{seq2seq_forward.4} parent=95 // pred_check_branch
          %1045 = sbr.rel (%p1043) target = $region124
        $region123: #{seq2seq_forward.4} parent=95 // pred_region
          %v1046 = vld [vmem:[%s995] sm:$0xff]
          %1047 = vst [vmem:[#allocation2] sm:$0xff] %v1046
        $region124: #{seq2seq_forward.4} parent=95 // pred_fallthru
          _
        %v1048 = vld [vmem:[#allocation2] sm:$0xff]
        %v1049 = vld [vmem:[%s999] sm:$0xff]
        %v1050 = vld [vmem:[%s1002] sm:$0x1]
        %v1051 = vld [vmem:[%s1005] sm:$0x1]
        %1052 = vadd.xlane.f32.xlu0 %v1048
        %v1053 = vpop.xlane.xlu0 %1052
        %v1054 = vrcp.pop 128.0
        %v1055 = vmul.f32 128.0, %v1054
        %v1056 = vsub.f32 1.0, %v1055
        %v1057 = vmul.f32 %v1054, %v1056
        %v1058 = vadd.f32 %v1054, %v1057
        %vm1059 = vweird.f32 %v1054
        %v1060 = vsel %vm1059, %v1054, %v1058
        %v1061 = vmul.f32 %v1053, %v1060
        %v1062 = vsub.f32 %v1048, %v1061
        %v1063 = vmul.f32 %v1062, %v1062
        %1064 = vadd.xlane.f32.xlu0 %v1063
        %v1065 = vpop.xlane.xlu0 %1064
        %v1066 = vmul.f32 %v1065, %v1060
        %v1067 = vadd.f32 %v1066, 1e-05
        %v1068 = vrsqrt.pop %v1067
        %v1069 = vmul.f32 %v1068, %v1067
        %v1070 = vmul.f32 %v1069, %v1068
        %v1071 = vmul.f32 0.5, %v1070
        %v1072 = vsub.f32 1.5, %v1071
        %v1073 = vmul.f32 %v1068, %v1072
        %vm1074 = vweird.f32 %v1067
        %vm1075 = vweird.f32 %v1068
        %vm1076 = vmor %vm1074, %vm1075
        %v1077 = vsel %vm1076, %v1068, %v1073
        %v1078 = vmul.f32 %v1062, %v1077
        %v1080 = vperm.slane %v1050, 0
        %v1082 = vmul.f32 %v1078, %v1080
        %v1084 = vperm.slane %v1051, 0
        %v1086 = vadd.f32 %v1082, %v1084
        %v1087 = vld [vmem:[%s1010] sm:$0xff]
        %v1088 = vld [vmem:[%s1010 + $0x8] sm:$0xff]
        %v1089 = vld [vmem:[%s1010 + $0x10] sm:$0xff]
        %v1090 = vld [vmem:[%s1010 + $0x18] sm:$0xff]
        %v1091 = vld [vmem:[%s1010 + $0x20] sm:$0xff]
        %v1092 = vld [vmem:[%s1010 + $0x28] sm:$0xff]
        %v1093 = vld [vmem:[%s1010 + $0x30] sm:$0xff]
        %v1094 = vld [vmem:[%s1010 + $0x38] sm:$0xff]
        %v1095 = vld [vmem:[%s1010 + $0x40] sm:$0xff]
        %v1096 = vld [vmem:[%s1010 + $0x48] sm:$0xff]
        %v1097 = vld [vmem:[%s1010 + $0x50] sm:$0xff]
        %v1098 = vld [vmem:[%s1010 + $0x58] sm:$0xff]
        %v1099 = vld [vmem:[%s1010 + $0x60] sm:$0xff]
        %v1100 = vld [vmem:[%s1010 + $0x68] sm:$0xff]
        %v1101 = vld [vmem:[%s1010 + $0x70] sm:$0xff]
        %v1102 = vld [vmem:[%s1010 + $0x78] sm:$0xff]
        %v1103 = vld [vmem:[%s1013] sm:$0x1]
        %v1105 = vperm.slane %v1103, 0
        %1107 = vmatpush.msra.mxu0 %v1102
        %1108 = vmatpush.msra.mxu0 %v1101
        %1109 = vmatpush.msra.mxu0 %v1100
        %1110 = vmatpush.msra.mxu0 %v1099
        %1111 = vmatpush.msra.mxu0 %v1098
        %1112 = vmatpush.msra.mxu0 %v1097
        %1113 = vmatpush.msra.mxu0 %v1096
        %1114 = vmatpush.msra.mxu0 %v1095
        %1115 = vmatpush.msra.mxu0 %v1094
        %1116 = vmatpush.msra.mxu0 %v1093
        %1117 = vmatpush.msra.mxu0 %v1092
        %1118 = vmatpush.msra.mxu0 %v1091
        %1119 = vmatpush.msra.mxu0 %v1090
        %1120 = vmatpush.msra.mxu0 %v1089
        %1121 = vmatpush.msra.mxu0 %v1088
        %1122 = vmatpush.msra.mxu0 %v1087
        %1123 = vmatmul.f32.gmra.mxu0 %v1086
        %v1124 = vpop.f32.mrf.mxu0
        %v1125 = vadd.f32 %v1105, %v1124
        %1126 = vdwg.mxu0
        %v1127 = vld [vmem:[%s816] sm:$0xff]
        %v1128 = vld [vmem:[%s816 + $0x8] sm:$0xff]
        %v1129 = vld [vmem:[%s816 + $0x10] sm:$0xff]
        %v1130 = vld [vmem:[%s816 + $0x18] sm:$0xff]
        %v1131 = vld [vmem:[%s816 + $0x20] sm:$0xff]
        %v1132 = vld [vmem:[%s816 + $0x28] sm:$0xff]
        %v1133 = vld [vmem:[%s816 + $0x30] sm:$0xff]
        %v1134 = vld [vmem:[%s816 + $0x38] sm:$0xff]
        %v1135 = vld [vmem:[%s816 + $0x40] sm:$0xff]
        %v1136 = vld [vmem:[%s816 + $0x48] sm:$0xff]
        %v1137 = vld [vmem:[%s816 + $0x50] sm:$0xff]
        %v1138 = vld [vmem:[%s816 + $0x58] sm:$0xff]
        %v1139 = vld [vmem:[%s816 + $0x60] sm:$0xff]
        %v1140 = vld [vmem:[%s816 + $0x68] sm:$0xff]
        %v1141 = vld [vmem:[%s816 + $0x70] sm:$0xff]
        %v1142 = vld [vmem:[%s816 + $0x78] sm:$0xff]
        %v1143 = vld [vmem:[%s816 + $0x80] sm:$0xff]
        %v1144 = vld [vmem:[%s816 + $0x88] sm:$0xff]
        %v1145 = vld [vmem:[%s816 + $0x90] sm:$0xff]
        %v1146 = vld [vmem:[%s816 + $0x98] sm:$0xff]
        %v1147 = vld [vmem:[%s816 + $0xa0] sm:$0xff]
        %v1148 = vld [vmem:[%s816 + $0xa8] sm:$0xff]
        %v1149 = vld [vmem:[%s816 + $0xb0] sm:$0xff]
        %v1150 = vld [vmem:[%s816 + $0xb8] sm:$0xff]
        %v1151 = vld [vmem:[%s816 + $0xc0] sm:$0xff]
        %v1152 = vld [vmem:[%s816 + $0xc8] sm:$0xff]
        %v1153 = vld [vmem:[%s816 + $0xd0] sm:$0xff]
        %v1154 = vld [vmem:[%s816 + $0xd8] sm:$0xff]
        %v1155 = vld [vmem:[%s816 + $0xe0] sm:$0xff]
        %v1156 = vld [vmem:[%s816 + $0xe8] sm:$0xff]
        %v1157 = vld [vmem:[%s816 + $0xf0] sm:$0xff]
        %v1158 = vld [vmem:[%s816 + $0xf8] sm:$0xff]
        %v1159 = vld [vmem:[%s1017] sm:$0x3]
        %v1161 = vperm.slane %v1159, 0
        %v1162 = vperm.slane %v1159, 1
        %1165 = vmatpush.msra.mxu0 %v1157
        %1166 = vmatpush.msra.mxu0 %v1155
        %1167 = vmatpush.msra.mxu0 %v1153
        %1168 = vmatpush.msra.mxu0 %v1151
        %1169 = vmatpush.msra.mxu0 %v1149
        %1170 = vmatpush.msra.mxu0 %v1147
        %1171 = vmatpush.msra.mxu0 %v1145
        %1172 = vmatpush.msra.mxu0 %v1143
        %1173 = vmatpush.msra.mxu0 %v1141
        %1174 = vmatpush.msra.mxu0 %v1139
        %1175 = vmatpush.msra.mxu0 %v1137
        %1176 = vmatpush.msra.mxu0 %v1135
        %1177 = vmatpush.msra.mxu0 %v1133
        %1178 = vmatpush.msra.mxu0 %v1131
        %1179 = vmatpush.msra.mxu0 %v1129
        %1180 = vmatpush.msra.mxu0 %v1127
        %1181 = vmatmul.f32.gmra.mxu0 %v1049
        %v1182 = vpop.f32.mrf.mxu0
        %v1183 = vadd.f32 %v1161, %v1182
        %1184 = vdwg.mxu0
        %1185 = vmatpush.msra.mxu0 %v1158
        %1186 = vmatpush.msra.mxu0 %v1156
        %1187 = vmatpush.msra.mxu0 %v1154
        %1188 = vmatpush.msra.mxu0 %v1152
        %1189 = vmatpush.msra.mxu0 %v1150
        %1190 = vmatpush.msra.mxu0 %v1148
        %1191 = vmatpush.msra.mxu0 %v1146
        %1192 = vmatpush.msra.mxu0 %v1144
        %1193 = vmatpush.msra.mxu0 %v1142
        %1194 = vmatpush.msra.mxu0 %v1140
        %1195 = vmatpush.msra.mxu0 %v1138
        %1196 = vmatpush.msra.mxu0 %v1136
        %1197 = vmatpush.msra.mxu0 %v1134
        %1198 = vmatpush.msra.mxu0 %v1132
        %1199 = vmatpush.msra.mxu0 %v1130
        %1200 = vmatpush.msra.mxu0 %v1128
        %1201 = vmatmul.f32.gmra.mxu0 %v1049
        %v1202 = vpop.f32.mrf.mxu0
        %v1203 = vadd.f32 %v1162, %v1202
        %1204 = vdwg.mxu0
        %v1205 = vld [vmem:[%s826] sm:$0xff]
        %v1206 = vld [vmem:[%s826 + $0x8] sm:$0xff]
        %v1207 = vld [vmem:[%s826 + $0x10] sm:$0xff]
        %v1208 = vld [vmem:[%s826 + $0x18] sm:$0xff]
        %v1209 = vld [vmem:[%s826 + $0x20] sm:$0xff]
        %v1210 = vld [vmem:[%s826 + $0x28] sm:$0xff]
        %v1211 = vld [vmem:[%s826 + $0x30] sm:$0xff]
        %v1212 = vld [vmem:[%s826 + $0x38] sm:$0xff]
        %v1213 = vld [vmem:[%s826 + $0x40] sm:$0xff]
        %v1214 = vld [vmem:[%s826 + $0x48] sm:$0xff]
        %v1215 = vld [vmem:[%s826 + $0x50] sm:$0xff]
        %v1216 = vld [vmem:[%s826 + $0x58] sm:$0xff]
        %v1217 = vld [vmem:[%s826 + $0x60] sm:$0xff]
        %v1218 = vld [vmem:[%s826 + $0x68] sm:$0xff]
        %v1219 = vld [vmem:[%s826 + $0x70] sm:$0xff]
        %v1220 = vld [vmem:[%s826 + $0x78] sm:$0xff]
        %v1221 = vld [vmem:[%s1020] sm:$0x1]
        %vm1222 = vcmask 261120
        %v1224 = vsel %vm1222, %v1125, 0
        %v1227 = vsel %vm1222, %v1183, 0
        %1229 = vmatpush.xpose.msra.mxu0 0.0
        %1230 = vmatpush.xpose.msra.mxu0 0.0
        %1231 = vmatpush.xpose.msra.mxu0 0.0
        %1232 = vmatpush.xpose.msra.mxu0 0.0
        %1233 = vmatpush.xpose.msra.mxu0 0.0
        %1234 = vmatpush.xpose.msra.mxu0 0.0
        %1235 = vmatpush.xpose.msra.mxu0 0.0
        %1236 = vmatpush.xpose.msra.mxu0 0.0
        %1237 = vmatpush.xpose.msra.mxu0 0.0
        %1238 = vmatpush.xpose.msra.mxu0 0.0
        %1239 = vmatpush.xpose.msra.mxu0 0.0
        %1240 = vmatpush.xpose.msra.mxu0 0.0
        %1241 = vmatpush.xpose.msra.mxu0 0.0
        %1242 = vmatpush.xpose.msra.mxu0 0.0
        %1243 = vmatpush.xpose.msra.mxu0 0.0
        %1244 = vmatpush.xpose.msra.mxu0 %v1227
        %1245 = vmatmul.f32.gmra.mxu0 %v1224
        %v1246 = vpop.f32.mrf.mxu0
        %v1247 = vadd.f32 0.0, %v1246
        %1248 = vdwg.mxu0
        %v1249 = vmul.f32 %v1247, 0.17677669
        %vm1250 = vcmask 64512
        %v1251 = vsel %vm1250, %v1249, -inf
        %1252 = vmax.xlane.f32.xlu0 %v1251
        %v1253 = vpop.xlane.xlu0 %1252
        %v1254 = vsub.f32 %v1249, %v1253
        %v1255 = vmul.f32 %v1254, 1.442695
        %v1256 = vpow.pop %v1255
        %v1257 = vsel %vm1250, %v1256, 0.0
        %1258 = vadd.xlane.f32.xlu0 %v1257
        %v1259 = vpop.xlane.xlu0 %1258
        %v1260 = vrcp.pop %v1259
        %v1261 = vmul.f32 %v1259, %v1260
        %v1262 = vsub.f32 1.0, %v1261
        %v1263 = vmul.f32 %v1260, %v1262
        %v1264 = vadd.f32 %v1260, %v1263
        %vm1265 = vweird.f32 %v1259
        %vm1266 = vweird.f32 %v1260
        %vm1267 = vmor %vm1265, %vm1266
        %v1268 = vsel %vm1267, %v1260, %v1264
        %v1269 = vand.u32 2147483647, %v1259
        %vm1270 = vcmp.eq.f32.partialorder %v1269, 8.507059e+37
        %v1271 = vand.u32 %v1259, 2147483648
        %v1272 = vor.u32 1.1754944e-38, %v1271
        %v1273 = vsel %vm1270, %v1272, %v1268
        %v1274 = vmul.f32 %v1256, %v1273
        %v1276 = vsel %vm1250, %v1274, 0
        %1278 = vmatpush.msra.mxu0 0.0
        %1279 = vmatpush.msra.mxu0 0.0
        %1280 = vmatpush.msra.mxu0 0.0
        %1281 = vmatpush.msra.mxu0 0.0
        %1282 = vmatpush.msra.mxu0 0.0
        %1283 = vmatpush.msra.mxu0 0.0
        %1284 = vmatpush.msra.mxu0 0.0
        %1285 = vmatpush.msra.mxu0 0.0
        %1286 = vmatpush.msra.mxu0 0.0
        %1287 = vmatpush.msra.mxu0 0.0
        %1288 = vmatpush.msra.mxu0 0.0
        %1289 = vmatpush.msra.mxu0 0.0
        %1290 = vmatpush.msra.mxu0 0.0
        %1291 = vmatpush.msra.mxu0 0.0
        %1292 = vmatpush.msra.mxu0 0.0
        %1293 = vmatpush.msra.mxu0 %v1203
        %1294 = vmatmul.f32.gmra.mxu0 %v1276
        %v1295 = vpop.f32.mrf.mxu0
        %v1296 = vadd.f32 0.0, %v1295
        %1297 = vdwg.mxu0
        %1298 = vrot.lane.b32.xlu0 %v1125, 96
        %v1299 = vpop.permute.xlu0 %1298
        %1300 = vrot.lane.b32.xlu0 %v1183, 96
        %v1301 = vpop.permute.xlu0 %1300
        %v1302 = vsel %vm1222, %v1299, 0
        %v1304 = vsel %vm1222, %v1301, 0
        %1306 = vmatpush.xpose.msra.mxu0 0.0
        %1307 = vmatpush.xpose.msra.mxu0 0.0
        %1308 = vmatpush.xpose.msra.mxu0 0.0
        %1309 = vmatpush.xpose.msra.mxu0 0.0
        %1310 = vmatpush.xpose.msra.mxu0 0.0
        %1311 = vmatpush.xpose.msra.mxu0 0.0
        %1312 = vmatpush.xpose.msra.mxu0 0.0
        %1313 = vmatpush.xpose.msra.mxu0 0.0
        %1314 = vmatpush.xpose.msra.mxu0 0.0
        %1315 = vmatpush.xpose.msra.mxu0 0.0
        %1316 = vmatpush.xpose.msra.mxu0 0.0
        %1317 = vmatpush.xpose.msra.mxu0 0.0
        %1318 = vmatpush.xpose.msra.mxu0 0.0
        %1319 = vmatpush.xpose.msra.mxu0 0.0
        %1320 = vmatpush.xpose.msra.mxu0 0.0
        %1321 = vmatpush.xpose.msra.mxu0 %v1304
        %1322 = vmatmul.f32.gmra.mxu0 %v1302
        %v1323 = vpop.f32.mrf.mxu0
        %v1324 = vadd.f32 0.0, %v1323
        %1325 = vdwg.mxu0
        %v1326 = vmul.f32 %v1324, 0.17677669
        %v1327 = vsel %vm1250, %v1326, -inf
        %1328 = vmax.xlane.f32.xlu0 %v1327
        %v1329 = vpop.xlane.xlu0 %1328
        %v1330 = vsub.f32 %v1326, %v1329
        %v1331 = vmul.f32 %v1330, 1.442695
        %v1332 = vpow.pop %v1331
        %v1333 = vsel %vm1250, %v1332, 0.0
        %1334 = vadd.xlane.f32.xlu0 %v1333
        %v1335 = vpop.xlane.xlu0 %1334
        %v1336 = vrcp.pop %v1335
        %v1337 = vmul.f32 %v1335, %v1336
        %v1338 = vsub.f32 1.0, %v1337
        %v1339 = vmul.f32 %v1336, %v1338
        %v1340 = vadd.f32 %v1336, %v1339
        %vm1341 = vweird.f32 %v1335
        %vm1342 = vweird.f32 %v1336
        %vm1343 = vmor %vm1341, %vm1342
        %v1344 = vsel %vm1343, %v1336, %v1340
        %v1345 = vand.u32 2147483647, %v1335
        %vm1346 = vcmp.eq.f32.partialorder %v1345, 8.507059e+37
        %v1347 = vand.u32 %v1335, 2147483648
        %v1348 = vor.u32 1.1754944e-38, %v1347
        %v1349 = vsel %vm1346, %v1348, %v1344
        %v1350 = vmul.f32 %v1332, %v1349
        %1352 = vrot.lane.b32.xlu0 %v1203, 96
        %v1353 = vpop.permute.xlu0 %1352
        %v1356 = vsel %vm1250, %v1350, 0
        %1358 = vmatpush.msra.mxu0 0.0
        %1359 = vmatpush.msra.mxu0 0.0
        %1360 = vmatpush.msra.mxu0 0.0
        %1361 = vmatpush.msra.mxu0 0.0
        %1362 = vmatpush.msra.mxu0 0.0
        %1363 = vmatpush.msra.mxu0 0.0
        %1364 = vmatpush.msra.mxu0 0.0
        %1365 = vmatpush.msra.mxu0 0.0
        %1366 = vmatpush.msra.mxu0 0.0
        %1367 = vmatpush.msra.mxu0 0.0
        %1368 = vmatpush.msra.mxu0 0.0
        %1369 = vmatpush.msra.mxu0 0.0
        %1370 = vmatpush.msra.mxu0 0.0
        %1371 = vmatpush.msra.mxu0 0.0
        %1372 = vmatpush.msra.mxu0 0.0
        %1373 = vmatpush.msra.mxu0 %v1353
        %1374 = vmatmul.f32.gmra.mxu0 %v1356
        %v1375 = vpop.f32.mrf.mxu0
        %v1376 = vadd.f32 0.0, %v1375
        %1377 = vdwg.mxu0
        %v1379 = vsel %vm1222, %v1376, 0
        %1381 = vmatpush.msra.mxu0 0.0
        %1382 = vmatpush.msra.mxu0 0.0
        %1383 = vmatpush.msra.mxu0 0.0
        %1384 = vmatpush.msra.mxu0 0.0
        %1385 = vmatpush.msra.mxu0 0.0
        %1386 = vmatpush.msra.mxu0 0.0
        %1387 = vmatpush.msra.mxu0 0.0
        %1388 = vmatpush.msra.mxu0 0.0
        %1389 = vmatpush.msra.mxu0 0.0
        %1390 = vmatpush.msra.mxu0 0.0
        %1391 = vmatpush.msra.mxu0 0.0
        %1392 = vmatpush.msra.mxu0 0.0
        %1393 = vmatpush.msra.mxu0 %v1212
        %1394 = vmatpush.msra.mxu0 %v1211
        %1395 = vmatpush.msra.mxu0 %v1210
        %1396 = vmatpush.msra.mxu0 %v1209
        %1397 = vmatmul.f32.gmra.mxu0 %v1379
        %v1398 = vpop.f32.mrf.mxu0
        %v1399 = vadd.f32 0.0, %v1398
        %1400 = vdwg.mxu0
        %v1402 = vsel %vm1222, %v1296, 0
        %1404 = vmatpush.msra.mxu0 0.0
        %1405 = vmatpush.msra.mxu0 0.0
        %1406 = vmatpush.msra.mxu0 0.0
        %1407 = vmatpush.msra.mxu0 0.0
        %1408 = vmatpush.msra.mxu0 0.0
        %1409 = vmatpush.msra.mxu0 0.0
        %1410 = vmatpush.msra.mxu0 0.0
        %1411 = vmatpush.msra.mxu0 0.0
        %1412 = vmatpush.msra.mxu0 0.0
        %1413 = vmatpush.msra.mxu0 0.0
        %1414 = vmatpush.msra.mxu0 0.0
        %1415 = vmatpush.msra.mxu0 0.0
        %1416 = vmatpush.msra.mxu0 %v1208
        %1417 = vmatpush.msra.mxu0 %v1207
        %1418 = vmatpush.msra.mxu0 %v1206
        %1419 = vmatpush.msra.mxu0 %v1205
        %1420 = vmatmul.f32.gmra.mxu0 %v1402
        %v1421 = vpop.f32.mrf.mxu0
        %v1422 = vadd.f32 %v1399, %v1421
        %1423 = vdwg.mxu0
        %1424 = vrot.lane.b32.xlu0 %v1125, 64
        %v1425 = vpop.permute.xlu0 %1424
        %1426 = vrot.lane.b32.xlu0 %v1183, 64
        %v1427 = vpop.permute.xlu0 %1426
        %v1428 = vsel %vm1222, %v1425, 0
        %v1430 = vsel %vm1222, %v1427, 0
        %1432 = vmatpush.xpose.msra.mxu0 0.0
        %1433 = vmatpush.xpose.msra.mxu0 0.0
        %1434 = vmatpush.xpose.msra.mxu0 0.0
        %1435 = vmatpush.xpose.msra.mxu0 0.0
        %1436 = vmatpush.xpose.msra.mxu0 0.0
        %1437 = vmatpush.xpose.msra.mxu0 0.0
        %1438 = vmatpush.xpose.msra.mxu0 0.0
        %1439 = vmatpush.xpose.msra.mxu0 0.0
        %1440 = vmatpush.xpose.msra.mxu0 0.0
        %1441 = vmatpush.xpose.msra.mxu0 0.0
        %1442 = vmatpush.xpose.msra.mxu0 0.0
        %1443 = vmatpush.xpose.msra.mxu0 0.0
        %1444 = vmatpush.xpose.msra.mxu0 0.0
        %1445 = vmatpush.xpose.msra.mxu0 0.0
        %1446 = vmatpush.xpose.msra.mxu0 0.0
        %1447 = vmatpush.xpose.msra.mxu0 %v1430
        %1448 = vmatmul.f32.gmra.mxu0 %v1428
        %v1449 = vpop.f32.mrf.mxu0
        %v1450 = vadd.f32 0.0, %v1449
        %1451 = vdwg.mxu0
        %v1452 = vmul.f32 %v1450, 0.17677669
        %v1453 = vsel %vm1250, %v1452, -inf
        %1454 = vmax.xlane.f32.xlu0 %v1453
        %v1455 = vpop.xlane.xlu0 %1454
        %v1456 = vsub.f32 %v1452, %v1455
        %v1457 = vmul.f32 %v1456, 1.442695
        %v1458 = vpow.pop %v1457
        %v1459 = vsel %vm1250, %v1458, 0.0
        %1460 = vadd.xlane.f32.xlu0 %v1459
        %v1461 = vpop.xlane.xlu0 %1460
        %v1462 = vrcp.pop %v1461
        %v1463 = vmul.f32 %v1461, %v1462
        %v1464 = vsub.f32 1.0, %v1463
        %v1465 = vmul.f32 %v1462, %v1464
        %v1466 = vadd.f32 %v1462, %v1465
        %vm1467 = vweird.f32 %v1461
        %vm1468 = vweird.f32 %v1462
        %vm1469 = vmor %vm1467, %vm1468
        %v1470 = vsel %vm1469, %v1462, %v1466
        %v1471 = vand.u32 2147483647, %v1461
        %vm1472 = vcmp.eq.f32.partialorder %v1471, 8.507059e+37
        %v1473 = vand.u32 %v1461, 2147483648
        %v1474 = vor.u32 1.1754944e-38, %v1473
        %v1475 = vsel %vm1472, %v1474, %v1470
        %v1476 = vmul.f32 %v1458, %v1475
        %1477 = vrot.lane.b32.xlu0 %v1203, 64
        %v1478 = vpop.permute.xlu0 %1477
        %v1481 = vsel %vm1250, %v1476, 0
        %1483 = vmatpush.msra.mxu0 0.0
        %1484 = vmatpush.msra.mxu0 0.0
        %1485 = vmatpush.msra.mxu0 0.0
        %1486 = vmatpush.msra.mxu0 0.0
        %1487 = vmatpush.msra.mxu0 0.0
        %1488 = vmatpush.msra.mxu0 0.0
        %1489 = vmatpush.msra.mxu0 0.0
        %1490 = vmatpush.msra.mxu0 0.0
        %1491 = vmatpush.msra.mxu0 0.0
        %1492 = vmatpush.msra.mxu0 0.0
        %1493 = vmatpush.msra.mxu0 0.0
        %1494 = vmatpush.msra.mxu0 0.0
        %1495 = vmatpush.msra.mxu0 0.0
        %1496 = vmatpush.msra.mxu0 0.0
        %1497 = vmatpush.msra.mxu0 0.0
        %1498 = vmatpush.msra.mxu0 %v1478
        %1499 = vmatmul.f32.gmra.mxu0 %v1481
        %v1500 = vpop.f32.mrf.mxu0
        %v1501 = vadd.f32 0.0, %v1500
        %1502 = vdwg.mxu0
        %v1504 = vsel %vm1222, %v1501, 0
        %1506 = vmatpush.msra.mxu0 0.0
        %1507 = vmatpush.msra.mxu0 0.0
        %1508 = vmatpush.msra.mxu0 0.0
        %1509 = vmatpush.msra.mxu0 0.0
        %1510 = vmatpush.msra.mxu0 0.0
        %1511 = vmatpush.msra.mxu0 0.0
        %1512 = vmatpush.msra.mxu0 0.0
        %1513 = vmatpush.msra.mxu0 0.0
        %1514 = vmatpush.msra.mxu0 0.0
        %1515 = vmatpush.msra.mxu0 0.0
        %1516 = vmatpush.msra.mxu0 0.0
        %1517 = vmatpush.msra.mxu0 0.0
        %1518 = vmatpush.msra.mxu0 %v1216
        %1519 = vmatpush.msra.mxu0 %v1215
        %1520 = vmatpush.msra.mxu0 %v1214
        %1521 = vmatpush.msra.mxu0 %v1213
        %1522 = vmatmul.f32.gmra.mxu0 %v1504
        %v1523 = vpop.f32.mrf.mxu0
        %v1524 = vadd.f32 0.0, %v1523
        %1525 = vdwg.mxu0
        %v1526 = vadd.f32 %v1422, %v1524
        %1527 = vrot.lane.b32.xlu0 %v1125, 32
        %v1528 = vpop.permute.xlu0 %1527
        %1529 = vrot.lane.b32.xlu0 %v1183, 32
        %v1530 = vpop.permute.xlu0 %1529
        %v1531 = vsel %vm1222, %v1528, 0
        %v1533 = vsel %vm1222, %v1530, 0
        %1535 = vmatpush.xpose.msra.mxu0 0.0
        %1536 = vmatpush.xpose.msra.mxu0 0.0
        %1537 = vmatpush.xpose.msra.mxu0 0.0
        %1538 = vmatpush.xpose.msra.mxu0 0.0
        %1539 = vmatpush.xpose.msra.mxu0 0.0
        %1540 = vmatpush.xpose.msra.mxu0 0.0
        %1541 = vmatpush.xpose.msra.mxu0 0.0
        %1542 = vmatpush.xpose.msra.mxu0 0.0
        %1543 = vmatpush.xpose.msra.mxu0 0.0
        %1544 = vmatpush.xpose.msra.mxu0 0.0
        %1545 = vmatpush.xpose.msra.mxu0 0.0
        %1546 = vmatpush.xpose.msra.mxu0 0.0
        %1547 = vmatpush.xpose.msra.mxu0 0.0
        %1548 = vmatpush.xpose.msra.mxu0 0.0
        %1549 = vmatpush.xpose.msra.mxu0 0.0
        %1550 = vmatpush.xpose.msra.mxu0 %v1533
        %1551 = vmatmul.f32.gmra.mxu0 %v1531
        %v1552 = vpop.f32.mrf.mxu0
        %v1553 = vadd.f32 0.0, %v1552
        %1554 = vdwg.mxu0
        %v1555 = vmul.f32 %v1553, 0.17677669
        %v1556 = vsel %vm1250, %v1555, -inf
        %1557 = vmax.xlane.f32.xlu0 %v1556
        %v1558 = vpop.xlane.xlu0 %1557
        %v1559 = vsub.f32 %v1555, %v1558
        %v1560 = vmul.f32 %v1559, 1.442695
        %v1561 = vpow.pop %v1560
        %v1562 = vsel %vm1250, %v1561, 0.0
        %1563 = vadd.xlane.f32.xlu0 %v1562
        %v1564 = vpop.xlane.xlu0 %1563
        %v1565 = vrcp.pop %v1564
        %v1566 = vmul.f32 %v1564, %v1565
        %v1567 = vsub.f32 1.0, %v1566
        %v1568 = vmul.f32 %v1565, %v1567
        %v1569 = vadd.f32 %v1565, %v1568
        %vm1570 = vweird.f32 %v1564
        %vm1571 = vweird.f32 %v1565
        %vm1572 = vmor %vm1570, %vm1571
        %v1573 = vsel %vm1572, %v1565, %v1569
        %v1574 = vand.u32 2147483647, %v1564
        %vm1575 = vcmp.eq.f32.partialorder %v1574, 8.507059e+37
        %v1576 = vand.u32 %v1564, 2147483648
        %v1577 = vor.u32 1.1754944e-38, %v1576
        %v1578 = vsel %vm1575, %v1577, %v1573
        %v1579 = vmul.f32 %v1561, %v1578
        %1580 = vrot.lane.b32.xlu0 %v1203, 32
        %v1581 = vpop.permute.xlu0 %1580
        %v1584 = vsel %vm1250, %v1579, 0
        %1586 = vmatpush.msra.mxu0 0.0
        %1587 = vmatpush.msra.mxu0 0.0
        %1588 = vmatpush.msra.mxu0 0.0
        %1589 = vmatpush.msra.mxu0 0.0
        %1590 = vmatpush.msra.mxu0 0.0
        %1591 = vmatpush.msra.mxu0 0.0
        %1592 = vmatpush.msra.mxu0 0.0
        %1593 = vmatpush.msra.mxu0 0.0
        %1594 = vmatpush.msra.mxu0 0.0
        %1595 = vmatpush.msra.mxu0 0.0
        %1596 = vmatpush.msra.mxu0 0.0
        %1597 = vmatpush.msra.mxu0 0.0
        %1598 = vmatpush.msra.mxu0 0.0
        %1599 = vmatpush.msra.mxu0 0.0
        %1600 = vmatpush.msra.mxu0 0.0
        %1601 = vmatpush.msra.mxu0 %v1581
        %1602 = vmatmul.f32.gmra.mxu0 %v1584
        %v1603 = vpop.f32.mrf.mxu0
        %v1604 = vadd.f32 0.0, %v1603
        %1605 = vdwg.mxu0
        %v1607 = vsel %vm1222, %v1604, 0
        %1609 = vmatpush.msra.mxu0 0.0
        %1610 = vmatpush.msra.mxu0 0.0
        %1611 = vmatpush.msra.mxu0 0.0
        %1612 = vmatpush.msra.mxu0 0.0
        %1613 = vmatpush.msra.mxu0 0.0
        %1614 = vmatpush.msra.mxu0 0.0
        %1615 = vmatpush.msra.mxu0 0.0
        %1616 = vmatpush.msra.mxu0 0.0
        %1617 = vmatpush.msra.mxu0 0.0
        %1618 = vmatpush.msra.mxu0 0.0
        %1619 = vmatpush.msra.mxu0 0.0
        %1620 = vmatpush.msra.mxu0 0.0
        %1621 = vmatpush.msra.mxu0 %v1220
        %1622 = vmatpush.msra.mxu0 %v1219
        %1623 = vmatpush.msra.mxu0 %v1218
        %1624 = vmatpush.msra.mxu0 %v1217
        %1625 = vmatmul.f32.gmra.mxu0 %v1607
        %v1626 = vpop.f32.mrf.mxu0
        %v1627 = vadd.f32 0.0, %v1626
        %1628 = vdwg.mxu0
        %v1629 = vadd.f32 %v1526, %v1627
        %v1631 = vperm.slane %v1221, 0
        %v1633 = vadd.f32 %v1629, %v1631
        %v1634 = vadd.f32 %v1633, %v1048
        %v1635 = vld [vmem:[%s1023] sm:$0x1]
        %v1636 = vld [vmem:[%s1026] sm:$0x1]
        %1637 = vadd.xlane.f32.xlu0 %v1634
        %v1638 = vpop.xlane.xlu0 %1637
        %v1639 = vmul.f32 %v1638, %v1060
        %v1640 = vsub.f32 %v1634, %v1639
        %v1641 = vmul.f32 %v1640, %v1640
        %1642 = vadd.xlane.f32.xlu0 %v1641
        %v1643 = vpop.xlane.xlu0 %1642
        %v1644 = vmul.f32 %v1643, %v1060
        %v1645 = vadd.f32 %v1644, 1e-05
        %v1646 = vrsqrt.pop %v1645
        %v1647 = vmul.f32 %v1646, %v1645
        %v1648 = vmul.f32 %v1647, %v1646
        %v1649 = vmul.f32 0.5, %v1648
        %v1650 = vsub.f32 1.5, %v1649
        %v1651 = vmul.f32 %v1646, %v1650
        %vm1652 = vweird.f32 %v1645
        %vm1653 = vweird.f32 %v1646
        %vm1654 = vmor %vm1652, %vm1653
        %v1655 = vsel %vm1654, %v1646, %v1651
        %v1656 = vmul.f32 %v1640, %v1655
        %v1658 = vperm.slane %v1635, 0
        %v1660 = vmul.f32 %v1656, %v1658
        %v1662 = vperm.slane %v1636, 0
        %v1664 = vadd.f32 %v1660, %v1662
        %v1665 = vld [vmem:[%s836] sm:$0xff]
        %v1666 = vld [vmem:[%s836 + $0x8] sm:$0xff]
        %v1667 = vld [vmem:[%s836 + $0x10] sm:$0xff]
        %v1668 = vld [vmem:[%s836 + $0x18] sm:$0xff]
        %v1669 = vld [vmem:[%s836 + $0x20] sm:$0xff]
        %v1670 = vld [vmem:[%s836 + $0x28] sm:$0xff]
        %v1671 = vld [vmem:[%s836 + $0x30] sm:$0xff]
        %v1672 = vld [vmem:[%s836 + $0x38] sm:$0xff]
        %v1673 = vld [vmem:[%s836 + $0x40] sm:$0xff]
        %v1674 = vld [vmem:[%s836 + $0x48] sm:$0xff]
        %v1675 = vld [vmem:[%s836 + $0x50] sm:$0xff]
        %v1676 = vld [vmem:[%s836 + $0x58] sm:$0xff]
        %v1677 = vld [vmem:[%s836 + $0x60] sm:$0xff]
        %v1678 = vld [vmem:[%s836 + $0x68] sm:$0xff]
        %v1679 = vld [vmem:[%s836 + $0x70] sm:$0xff]
        %v1680 = vld [vmem:[%s836 + $0x78] sm:$0xff]
        %v1681 = vld [vmem:[%s836 + $0x80] sm:$0xff]
        %v1682 = vld [vmem:[%s836 + $0x88] sm:$0xff]
        %v1683 = vld [vmem:[%s836 + $0x90] sm:$0xff]
        %v1684 = vld [vmem:[%s836 + $0x98] sm:$0xff]
        %v1685 = vld [vmem:[%s836 + $0xa0] sm:$0xff]
        %v1686 = vld [vmem:[%s836 + $0xa8] sm:$0xff]
        %v1687 = vld [vmem:[%s836 + $0xb0] sm:$0xff]
        %v1688 = vld [vmem:[%s836 + $0xb8] sm:$0xff]
        %v1689 = vld [vmem:[%s836 + $0xc0] sm:$0xff]
        %v1690 = vld [vmem:[%s836 + $0xc8] sm:$0xff]
        %v1691 = vld [vmem:[%s836 + $0xd0] sm:$0xff]
        %v1692 = vld [vmem:[%s836 + $0xd8] sm:$0xff]
        %v1693 = vld [vmem:[%s836 + $0xe0] sm:$0xff]
        %v1694 = vld [vmem:[%s836 + $0xe8] sm:$0xff]
        %v1695 = vld [vmem:[%s836 + $0xf0] sm:$0xff]
        %v1696 = vld [vmem:[%s836 + $0xf8] sm:$0xff]
        %v1697 = vld [vmem:[%s836 + $0x100] sm:$0xff]
        %v1698 = vld [vmem:[%s836 + $0x108] sm:$0xff]
        %v1699 = vld [vmem:[%s836 + $0x110] sm:$0xff]
        %v1700 = vld [vmem:[%s836 + $0x118] sm:$0xff]
        %v1701 = vld [vmem:[%s836 + $0x120] sm:$0xff]
        %v1702 = vld [vmem:[%s836 + $0x128] sm:$0xff]
        %v1703 = vld [vmem:[%s836 + $0x130] sm:$0xff]
        %v1704 = vld [vmem:[%s836 + $0x138] sm:$0xff]
        %v1705 = vld [vmem:[%s836 + $0x140] sm:$0xff]
        %v1706 = vld [vmem:[%s836 + $0x148] sm:$0xff]
        %v1707 = vld [vmem:[%s836 + $0x150] sm:$0xff]
        %v1708 = vld [vmem:[%s836 + $0x158] sm:$0xff]
        %v1709 = vld [vmem:[%s836 + $0x160] sm:$0xff]
        %v1710 = vld [vmem:[%s836 + $0x168] sm:$0xff]
        %v1711 = vld [vmem:[%s836 + $0x170] sm:$0xff]
        %v1712 = vld [vmem:[%s836 + $0x178] sm:$0xff]
        %v1713 = vld [vmem:[%s836 + $0x180] sm:$0xff]
        %v1714 = vld [vmem:[%s836 + $0x188] sm:$0xff]
        %v1715 = vld [vmem:[%s836 + $0x190] sm:$0xff]
        %v1716 = vld [vmem:[%s836 + $0x198] sm:$0xff]
        %v1717 = vld [vmem:[%s836 + $0x1a0] sm:$0xff]
        %v1718 = vld [vmem:[%s836 + $0x1a8] sm:$0xff]
        %v1719 = vld [vmem:[%s836 + $0x1b0] sm:$0xff]
        %v1720 = vld [vmem:[%s836 + $0x1b8] sm:$0xff]
        %v1721 = vld [vmem:[%s836 + $0x1c0] sm:$0xff]
        %v1722 = vld [vmem:[%s836 + $0x1c8] sm:$0xff]
        %v1723 = vld [vmem:[%s836 + $0x1d0] sm:$0xff]
        %v1724 = vld [vmem:[%s836 + $0x1d8] sm:$0xff]
        %v1725 = vld [vmem:[%s836 + $0x1e0] sm:$0xff]
        %v1726 = vld [vmem:[%s836 + $0x1e8] sm:$0xff]
        %v1727 = vld [vmem:[%s836 + $0x1f0] sm:$0xff]
        %v1728 = vld [vmem:[%s836 + $0x1f8] sm:$0xff]
        %v1729 = vld [vmem:[%s1030] sm:$0xf]
        %v1731 = vperm.slane %v1729, 0
        %v1732 = vperm.slane %v1729, 1
        %v1733 = vperm.slane %v1729, 2
        %v1734 = vperm.slane %v1729, 3
        %1739 = vmatpush.msra.mxu0 %v1725
        %1740 = vmatpush.msra.mxu0 %v1721
        %1741 = vmatpush.msra.mxu0 %v1717
        %1742 = vmatpush.msra.mxu0 %v1713
        %1743 = vmatpush.msra.mxu0 %v1709
        %1744 = vmatpush.msra.mxu0 %v1705
        %1745 = vmatpush.msra.mxu0 %v1701
        %1746 = vmatpush.msra.mxu0 %v1697
        %1747 = vmatpush.msra.mxu0 %v1693
        %1748 = vmatpush.msra.mxu0 %v1689
        %1749 = vmatpush.msra.mxu0 %v1685
        %1750 = vmatpush.msra.mxu0 %v1681
        %1751 = vmatpush.msra.mxu0 %v1677
        %1752 = vmatpush.msra.mxu0 %v1673
        %1753 = vmatpush.msra.mxu0 %v1669
        %1754 = vmatpush.msra.mxu0 %v1665
        %1755 = vmatmul.f32.gmra.mxu0 %v1664
        %v1756 = vpop.f32.mrf.mxu0
        %v1757 = vadd.f32 %v1731, %v1756
        %1758 = vdwg.mxu0
        %1759 = vmatpush.msra.mxu0 %v1726
        %1760 = vmatpush.msra.mxu0 %v1722
        %1761 = vmatpush.msra.mxu0 %v1718
        %1762 = vmatpush.msra.mxu0 %v1714
        %1763 = vmatpush.msra.mxu0 %v1710
        %1764 = vmatpush.msra.mxu0 %v1706
        %1765 = vmatpush.msra.mxu0 %v1702
        %1766 = vmatpush.msra.mxu0 %v1698
        %1767 = vmatpush.msra.mxu0 %v1694
        %1768 = vmatpush.msra.mxu0 %v1690
        %1769 = vmatpush.msra.mxu0 %v1686
        %1770 = vmatpush.msra.mxu0 %v1682
        %1771 = vmatpush.msra.mxu0 %v1678
        %1772 = vmatpush.msra.mxu0 %v1674
        %1773 = vmatpush.msra.mxu0 %v1670
        %1774 = vmatpush.msra.mxu0 %v1666
        %1775 = vmatmul.f32.gmra.mxu0 %v1664
        %v1776 = vpop.f32.mrf.mxu0
        %v1777 = vadd.f32 %v1732, %v1776
        %1778 = vdwg.mxu0
        %1779 = vmatpush.msra.mxu0 %v1727
        %1780 = vmatpush.msra.mxu0 %v1723
        %1781 = vmatpush.msra.mxu0 %v1719
        %1782 = vmatpush.msra.mxu0 %v1715
        %1783 = vmatpush.msra.mxu0 %v1711
        %1784 = vmatpush.msra.mxu0 %v1707
        %1785 = vmatpush.msra.mxu0 %v1703
        %1786 = vmatpush.msra.mxu0 %v1699
        %1787 = vmatpush.msra.mxu0 %v1695
        %1788 = vmatpush.msra.mxu0 %v1691
        %1789 = vmatpush.msra.mxu0 %v1687
        %1790 = vmatpush.msra.mxu0 %v1683
        %1791 = vmatpush.msra.mxu0 %v1679
        %1792 = vmatpush.msra.mxu0 %v1675
        %1793 = vmatpush.msra.mxu0 %v1671
        %1794 = vmatpush.msra.mxu0 %v1667
        %1795 = vmatmul.f32.gmra.mxu0 %v1664
        %v1796 = vpop.f32.mrf.mxu0
        %v1797 = vadd.f32 %v1733, %v1796
        %1798 = vdwg.mxu0
        %1799 = vmatpush.msra.mxu0 %v1728
        %1800 = vmatpush.msra.mxu0 %v1724
        %1801 = vmatpush.msra.mxu0 %v1720
        %1802 = vmatpush.msra.mxu0 %v1716
        %1803 = vmatpush.msra.mxu0 %v1712
        %1804 = vmatpush.msra.mxu0 %v1708
        %1805 = vmatpush.msra.mxu0 %v1704
        %1806 = vmatpush.msra.mxu0 %v1700
        %1807 = vmatpush.msra.mxu0 %v1696
        %1808 = vmatpush.msra.mxu0 %v1692
        %1809 = vmatpush.msra.mxu0 %v1688
        %1810 = vmatpush.msra.mxu0 %v1684
        %1811 = vmatpush.msra.mxu0 %v1680
        %1812 = vmatpush.msra.mxu0 %v1676
        %1813 = vmatpush.msra.mxu0 %v1672
        %1814 = vmatpush.msra.mxu0 %v1668
        %1815 = vmatmul.f32.gmra.mxu0 %v1664
        %v1816 = vpop.f32.mrf.mxu0
        %v1817 = vadd.f32 %v1734, %v1816
        %1818 = vdwg.mxu0
        %1819 = vst [vmem:[#allocation3] sm:$0xff] %v1757
        %1820 = vst [vmem:[#allocation3 + $0x8] sm:$0xff] %v1777
        %1821 = vst [vmem:[#allocation3 + $0x10] sm:$0xff] %v1797
        %1822 = vst [vmem:[#allocation3 + $0x18] sm:$0xff] %v1817
        %v1823 = vld [vmem:[%s846] sm:$0xff]
        %v1824 = vld [vmem:[%s846 + $0x8] sm:$0xff]
        %v1825 = vld [vmem:[%s846 + $0x10] sm:$0xff]
        %v1826 = vld [vmem:[%s846 + $0x18] sm:$0xff]
        %v1827 = vld [vmem:[%s846 + $0x20] sm:$0xff]
        %v1828 = vld [vmem:[%s846 + $0x28] sm:$0xff]
        %v1829 = vld [vmem:[%s846 + $0x30] sm:$0xff]
        %v1830 = vld [vmem:[%s846 + $0x38] sm:$0xff]
        %v1831 = vld [vmem:[%s846 + $0x40] sm:$0xff]
        %v1832 = vld [vmem:[%s846 + $0x48] sm:$0xff]
        %v1833 = vld [vmem:[%s846 + $0x50] sm:$0xff]
        %v1834 = vld [vmem:[%s846 + $0x58] sm:$0xff]
        %v1835 = vld [vmem:[%s846 + $0x60] sm:$0xff]
        %v1836 = vld [vmem:[%s846 + $0x68] sm:$0xff]
        %v1837 = vld [vmem:[%s846 + $0x70] sm:$0xff]
        %v1838 = vld [vmem:[%s846 + $0x78] sm:$0xff]
        %v1839 = vld [vmem:[%s846 + $0x80] sm:$0xff]
        %v1840 = vld [vmem:[%s846 + $0x88] sm:$0xff]
        %v1841 = vld [vmem:[%s846 + $0x90] sm:$0xff]
        %v1842 = vld [vmem:[%s846 + $0x98] sm:$0xff]
        %v1843 = vld [vmem:[%s846 + $0xa0] sm:$0xff]
        %v1844 = vld [vmem:[%s846 + $0xa8] sm:$0xff]
        %v1845 = vld [vmem:[%s846 + $0xb0] sm:$0xff]
        %v1846 = vld [vmem:[%s846 + $0xb8] sm:$0xff]
        %v1847 = vld [vmem:[%s846 + $0xc0] sm:$0xff]
        %v1848 = vld [vmem:[%s846 + $0xc8] sm:$0xff]
        %v1849 = vld [vmem:[%s846 + $0xd0] sm:$0xff]
        %v1850 = vld [vmem:[%s846 + $0xd8] sm:$0xff]
        %v1851 = vld [vmem:[%s846 + $0xe0] sm:$0xff]
        %v1852 = vld [vmem:[%s846 + $0xe8] sm:$0xff]
        %v1853 = vld [vmem:[%s846 + $0xf0] sm:$0xff]
        %v1854 = vld [vmem:[%s846 + $0xf8] sm:$0xff]
        %v1855 = vld [vmem:[%s846 + $0x100] sm:$0xff]
        %v1856 = vld [vmem:[%s846 + $0x108] sm:$0xff]
        %v1857 = vld [vmem:[%s846 + $0x110] sm:$0xff]
        %v1858 = vld [vmem:[%s846 + $0x118] sm:$0xff]
        %v1859 = vld [vmem:[%s846 + $0x120] sm:$0xff]
        %v1860 = vld [vmem:[%s846 + $0x128] sm:$0xff]
        %v1861 = vld [vmem:[%s846 + $0x130] sm:$0xff]
        %v1862 = vld [vmem:[%s846 + $0x138] sm:$0xff]
        %v1863 = vld [vmem:[%s846 + $0x140] sm:$0xff]
        %v1864 = vld [vmem:[%s846 + $0x148] sm:$0xff]
        %v1865 = vld [vmem:[%s846 + $0x150] sm:$0xff]
        %v1866 = vld [vmem:[%s846 + $0x158] sm:$0xff]
        %v1867 = vld [vmem:[%s846 + $0x160] sm:$0xff]
        %v1868 = vld [vmem:[%s846 + $0x168] sm:$0xff]
        %v1869 = vld [vmem:[%s846 + $0x170] sm:$0xff]
        %v1870 = vld [vmem:[%s846 + $0x178] sm:$0xff]
        %v1871 = vld [vmem:[%s846 + $0x180] sm:$0xff]
        %v1872 = vld [vmem:[%s846 + $0x188] sm:$0xff]
        %v1873 = vld [vmem:[%s846 + $0x190] sm:$0xff]
        %v1874 = vld [vmem:[%s846 + $0x198] sm:$0xff]
        %v1875 = vld [vmem:[%s846 + $0x1a0] sm:$0xff]
        %v1876 = vld [vmem:[%s846 + $0x1a8] sm:$0xff]
        %v1877 = vld [vmem:[%s846 + $0x1b0] sm:$0xff]
        %v1878 = vld [vmem:[%s846 + $0x1b8] sm:$0xff]
        %v1879 = vld [vmem:[%s846 + $0x1c0] sm:$0xff]
        %v1880 = vld [vmem:[%s846 + $0x1c8] sm:$0xff]
        %v1881 = vld [vmem:[%s846 + $0x1d0] sm:$0xff]
        %v1882 = vld [vmem:[%s846 + $0x1d8] sm:$0xff]
        %v1883 = vld [vmem:[%s846 + $0x1e0] sm:$0xff]
        %v1884 = vld [vmem:[%s846 + $0x1e8] sm:$0xff]
        %v1885 = vld [vmem:[%s846 + $0x1f0] sm:$0xff]
        %v1886 = vld [vmem:[%s846 + $0x1f8] sm:$0xff]
        %v1887 = vld [vmem:[#allocation3] ss:$8 sm:$0xf]
        %1888 = vmatpush.msra.mxu0 %v1883
        %1889 = vmatpush.msra.mxu0 %v1879
        %1890 = vmatpush.msra.mxu0 %v1875
        %1891 = vmatpush.msra.mxu0 %v1871
        %1892 = vmatpush.msra.mxu0 %v1867
        %1893 = vmatpush.msra.mxu0 %v1863
        %1894 = vmatpush.msra.mxu0 %v1859
        %1895 = vmatpush.msra.mxu0 %v1855
        %1896 = vmatpush.msra.mxu0 %v1851
        %1897 = vmatpush.msra.mxu0 %v1847
        %1898 = vmatpush.msra.mxu0 %v1843
        %1899 = vmatpush.msra.mxu0 %v1839
        %1900 = vmatpush.msra.mxu0 %v1835
        %1901 = vmatpush.msra.mxu0 %v1831
        %1902 = vmatpush.msra.mxu0 %v1827
        %1903 = vmatpush.msra.mxu0 %v1823
        %1904 = vmatmul.f32.gmra.mxu0 0.0
        %v1905 = vpop.f32.mrf.mxu0
        %v1906 = vadd.f32 0.0, %v1905
        %1907 = vdwg.mxu0
        %1908 = vmatpush.msra.mxu0 %v1884
        %1909 = vmatpush.msra.mxu0 %v1880
        %1910 = vmatpush.msra.mxu0 %v1876
        %1911 = vmatpush.msra.mxu0 %v1872
        %1912 = vmatpush.msra.mxu0 %v1868
        %1913 = vmatpush.msra.mxu0 %v1864
        %1914 = vmatpush.msra.mxu0 %v1860
        %1915 = vmatpush.msra.mxu0 %v1856
        %1916 = vmatpush.msra.mxu0 %v1852
        %1917 = vmatpush.msra.mxu0 %v1848
        %1918 = vmatpush.msra.mxu0 %v1844
        %1919 = vmatpush.msra.mxu0 %v1840
        %1920 = vmatpush.msra.mxu0 %v1836
        %1921 = vmatpush.msra.mxu0 %v1832
        %1922 = vmatpush.msra.mxu0 %v1828
        %1923 = vmatpush.msra.mxu0 %v1824
        %1924 = vmatmul.f32.gmra.mxu0 0.0
        %v1925 = vpop.f32.mrf.mxu0
        %v1926 = vadd.f32 0.0, %v1925
        %1927 = vdwg.mxu0
        %1928 = vmatpush.msra.mxu0 %v1885
        %1929 = vmatpush.msra.mxu0 %v1881
        %1930 = vmatpush.msra.mxu0 %v1877
        %1931 = vmatpush.msra.mxu0 %v1873
        %1932 = vmatpush.msra.mxu0 %v1869
        %1933 = vmatpush.msra.mxu0 %v1865
        %1934 = vmatpush.msra.mxu0 %v1861
        %1935 = vmatpush.msra.mxu0 %v1857
        %1936 = vmatpush.msra.mxu0 %v1853
        %1937 = vmatpush.msra.mxu0 %v1849
        %1938 = vmatpush.msra.mxu0 %v1845
        %1939 = vmatpush.msra.mxu0 %v1841
        %1940 = vmatpush.msra.mxu0 %v1837
        %1941 = vmatpush.msra.mxu0 %v1833
        %1942 = vmatpush.msra.mxu0 %v1829
        %1943 = vmatpush.msra.mxu0 %v1825
        %1944 = vmatmul.f32.gmra.mxu0 0.0
        %v1945 = vpop.f32.mrf.mxu0
        %v1946 = vadd.f32 0.0, %v1945
        %1947 = vdwg.mxu0
        %1948 = vmatpush.msra.mxu0 %v1886
        %1949 = vmatpush.msra.mxu0 %v1882
        %1950 = vmatpush.msra.mxu0 %v1878
        %1951 = vmatpush.msra.mxu0 %v1874
        %1952 = vmatpush.msra.mxu0 %v1870
        %1953 = vmatpush.msra.mxu0 %v1866
        %1954 = vmatpush.msra.mxu0 %v1862
        %1955 = vmatpush.msra.mxu0 %v1858
        %1956 = vmatpush.msra.mxu0 %v1854
        %1957 = vmatpush.msra.mxu0 %v1850
        %1958 = vmatpush.msra.mxu0 %v1846
        %1959 = vmatpush.msra.mxu0 %v1842
        %1960 = vmatpush.msra.mxu0 %v1838
        %1961 = vmatpush.msra.mxu0 %v1834
        %1962 = vmatpush.msra.mxu0 %v1830
        %1963 = vmatpush.msra.mxu0 %v1826
        %1964 = vmatmul.f32.gmra.mxu0 0.0
        %v1965 = vpop.f32.mrf.mxu0
        %v1966 = vadd.f32 0.0, %v1965
        %1967 = vdwg.mxu0
        %v1972 = vrot.slane %v1926, 7
        %v1973 = vrot.slane %v1946, 6
        %v1974 = vrot.slane %v1966, 5
        %vm1975 = vcmask 1040384
        %v1976 = vsel %vm1975, %v1906, %v1972
        %vm1977 = vcmask 1042434
        %v1978 = vsel %vm1977, %v1973, %v1974
        %vm1979 = vcmask 1041408
        %v1980 = vsel %vm1979, %v1976, %v1978
        %v1982 = vadd.f32 %v1887, %v1980
        %v1983 = vxor.u32 %v1982, 2147483648
        %v1984 = vmul.f32 %v1983, 1.442695
        %v1985 = vpow.pop %v1984
        %v1986 = vadd.f32 %v1985, 1.0
        %v1987 = vrcp.pop %v1986
        %v1988 = vmul.f32 %v1986, %v1987
        %v1989 = vsub.f32 1.0, %v1988
        %v1990 = vmul.f32 %v1987, %v1989
        %v1991 = vadd.f32 %v1987, %v1990
        %vm1992 = vweird.f32 %v1986
        %vm1993 = vweird.f32 %v1987
        %vm1994 = vmor %vm1992, %vm1993
        %v1995 = vsel %vm1994, %v1987, %v1991
        %v1996 = vand.u32 2147483647, %v1986
        %vm1997 = vcmp.eq.f32.partialorder %v1996, 8.507059e+37
        %v1998 = vand.u32 %v1986, 2147483648
        %v1999 = vor.u32 1.1754944e-38, %v1998
        %v2000 = vsel %vm1997, %v1999, %v1995
        %v2001 = vmul.f32 1.0, %v2000
        %v2003 = vrot.slane %v1982, 1
        %v2005 = vxor.u32 %v2003, 2147483648
        %v2006 = vmul.f32 %v2005, 1.442695
        %v2007 = vpow.pop %v2006
        %v2008 = vadd.f32 %v2007, 1.0
        %v2009 = vrcp.pop %v2008
        %v2010 = vmul.f32 %v2008, %v2009
        %v2011 = vsub.f32 1.0, %v2010
        %v2012 = vmul.f32 %v2009, %v2011
        %v2013 = vadd.f32 %v2009, %v2012
        %vm2014 = vweird.f32 %v2008
        %vm2015 = vweird.f32 %v2009
        %vm2016 = vmor %vm2014, %vm2015
        %v2017 = vsel %vm2016, %v2009, %v2013
        %v2018 = vand.u32 2147483647, %v2008
        %vm2019 = vcmp.eq.f32.partialorder %v2018, 8.507059e+37
        %v2020 = vand.u32 %v2008, 2147483648
        %v2021 = vor.u32 1.1754944e-38, %v2020
        %v2022 = vsel %vm2019, %v2021, %v2017
        %v2023 = vmul.f32 1.0, %v2022
        %v2024 = vrot.slane %v1982, 2
        %v2026 = vtanh.pop %v2024
        %v2027 = vrot.slane %v1982, 3
        %v2029 = vxor.u32 %v2027, 2147483648
        %v2030 = vmul.f32 %v2029, 1.442695
        %v2031 = vpow.pop %v2030
        %v2032 = vadd.f32 %v2031, 1.0
        %v2033 = vrcp.pop %v2032
        %v2034 = vmul.f32 %v2032, %v2033
        %v2035 = vsub.f32 1.0, %v2034
        %v2036 = vmul.f32 %v2033, %v2035
        %v2037 = vadd.f32 %v2033, %v2036
        %vm2038 = vweird.f32 %v2032
        %vm2039 = vweird.f32 %v2033
        %vm2040 = vmor %vm2038, %vm2039
        %v2041 = vsel %vm2040, %v2033, %v2037
        %v2042 = vand.u32 2147483647, %v2032
        %vm2043 = vcmp.eq.f32.partialorder %v2042, 8.507059e+37
        %v2044 = vand.u32 %v2032, 2147483648
        %v2045 = vor.u32 1.1754944e-38, %v2044
        %v2046 = vsel %vm2043, %v2045, %v2041
        %v2047 = vmul.f32 1.0, %v2046
        %v2048 = vmul.f32 %v2023, 0.0
        %v2049 = vmul.f32 %v2001, %v2026
        %v2050 = vadd.f32 %v2048, %v2049
        %v2051 = vtanh.pop %v2050
        %v2052 = vmul.f32 %v2047, %v2051
        %2053 = vst [vmem:[#allocation4] sm:$0x1] %v2052
        %s2054 = scalar_lea.vmem [#allocation3], 1
        %v2055 = vld [vmem:[%s2054] ss:$8 sm:$0xf]
        %2056 = vmatpush.msra.mxu0 %v1883
        %2057 = vmatpush.msra.mxu0 %v1879
        %2058 = vmatpush.msra.mxu0 %v1875
        %2059 = vmatpush.msra.mxu0 %v1871
        %2060 = vmatpush.msra.mxu0 %v1867
        %2061 = vmatpush.msra.mxu0 %v1863
        %2062 = vmatpush.msra.mxu0 %v1859
        %2063 = vmatpush.msra.mxu0 %v1855
        %2064 = vmatpush.msra.mxu0 %v1851
        %2065 = vmatpush.msra.mxu0 %v1847
        %2066 = vmatpush.msra.mxu0 %v1843
        %2067 = vmatpush.msra.mxu0 %v1839
        %2068 = vmatpush.msra.mxu0 %v1835
        %2069 = vmatpush.msra.mxu0 %v1831
        %2070 = vmatpush.msra.mxu0 %v1827
        %2071 = vmatpush.msra.mxu0 %v1823
        %2072 = vmatmul.f32.gmra.mxu0 %v2052
        %v2073 = vpop.f32.mrf.mxu0
        %v2074 = vadd.f32 0.0, %v2073
        %2075 = vdwg.mxu0
        %2076 = vmatpush.msra.mxu0 %v1884
        %2077 = vmatpush.msra.mxu0 %v1880
        %2078 = vmatpush.msra.mxu0 %v1876
        %2079 = vmatpush.msra.mxu0 %v1872
        %2080 = vmatpush.msra.mxu0 %v1868
        %2081 = vmatpush.msra.mxu0 %v1864
        %2082 = vmatpush.msra.mxu0 %v1860
        %2083 = vmatpush.msra.mxu0 %v1856
        %2084 = vmatpush.msra.mxu0 %v1852
        %2085 = vmatpush.msra.mxu0 %v1848
        %2086 = vmatpush.msra.mxu0 %v1844
        %2087 = vmatpush.msra.mxu0 %v1840
        %2088 = vmatpush.msra.mxu0 %v1836
        %2089 = vmatpush.msra.mxu0 %v1832
        %2090 = vmatpush.msra.mxu0 %v1828
        %2091 = vmatpush.msra.mxu0 %v1824
        %2092 = vmatmul.f32.gmra.mxu0 %v2052
        %v2093 = vpop.f32.mrf.mxu0
        %v2094 = vadd.f32 0.0, %v2093
        %2095 = vdwg.mxu0
        %2096 = vmatpush.msra.mxu0 %v1885
        %2097 = vmatpush.msra.mxu0 %v1881
        %2098 = vmatpush.msra.mxu0 %v1877
        %2099 = vmatpush.msra.mxu0 %v1873
        %2100 = vmatpush.msra.mxu0 %v1869
        %2101 = vmatpush.msra.mxu0 %v1865
        %2102 = vmatpush.msra.mxu0 %v1861
        %2103 = vmatpush.msra.mxu0 %v1857
        %2104 = vmatpush.msra.mxu0 %v1853
        %2105 = vmatpush.msra.mxu0 %v1849
        %2106 = vmatpush.msra.mxu0 %v1845
        %2107 = vmatpush.msra.mxu0 %v1841
        %2108 = vmatpush.msra.mxu0 %v1837
        %2109 = vmatpush.msra.mxu0 %v1833
        %2110 = vmatpush.msra.mxu0 %v1829
        %2111 = vmatpush.msra.mxu0 %v1825
        %2112 = vmatmul.f32.gmra.mxu0 %v2052
        %v2113 = vpop.f32.mrf.mxu0
        %v2114 = vadd.f32 0.0, %v2113
        %2115 = vdwg.mxu0
        %2116 = vmatpush.msra.mxu0 %v1886
        %2117 = vmatpush.msra.mxu0 %v1882
        %2118 = vmatpush.msra.mxu0 %v1878
        %2119 = vmatpush.msra.mxu0 %v1874
        %2120 = vmatpush.msra.mxu0 %v1870
        %2121 = vmatpush.msra.mxu0 %v1866
        %2122 = vmatpush.msra.mxu0 %v1862
        %2123 = vmatpush.msra.mxu0 %v1858
        %2124 = vmatpush.msra.mxu0 %v1854
        %2125 = vmatpush.msra.mxu0 %v1850
        %2126 = vmatpush.msra.mxu0 %v1846
        %2127 = vmatpush.msra.mxu0 %v1842
        %2128 = vmatpush.msra.mxu0 %v1838
        %2129 = vmatpush.msra.mxu0 %v1834
        %2130 = vmatpush.msra.mxu0 %v1830
        %2131 = vmatpush.msra.mxu0 %v1826
        %2132 = vmatmul.f32.gmra.mxu0 %v2052
        %v2133 = vpop.f32.mrf.mxu0
        %v2134 = vadd.f32 0.0, %v2133
        %2135 = vdwg.mxu0
        %v2140 = vrot.slane %v2094, 7
        %v2141 = vrot.slane %v2114, 6
        %v2142 = vrot.slane %v2134, 5
        %v2143 = vsel %vm1975, %v2074, %v2140
        %v2144 = vsel %vm1977, %v2141, %v2142
        %v2145 = vsel %vm1979, %v2143, %v2144
        %v2147 = vadd.f32 %v2055, %v2145
        %v2148 = vxor.u32 %v2147, 2147483648
        %v2149 = vmul.f32 %v2148, 1.442695
        %v2150 = vpow.pop %v2149
        %v2151 = vadd.f32 %v2150, 1.0
        %v2152 = vrcp.pop %v2151
        %v2153 = vmul.f32 %v2151, %v2152
        %v2154 = vsub.f32 1.0, %v2153
        %v2155 = vmul.f32 %v2152, %v2154
        %v2156 = vadd.f32 %v2152, %v2155
        %vm2157 = vweird.f32 %v2151
        %vm2158 = vweird.f32 %v2152
        %vm2159 = vmor %vm2157, %vm2158
        %v2160 = vsel %vm2159, %v2152, %v2156
        %v2161 = vand.u32 2147483647, %v2151
        %vm2162 = vcmp.eq.f32.partialorder %v2161, 8.507059e+37
        %v2163 = vand.u32 %v2151, 2147483648
        %v2164 = vor.u32 1.1754944e-38, %v2163
        %v2165 = vsel %vm2162, %v2164, %v2160
        %v2166 = vmul.f32 1.0, %v2165
        %v2168 = vrot.slane %v2147, 1
        %v2170 = vxor.u32 %v2168, 2147483648
        %v2171 = vmul.f32 %v2170, 1.442695
        %v2172 = vpow.pop %v2171
        %v2173 = vadd.f32 %v2172, 1.0
        %v2174 = vrcp.pop %v2173
        %v2175 = vmul.f32 %v2173, %v2174
        %v2176 = vsub.f32 1.0, %v2175
        %v2177 = vmul.f32 %v2174, %v2176
        %v2178 = vadd.f32 %v2174, %v2177
        %vm2179 = vweird.f32 %v2173
        %vm2180 = vweird.f32 %v2174
        %vm2181 = vmor %vm2179, %vm2180
        %v2182 = vsel %vm2181, %v2174, %v2178
        %v2183 = vand.u32 2147483647, %v2173
        %vm2184 = vcmp.eq.f32.partialorder %v2183, 8.507059e+37
        %v2185 = vand.u32 %v2173, 2147483648
        %v2186 = vor.u32 1.1754944e-38, %v2185
        %v2187 = vsel %vm2184, %v2186, %v2182
        %v2188 = vmul.f32 1.0, %v2187
        %v2189 = vrot.slane %v2147, 2
        %v2191 = vtanh.pop %v2189
        %v2192 = vrot.slane %v2147, 3
        %v2194 = vxor.u32 %v2192, 2147483648
        %v2195 = vmul.f32 %v2194, 1.442695
        %v2196 = vpow.pop %v2195
        %v2197 = vadd.f32 %v2196, 1.0
        %v2198 = vrcp.pop %v2197
        %v2199 = vmul.f32 %v2197, %v2198
        %v2200 = vsub.f32 1.0, %v2199
        %v2201 = vmul.f32 %v2198, %v2200
        %v2202 = vadd.f32 %v2198, %v2201
        %vm2203 = vweird.f32 %v2197
        %vm2204 = vweird.f32 %v2198
        %vm2205 = vmor %vm2203, %vm2204
        %v2206 = vsel %vm2205, %v2198, %v2202
        %v2207 = vand.u32 2147483647, %v2197
        %vm2208 = vcmp.eq.f32.partialorder %v2207, 8.507059e+37
        %v2209 = vand.u32 %v2197, 2147483648
        %v2210 = vor.u32 1.1754944e-38, %v2209
        %v2211 = vsel %vm2208, %v2210, %v2206
        %v2212 = vmul.f32 1.0, %v2211
        %v2213 = vmul.f32 %v2188, %v2050
        %v2214 = vmul.f32 %v2166, %v2191
        %v2215 = vadd.f32 %v2213, %v2214
        %v2216 = vtanh.pop %v2215
        %v2217 = vmul.f32 %v2212, %v2216
        %2218 = vst [vmem:[#allocation4 + $0x1] sm:$0x1] %v2217
        %s2219 = scalar_lea.vmem [#allocation3], 2
        %v2220 = vld [vmem:[%s2219] ss:$8 sm:$0xf]
        %2221 = vmatpush.msra.mxu0 %v1883
        %2222 = vmatpush.msra.mxu0 %v1879
        %2223 = vmatpush.msra.mxu0 %v1875
        %2224 = vmatpush.msra.mxu0 %v1871
        %2225 = vmatpush.msra.mxu0 %v1867
        %2226 = vmatpush.msra.mxu0 %v1863
        %2227 = vmatpush.msra.mxu0 %v1859
        %2228 = vmatpush.msra.mxu0 %v1855
        %2229 = vmatpush.msra.mxu0 %v1851
        %2230 = vmatpush.msra.mxu0 %v1847
        %2231 = vmatpush.msra.mxu0 %v1843
        %2232 = vmatpush.msra.mxu0 %v1839
        %2233 = vmatpush.msra.mxu0 %v1835
        %2234 = vmatpush.msra.mxu0 %v1831
        %2235 = vmatpush.msra.mxu0 %v1827
        %2236 = vmatpush.msra.mxu0 %v1823
        %2237 = vmatmul.f32.gmra.mxu0 %v2217
        %v2238 = vpop.f32.mrf.mxu0
        %v2239 = vadd.f32 0.0, %v2238
        %2240 = vdwg.mxu0
        %2241 = vmatpush.msra.mxu0 %v1884
        %2242 = vmatpush.msra.mxu0 %v1880
        %2243 = vmatpush.msra.mxu0 %v1876
        %2244 = vmatpush.msra.mxu0 %v1872
        %2245 = vmatpush.msra.mxu0 %v1868
        %2246 = vmatpush.msra.mxu0 %v1864
        %2247 = vmatpush.msra.mxu0 %v1860
        %2248 = vmatpush.msra.mxu0 %v1856
        %2249 = vmatpush.msra.mxu0 %v1852
        %2250 = vmatpush.msra.mxu0 %v1848
        %2251 = vmatpush.msra.mxu0 %v1844
        %2252 = vmatpush.msra.mxu0 %v1840
        %2253 = vmatpush.msra.mxu0 %v1836
        %2254 = vmatpush.msra.mxu0 %v1832
        %2255 = vmatpush.msra.mxu0 %v1828
        %2256 = vmatpush.msra.mxu0 %v1824
        %2257 = vmatmul.f32.gmra.mxu0 %v2217
        %v2258 = vpop.f32.mrf.mxu0
        %v2259 = vadd.f32 0.0, %v2258
        %2260 = vdwg.mxu0
        %2261 = vmatpush.msra.mxu0 %v1885
        %2262 = vmatpush.msra.mxu0 %v1881
        %2263 = vmatpush.msra.mxu0 %v1877
        %2264 = vmatpush.msra.mxu0 %v1873
        %2265 = vmatpush.msra.mxu0 %v1869
        %2266 = vmatpush.msra.mxu0 %v1865
        %2267 = vmatpush.msra.mxu0 %v1861
        %2268 = vmatpush.msra.mxu0 %v1857
        %2269 = vmatpush.msra.mxu0 %v1853
        %2270 = vmatpush.msra.mxu0 %v1849
        %2271 = vmatpush.msra.mxu0 %v1845
        %2272 = vmatpush.msra.mxu0 %v1841
        %2273 = vmatpush.msra.mxu0 %v1837
        %2274 = vmatpush.msra.mxu0 %v1833
        %2275 = vmatpush.msra.mxu0 %v1829
        %2276 = vmatpush.msra.mxu0 %v1825
        %2277 = vmatmul.f32.gmra.mxu0 %v2217
        %v2278 = vpop.f32.mrf.mxu0
        %v2279 = vadd.f32 0.0, %v2278
        %2280 = vdwg.mxu0
        %2281 = vmatpush.msra.mxu0 %v1886
        %2282 = vmatpush.msra.mxu0 %v1882
        %2283 = vmatpush.msra.mxu0 %v1878
        %2284 = vmatpush.msra.mxu0 %v1874
        %2285 = vmatpush.msra.mxu0 %v1870
        %2286 = vmatpush.msra.mxu0 %v1866
        %2287 = vmatpush.msra.mxu0 %v1862
        %2288 = vmatpush.msra.mxu0 %v1858
        %2289 = vmatpush.msra.mxu0 %v1854
        %2290 = vmatpush.msra.mxu0 %v1850
        %2291 = vmatpush.msra.mxu0 %v1846
        %2292 = vmatpush.msra.mxu0 %v1842
        %2293 = vmatpush.msra.mxu0 %v1838
        %2294 = vmatpush.msra.mxu0 %v1834
        %2295 = vmatpush.msra.mxu0 %v1830
        %2296 = vmatpush.msra.mxu0 %v1826
        %2297 = vmatmul.f32.gmra.mxu0 %v2217
        %v2298 = vpop.f32.mrf.mxu0
        %v2299 = vadd.f32 0.0, %v2298
        %2300 = vdwg.mxu0
        %v2305 = vrot.slane %v2259, 7
        %v2306 = vrot.slane %v2279, 6
        %v2307 = vrot.slane %v2299, 5
        %v2308 = vsel %vm1975, %v2239, %v2305
        %v2309 = vsel %vm1977, %v2306, %v2307
        %v2310 = vsel %vm1979, %v2308, %v2309
        %v2312 = vadd.f32 %v2220, %v2310
        %v2313 = vxor.u32 %v2312, 2147483648
        %v2314 = vmul.f32 %v2313, 1.442695
        %v2315 = vpow.pop %v2314
        %v2316 = vadd.f32 %v2315, 1.0
        %v2317 = vrcp.pop %v2316
        %v2318 = vmul.f32 %v2316, %v2317
        %v2319 = vsub.f32 1.0, %v2318
        %v2320 = vmul.f32 %v2317, %v2319
        %v2321 = vadd.f32 %v2317, %v2320
        %vm2322 = vweird.f32 %v2316
        %vm2323 = vweird.f32 %v2317
        %vm2324 = vmor %vm2322, %vm2323
        %v2325 = vsel %vm2324, %v2317, %v2321
        %v2326 = vand.u32 2147483647, %v2316
        %vm2327 = vcmp.eq.f32.partialorder %v2326, 8.507059e+37
        %v2328 = vand.u32 %v2316, 2147483648
        %v2329 = vor.u32 1.1754944e-38, %v2328
        %v2330 = vsel %vm2327, %v2329, %v2325
        %v2331 = vmul.f32 1.0, %v2330
        %v2333 = vrot.slane %v2312, 1
        %v2335 = vxor.u32 %v2333, 2147483648
        %v2336 = vmul.f32 %v2335, 1.442695
        %v2337 = vpow.pop %v2336
        %v2338 = vadd.f32 %v2337, 1.0
        %v2339 = vrcp.pop %v2338
        %v2340 = vmul.f32 %v2338, %v2339
        %v2341 = vsub.f32 1.0, %v2340
        %v2342 = vmul.f32 %v2339, %v2341
        %v2343 = vadd.f32 %v2339, %v2342
        %vm2344 = vweird.f32 %v2338
        %vm2345 = vweird.f32 %v2339
        %vm2346 = vmor %vm2344, %vm2345
        %v2347 = vsel %vm2346, %v2339, %v2343
        %v2348 = vand.u32 2147483647, %v2338
        %vm2349 = vcmp.eq.f32.partialorder %v2348, 8.507059e+37
        %v2350 = vand.u32 %v2338, 2147483648
        %v2351 = vor.u32 1.1754944e-38, %v2350
        %v2352 = vsel %vm2349, %v2351, %v2347
        %v2353 = vmul.f32 1.0, %v2352
        %v2354 = vrot.slane %v2312, 2
        %v2356 = vtanh.pop %v2354
        %v2357 = vrot.slane %v2312, 3
        %v2359 = vxor.u32 %v2357, 2147483648
        %v2360 = vmul.f32 %v2359, 1.442695
        %v2361 = vpow.pop %v2360
        %v2362 = vadd.f32 %v2361, 1.0
        %v2363 = vrcp.pop %v2362
        %v2364 = vmul.f32 %v2362, %v2363
        %v2365 = vsub.f32 1.0, %v2364
        %v2366 = vmul.f32 %v2363, %v2365
        %v2367 = vadd.f32 %v2363, %v2366
        %vm2368 = vweird.f32 %v2362
        %vm2369 = vweird.f32 %v2363
        %vm2370 = vmor %vm2368, %vm2369
        %v2371 = vsel %vm2370, %v2363, %v2367
        %v2372 = vand.u32 2147483647, %v2362
        %vm2373 = vcmp.eq.f32.partialorder %v2372, 8.507059e+37
        %v2374 = vand.u32 %v2362, 2147483648
        %v2375 = vor.u32 1.1754944e-38, %v2374
        %v2376 = vsel %vm2373, %v2375, %v2371
        %v2377 = vmul.f32 1.0, %v2376
        %v2378 = vmul.f32 %v2353, %v2215
        %v2379 = vmul.f32 %v2331, %v2356
        %v2380 = vadd.f32 %v2378, %v2379
        %v2381 = vtanh.pop %v2380
        %v2382 = vmul.f32 %v2377, %v2381
        %2383 = vst [vmem:[#allocation4 + $0x2] sm:$0x1] %v2382
        %s2384 = scalar_lea.vmem [#allocation3], 3
        %v2385 = vld [vmem:[%s2384] ss:$8 sm:$0xf]
        %2386 = vmatpush.msra.mxu0 %v1883
        %2387 = vmatpush.msra.mxu0 %v1879
        %2388 = vmatpush.msra.mxu0 %v1875
        %2389 = vmatpush.msra.mxu0 %v1871
        %2390 = vmatpush.msra.mxu0 %v1867
        %2391 = vmatpush.msra.mxu0 %v1863
        %2392 = vmatpush.msra.mxu0 %v1859
        %2393 = vmatpush.msra.mxu0 %v1855
        %2394 = vmatpush.msra.mxu0 %v1851
        %2395 = vmatpush.msra.mxu0 %v1847
        %2396 = vmatpush.msra.mxu0 %v1843
        %2397 = vmatpush.msra.mxu0 %v1839
        %2398 = vmatpush.msra.mxu0 %v1835
        %2399 = vmatpush.msra.mxu0 %v1831
        %2400 = vmatpush.msra.mxu0 %v1827
        %2401 = vmatpush.msra.mxu0 %v1823
        %2402 = vmatmul.f32.gmra.mxu0 %v2382
        %v2403 = vpop.f32.mrf.mxu0
        %v2404 = vadd.f32 0.0, %v2403
        %2405 = vdwg.mxu0
        %2406 = vmatpush.msra.mxu0 %v1884
        %2407 = vmatpush.msra.mxu0 %v1880
        %2408 = vmatpush.msra.mxu0 %v1876
        %2409 = vmatpush.msra.mxu0 %v1872
        %2410 = vmatpush.msra.mxu0 %v1868
        %2411 = vmatpush.msra.mxu0 %v1864
        %2412 = vmatpush.msra.mxu0 %v1860
        %2413 = vmatpush.msra.mxu0 %v1856
        %2414 = vmatpush.msra.mxu0 %v1852
        %2415 = vmatpush.msra.mxu0 %v1848
        %2416 = vmatpush.msra.mxu0 %v1844
        %2417 = vmatpush.msra.mxu0 %v1840
        %2418 = vmatpush.msra.mxu0 %v1836
        %2419 = vmatpush.msra.mxu0 %v1832
        %2420 = vmatpush.msra.mxu0 %v1828
        %2421 = vmatpush.msra.mxu0 %v1824
        %2422 = vmatmul.f32.gmra.mxu0 %v2382
        %v2423 = vpop.f32.mrf.mxu0
        %v2424 = vadd.f32 0.0, %v2423
        %2425 = vdwg.mxu0
        %2426 = vmatpush.msra.mxu0 %v1885
        %2427 = vmatpush.msra.mxu0 %v1881
        %2428 = vmatpush.msra.mxu0 %v1877
        %2429 = vmatpush.msra.mxu0 %v1873
        %2430 = vmatpush.msra.mxu0 %v1869
        %2431 = vmatpush.msra.mxu0 %v1865
        %2432 = vmatpush.msra.mxu0 %v1861
        %2433 = vmatpush.msra.mxu0 %v1857
        %2434 = vmatpush.msra.mxu0 %v1853
        %2435 = vmatpush.msra.mxu0 %v1849
        %2436 = vmatpush.msra.mxu0 %v1845
        %2437 = vmatpush.msra.mxu0 %v1841
        %2438 = vmatpush.msra.mxu0 %v1837
        %2439 = vmatpush.msra.mxu0 %v1833
        %2440 = vmatpush.msra.mxu0 %v1829
        %2441 = vmatpush.msra.mxu0 %v1825
        %2442 = vmatmul.f32.gmra.mxu0 %v2382
        %v2443 = vpop.f32.mrf.mxu0
        %v2444 = vadd.f32 0.0, %v2443
        %2445 = vdwg.mxu0
        %2446 = vmatpush.msra.mxu0 %v1886
        %2447 = vmatpush.msra.mxu0 %v1882
        %2448 = vmatpush.msra.mxu0 %v1878
        %2449 = vmatpush.msra.mxu0 %v1874
        %2450 = vmatpush.msra.mxu0 %v1870
        %2451 = vmatpush.msra.mxu0 %v1866
        %2452 = vmatpush.msra.mxu0 %v1862
        %2453 = vmatpush.msra.mxu0 %v1858
        %2454 = vmatpush.msra.mxu0 %v1854
        %2455 = vmatpush.msra.mxu0 %v1850
        %2456 = vmatpush.msra.mxu0 %v1846
        %2457 = vmatpush.msra.mxu0 %v1842
        %2458 = vmatpush.msra.mxu0 %v1838
        %2459 = vmatpush.msra.mxu0 %v1834
        %2460 = vmatpush.msra.mxu0 %v1830
        %2461 = vmatpush.msra.mxu0 %v1826
        %2462 = vmatmul.f32.gmra.mxu0 %v2382
        %v2463 = vpop.f32.mrf.mxu0
        %v2464 = vadd.f32 0.0, %v2463
        %2465 = vdwg.mxu0
        %v2470 = vrot.slane %v2424, 7
        %v2471 = vrot.slane %v2444, 6
        %v2472 = vrot.slane %v2464, 5
        %v2473 = vsel %vm1975, %v2404, %v2470
        %v2474 = vsel %vm1977, %v2471, %v2472
        %v2475 = vsel %vm1979, %v2473, %v2474
        %v2477 = vadd.f32 %v2385, %v2475
        %v2478 = vxor.u32 %v2477, 2147483648
        %v2479 = vmul.f32 %v2478, 1.442695
        %v2480 = vpow.pop %v2479
        %v2481 = vadd.f32 %v2480, 1.0
        %v2482 = vrcp.pop %v2481
        %v2483 = vmul.f32 %v2481, %v2482
        %v2484 = vsub.f32 1.0, %v2483
        %v2485 = vmul.f32 %v2482, %v2484
        %v2486 = vadd.f32 %v2482, %v2485
        %vm2487 = vweird.f32 %v2481
        %vm2488 = vweird.f32 %v2482
        %vm2489 = vmor %vm2487, %vm2488
        %v2490 = vsel %vm2489, %v2482, %v2486
        %v2491 = vand.u32 2147483647, %v2481
        %vm2492 = vcmp.eq.f32.partialorder %v2491, 8.507059e+37
        %v2493 = vand.u32 %v2481, 2147483648
        %v2494 = vor.u32 1.1754944e-38, %v2493
        %v2495 = vsel %vm2492, %v2494, %v2490
        %v2496 = vmul.f32 1.0, %v2495
        %v2498 = vrot.slane %v2477, 1
        %v2500 = vxor.u32 %v2498, 2147483648
        %v2501 = vmul.f32 %v2500, 1.442695
        %v2502 = vpow.pop %v2501
        %v2503 = vadd.f32 %v2502, 1.0
        %v2504 = vrcp.pop %v2503
        %v2505 = vmul.f32 %v2503, %v2504
        %v2506 = vsub.f32 1.0, %v2505
        %v2507 = vmul.f32 %v2504, %v2506
        %v2508 = vadd.f32 %v2504, %v2507
        %vm2509 = vweird.f32 %v2503
        %vm2510 = vweird.f32 %v2504
        %vm2511 = vmor %vm2509, %vm2510
        %v2512 = vsel %vm2511, %v2504, %v2508
        %v2513 = vand.u32 2147483647, %v2503
        %vm2514 = vcmp.eq.f32.partialorder %v2513, 8.507059e+37
        %v2515 = vand.u32 %v2503, 2147483648
        %v2516 = vor.u32 1.1754944e-38, %v2515
        %v2517 = vsel %vm2514, %v2516, %v2512
        %v2518 = vmul.f32 1.0, %v2517
        %v2519 = vrot.slane %v2477, 2
        %v2521 = vtanh.pop %v2519
        %v2522 = vrot.slane %v2477, 3
        %v2524 = vxor.u32 %v2522, 2147483648
        %v2525 = vmul.f32 %v2524, 1.442695
        %v2526 = vpow.pop %v2525
        %v2527 = vadd.f32 %v2526, 1.0
        %v2528 = vrcp.pop %v2527
        %v2529 = vmul.f32 %v2527, %v2528
        %v2530 = vsub.f32 1.0, %v2529
        %v2531 = vmul.f32 %v2528, %v2530
        %v2532 = vadd.f32 %v2528, %v2531
        %vm2533 = vweird.f32 %v2527
        %vm2534 = vweird.f32 %v2528
        %vm2535 = vmor %vm2533, %vm2534
        %v2536 = vsel %vm2535, %v2528, %v2532
        %v2537 = vand.u32 2147483647, %v2527
        %vm2538 = vcmp.eq.f32.partialorder %v2537, 8.507059e+37
        %v2539 = vand.u32 %v2527, 2147483648
        %v2540 = vor.u32 1.1754944e-38, %v2539
        %v2541 = vsel %vm2538, %v2540, %v2536
        %v2542 = vmul.f32 1.0, %v2541
        %v2543 = vmul.f32 %v2518, %v2380
        %v2544 = vmul.f32 %v2496, %v2521
        %v2545 = vadd.f32 %v2543, %v2544
        %v2546 = vtanh.pop %v2545
        %v2547 = vmul.f32 %v2542, %v2546
        %2548 = vst [vmem:[#allocation4 + $0x3] sm:$0x1] %v2547
        %s2549 = scalar_lea.vmem [#allocation3], 4
        %v2550 = vld [vmem:[%s2549] ss:$8 sm:$0xf]
        %2551 = vmatpush.msra.mxu0 %v1883
        %2552 = vmatpush.msra.mxu0 %v1879
        %2553 = vmatpush.msra.mxu0 %v1875
        %2554 = vmatpush.msra.mxu0 %v1871
        %2555 = vmatpush.msra.mxu0 %v1867
        %2556 = vmatpush.msra.mxu0 %v1863
        %2557 = vmatpush.msra.mxu0 %v1859
        %2558 = vmatpush.msra.mxu0 %v1855
        %2559 = vmatpush.msra.mxu0 %v1851
        %2560 = vmatpush.msra.mxu0 %v1847
        %2561 = vmatpush.msra.mxu0 %v1843
        %2562 = vmatpush.msra.mxu0 %v1839
        %2563 = vmatpush.msra.mxu0 %v1835
        %2564 = vmatpush.msra.mxu0 %v1831
        %2565 = vmatpush.msra.mxu0 %v1827
        %2566 = vmatpush.msra.mxu0 %v1823
        %2567 = vmatmul.f32.gmra.mxu0 %v2547
        %v2568 = vpop.f32.mrf.mxu0
        %v2569 = vadd.f32 0.0, %v2568
        %2570 = vdwg.mxu0
        %2571 = vmatpush.msra.mxu0 %v1884
        %2572 = vmatpush.msra.mxu0 %v1880
        %2573 = vmatpush.msra.mxu0 %v1876
        %2574 = vmatpush.msra.mxu0 %v1872
        %2575 = vmatpush.msra.mxu0 %v1868
        %2576 = vmatpush.msra.mxu0 %v1864
        %2577 = vmatpush.msra.mxu0 %v1860
        %2578 = vmatpush.msra.mxu0 %v1856
        %2579 = vmatpush.msra.mxu0 %v1852
        %2580 = vmatpush.msra.mxu0 %v1848
        %2581 = vmatpush.msra.mxu0 %v1844
        %2582 = vmatpush.msra.mxu0 %v1840
        %2583 = vmatpush.msra.mxu0 %v1836
        %2584 = vmatpush.msra.mxu0 %v1832
        %2585 = vmatpush.msra.mxu0 %v1828
        %2586 = vmatpush.msra.mxu0 %v1824
        %2587 = vmatmul.f32.gmra.mxu0 %v2547
        %v2588 = vpop.f32.mrf.mxu0
        %v2589 = vadd.f32 0.0, %v2588
        %2590 = vdwg.mxu0
        %2591 = vmatpush.msra.mxu0 %v1885
        %2592 = vmatpush.msra.mxu0 %v1881
        %2593 = vmatpush.msra.mxu0 %v1877
        %2594 = vmatpush.msra.mxu0 %v1873
        %2595 = vmatpush.msra.mxu0 %v1869
        %2596 = vmatpush.msra.mxu0 %v1865
        %2597 = vmatpush.msra.mxu0 %v1861
        %2598 = vmatpush.msra.mxu0 %v1857
        %2599 = vmatpush.msra.mxu0 %v1853
        %2600 = vmatpush.msra.mxu0 %v1849
        %2601 = vmatpush.msra.mxu0 %v1845
        %2602 = vmatpush.msra.mxu0 %v1841
        %2603 = vmatpush.msra.mxu0 %v1837
        %2604 = vmatpush.msra.mxu0 %v1833
        %2605 = vmatpush.msra.mxu0 %v1829
        %2606 = vmatpush.msra.mxu0 %v1825
        %2607 = vmatmul.f32.gmra.mxu0 %v2547
        %v2608 = vpop.f32.mrf.mxu0
        %v2609 = vadd.f32 0.0, %v2608
        %2610 = vdwg.mxu0
        %2611 = vmatpush.msra.mxu0 %v1886
        %2612 = vmatpush.msra.mxu0 %v1882
        %2613 = vmatpush.msra.mxu0 %v1878
        %2614 = vmatpush.msra.mxu0 %v1874
        %2615 = vmatpush.msra.mxu0 %v1870
        %2616 = vmatpush.msra.mxu0 %v1866
        %2617 = vmatpush.msra.mxu0 %v1862
        %2618 = vmatpush.msra.mxu0 %v1858
        %2619 = vmatpush.msra.mxu0 %v1854
        %2620 = vmatpush.msra.mxu0 %v1850
        %2621 = vmatpush.msra.mxu0 %v1846
        %2622 = vmatpush.msra.mxu0 %v1842
        %2623 = vmatpush.msra.mxu0 %v1838
        %2624 = vmatpush.msra.mxu0 %v1834
        %2625 = vmatpush.msra.mxu0 %v1830
        %2626 = vmatpush.msra.mxu0 %v1826
        %2627 = vmatmul.f32.gmra.mxu0 %v2547
        %v2628 = vpop.f32.mrf.mxu0
        %v2629 = vadd.f32 0.0, %v2628
        %2630 = vdwg.mxu0
        %v2635 = vrot.slane %v2589, 7
        %v2636 = vrot.slane %v2609, 6
        %v2637 = vrot.slane %v2629, 5
        %v2638 = vsel %vm1975, %v2569, %v2635
        %v2639 = vsel %vm1977, %v2636, %v2637
        %v2640 = vsel %vm1979, %v2638, %v2639
        %v2642 = vadd.f32 %v2550, %v2640
        %v2643 = vxor.u32 %v2642, 2147483648
        %v2644 = vmul.f32 %v2643, 1.442695
        %v2645 = vpow.pop %v2644
        %v2646 = vadd.f32 %v2645, 1.0
        %v2647 = vrcp.pop %v2646
        %v2648 = vmul.f32 %v2646, %v2647
        %v2649 = vsub.f32 1.0, %v2648
        %v2650 = vmul.f32 %v2647, %v2649
        %v2651 = vadd.f32 %v2647, %v2650
        %vm2652 = vweird.f32 %v2646
        %vm2653 = vweird.f32 %v2647
        %vm2654 = vmor %vm2652, %vm2653
        %v2655 = vsel %vm2654, %v2647, %v2651
        %v2656 = vand.u32 2147483647, %v2646
        %vm2657 = vcmp.eq.f32.partialorder %v2656, 8.507059e+37
        %v2658 = vand.u32 %v2646, 2147483648
        %v2659 = vor.u32 1.1754944e-38, %v2658
        %v2660 = vsel %vm2657, %v2659, %v2655
        %v2661 = vmul.f32 1.0, %v2660
        %v2663 = vrot.slane %v2642, 1
        %v2665 = vxor.u32 %v2663, 2147483648
        %v2666 = vmul.f32 %v2665, 1.442695
        %v2667 = vpow.pop %v2666
        %v2668 = vadd.f32 %v2667, 1.0
        %v2669 = vrcp.pop %v2668
        %v2670 = vmul.f32 %v2668, %v2669
        %v2671 = vsub.f32 1.0, %v2670
        %v2672 = vmul.f32 %v2669, %v2671
        %v2673 = vadd.f32 %v2669, %v2672
        %vm2674 = vweird.f32 %v2668
        %vm2675 = vweird.f32 %v2669
        %vm2676 = vmor %vm2674, %vm2675
        %v2677 = vsel %vm2676, %v2669, %v2673
        %v2678 = vand.u32 2147483647, %v2668
        %vm2679 = vcmp.eq.f32.partialorder %v2678, 8.507059e+37
        %v2680 = vand.u32 %v2668, 2147483648
        %v2681 = vor.u32 1.1754944e-38, %v2680
        %v2682 = vsel %vm2679, %v2681, %v2677
        %v2683 = vmul.f32 1.0, %v2682
        %v2684 = vrot.slane %v2642, 2
        %v2686 = vtanh.pop %v2684
        %v2687 = vrot.slane %v2642, 3
        %v2689 = vxor.u32 %v2687, 2147483648
        %v2690 = vmul.f32 %v2689, 1.442695
        %v2691 = vpow.pop %v2690
        %v2692 = vadd.f32 %v2691, 1.0
        %v2693 = vrcp.pop %v2692
        %v2694 = vmul.f32 %v2692, %v2693
        %v2695 = vsub.f32 1.0, %v2694
        %v2696 = vmul.f32 %v2693, %v2695
        %v2697 = vadd.f32 %v2693, %v2696
        %vm2698 = vweird.f32 %v2692
        %vm2699 = vweird.f32 %v2693
        %vm2700 = vmor %vm2698, %vm2699
        %v2701 = vsel %vm2700, %v2693, %v2697
        %v2702 = vand.u32 2147483647, %v2692
        %vm2703 = vcmp.eq.f32.partialorder %v2702, 8.507059e+37
        %v2704 = vand.u32 %v2692, 2147483648
        %v2705 = vor.u32 1.1754944e-38, %v2704
        %v2706 = vsel %vm2703, %v2705, %v2701
        %v2707 = vmul.f32 1.0, %v2706
        %v2708 = vmul.f32 %v2683, %v2545
        %v2709 = vmul.f32 %v2661, %v2686
        %v2710 = vadd.f32 %v2708, %v2709
        %v2711 = vtanh.pop %v2710
        %v2712 = vmul.f32 %v2707, %v2711
        %2713 = vst [vmem:[#allocation4 + $0x4] sm:$0x1] %v2712
        %s2714 = scalar_lea.vmem [#allocation3], 5
        %v2715 = vld [vmem:[%s2714] ss:$8 sm:$0xf]
        %2716 = vmatpush.msra.mxu0 %v1883
        %2717 = vmatpush.msra.mxu0 %v1879
        %2718 = vmatpush.msra.mxu0 %v1875
        %2719 = vmatpush.msra.mxu0 %v1871
        %2720 = vmatpush.msra.mxu0 %v1867
        %2721 = vmatpush.msra.mxu0 %v1863
        %2722 = vmatpush.msra.mxu0 %v1859
        %2723 = vmatpush.msra.mxu0 %v1855
        %2724 = vmatpush.msra.mxu0 %v1851
        %2725 = vmatpush.msra.mxu0 %v1847
        %2726 = vmatpush.msra.mxu0 %v1843
        %2727 = vmatpush.msra.mxu0 %v1839
        %2728 = vmatpush.msra.mxu0 %v1835
        %2729 = vmatpush.msra.mxu0 %v1831
        %2730 = vmatpush.msra.mxu0 %v1827
        %2731 = vmatpush.msra.mxu0 %v1823
        %2732 = vmatmul.f32.gmra.mxu0 %v2712
        %v2733 = vpop.f32.mrf.mxu0
        %v2734 = vadd.f32 0.0, %v2733
        %2735 = vdwg.mxu0
        %2736 = vmatpush.msra.mxu0 %v1884
        %2737 = vmatpush.msra.mxu0 %v1880
        %2738 = vmatpush.msra.mxu0 %v1876
        %2739 = vmatpush.msra.mxu0 %v1872
        %2740 = vmatpush.msra.mxu0 %v1868
        %2741 = vmatpush.msra.mxu0 %v1864
        %2742 = vmatpush.msra.mxu0 %v1860
        %2743 = vmatpush.msra.mxu0 %v1856
        %2744 = vmatpush.msra.mxu0 %v1852
        %2745 = vmatpush.msra.mxu0 %v1848
        %2746 = vmatpush.msra.mxu0 %v1844
        %2747 = vmatpush.msra.mxu0 %v1840
        %2748 = vmatpush.msra.mxu0 %v1836
        %2749 = vmatpush.msra.mxu0 %v1832
        %2750 = vmatpush.msra.mxu0 %v1828
        %2751 = vmatpush.msra.mxu0 %v1824
        %2752 = vmatmul.f32.gmra.mxu0 %v2712
        %v2753 = vpop.f32.mrf.mxu0
        %v2754 = vadd.f32 0.0, %v2753
        %2755 = vdwg.mxu0
        %2756 = vmatpush.msra.mxu0 %v1885
        %2757 = vmatpush.msra.mxu0 %v1881
        %2758 = vmatpush.msra.mxu0 %v1877
        %2759 = vmatpush.msra.mxu0 %v1873
        %2760 = vmatpush.msra.mxu0 %v1869
        %2761 = vmatpush.msra.mxu0 %v1865
        %2762 = vmatpush.msra.mxu0 %v1861
        %2763 = vmatpush.msra.mxu0 %v1857
        %2764 = vmatpush.msra.mxu0 %v1853
        %2765 = vmatpush.msra.mxu0 %v1849
        %2766 = vmatpush.msra.mxu0 %v1845
        %2767 = vmatpush.msra.mxu0 %v1841
        %2768 = vmatpush.msra.mxu0 %v1837
        %2769 = vmatpush.msra.mxu0 %v1833
        %2770 = vmatpush.msra.mxu0 %v1829
        %2771 = vmatpush.msra.mxu0 %v1825
        %2772 = vmatmul.f32.gmra.mxu0 %v2712
        %v2773 = vpop.f32.mrf.mxu0
        %v2774 = vadd.f32 0.0, %v2773
        %2775 = vdwg.mxu0
        %2776 = vmatpush.msra.mxu0 %v1886
        %2777 = vmatpush.msra.mxu0 %v1882
        %2778 = vmatpush.msra.mxu0 %v1878
        %2779 = vmatpush.msra.mxu0 %v1874
        %2780 = vmatpush.msra.mxu0 %v1870
        %2781 = vmatpush.msra.mxu0 %v1866
        %2782 = vmatpush.msra.mxu0 %v1862
        %2783 = vmatpush.msra.mxu0 %v1858
        %2784 = vmatpush.msra.mxu0 %v1854
        %2785 = vmatpush.msra.mxu0 %v1850
        %2786 = vmatpush.msra.mxu0 %v1846
        %2787 = vmatpush.msra.mxu0 %v1842
        %2788 = vmatpush.msra.mxu0 %v1838
        %2789 = vmatpush.msra.mxu0 %v1834
        %2790 = vmatpush.msra.mxu0 %v1830
        %2791 = vmatpush.msra.mxu0 %v1826
        %2792 = vmatmul.f32.gmra.mxu0 %v2712
        %v2793 = vpop.f32.mrf.mxu0
        %v2794 = vadd.f32 0.0, %v2793
        %2795 = vdwg.mxu0
        %v2800 = vrot.slane %v2754, 7
        %v2801 = vrot.slane %v2774, 6
        %v2802 = vrot.slane %v2794, 5
        %v2803 = vsel %vm1975, %v2734, %v2800
        %v2804 = vsel %vm1977, %v2801, %v2802
        %v2805 = vsel %vm1979, %v2803, %v2804
        %v2807 = vadd.f32 %v2715, %v2805
        %v2808 = vxor.u32 %v2807, 2147483648
        %v2809 = vmul.f32 %v2808, 1.442695
        %v2810 = vpow.pop %v2809
        %v2811 = vadd.f32 %v2810, 1.0
        %v2812 = vrcp.pop %v2811
        %v2813 = vmul.f32 %v2811, %v2812
        %v2814 = vsub.f32 1.0, %v2813
        %v2815 = vmul.f32 %v2812, %v2814
        %v2816 = vadd.f32 %v2812, %v2815
        %vm2817 = vweird.f32 %v2811
        %vm2818 = vweird.f32 %v2812
        %vm2819 = vmor %vm2817, %vm2818
        %v2820 = vsel %vm2819, %v2812, %v2816
        %v2821 = vand.u32 2147483647, %v2811
        %vm2822 = vcmp.eq.f32.partialorder %v2821, 8.507059e+37
        %v2823 = vand.u32 %v2811, 2147483648
        %v2824 = vor.u32 1.1754944e-38, %v2823
        %v2825 = vsel %vm2822, %v2824, %v2820
        %v2826 = vmul.f32 1.0, %v2825
        %v2828 = vrot.slane %v2807, 1
        %v2830 = vxor.u32 %v2828, 2147483648
        %v2831 = vmul.f32 %v2830, 1.442695
        %v2832 = vpow.pop %v2831
        %v2833 = vadd.f32 %v2832, 1.0
        %v2834 = vrcp.pop %v2833
        %v2835 = vmul.f32 %v2833, %v2834
        %v2836 = vsub.f32 1.0, %v2835
        %v2837 = vmul.f32 %v2834, %v2836
        %v2838 = vadd.f32 %v2834, %v2837
        %vm2839 = vweird.f32 %v2833
        %vm2840 = vweird.f32 %v2834
        %vm2841 = vmor %vm2839, %vm2840
        %v2842 = vsel %vm2841, %v2834, %v2838
        %v2843 = vand.u32 2147483647, %v2833
        %vm2844 = vcmp.eq.f32.partialorder %v2843, 8.507059e+37
        %v2845 = vand.u32 %v2833, 2147483648
        %v2846 = vor.u32 1.1754944e-38, %v2845
        %v2847 = vsel %vm2844, %v2846, %v2842
        %v2848 = vmul.f32 1.0, %v2847
        %v2849 = vrot.slane %v2807, 2
        %v2851 = vtanh.pop %v2849
        %v2852 = vrot.slane %v2807, 3
        %v2854 = vxor.u32 %v2852, 2147483648
        %v2855 = vmul.f32 %v2854, 1.442695
        %v2856 = vpow.pop %v2855
        %v2857 = vadd.f32 %v2856, 1.0
        %v2858 = vrcp.pop %v2857
        %v2859 = vmul.f32 %v2857, %v2858
        %v2860 = vsub.f32 1.0, %v2859
        %v2861 = vmul.f32 %v2858, %v2860
        %v2862 = vadd.f32 %v2858, %v2861
        %vm2863 = vweird.f32 %v2857
        %vm2864 = vweird.f32 %v2858
        %vm2865 = vmor %vm2863, %vm2864
        %v2866 = vsel %vm2865, %v2858, %v2862
        %v2867 = vand.u32 2147483647, %v2857
        %vm2868 = vcmp.eq.f32.partialorder %v2867, 8.507059e+37
        %v2869 = vand.u32 %v2857, 2147483648
        %v2870 = vor.u32 1.1754944e-38, %v2869
        %v2871 = vsel %vm2868, %v2870, %v2866
        %v2872 = vmul.f32 1.0, %v2871
        %v2873 = vmul.f32 %v2848, %v2710
        %v2874 = vmul.f32 %v2826, %v2851
        %v2875 = vadd.f32 %v2873, %v2874
        %v2876 = vtanh.pop %v2875
        %v2877 = vmul.f32 %v2872, %v2876
        %2878 = vst [vmem:[#allocation4 + $0x5] sm:$0x1] %v2877
        %s2879 = scalar_lea.vmem [#allocation3], 6
        %v2880 = vld [vmem:[%s2879] ss:$8 sm:$0xf]
        %2881 = vmatpush.msra.mxu0 %v1883
        %2882 = vmatpush.msra.mxu0 %v1879
        %2883 = vmatpush.msra.mxu0 %v1875
        %2884 = vmatpush.msra.mxu0 %v1871
        %2885 = vmatpush.msra.mxu0 %v1867
        %2886 = vmatpush.msra.mxu0 %v1863
        %2887 = vmatpush.msra.mxu0 %v1859
        %2888 = vmatpush.msra.mxu0 %v1855
        %2889 = vmatpush.msra.mxu0 %v1851
        %2890 = vmatpush.msra.mxu0 %v1847
        %2891 = vmatpush.msra.mxu0 %v1843
        %2892 = vmatpush.msra.mxu0 %v1839
        %2893 = vmatpush.msra.mxu0 %v1835
        %2894 = vmatpush.msra.mxu0 %v1831
        %2895 = vmatpush.msra.mxu0 %v1827
        %2896 = vmatpush.msra.mxu0 %v1823
        %2897 = vmatmul.f32.gmra.mxu0 %v2877
        %v2898 = vpop.f32.mrf.mxu0
        %v2899 = vadd.f32 0.0, %v2898
        %2900 = vdwg.mxu0
        %2901 = vmatpush.msra.mxu0 %v1884
        %2902 = vmatpush.msra.mxu0 %v1880
        %2903 = vmatpush.msra.mxu0 %v1876
        %2904 = vmatpush.msra.mxu0 %v1872
        %2905 = vmatpush.msra.mxu0 %v1868
        %2906 = vmatpush.msra.mxu0 %v1864
        %2907 = vmatpush.msra.mxu0 %v1860
        %2908 = vmatpush.msra.mxu0 %v1856
        %2909 = vmatpush.msra.mxu0 %v1852
        %2910 = vmatpush.msra.mxu0 %v1848
        %2911 = vmatpush.msra.mxu0 %v1844
        %2912 = vmatpush.msra.mxu0 %v1840
        %2913 = vmatpush.msra.mxu0 %v1836
        %2914 = vmatpush.msra.mxu0 %v1832
        %2915 = vmatpush.msra.mxu0 %v1828
        %2916 = vmatpush.msra.mxu0 %v1824
        %2917 = vmatmul.f32.gmra.mxu0 %v2877
        %v2918 = vpop.f32.mrf.mxu0
        %v2919 = vadd.f32 0.0, %v2918
        %2920 = vdwg.mxu0
        %2921 = vmatpush.msra.mxu0 %v1885
        %2922 = vmatpush.msra.mxu0 %v1881
        %2923 = vmatpush.msra.mxu0 %v1877
        %2924 = vmatpush.msra.mxu0 %v1873
        %2925 = vmatpush.msra.mxu0 %v1869
        %2926 = vmatpush.msra.mxu0 %v1865
        %2927 = vmatpush.msra.mxu0 %v1861
        %2928 = vmatpush.msra.mxu0 %v1857
        %2929 = vmatpush.msra.mxu0 %v1853
        %2930 = vmatpush.msra.mxu0 %v1849
        %2931 = vmatpush.msra.mxu0 %v1845
        %2932 = vmatpush.msra.mxu0 %v1841
        %2933 = vmatpush.msra.mxu0 %v1837
        %2934 = vmatpush.msra.mxu0 %v1833
        %2935 = vmatpush.msra.mxu0 %v1829
        %2936 = vmatpush.msra.mxu0 %v1825
        %2937 = vmatmul.f32.gmra.mxu0 %v2877
        %v2938 = vpop.f32.mrf.mxu0
        %v2939 = vadd.f32 0.0, %v2938
        %2940 = vdwg.mxu0
        %2941 = vmatpush.msra.mxu0 %v1886
        %2942 = vmatpush.msra.mxu0 %v1882
        %2943 = vmatpush.msra.mxu0 %v1878
        %2944 = vmatpush.msra.mxu0 %v1874
        %2945 = vmatpush.msra.mxu0 %v1870
        %2946 = vmatpush.msra.mxu0 %v1866
        %2947 = vmatpush.msra.mxu0 %v1862
        %2948 = vmatpush.msra.mxu0 %v1858
        %2949 = vmatpush.msra.mxu0 %v1854
        %2950 = vmatpush.msra.mxu0 %v1850
        %2951 = vmatpush.msra.mxu0 %v1846
        %2952 = vmatpush.msra.mxu0 %v1842
        %2953 = vmatpush.msra.mxu0 %v1838
        %2954 = vmatpush.msra.mxu0 %v1834
        %2955 = vmatpush.msra.mxu0 %v1830
        %2956 = vmatpush.msra.mxu0 %v1826
        %2957 = vmatmul.f32.gmra.mxu0 %v2877
        %v2958 = vpop.f32.mrf.mxu0
        %v2959 = vadd.f32 0.0, %v2958
        %2960 = vdwg.mxu0
        %v2965 = vrot.slane %v2919, 7
        %v2966 = vrot.slane %v2939, 6
        %v2967 = vrot.slane %v2959, 5
        %v2968 = vsel %vm1975, %v2899, %v2965
        %v2969 = vsel %vm1977, %v2966, %v2967
        %v2970 = vsel %vm1979, %v2968, %v2969
        %v2972 = vadd.f32 %v2880, %v2970
        %v2973 = vxor.u32 %v2972, 2147483648
        %v2974 = vmul.f32 %v2973, 1.442695
        %v2975 = vpow.pop %v2974
        %v2976 = vadd.f32 %v2975, 1.0
        %v2977 = vrcp.pop %v2976
        %v2978 = vmul.f32 %v2976, %v2977
        %v2979 = vsub.f32 1.0, %v2978
        %v2980 = vmul.f32 %v2977, %v2979
        %v2981 = vadd.f32 %v2977, %v2980
        %vm2982 = vweird.f32 %v2976
        %vm2983 = vweird.f32 %v2977
        %vm2984 = vmor %vm2982, %vm2983
        %v2985 = vsel %vm2984, %v2977, %v2981
        %v2986 = vand.u32 2147483647, %v2976
        %vm2987 = vcmp.eq.f32.partialorder %v2986, 8.507059e+37
        %v2988 = vand.u32 %v2976, 2147483648
        %v2989 = vor.u32 1.1754944e-38, %v2988
        %v2990 = vsel %vm2987, %v2989, %v2985
        %v2991 = vmul.f32 1.0, %v2990
        %v2993 = vrot.slane %v2972, 1
        %v2995 = vxor.u32 %v2993, 2147483648
        %v2996 = vmul.f32 %v2995, 1.442695
        %v2997 = vpow.pop %v2996
        %v2998 = vadd.f32 %v2997, 1.0
        %v2999 = vrcp.pop %v2998
        %v3000 = vmul.f32 %v2998, %v2999
        %v3001 = vsub.f32 1.0, %v3000
        %v3002 = vmul.f32 %v2999, %v3001
        %v3003 = vadd.f32 %v2999, %v3002
        %vm3004 = vweird.f32 %v2998
        %vm3005 = vweird.f32 %v2999
        %vm3006 = vmor %vm3004, %vm3005
        %v3007 = vsel %vm3006, %v2999, %v3003
        %v3008 = vand.u32 2147483647, %v2998
        %vm3009 = vcmp.eq.f32.partialorder %v3008, 8.507059e+37
        %v3010 = vand.u32 %v2998, 2147483648
        %v3011 = vor.u32 1.1754944e-38, %v3010
        %v3012 = vsel %vm3009, %v3011, %v3007
        %v3013 = vmul.f32 1.0, %v3012
        %v3014 = vrot.slane %v2972, 2
        %v3016 = vtanh.pop %v3014
        %v3017 = vrot.slane %v2972, 3
        %v3019 = vxor.u32 %v3017, 2147483648
        %v3020 = vmul.f32 %v3019, 1.442695
        %v3021 = vpow.pop %v3020
        %v3022 = vadd.f32 %v3021, 1.0
        %v3023 = vrcp.pop %v3022
        %v3024 = vmul.f32 %v3022, %v3023
        %v3025 = vsub.f32 1.0, %v3024
        %v3026 = vmul.f32 %v3023, %v3025
        %v3027 = vadd.f32 %v3023, %v3026
        %vm3028 = vweird.f32 %v3022
        %vm3029 = vweird.f32 %v3023
        %vm3030 = vmor %vm3028, %vm3029
        %v3031 = vsel %vm3030, %v3023, %v3027
        %v3032 = vand.u32 2147483647, %v3022
        %vm3033 = vcmp.eq.f32.partialorder %v3032, 8.507059e+37
        %v3034 = vand.u32 %v3022, 2147483648
        %v3035 = vor.u32 1.1754944e-38, %v3034
        %v3036 = vsel %vm3033, %v3035, %v3031
        %v3037 = vmul.f32 1.0, %v3036
        %v3038 = vmul.f32 %v3013, %v2875
        %v3039 = vmul.f32 %v2991, %v3016
        %v3040 = vadd.f32 %v3038, %v3039
        %v3041 = vtanh.pop %v3040
        %v3042 = vmul.f32 %v3037, %v3041
        %3043 = vst [vmem:[#allocation4 + $0x6] sm:$0x1] %v3042
        %s3044 = scalar_lea.vmem [#allocation3], 7
        %v3045 = vld [vmem:[%s3044] ss:$8 sm:$0xf]
        %3046 = vmatpush.msra.mxu0 %v1883
        %3047 = vmatpush.msra.mxu0 %v1879
        %3048 = vmatpush.msra.mxu0 %v1875
        %3049 = vmatpush.msra.mxu0 %v1871
        %3050 = vmatpush.msra.mxu0 %v1867
        %3051 = vmatpush.msra.mxu0 %v1863
        %3052 = vmatpush.msra.mxu0 %v1859
        %3053 = vmatpush.msra.mxu0 %v1855
        %3054 = vmatpush.msra.mxu0 %v1851
        %3055 = vmatpush.msra.mxu0 %v1847
        %3056 = vmatpush.msra.mxu0 %v1843
        %3057 = vmatpush.msra.mxu0 %v1839
        %3058 = vmatpush.msra.mxu0 %v1835
        %3059 = vmatpush.msra.mxu0 %v1831
        %3060 = vmatpush.msra.mxu0 %v1827
        %3061 = vmatpush.msra.mxu0 %v1823
        %3062 = vmatmul.f32.gmra.mxu0 %v3042
        %v3063 = vpop.f32.mrf.mxu0
        %v3064 = vadd.f32 0.0, %v3063
        %3065 = vdwg.mxu0
        %3066 = vmatpush.msra.mxu0 %v1884
        %3067 = vmatpush.msra.mxu0 %v1880
        %3068 = vmatpush.msra.mxu0 %v1876
        %3069 = vmatpush.msra.mxu0 %v1872
        %3070 = vmatpush.msra.mxu0 %v1868
        %3071 = vmatpush.msra.mxu0 %v1864
        %3072 = vmatpush.msra.mxu0 %v1860
        %3073 = vmatpush.msra.mxu0 %v1856
        %3074 = vmatpush.msra.mxu0 %v1852
        %3075 = vmatpush.msra.mxu0 %v1848
        %3076 = vmatpush.msra.mxu0 %v1844
        %3077 = vmatpush.msra.mxu0 %v1840
        %3078 = vmatpush.msra.mxu0 %v1836
        %3079 = vmatpush.msra.mxu0 %v1832
        %3080 = vmatpush.msra.mxu0 %v1828
        %3081 = vmatpush.msra.mxu0 %v1824
        %3082 = vmatmul.f32.gmra.mxu0 %v3042
        %v3083 = vpop.f32.mrf.mxu0
        %v3084 = vadd.f32 0.0, %v3083
        %3085 = vdwg.mxu0
        %3086 = vmatpush.msra.mxu0 %v1885
        %3087 = vmatpush.msra.mxu0 %v1881
        %3088 = vmatpush.msra.mxu0 %v1877
        %3089 = vmatpush.msra.mxu0 %v1873
        %3090 = vmatpush.msra.mxu0 %v1869
        %3091 = vmatpush.msra.mxu0 %v1865
        %3092 = vmatpush.msra.mxu0 %v1861
        %3093 = vmatpush.msra.mxu0 %v1857
        %3094 = vmatpush.msra.mxu0 %v1853
        %3095 = vmatpush.msra.mxu0 %v1849
        %3096 = vmatpush.msra.mxu0 %v1845
        %3097 = vmatpush.msra.mxu0 %v1841
        %3098 = vmatpush.msra.mxu0 %v1837
        %3099 = vmatpush.msra.mxu0 %v1833
        %3100 = vmatpush.msra.mxu0 %v1829
        %3101 = vmatpush.msra.mxu0 %v1825
        %3102 = vmatmul.f32.gmra.mxu0 %v3042
        %v3103 = vpop.f32.mrf.mxu0
        %v3104 = vadd.f32 0.0, %v3103
        %3105 = vdwg.mxu0
        %3106 = vmatpush.msra.mxu0 %v1886
        %3107 = vmatpush.msra.mxu0 %v1882
        %3108 = vmatpush.msra.mxu0 %v1878
        %3109 = vmatpush.msra.mxu0 %v1874
        %3110 = vmatpush.msra.mxu0 %v1870
        %3111 = vmatpush.msra.mxu0 %v1866
        %3112 = vmatpush.msra.mxu0 %v1862
        %3113 = vmatpush.msra.mxu0 %v1858
        %3114 = vmatpush.msra.mxu0 %v1854
        %3115 = vmatpush.msra.mxu0 %v1850
        %3116 = vmatpush.msra.mxu0 %v1846
        %3117 = vmatpush.msra.mxu0 %v1842
        %3118 = vmatpush.msra.mxu0 %v1838
        %3119 = vmatpush.msra.mxu0 %v1834
        %3120 = vmatpush.msra.mxu0 %v1830
        %3121 = vmatpush.msra.mxu0 %v1826
        %3122 = vmatmul.f32.gmra.mxu0 %v3042
        %v3123 = vpop.f32.mrf.mxu0
        %v3124 = vadd.f32 0.0, %v3123
        %3125 = vdwg.mxu0
        %v3130 = vrot.slane %v3084, 7
        %v3131 = vrot.slane %v3104, 6
        %v3132 = vrot.slane %v3124, 5
        %v3133 = vsel %vm1975, %v3064, %v3130
        %v3134 = vsel %vm1977, %v3131, %v3132
        %v3135 = vsel %vm1979, %v3133, %v3134
        %v3137 = vadd.f32 %v3045, %v3135
        %v3138 = vxor.u32 %v3137, 2147483648
        %v3139 = vmul.f32 %v3138, 1.442695
        %v3140 = vpow.pop %v3139
        %v3141 = vadd.f32 %v3140, 1.0
        %v3142 = vrcp.pop %v3141
        %v3143 = vmul.f32 %v3141, %v3142
        %v3144 = vsub.f32 1.0, %v3143
        %v3145 = vmul.f32 %v3142, %v3144
        %v3146 = vadd.f32 %v3142, %v3145
        %vm3147 = vweird.f32 %v3141
        %vm3148 = vweird.f32 %v3142
        %vm3149 = vmor %vm3147, %vm3148
        %v3150 = vsel %vm3149, %v3142, %v3146
        %v3151 = vand.u32 2147483647, %v3141
        %vm3152 = vcmp.eq.f32.partialorder %v3151, 8.507059e+37
        %v3153 = vand.u32 %v3141, 2147483648
        %v3154 = vor.u32 1.1754944e-38, %v3153
        %v3155 = vsel %vm3152, %v3154, %v3150
        %v3156 = vmul.f32 1.0, %v3155
        %v3158 = vrot.slane %v3137, 1
        %v3160 = vxor.u32 %v3158, 2147483648
        %v3161 = vmul.f32 %v3160, 1.442695
        %v3162 = vpow.pop %v3161
        %v3163 = vadd.f32 %v3162, 1.0
        %v3164 = vrcp.pop %v3163
        %v3165 = vmul.f32 %v3163, %v3164
        %v3166 = vsub.f32 1.0, %v3165
        %v3167 = vmul.f32 %v3164, %v3166
        %v3168 = vadd.f32 %v3164, %v3167
        %vm3169 = vweird.f32 %v3163
        %vm3170 = vweird.f32 %v3164
        %vm3171 = vmor %vm3169, %vm3170
        %v3172 = vsel %vm3171, %v3164, %v3168
        %v3173 = vand.u32 2147483647, %v3163
        %vm3174 = vcmp.eq.f32.partialorder %v3173, 8.507059e+37
        %v3175 = vand.u32 %v3163, 2147483648
        %v3176 = vor.u32 1.1754944e-38, %v3175
        %v3177 = vsel %vm3174, %v3176, %v3172
        %v3178 = vmul.f32 1.0, %v3177
        %v3179 = vrot.slane %v3137, 2
        %v3181 = vtanh.pop %v3179
        %v3182 = vrot.slane %v3137, 3
        %v3184 = vxor.u32 %v3182, 2147483648
        %v3185 = vmul.f32 %v3184, 1.442695
        %v3186 = vpow.pop %v3185
        %v3187 = vadd.f32 %v3186, 1.0
        %v3188 = vrcp.pop %v3187
        %v3189 = vmul.f32 %v3187, %v3188
        %v3190 = vsub.f32 1.0, %v3189
        %v3191 = vmul.f32 %v3188, %v3190
        %v3192 = vadd.f32 %v3188, %v3191
        %vm3193 = vweird.f32 %v3187
        %vm3194 = vweird.f32 %v3188
        %vm3195 = vmor %vm3193, %vm3194
        %v3196 = vsel %vm3195, %v3188, %v3192
        %v3197 = vand.u32 2147483647, %v3187
        %vm3198 = vcmp.eq.f32.partialorder %v3197, 8.507059e+37
        %v3199 = vand.u32 %v3187, 2147483648
        %v3200 = vor.u32 1.1754944e-38, %v3199
        %v3201 = vsel %vm3198, %v3200, %v3196
        %v3202 = vmul.f32 1.0, %v3201
        %v3203 = vmul.f32 %v3178, %v3040
        %v3204 = vmul.f32 %v3156, %v3181
        %v3205 = vadd.f32 %v3203, %v3204
        %v3206 = vtanh.pop %v3205
        %v3207 = vmul.f32 %v3202, %v3206
        %3208 = vst [vmem:[#allocation4 + $0x7] sm:$0x1] %v3207
        %v3209 = vld [vmem:[#allocation4] sm:$0xff]
        %v3210 = vadd.f32 %v3209, %v1634
        %v3211 = vld [vmem:[%s856] sm:$0xff]
        %v3212 = vld [vmem:[%s856 + $0x8] sm:$0xff]
        %v3213 = vld [vmem:[%s856 + $0x10] sm:$0xff]
        %v3214 = vld [vmem:[%s856 + $0x18] sm:$0xff]
        %v3215 = vld [vmem:[%s856 + $0x20] sm:$0xff]
        %v3216 = vld [vmem:[%s856 + $0x28] sm:$0xff]
        %v3217 = vld [vmem:[%s856 + $0x30] sm:$0xff]
        %v3218 = vld [vmem:[%s856 + $0x38] sm:$0xff]
        %v3219 = vld [vmem:[%s856 + $0x40] sm:$0xff]
        %v3220 = vld [vmem:[%s856 + $0x48] sm:$0xff]
        %v3221 = vld [vmem:[%s856 + $0x50] sm:$0xff]
        %v3222 = vld [vmem:[%s856 + $0x58] sm:$0xff]
        %v3223 = vld [vmem:[%s856 + $0x60] sm:$0xff]
        %v3224 = vld [vmem:[%s856 + $0x68] sm:$0xff]
        %v3225 = vld [vmem:[%s856 + $0x70] sm:$0xff]
        %v3226 = vld [vmem:[%s856 + $0x78] sm:$0xff]
        %v3227 = vld [vmem:[%s856 + $0x80] sm:$0xff]
        %v3228 = vld [vmem:[%s856 + $0x88] sm:$0xff]
        %v3229 = vld [vmem:[%s856 + $0x90] sm:$0xff]
        %v3230 = vld [vmem:[%s856 + $0x98] sm:$0xff]
        %v3231 = vld [vmem:[%s856 + $0xa0] sm:$0xff]
        %v3232 = vld [vmem:[%s856 + $0xa8] sm:$0xff]
        %v3233 = vld [vmem:[%s856 + $0xb0] sm:$0xff]
        %v3234 = vld [vmem:[%s856 + $0xb8] sm:$0xff]
        %v3235 = vld [vmem:[%s856 + $0xc0] sm:$0xff]
        %v3236 = vld [vmem:[%s856 + $0xc8] sm:$0xff]
        %v3237 = vld [vmem:[%s856 + $0xd0] sm:$0xff]
        %v3238 = vld [vmem:[%s856 + $0xd8] sm:$0xff]
        %v3239 = vld [vmem:[%s856 + $0xe0] sm:$0xff]
        %v3240 = vld [vmem:[%s856 + $0xe8] sm:$0xff]
        %v3241 = vld [vmem:[%s856 + $0xf0] sm:$0xff]
        %v3242 = vld [vmem:[%s856 + $0xf8] sm:$0xff]
        %v3243 = vld [vmem:[%s1034] sm:$0x3]
        %v3245 = vperm.slane %v3243, 0
        %v3246 = vperm.slane %v3243, 1
        %3249 = vmatpush.msra.mxu0 %v3241
        %3250 = vmatpush.msra.mxu0 %v3239
        %3251 = vmatpush.msra.mxu0 %v3237
        %3252 = vmatpush.msra.mxu0 %v3235
        %3253 = vmatpush.msra.mxu0 %v3233
        %3254 = vmatpush.msra.mxu0 %v3231
        %3255 = vmatpush.msra.mxu0 %v3229
        %3256 = vmatpush.msra.mxu0 %v3227
        %3257 = vmatpush.msra.mxu0 %v3225
        %3258 = vmatpush.msra.mxu0 %v3223
        %3259 = vmatpush.msra.mxu0 %v3221
        %3260 = vmatpush.msra.mxu0 %v3219
        %3261 = vmatpush.msra.mxu0 %v3217
        %3262 = vmatpush.msra.mxu0 %v3215
        %3263 = vmatpush.msra.mxu0 %v3213
        %3264 = vmatpush.msra.mxu0 %v3211
        %3265 = vmatmul.f32.gmra.mxu0 %v3210
        %v3266 = vpop.f32.mrf.mxu0
        %v3267 = vadd.f32 %v3245, %v3266
        %3268 = vdwg.mxu0
        %3269 = vmatpush.msra.mxu0 %v3242
        %3270 = vmatpush.msra.mxu0 %v3240
        %3271 = vmatpush.msra.mxu0 %v3238
        %3272 = vmatpush.msra.mxu0 %v3236
        %3273 = vmatpush.msra.mxu0 %v3234
        %3274 = vmatpush.msra.mxu0 %v3232
        %3275 = vmatpush.msra.mxu0 %v3230
        %3276 = vmatpush.msra.mxu0 %v3228
        %3277 = vmatpush.msra.mxu0 %v3226
        %3278 = vmatpush.msra.mxu0 %v3224
        %3279 = vmatpush.msra.mxu0 %v3222
        %3280 = vmatpush.msra.mxu0 %v3220
        %3281 = vmatpush.msra.mxu0 %v3218
        %3282 = vmatpush.msra.mxu0 %v3216
        %3283 = vmatpush.msra.mxu0 %v3214
        %3284 = vmatpush.msra.mxu0 %v3212
        %3285 = vmatmul.f32.gmra.mxu0 %v3210
        %v3286 = vpop.f32.mrf.mxu0
        %v3287 = vadd.f32 %v3246, %v3286
        %3288 = vdwg.mxu0
        %v3289 = vmul.f32 %v3267, 0.5
        %v3290 = vmul.f32 %v3287, 0.5
        %v3291 = vmul.f32 %v3267, 0.70710677
        %v3292 = vmul.f32 %v3287, 0.70710677
        %v3293 = vmul.f32 %v3291, %v3291
        %v3294 = vmin.f32 16.0, %v3293
        %v3295 = vmul.f32 %v3294, 2.1237322e-06
        %v3296 = vadd.f32 %v3295, 0.00028619796
        %v3297 = vmul.f32 %v3294, %v3296
        %v3298 = vadd.f32 %v3297, 0.0036580483
        %v3299 = vmul.f32 %v3294, %v3298
        %v3300 = vadd.f32 %v3299, 0.05243302
        %v3301 = vmul.f32 %v3294, %v3300
        %v3302 = vadd.f32 %v3301, 0.18741608
        %v3303 = vmul.f32 %v3294, %v3302
        %v3304 = vadd.f32 %v3303, 1.1283791
        %v3305 = vmul.f32 %v3291, %v3304
        %v3306 = vmul.f32 %v3294, 3.8918573e-05
        %v3307 = vadd.f32 %v3306, 0.001143296
        %v3308 = vmul.f32 %v3294, %v3307
        %v3309 = vadd.f32 %v3308, 0.014752088
        %v3310 = vmul.f32 %v3294, %v3309
        %v3311 = vadd.f32 %v3310, 0.112945676
        %v3312 = vmul.f32 %v3294, %v3311
        %v3313 = vadd.f32 %v3312, 0.4994258
        %v3314 = vmul.f32 %v3294, %v3313
        %v3315 = vadd.f32 %v3314, 1.0
        %v3316 = vrcp.pop %v3315
        %v3317 = vmul.f32 %v3315, %v3316
        %v3318 = vsub.f32 1.0, %v3317
        %v3319 = vmul.f32 %v3316, %v3318
        %v3320 = vadd.f32 %v3316, %v3319
        %vm3321 = vweird.f32 %v3315
        %vm3322 = vweird.f32 %v3316
        %vm3323 = vmor %vm3321, %vm3322
        %v3324 = vsel %vm3323, %v3316, %v3320
        %v3325 = vand.u32 2147483647, %v3315
        %vm3326 = vcmp.eq.f32.partialorder %v3325, 8.507059e+37
        %v3327 = vand.u32 %v3315, 2147483648
        %v3328 = vor.u32 1.1754944e-38, %v3327
        %v3329 = vsel %vm3326, %v3328, %v3324
        %v3330 = vmul.f32 %v3305, %v3329
        %v3331 = vmin.f32 %v3330, 1.0
        %v3332 = vmax.f32 %v3331, -1.0
        %v3333 = vmul.f32 %v3292, %v3292
        %v3334 = vmin.f32 16.0, %v3333
        %v3335 = vmul.f32 %v3334, 2.1237322e-06
        %v3336 = vadd.f32 %v3335, 0.00028619796
        %v3337 = vmul.f32 %v3334, %v3336
        %v3338 = vadd.f32 %v3337, 0.0036580483
        %v3339 = vmul.f32 %v3334, %v3338
        %v3340 = vadd.f32 %v3339, 0.05243302
        %v3341 = vmul.f32 %v3334, %v3340
        %v3342 = vadd.f32 %v3341, 0.18741608
        %v3343 = vmul.f32 %v3334, %v3342
        %v3344 = vadd.f32 %v3343, 1.1283791
        %v3345 = vmul.f32 %v3292, %v3344
        %v3346 = vmul.f32 %v3334, 3.8918573e-05
        %v3347 = vadd.f32 %v3346, 0.001143296
        %v3348 = vmul.f32 %v3334, %v3347
        %v3349 = vadd.f32 %v3348, 0.014752088
        %v3350 = vmul.f32 %v3334, %v3349
        %v3351 = vadd.f32 %v3350, 0.112945676
        %v3352 = vmul.f32 %v3334, %v3351
        %v3353 = vadd.f32 %v3352, 0.4994258
        %v3354 = vmul.f32 %v3334, %v3353
        %v3355 = vadd.f32 %v3354, 1.0
        %v3356 = vrcp.pop %v3355
        %v3357 = vmul.f32 %v3355, %v3356
        %v3358 = vsub.f32 1.0, %v3357
        %v3359 = vmul.f32 %v3356, %v3358
        %v3360 = vadd.f32 %v3356, %v3359
        %vm3361 = vweird.f32 %v3355
        %vm3362 = vweird.f32 %v3356
        %vm3363 = vmor %vm3361, %vm3362
        %v3364 = vsel %vm3363, %v3356, %v3360
        %v3365 = vand.u32 2147483647, %v3355
        %vm3366 = vcmp.eq.f32.partialorder %v3365, 8.507059e+37
        %v3367 = vand.u32 %v3355, 2147483648
        %v3368 = vor.u32 1.1754944e-38, %v3367
        %v3369 = vsel %vm3366, %v3368, %v3364
        %v3370 = vmul.f32 %v3345, %v3369
        %v3371 = vmin.f32 %v3370, 1.0
        %v3372 = vmax.f32 %v3371, -1.0
        %v3373 = vadd.f32 %v3332, 1.0
        %v3374 = vadd.f32 %v3372, 1.0
        %v3375 = vmul.f32 %v3289, %v3373
        %v3376 = vmul.f32 %v3290, %v3374
        %v3377 = vld [vmem:[%s866] sm:$0xff]
        %v3378 = vld [vmem:[%s866 + $0x8] sm:$0xff]
        %v3379 = vld [vmem:[%s866 + $0x10] sm:$0xff]
        %v3380 = vld [vmem:[%s866 + $0x18] sm:$0xff]
        %v3381 = vld [vmem:[%s866 + $0x20] sm:$0xff]
        %v3382 = vld [vmem:[%s866 + $0x28] sm:$0xff]
        %v3383 = vld [vmem:[%s866 + $0x30] sm:$0xff]
        %v3384 = vld [vmem:[%s866 + $0x38] sm:$0xff]
        %v3385 = vld [vmem:[%s866 + $0x40] sm:$0xff]
        %v3386 = vld [vmem:[%s866 + $0x48] sm:$0xff]
        %v3387 = vld [vmem:[%s866 + $0x50] sm:$0xff]
        %v3388 = vld [vmem:[%s866 + $0x58] sm:$0xff]
        %v3389 = vld [vmem:[%s866 + $0x60] sm:$0xff]
        %v3390 = vld [vmem:[%s866 + $0x68] sm:$0xff]
        %v3391 = vld [vmem:[%s866 + $0x70] sm:$0xff]
        %v3392 = vld [vmem:[%s866 + $0x78] sm:$0xff]
        %v3393 = vld [vmem:[%s866 + $0x80] sm:$0xff]
        %v3394 = vld [vmem:[%s866 + $0x88] sm:$0xff]
        %v3395 = vld [vmem:[%s866 + $0x90] sm:$0xff]
        %v3396 = vld [vmem:[%s866 + $0x98] sm:$0xff]
        %v3397 = vld [vmem:[%s866 + $0xa0] sm:$0xff]
        %v3398 = vld [vmem:[%s866 + $0xa8] sm:$0xff]
        %v3399 = vld [vmem:[%s866 + $0xb0] sm:$0xff]
        %v3400 = vld [vmem:[%s866 + $0xb8] sm:$0xff]
        %v3401 = vld [vmem:[%s866 + $0xc0] sm:$0xff]
        %v3402 = vld [vmem:[%s866 + $0xc8] sm:$0xff]
        %v3403 = vld [vmem:[%s866 + $0xd0] sm:$0xff]
        %v3404 = vld [vmem:[%s866 + $0xd8] sm:$0xff]
        %v3405 = vld [vmem:[%s866 + $0xe0] sm:$0xff]
        %v3406 = vld [vmem:[%s866 + $0xe8] sm:$0xff]
        %v3407 = vld [vmem:[%s866 + $0xf0] sm:$0xff]
        %v3408 = vld [vmem:[%s866 + $0xf8] sm:$0xff]
        %v3409 = vld [vmem:[%s1037] sm:$0x1]
        %v3411 = vperm.slane %v3409, 0
        %3413 = vmatpush.msra.mxu0 %v3392
        %3414 = vmatpush.msra.mxu0 %v3391
        %3415 = vmatpush.msra.mxu0 %v3390
        %3416 = vmatpush.msra.mxu0 %v3389
        %3417 = vmatpush.msra.mxu0 %v3388
        %3418 = vmatpush.msra.mxu0 %v3387
        %3419 = vmatpush.msra.mxu0 %v3386
        %3420 = vmatpush.msra.mxu0 %v3385
        %3421 = vmatpush.msra.mxu0 %v3384
        %3422 = vmatpush.msra.mxu0 %v3383
        %3423 = vmatpush.msra.mxu0 %v3382
        %3424 = vmatpush.msra.mxu0 %v3381
        %3425 = vmatpush.msra.mxu0 %v3380
        %3426 = vmatpush.msra.mxu0 %v3379
        %3427 = vmatpush.msra.mxu0 %v3378
        %3428 = vmatpush.msra.mxu0 %v3377
        %3429 = vmatmul.f32.gmra.mxu0 %v3375
        %v3430 = vpop.f32.mrf.mxu0
        %v3431 = vadd.f32 %v3411, %v3430
        %3432 = vdwg.mxu0
        %3433 = vmatpush.msra.mxu0 %v3408
        %3434 = vmatpush.msra.mxu0 %v3407
        %3435 = vmatpush.msra.mxu0 %v3406
        %3436 = vmatpush.msra.mxu0 %v3405
        %3437 = vmatpush.msra.mxu0 %v3404
        %3438 = vmatpush.msra.mxu0 %v3403
        %3439 = vmatpush.msra.mxu0 %v3402
        %3440 = vmatpush.msra.mxu0 %v3401
        %3441 = vmatpush.msra.mxu0 %v3400
        %3442 = vmatpush.msra.mxu0 %v3399
        %3443 = vmatpush.msra.mxu0 %v3398
        %3444 = vmatpush.msra.mxu0 %v3397
        %3445 = vmatpush.msra.mxu0 %v3396
        %3446 = vmatpush.msra.mxu0 %v3395
        %3447 = vmatpush.msra.mxu0 %v3394
        %3448 = vmatpush.msra.mxu0 %v3393
        %3449 = vmatmul.f32.gmra.mxu0 %v3376
        %v3450 = vpop.f32.mrf.mxu0
        %v3451 = vadd.f32 %v3431, %v3450
        %3452 = vdwg.mxu0
        %v3453 = vadd.f32 %v3451, %v3210
        %3454 = vst [vmem:[#allocation2] sm:$0xff] %v3453
        %p3455 = scmp.eq.s32.totalorder %s47, 1
        // Predicated region
        $region125: #{seq2seq_forward.4} parent=95 // pred_check
          %p3456 = pneg %p3455
        $region126: #{seq2seq_forward.4} parent=95 // pred_check_branch
          %3458 = sbr.rel (%p3456) target = $region128
        $region127: #{seq2seq_forward.4} parent=95 // pred_region
          %3459 = vst [vmem:[%s1041] sm:$0xff] %v3453
        $region128: #{seq2seq_forward.4} parent=95 // pred_fallthru
          _
        %p3460 = scmp.lt.s32.totalorder %s46, 1
        %s3461 = scalar_select %p3460, %s46, 1
        %s3462 = smul.addr %s3461, 8
        %s3463 = scalar_lea.vmem %s19, %s3462
        // Predicated region
        $region129: #{seq2seq_forward.4} parent=95 // pred_check
          %p3464 = pneg %p566
        $region130: #{seq2seq_forward.4} parent=95 // pred_check_branch
          %3466 = sbr.rel (%p3464) target = $region132
        $region131: #{seq2seq_forward.4} parent=95 // pred_region
          _
        $region132: #{seq2seq_forward.4} parent=95 // pred_fallthru
          _
      $region96: #{seq2seq_forward.4} parent=5 // pred_fallthru
        _
      %p3467 = scmp.le.s32.totalorder 2, %s37
      // Predicated region
      $region133: #{seq2seq_forward.4} parent=5 // pred_check
        %p3468 = pneg %p3467
      $region134: #{seq2seq_forward.4} parent=5 // pred_check_branch
        %3470 = sbr.rel (%p3468) target = $region136
      $region135: #{seq2seq_forward.4} parent=5 // pred_region
        %s3471 = ssub.s32 %s37, 2
        // Predicated region
        $region137: #{seq2seq_forward.4} parent=135 // pred_check
          %p3472 = pneg %p572
        $region138: #{seq2seq_forward.4} parent=135 // pred_check_branch
          %3474 = sbr.rel (%p3472) target = $region140
        $region139: #{seq2seq_forward.4} parent=135 // pred_region
          %p3475 = scmp.lt.s32.totalorder %s48, 1
          %s3476 = scalar_select %p3475, %s48, 1
          %s3477 = smul.addr %s3476, 8
          %s3478 = scalar_lea.vmem %s19, %s3477
        $region140: #{seq2seq_forward.4} parent=135 // pred_fallthru
          _
      $region136: #{seq2seq_forward.4} parent=5 // pred_fallthru
        _
    $region6: #{seq2seq_forward.4} parent=1 // loop_footer
      %s41 = sadd.s32 1, %s37
    $region7: #{seq2seq_forward.4} parent=1 // loop_footer_branch
      %36 = sbr.rel target = $region3
    $region8: #{seq2seq_forward.4} parent=1 // loop_exit
      _
    %3479 = vsyncpa [#allocation6], 1
    %s3480 = scalar_lea.sflag [#allocation6], 1
    %3481 = vsyncpa %s3480, 1
    %3482 = vsyncpa [#allocation8], 1
    %s3483 = scalar_lea.sflag [#allocation8], 1
    %3484 = vsyncpa %s3483, 1
    %3485 = vsyncpa [#allocation11], 1
    %s3486 = scalar_lea.sflag [#allocation11], 1
    %3487 = vsyncpa %s3486, 1
    %3488 = vsyncpa [#allocation14], 1
    %s3489 = scalar_lea.sflag [#allocation14], 1
    %3490 = vsyncpa %s3489, 1

</llo_original>
